<compile_context>
chip_gen: v6e
topology: v6e:2x2x1
jax: 0.10.0
libtpu: 0.0.40
codegen_flags: <defaults>
</compile_context>

<pallas_src>
import jax
import jax.numpy as jnp
from jax.experimental import pallas as pl
from jax.experimental.pallas import tpu as pltpu

NUM_CLASSES = 4
IMG_DIM = 1280
TXT_DIM = 768
PROJ_DIM = 750
HID_DIM = 1000
BN_EPS = 1e-5

# Lane-aligned (multiple-of-128) padded dims.
P_PAD = 768      # 750 -> 768
H_PAD = 1024     # 1000 -> 1024
OUT_PAD = 128    # 4 -> 128 (sliced back to NUM_CLASSES outside the kernel)


def _round_up(x, m):
    return ((x + m - 1) // m) * m


def fusion_head_kernel(img_ref, txt_ref,
                       w_img_ref, b_img_ref,
                       w_txt_ref, b_txt_ref,
                       w1i_ref, w1t_ref, b1_ref,
                       w2_ref, b2_ref,
                       out_ref):
    # Image branch: Linear(1280->750) with BatchNorm folded into (w, b).
    # bf16 operands on the MXU, f32 accumulation, f32 bias add.
    img = jnp.dot(img_ref[...].astype(jnp.bfloat16), w_img_ref[...],
                  preferred_element_type=jnp.float32) + b_img_ref[...]

    # Text branch: Linear(768->750) with BatchNorm folded in.
    txt = jnp.dot(txt_ref[...].astype(jnp.bfloat16), w_txt_ref[...],
                  preferred_element_type=jnp.float32) + b_txt_ref[...]

    # Classifier: Dropout(0.3) is identity in eval mode.
    # concat([img, txt], dim=1) @ W1 == img @ W1[:750] + txt @ W1[750:]
    h = (jnp.dot(img.astype(jnp.bfloat16), w1i_ref[...],
                 preferred_element_type=jnp.float32)
         + jnp.dot(txt.astype(jnp.bfloat16), w1t_ref[...],
                   preferred_element_type=jnp.float32)
         + b1_ref[...])
    h = jnp.maximum(h, 0.0)  # ReLU

    out_ref[...] = (jnp.dot(h.astype(jnp.bfloat16), w2_ref[...],
                            preferred_element_type=jnp.float32)
                    + b2_ref[...])


def multimodal_classifier_head(img_feat, txt_feat, params):
    B = img_feat.shape[0]

    # Batch tile: 256 for MXU-sized batches (v6e/v7x), 128 otherwise;
    # shrink to the sublane-rounded batch for tiny B.
    if B >= 256:
        tm = 256
    else:
        tm = min(128, _round_up(B, 8))
    b_pad = _round_up(B, tm)
    if b_pad != B:
        img_feat = jnp.pad(img_feat, ((0, b_pad - B), (0, 0)))
        txt_feat = jnp.pad(txt_feat, ((0, b_pad - B), (0, 0)))

    grid = (b_pad // tm,)

    def act_spec(d):
        return pl.BlockSpec((tm, d), lambda i: (i, 0))

    def w_spec(shape):
        # Constant block index -> weights stay VMEM-resident across the grid.
        return pl.BlockSpec(shape, lambda i: (0, 0))

    in_specs = [act_spec(IMG_DIM), act_spec(TXT_DIM)]
    in_specs += [w_spec(p.shape) for p in params]

    flops = 2 * b_pad * (IMG_DIM * P_PAD + TXT_DIM * P_PAD
                         + 2 * P_PAD * H_PAD + H_PAD * OUT_PAD)
    bytes_accessed = int(
        sum(int(p.size) * p.dtype.itemsize for p in params)
        + img_feat.size * 4 + txt_feat.size * 4 + b_pad * OUT_PAD * 4)

    out = pl.pallas_call(
        fusion_head_kernel,
        out_shape=jax.ShapeDtypeStruct((b_pad, OUT_PAD), jnp.float32),
        grid=grid,
        in_specs=in_specs,
        out_specs=pl.BlockSpec((tm, OUT_PAD), lambda i: (i, 0)),
        compiler_params=pltpu.CompilerParams(
            dimension_semantics=("parallel",),
            vmem_limit_bytes=32 << 20),
        cost_estimate=pl.CostEstimate(flops=flops, transcendentals=0,
                                      bytes_accessed=bytes_accessed),
    )(img_feat, txt_feat, *params)

    return out[:B, :NUM_CLASSES]


def init_params(key):
    """Deterministic 'PyTorch-like' parameters (unfolded, unpadded, f32)."""
    ks = jax.random.split(key, 12)

    def lin(kw, kb, fan_in, fan_out):
        bound = 1.0 / jnp.sqrt(fan_in)
        w = jax.random.uniform(kw, (fan_in, fan_out), jnp.float32, -bound, bound)
        b = jax.random.uniform(kb, (fan_out,), jnp.float32, -bound, bound)
        return w, b

    w_img, b_img = lin(ks[0], ks[1], IMG_DIM, PROJ_DIM)
    w_txt, b_txt = lin(ks[2], ks[3], TXT_DIM, PROJ_DIM)

    def bn_stats(km, kv):
        gamma = jnp.ones((PROJ_DIM,), jnp.float32)
        beta = jnp.zeros((PROJ_DIM,), jnp.float32)
        mean = 0.1 * jax.random.normal(km, (PROJ_DIM,), jnp.float32)
        var = 1.0 + 0.1 * jax.random.uniform(kv, (PROJ_DIM,), jnp.float32)
        return gamma, beta, mean, var

    bn_img = bn_stats(ks[4], ks[5])
    bn_txt = bn_stats(ks[6], ks[7])

    w1, b1 = lin(ks[8], ks[9], 2 * PROJ_DIM, HID_DIM)
    w2, b2 = lin(ks[10], ks[11], HID_DIM, NUM_CLASSES)

    return dict(w_img=w_img, b_img=b_img, bn_img=bn_img,
                w_txt=w_txt, b_txt=b_txt, bn_txt=bn_txt,
                w1=w1, b1=b1, w2=w2, b2=b2)


def prepare_kernel_params(raw):
    """Host-side prep: fold eval-mode BatchNorm into the preceding Linear,
    zero-pad to lane-aligned dims, split the concat matmul, cast weights to
    bf16 (biases stay f32)."""

    def fold(w, b, bn):
        gamma, beta, mean, var = bn
        scale = gamma / jnp.sqrt(var + BN_EPS)           # (PROJ_DIM,)
        shift = beta - mean * scale
        return w * scale[None, :], b * scale + shift

    wi, bi = fold(raw["w_img"], raw["b_img"], raw["bn_img"])
    wt, bt = fold(raw["w_txt"], raw["b_txt"], raw["bn_txt"])

    def pad2(x, r, c):
        return jnp.pad(x, ((0, r - x.shape[0]), (0, c - x.shape[1])))

    def pad_row(x, c):
        return jnp.pad(x, (0, c - x.shape[0]))[None, :]

    w_img = pad2(wi, IMG_DIM, P_PAD).astype(jnp.bfloat16)
    b_img = pad_row(bi, P_PAD)
    w_txt = pad2(wt, TXT_DIM, P_PAD).astype(jnp.bfloat16)
    b_txt = pad_row(bt, P_PAD)

    w1 = raw["w1"]
    w1i = pad2(w1[:PROJ_DIM], P_PAD, H_PAD).astype(jnp.bfloat16)
    w1t = pad2(w1[PROJ_DIM:], P_PAD, H_PAD).astype(jnp.bfloat16)
    b1 = pad_row(raw["b1"], H_PAD)

    w2 = pad2(raw["w2"], H_PAD, OUT_PAD).astype(jnp.bfloat16)
    b2 = pad_row(raw["b2"], OUT_PAD)

    return (w_img, b_img, w_txt, b_txt, w1i, w1t, b1, w2, b2)


def reference_head(img, txt, raw):
    """Plain-JAX f32 reference of the module's own layers (eval mode)."""
    def bn(x, bnp):
        g, beta, m, v = bnp
        return (x - m) / jnp.sqrt(v + BN_EPS) * g + beta

    i = bn(img @ raw["w_img"] + raw["b_img"], raw["bn_img"])
    t = bn(txt @ raw["w_txt"] + raw["b_txt"], raw["bn_txt"])
    fused = jnp.concatenate([i, t], axis=1)
    h = jnp.maximum(fused @ raw["w1"] + raw["b1"], 0.0)
    return h @ raw["w2"] + raw["b2"]


if __name__ == "__main__":
    key = jax.random.PRNGKey(0)
    k_img, k_txt, k_par = jax.random.split(key, 3)

    B = 8
    # Stand-ins for MobileNetV2 / DistilBERT pooled feature vectors.
    img_feat = jax.random.normal(k_img, (B, IMG_DIM), jnp.float32)
    txt_feat = jax.random.normal(k_txt, (B, TXT_DIM), jnp.float32)

    raw = init_params(k_par)
    params = prepare_kernel_params(raw)

    logits = multimodal_classifier_head(img_feat, txt_feat, params)
    logits = jax.block_until_ready(logits)

    expect = reference_head(img_feat, txt_feat, raw)

    assert logits.shape == (B, NUM_CLASSES)
    assert jnp.all(jnp.isfinite(logits))
    rel_err = jnp.max(jnp.abs(logits - expect)) / (jnp.max(jnp.abs(expect)) + 1e-6)
    assert rel_err < 5e-2, f"relative error too large: {rel_err}"
    print("KERNEL_OK")
</pallas_src>

<mosaic_0001>
module attributes {stable_mosaic.version = 11 : i64} {
  func.func @fusion_head_kernel(%arg0: i32, %arg1: memref<8x1280xf32, #tpu.memory_space<vmem>>, %arg2: memref<8x768xf32, #tpu.memory_space<vmem>>, %arg3: memref<1280x768xbf16, #tpu.memory_space<vmem>>, %arg4: memref<1x768xf32, #tpu.memory_space<vmem>>, %arg5: memref<768x768xbf16, #tpu.memory_space<vmem>>, %arg6: memref<1x768xf32, #tpu.memory_space<vmem>>, %arg7: memref<768x1024xbf16, #tpu.memory_space<vmem>>, %arg8: memref<768x1024xbf16, #tpu.memory_space<vmem>>, %arg9: memref<1x1024xf32, #tpu.memory_space<vmem>>, %arg10: memref<1024x128xbf16, #tpu.memory_space<vmem>>, %arg11: memref<1x128xf32, #tpu.memory_space<vmem>>, %arg12: memref<8x128xf32, #tpu.memory_space<vmem>>) attributes {dimension_semantics = [#tpu.dimension_semantics<parallel>], iteration_bounds = array<i64: 1>, scalar_prefetch = 0 : i64, scratch_operands = 0 : i64, tpu.core_type = #tpu.core_type<tc>, window_params = [{transform_indices = @transform_0, window_bounds = array<i64: 8, 1280>}, {transform_indices = @transform_1, window_bounds = array<i64: 8, 768>}, {pipeline_mode = #tpu.pipeline_mode<synchronous>, transform_indices = @transform_2, window_bounds = array<i64: 1280, 768>}, {pipeline_mode = #tpu.pipeline_mode<synchronous>, transform_indices = @transform_3, window_bounds = array<i64: 1, 768>}, {pipeline_mode = #tpu.pipeline_mode<synchronous>, transform_indices = @transform_4, window_bounds = array<i64: 768, 768>}, {pipeline_mode = #tpu.pipeline_mode<synchronous>, transform_indices = @transform_5, window_bounds = array<i64: 1, 768>}, {pipeline_mode = #tpu.pipeline_mode<synchronous>, transform_indices = @transform_6, window_bounds = array<i64: 768, 1024>}, {pipeline_mode = #tpu.pipeline_mode<synchronous>, transform_indices = @transform_7, window_bounds = array<i64: 768, 1024>}, {pipeline_mode = #tpu.pipeline_mode<synchronous>, transform_indices = @transform_8, window_bounds = array<i64: 1, 1024>}, {pipeline_mode = #tpu.pipeline_mode<synchronous>, transform_indices = @transform_9, window_bounds = array<i64: 1024, 128>}, {pipeline_mode = #tpu.pipeline_mode<synchronous>, transform_indices = @transform_10, window_bounds = array<i64: 1, 128>}, {transform_indices = @transform_11, window_bounds = array<i64: 8, 128>}]} {
    %c0 = arith.constant 0 : index
    %c0_0 = arith.constant 0 : index
    %0 = vector.load %arg1[%c0, %c0_0] : memref<8x1280xf32, #tpu.memory_space<vmem>>, vector<8x1280xf32>
    %1 = arith.truncf %0 : vector<8x1280xf32> to vector<8x1280xbf16>
    %c0_1 = arith.constant 0 : index
    %c0_2 = arith.constant 0 : index
    %2 = vector.load %arg3[%c0_1, %c0_2] : memref<1280x768xbf16, #tpu.memory_space<vmem>>, vector<1280x768xbf16>
    %cst = arith.constant dense<0.000000e+00> : vector<8x768xf32>
    %3 = tpu.matmul %1, %2, %cst {dimension_numbers = #tpu.dot_dimension_numbers<[1], [0], [0], [1], [0, 0, 1, 1], [], []>} : vector<8x1280xbf16>, vector<1280x768xbf16>, vector<8x768xf32> -> vector<8x768xf32>
    %c0_3 = arith.constant 0 : index
    %c0_4 = arith.constant 0 : index
    %4 = vector.load %arg4[%c0_3, %c0_4] : memref<1x768xf32, #tpu.memory_space<vmem>>, vector<1x768xf32>
    %5 = vector.broadcast %4 : vector<1x768xf32> to vector<8x768xf32>
    %6 = arith.addf %3, %5 : vector<8x768xf32>
    %c0_5 = arith.constant 0 : index
    %c0_6 = arith.constant 0 : index
    %7 = vector.load %arg2[%c0_5, %c0_6] : memref<8x768xf32, #tpu.memory_space<vmem>>, vector<8x768xf32>
    %8 = arith.truncf %7 : vector<8x768xf32> to vector<8x768xbf16>
    %c0_7 = arith.constant 0 : index
    %c0_8 = arith.constant 0 : index
    %9 = vector.load %arg5[%c0_7, %c0_8] : memref<768x768xbf16, #tpu.memory_space<vmem>>, vector<768x768xbf16>
    %cst_9 = arith.constant dense<0.000000e+00> : vector<8x768xf32>
    %10 = tpu.matmul %8, %9, %cst_9 {dimension_numbers = #tpu.dot_dimension_numbers<[1], [0], [0], [1], [0, 0, 1, 1], [], []>} : vector<8x768xbf16>, vector<768x768xbf16>, vector<8x768xf32> -> vector<8x768xf32>
    %c0_10 = arith.constant 0 : index
    %c0_11 = arith.constant 0 : index
    %11 = vector.load %arg6[%c0_10, %c0_11] : memref<1x768xf32, #tpu.memory_space<vmem>>, vector<1x768xf32>
    %12 = vector.broadcast %11 : vector<1x768xf32> to vector<8x768xf32>
    %13 = arith.addf %10, %12 : vector<8x768xf32>
    %14 = arith.truncf %6 : vector<8x768xf32> to vector<8x768xbf16>
    %c0_12 = arith.constant 0 : index
    %c0_13 = arith.constant 0 : index
    %15 = vector.load %arg7[%c0_12, %c0_13] : memref<768x1024xbf16, #tpu.memory_space<vmem>>, vector<768x1024xbf16>
    %cst_14 = arith.constant dense<0.000000e+00> : vector<8x1024xf32>
    %16 = tpu.matmul %14, %15, %cst_14 {dimension_numbers = #tpu.dot_dimension_numbers<[1], [0], [0], [1], [0, 0, 1, 1], [], []>} : vector<8x768xbf16>, vector<768x1024xbf16>, vector<8x1024xf32> -> vector<8x1024xf32>
    %17 = arith.truncf %13 : vector<8x768xf32> to vector<8x768xbf16>
    %c0_15 = arith.constant 0 : index
    %c0_16 = arith.constant 0 : index
    %18 = vector.load %arg8[%c0_15, %c0_16] : memref<768x1024xbf16, #tpu.memory_space<vmem>>, vector<768x1024xbf16>
    %cst_17 = arith.constant dense<0.000000e+00> : vector<8x1024xf32>
    %19 = tpu.matmul %17, %18, %cst_17 {dimension_numbers = #tpu.dot_dimension_numbers<[1], [0], [0], [1], [0, 0, 1, 1], [], []>} : vector<8x768xbf16>, vector<768x1024xbf16>, vector<8x1024xf32> -> vector<8x1024xf32>
    %20 = arith.addf %16, %19 : vector<8x1024xf32>
    %c0_18 = arith.constant 0 : index
    %c0_19 = arith.constant 0 : index
    %21 = vector.load %arg9[%c0_18, %c0_19] : memref<1x1024xf32, #tpu.memory_space<vmem>>, vector<1x1024xf32>
    %22 = vector.broadcast %21 : vector<1x1024xf32> to vector<8x1024xf32>
    %23 = arith.addf %20, %22 : vector<8x1024xf32>
    %cst_20 = arith.constant 0.000000e+00 : f32
    %24 = vector.broadcast %cst_20 : f32 to vector<8x1024xf32>
    %25 = arith.maximumf %23, %24 : vector<8x1024xf32>
    %26 = arith.truncf %25 : vector<8x1024xf32> to vector<8x1024xbf16>
    %c0_21 = arith.constant 0 : index
    %c0_22 = arith.constant 0 : index
    %27 = vector.load %arg10[%c0_21, %c0_22] : memref<1024x128xbf16, #tpu.memory_space<vmem>>, vector<1024x128xbf16>
    %cst_23 = arith.constant dense<0.000000e+00> : vector<8x128xf32>
    %28 = tpu.matmul %26, %27, %cst_23 {dimension_numbers = #tpu.dot_dimension_numbers<[1], [0], [0], [1], [0, 0, 1, 1], [], []>} : vector<8x1024xbf16>, vector<1024x128xbf16>, vector<8x128xf32> -> vector<8x128xf32>
    %c0_24 = arith.constant 0 : index
    %c0_25 = arith.constant 0 : index
    %29 = vector.load %arg11[%c0_24, %c0_25] : memref<1x128xf32, #tpu.memory_space<vmem>>, vector<1x128xf32>
    %30 = vector.broadcast %29 : vector<1x128xf32> to vector<8x128xf32>
    %31 = arith.addf %28, %30 : vector<8x128xf32>
    %c0_26 = arith.constant 0 : index
    %c0_27 = arith.constant 0 : index
    %32 = vector.load %arg12[%c0_26, %c0_27] : memref<8x128xf32, #tpu.memory_space<vmem>>, vector<8x128xf32>
    tpu.vector_store %arg12[%c0_26, %c0_27], %31 {strides = array<i32>} : memref<8x128xf32, #tpu.memory_space<vmem>>, vector<8x128xf32>,
    return
  }
  func.func @transform_0(%arg0: i32) -> (i32, i32) {
    %c0_i32 = arith.constant 0 : i32
    %c0_i32_0 = arith.constant 0 : i32
    return %arg0, %c0_i32 : i32, i32
  }
  func.func @transform_1(%arg0: i32) -> (i32, i32) {
    %c0_i32 = arith.constant 0 : i32
    %c0_i32_0 = arith.constant 0 : i32
    return %arg0, %c0_i32 : i32, i32
  }
  func.func @transform_2(%arg0: i32) -> (i32, i32) {
    %c0_i32 = arith.constant 0 : i32
    %c0_i32_0 = arith.constant 0 : i32
    %c0_i32_1 = arith.constant 0 : i32
    return %c0_i32, %c0_i32_0 : i32, i32
  }
  func.func @transform_3(%arg0: i32) -> (i32, i32) {
    %c0_i32 = arith.constant 0 : i32
    %c0_i32_0 = arith.constant 0 : i32
    %c0_i32_1 = arith.constant 0 : i32
    return %c0_i32, %c0_i32_0 : i32, i32
  }
  func.func @transform_4(%arg0: i32) -> (i32, i32) {
    %c0_i32 = arith.constant 0 : i32
    %c0_i32_0 = arith.constant 0 : i32
    %c0_i32_1 = arith.constant 0 : i32
    return %c0_i32, %c0_i32_0 : i32, i32
  }
  func.func @transform_5(%arg0: i32) -> (i32, i32) {
    %c0_i32 = arith.constant 0 : i32
    %c0_i32_0 = arith.constant 0 : i32
    %c0_i32_1 = arith.constant 0 : i32
    return %c0_i32, %c0_i32_0 : i32, i32
  }
  func.func @transform_6(%arg0: i32) -> (i32, i32) {
    %c0_i32 = arith.constant 0 : i32
    %c0_i32_0 = arith.constant 0 : i32
    %c0_i32_1 = arith.constant 0 : i32
    return %c0_i32, %c0_i32_0 : i32, i32
  }
  func.func @transform_7(%arg0: i32) -> (i32, i32) {
    %c0_i32 = arith.constant 0 : i32
    %c0_i32_0 = arith.constant 0 : i32
    %c0_i32_1 = arith.constant 0 : i32
    return %c0_i32, %c0_i32_0 : i32, i32
  }
  func.func @transform_8(%arg0: i32) -> (i32, i32) {
    %c0_i32 = arith.constant 0 : i32
    %c0_i32_0 = arith.constant 0 : i32
    %c0_i32_1 = arith.constant 0 : i32
    return %c0_i32, %c0_i32_0 : i32, i32
  }
  func.func @transform_9(%arg0: i32) -> (i32, i32) {
    %c0_i32 = arith.constant 0 : i32
    %c0_i32_0 = arith.constant 0 : i32
    %c0_i32_1 = arith.constant 0 : i32
    return %c0_i32, %c0_i32_0 : i32, i32
  }
  func.func @transform_10(%arg0: i32) -> (i32, i32) {
    %c0_i32 = arith.constant 0 : i32
    %c0_i32_0 = arith.constant 0 : i32
    %c0_i32_1 = arith.constant 0 : i32
    return %c0_i32, %c0_i32_0 : i32, i32
  }
  func.func @transform_11(%arg0: i32) -> (i32, i32) {
    %c0_i32 = arith.constant 0 : i32
    %c0_i32_0 = arith.constant 0 : i32
    return %arg0, %c0_i32 : i32, i32
  }
}

</mosaic_0001>

<llo_original>
// kernel: tpu_custom_call.1
$region0: #{tpu_custom_call.1}
  #allocation0 [shape = 'u32[]', space=smem, size = 0x4, offset = 0x4, fixed_abs, tag = 'smem constant byte address 0x4 - core index']
  #allocation1 [shape = 'u32[144,128]{1,0:T(1,128)}', space=vmem, size = 0x12000, scoped, tag = 'internal scratch']
  %s0 = inlined_call_operand.hbm [shape: f32[8,1280], index: 0, kind: input, shape index: {}]
  %s1 = inlined_call_operand.hbm [shape: f32[8,768], index: 1, kind: input, shape index: {}]
  %s2 = inlined_call_operand.hbm [shape: bf16[1280,768], index: 2, kind: input, shape index: {}]
  %s3 = inlined_call_operand.hbm [shape: f32[1,768], index: 3, kind: input, shape index: {}]
  %s4 = inlined_call_operand.hbm [shape: bf16[768,768], index: 4, kind: input, shape index: {}]
  %s5 = inlined_call_operand.hbm [shape: f32[1,768], index: 5, kind: input, shape index: {}]
  %s6 = inlined_call_operand.hbm [shape: bf16[768,1024], index: 6, kind: input, shape index: {}]
  %s7 = inlined_call_operand.hbm [shape: bf16[768,1024], index: 7, kind: input, shape index: {}]
  %s8 = inlined_call_operand.hbm [shape: f32[1,1024], index: 8, kind: input, shape index: {}]
  %s9 = inlined_call_operand.hbm [shape: bf16[1024,128], index: 9, kind: input, shape index: {}]
  %s10 = inlined_call_operand.hbm [shape: f32[1,128], index: 10, kind: input, shape index: {}]
  %s11 = inlined_call_operand.hbm [shape: f32[8,128], index: 11, kind: output, shape index: {}]
  %s12 = sld [smem:[#allocation0]]
  $region98: #{tpu_custom_call.1} parent=0
    _
  %s14 = ssub.s32 1, %s12
  %s15 = scalar_select 0, %s14, %s12
  $region1: #{tpu_custom_call.1} parent=0
    #allocation2 [shape = 'u8[40960]{0}', space=vmem, size = 0xa000, scoped, tag = 'input window, operand 0, single buffered']
    #allocation3 [shape = 's32[1]{0}', space=sflag, size = 0x4, scoped, tag = 'scoped memory for tpu_custom_call.1']
    #allocation4 [shape = 's32[1]{0}', space=sflag, size = 0x4, scoped, tag = 'scoped memory for tpu_custom_call.1']
    #allocation5 [shape = 'u8[24576]{0}', space=vmem, size = 0x6000, scoped, tag = 'input window, operand 1, single buffered']
    #allocation6 [shape = 's32[1]{0}', space=sflag, size = 0x4, scoped, tag = 'scoped memory for tpu_custom_call.1']
    #allocation7 [shape = 'u8[1966080]{0}', space=vmem, size = 0x1e0000, scoped, tag = 'input window, operand 2, single buffered']
    #allocation8 [shape = 'u8[3072]{0}', space=vmem, size = 0xc00, scoped, tag = 'input window, operand 3, single buffered']
    #allocation9 [shape = 's32[1]{0}', space=sflag, size = 0x4, scoped, tag = 'scoped memory for tpu_custom_call.1']
    #allocation10 [shape = 'u8[1179648]{0}', space=vmem, size = 0x120000, scoped, tag = 'input window, operand 4, single buffered']
    #allocation11 [shape = 'u8[3072]{0}', space=vmem, size = 0xc00, scoped, tag = 'input window, operand 5, single buffered']
    #allocation12 [shape = 's32[1]{0}', space=sflag, size = 0x4, scoped, tag = 'scoped memory for tpu_custom_call.1']
    #allocation13 [shape = 'u8[1572864]{0}', space=vmem, size = 0x180000, scoped, tag = 'input window, operand 6, single buffered']
    #allocation14 [shape = 'u8[1572864]{0}', space=vmem, size = 0x180000, scoped, tag = 'input window, operand 7, single buffered']
    #allocation15 [shape = 's32[1]{0}', space=sflag, size = 0x4, scoped, tag = 'scoped memory for tpu_custom_call.1']
    #allocation16 [shape = 'u8[4096]{0}', space=vmem, size = 0x1000, scoped, tag = 'input window, operand 8, single buffered']
    #allocation17 [shape = 'u8[262144]{0}', space=vmem, size = 0x40000, scoped, tag = 'input window, operand 9, single buffered']
    #allocation18 [shape = 's32[1]{0}', space=sflag, size = 0x4, scoped, tag = 'scoped memory for tpu_custom_call.1']
    #allocation19 [shape = 'u8[512]{0}', space=vmem, size = 0x400, scoped, tag = 'input window, operand 10, single buffered']
    #allocation20 [shape = 'u8[4096]{0}', space=vmem, size = 0x1000, scoped, tag = 'output window, operand 0, single buffered']
    %16 = vsyncpa [#allocation3], 0
    %17 = vsyncpa [#allocation6], 0
    %18 = vsyncpa [#allocation9], 0
    %19 = vsyncpa [#allocation12], 0
    %20 = vsyncpa [#allocation15], 0
    %21 = vsyncpa [#allocation18], 0
    %22 = vsyncpa [#allocation4], 0
    // Predicated region
    $region2: #{tpu_custom_call.1} parent=1 // pred_check
      _
    $region3: #{tpu_custom_call.1} parent=1 // pred_check_branch
      %24 = sbr.rel (0) target = $region5
    $region4: #{tpu_custom_call.1} parent=1 // pred_region
      %s26 = ssub.s32 1280, 1280
      %27 = vsyncadd [#allocation3], %s26
      %s29 = sshll.u32 [#allocation2], 4
      %s30 = int_to_ptr.vmem [resolvable:$true] %s29
      %32 = dma.hbm_to_vmem [thread:$0]  %s0, 1280, %s30, [#allocation3]
    $region5: #{tpu_custom_call.1} parent=1 // pred_fallthru
      _
    // Predicated region
    $region6: #{tpu_custom_call.1} parent=1 // pred_check
      _
    $region7: #{tpu_custom_call.1} parent=1 // pred_check_branch
      %34 = sbr.rel (0) target = $region9
    $region8: #{tpu_custom_call.1} parent=1 // pred_region
      %s36 = ssub.s32 768, 768
      %37 = vsyncadd [#allocation6], %s36
      %s39 = sshll.u32 [#allocation5], 4
      %s40 = int_to_ptr.vmem [resolvable:$true] %s39
      %42 = dma.hbm_to_vmem [thread:$0]  %s1, 768, %s40, [#allocation6]
    $region9: #{tpu_custom_call.1} parent=1 // pred_fallthru
      _
    // Predicated region
    $region10: #{tpu_custom_call.1} parent=1 // pred_check
      _
    $region11: #{tpu_custom_call.1} parent=1 // pred_check_branch
      %44 = sbr.rel (0) target = $region13
    $region12: #{tpu_custom_call.1} parent=1 // pred_region
      %s46 = ssub.s32 61440, 61440
      %47 = vsyncadd [#allocation6], %s46
      %s48 = sshll.u32 [#allocation7], 4
      %s49 = int_to_ptr.vmem [resolvable:$true] %s48
      %54 = dma.hbm_to_vmem [thread:$0]  %s2, 61440, %s49, [#allocation6], 384, 384, 24
    $region13: #{tpu_custom_call.1} parent=1 // pred_fallthru
      _
    // Predicated region
    $region14: #{tpu_custom_call.1} parent=1 // pred_check
      _
    $region15: #{tpu_custom_call.1} parent=1 // pred_check_branch
      %56 = sbr.rel (0) target = $region17
    $region16: #{tpu_custom_call.1} parent=1 // pred_region
      %s58 = ssub.s32 96, 96
      %59 = vsyncadd [#allocation9], %s58
      %s61 = sshll.u32 [#allocation8], 4
      %s62 = int_to_ptr.vmem [resolvable:$true] %s61
      %64 = dma.hbm_to_vmem [thread:$0]  %s3, 96, %s62, [#allocation9]
    $region17: #{tpu_custom_call.1} parent=1 // pred_fallthru
      _
    // Predicated region
    $region18: #{tpu_custom_call.1} parent=1 // pred_check
      _
    $region19: #{tpu_custom_call.1} parent=1 // pred_check_branch
      %66 = sbr.rel (0) target = $region21
    $region20: #{tpu_custom_call.1} parent=1 // pred_region
      %s68 = ssub.s32 36864, 36864
      %69 = vsyncadd [#allocation9], %s68
      %s70 = sshll.u32 [#allocation10], 4
      %s71 = int_to_ptr.vmem [resolvable:$true] %s70
      %76 = dma.hbm_to_vmem [thread:$0]  %s4, 36864, %s71, [#allocation9], 384, 384, 24
    $region21: #{tpu_custom_call.1} parent=1 // pred_fallthru
      _
    // Predicated region
    $region22: #{tpu_custom_call.1} parent=1 // pred_check
      _
    $region23: #{tpu_custom_call.1} parent=1 // pred_check_branch
      %78 = sbr.rel (0) target = $region25
    $region24: #{tpu_custom_call.1} parent=1 // pred_region
      %s80 = ssub.s32 96, 96
      %81 = vsyncadd [#allocation12], %s80
      %s83 = sshll.u32 [#allocation11], 4
      %s84 = int_to_ptr.vmem [resolvable:$true] %s83
      %86 = dma.hbm_to_vmem [thread:$0]  %s5, 96, %s84, [#allocation12]
    $region25: #{tpu_custom_call.1} parent=1 // pred_fallthru
      _
    // Predicated region
    $region26: #{tpu_custom_call.1} parent=1 // pred_check
      _
    $region27: #{tpu_custom_call.1} parent=1 // pred_check_branch
      %88 = sbr.rel (0) target = $region29
    $region28: #{tpu_custom_call.1} parent=1 // pred_region
      %s90 = ssub.s32 49152, 49152
      %91 = vsyncadd [#allocation12], %s90
      %s92 = sshll.u32 [#allocation13], 4
      %s93 = int_to_ptr.vmem [resolvable:$true] %s92
      %98 = dma.hbm_to_vmem [thread:$0]  %s6, 49152, %s93, [#allocation12], 512, 512, 32
    $region29: #{tpu_custom_call.1} parent=1 // pred_fallthru
      _
    // Predicated region
    $region30: #{tpu_custom_call.1} parent=1 // pred_check
      _
    $region31: #{tpu_custom_call.1} parent=1 // pred_check_branch
      %100 = sbr.rel (0) target = $region33
    $region32: #{tpu_custom_call.1} parent=1 // pred_region
      %s102 = ssub.s32 49152, 49152
      %103 = vsyncadd [#allocation15], %s102
      %s104 = sshll.u32 [#allocation14], 4
      %s105 = int_to_ptr.vmem [resolvable:$true] %s104
      %110 = dma.hbm_to_vmem [thread:$0]  %s7, 49152, %s105, [#allocation15], 512, 512, 32
    $region33: #{tpu_custom_call.1} parent=1 // pred_fallthru
      _
    // Predicated region
    $region34: #{tpu_custom_call.1} parent=1 // pred_check
      _
    $region35: #{tpu_custom_call.1} parent=1 // pred_check_branch
      %112 = sbr.rel (0) target = $region37
    $region36: #{tpu_custom_call.1} parent=1 // pred_region
      %s114 = ssub.s32 128, 128
      %115 = vsyncadd [#allocation15], %s114
      %s117 = sshll.u32 [#allocation16], 4
      %s118 = int_to_ptr.vmem [resolvable:$true] %s117
      %120 = dma.hbm_to_vmem [thread:$0]  %s8, 128, %s118, [#allocation15]
    $region37: #{tpu_custom_call.1} parent=1 // pred_fallthru
      _
    // Predicated region
    $region38: #{tpu_custom_call.1} parent=1 // pred_check
      _
    $region39: #{tpu_custom_call.1} parent=1 // pred_check_branch
      %122 = sbr.rel (0) target = $region41
    $region40: #{tpu_custom_call.1} parent=1 // pred_region
      %s124 = ssub.s32 8192, 8192
      %125 = vsyncadd [#allocation18], %s124
      %s126 = sshll.u32 [#allocation17], 4
      %s127 = int_to_ptr.vmem [resolvable:$true] %s126
      %132 = dma.hbm_to_vmem [thread:$0]  %s9, 8192, %s127, [#allocation18], 64, 64, 4
    $region41: #{tpu_custom_call.1} parent=1 // pred_fallthru
      _
    // Predicated region
    $region42: #{tpu_custom_call.1} parent=1 // pred_check
      _
    $region43: #{tpu_custom_call.1} parent=1 // pred_check_branch
      %134 = sbr.rel (0) target = $region45
    $region44: #{tpu_custom_call.1} parent=1 // pred_region
      %s136 = ssub.s32 16, 16
      %137 = vsyncadd [#allocation18], %s136
      %s139 = sshll.u32 [#allocation19], 4
      %s140 = int_to_ptr.vmem [resolvable:$true] %s139
      %142 = dma.hbm_to_vmem [thread:$0]  %s10, 16, %s140, [#allocation18]
    $region45: #{tpu_custom_call.1} parent=1 // pred_fallthru
      _
    // Predicated region
    $region46: #{tpu_custom_call.1} parent=1 // pred_check
      _
    $region47: #{tpu_custom_call.1} parent=1 // pred_check_branch
      %144 = sbr.rel (0) target = $region49
    $region48: #{tpu_custom_call.1} parent=1 // pred_region
      %145 = dma.done [#allocation3], 1280
    $region49: #{tpu_custom_call.1} parent=1 // pred_fallthru
      _
    // Predicated region
    $region50: #{tpu_custom_call.1} parent=1 // pred_check
      _
    $region51: #{tpu_custom_call.1} parent=1 // pred_check_branch
      %147 = sbr.rel (0) target = $region53
    $region52: #{tpu_custom_call.1} parent=1 // pred_region
      %148 = dma.done [#allocation6], 768
    $region53: #{tpu_custom_call.1} parent=1 // pred_fallthru
      _
    // Predicated region
    $region54: #{tpu_custom_call.1} parent=1 // pred_check
      _
    $region55: #{tpu_custom_call.1} parent=1 // pred_check_branch
      %150 = sbr.rel (0) target = $region57
    $region56: #{tpu_custom_call.1} parent=1 // pred_region
      %151 = dma.done [#allocation6], 61440
    $region57: #{tpu_custom_call.1} parent=1 // pred_fallthru
      _
    // Predicated region
    $region58: #{tpu_custom_call.1} parent=1 // pred_check
      _
    $region59: #{tpu_custom_call.1} parent=1 // pred_check_branch
      %153 = sbr.rel (0) target = $region61
    $region60: #{tpu_custom_call.1} parent=1 // pred_region
      %154 = dma.done [#allocation9], 96
    $region61: #{tpu_custom_call.1} parent=1 // pred_fallthru
      _
    // Predicated region
    $region62: #{tpu_custom_call.1} parent=1 // pred_check
      _
    $region63: #{tpu_custom_call.1} parent=1 // pred_check_branch
      %156 = sbr.rel (0) target = $region65
    $region64: #{tpu_custom_call.1} parent=1 // pred_region
      %157 = dma.done [#allocation9], 36864
    $region65: #{tpu_custom_call.1} parent=1 // pred_fallthru
      _
    // Predicated region
    $region66: #{tpu_custom_call.1} parent=1 // pred_check
      _
    $region67: #{tpu_custom_call.1} parent=1 // pred_check_branch
      %159 = sbr.rel (0) target = $region69
    $region68: #{tpu_custom_call.1} parent=1 // pred_region
      %160 = dma.done [#allocation12], 96
    $region69: #{tpu_custom_call.1} parent=1 // pred_fallthru
      _
    // Predicated region
    $region70: #{tpu_custom_call.1} parent=1 // pred_check
      _
    $region71: #{tpu_custom_call.1} parent=1 // pred_check_branch
      %162 = sbr.rel (0) target = $region73
    $region72: #{tpu_custom_call.1} parent=1 // pred_region
      %163 = dma.done [#allocation12], 49152
    $region73: #{tpu_custom_call.1} parent=1 // pred_fallthru
      _
    // Predicated region
    $region74: #{tpu_custom_call.1} parent=1 // pred_check
      _
    $region75: #{tpu_custom_call.1} parent=1 // pred_check_branch
      %165 = sbr.rel (0) target = $region77
    $region76: #{tpu_custom_call.1} parent=1 // pred_region
      %166 = dma.done [#allocation15], 49152
    $region77: #{tpu_custom_call.1} parent=1 // pred_fallthru
      _
    // Predicated region
    $region78: #{tpu_custom_call.1} parent=1 // pred_check
      _
    $region79: #{tpu_custom_call.1} parent=1 // pred_check_branch
      %168 = sbr.rel (0) target = $region81
    $region80: #{tpu_custom_call.1} parent=1 // pred_region
      %169 = dma.done [#allocation15], 128
    $region81: #{tpu_custom_call.1} parent=1 // pred_fallthru
      _
    // Predicated region
    $region82: #{tpu_custom_call.1} parent=1 // pred_check
      _
    $region83: #{tpu_custom_call.1} parent=1 // pred_check_branch
      %171 = sbr.rel (0) target = $region85
    $region84: #{tpu_custom_call.1} parent=1 // pred_region
      %172 = dma.done [#allocation18], 8192
    $region85: #{tpu_custom_call.1} parent=1 // pred_fallthru
      _
    // Predicated region
    $region86: #{tpu_custom_call.1} parent=1 // pred_check
      _
    $region87: #{tpu_custom_call.1} parent=1 // pred_check_branch
      %174 = sbr.rel (0) target = $region89
    $region88: #{tpu_custom_call.1} parent=1 // pred_region
      %175 = dma.done [#allocation18], 16
    $region89: #{tpu_custom_call.1} parent=1 // pred_fallthru
      _
    %v177 = vld [vmem:[#allocation2] sm:$0xff]
    %v178 = vld [vmem:[#allocation2 + $0x8] sm:$0xff]
    %v179 = vld [vmem:[#allocation2 + $0x10] sm:$0xff]
    %v180 = vld [vmem:[#allocation2 + $0x18] sm:$0xff]
    %v181 = vld [vmem:[#allocation2 + $0x20] sm:$0xff]
    %v182 = vld [vmem:[#allocation2 + $0x28] sm:$0xff]
    %v183 = vld [vmem:[#allocation2 + $0x30] sm:$0xff]
    %v184 = vld [vmem:[#allocation2 + $0x38] sm:$0xff]
    %v185 = vld [vmem:[#allocation2 + $0x40] sm:$0xff]
    %v186 = vld [vmem:[#allocation2 + $0x48] sm:$0xff]
    %v187 = vpack.c.bf16 %v177, %v177
    %v188 = vpack.c.bf16 %v178, %v178
    %v189 = vpack.c.bf16 %v179, %v179
    %v190 = vpack.c.bf16 %v180, %v180
    %v191 = vpack.c.bf16 %v181, %v181
    %v192 = vpack.c.bf16 %v182, %v182
    %v193 = vpack.c.bf16 %v183, %v183
    %v194 = vpack.c.bf16 %v184, %v184
    %v195 = vpack.c.bf16 %v185, %v185
    %v196 = vpack.c.bf16 %v186, %v186
    %v197 = vld [vmem:[#allocation7] sm:$0xff]
    %v198 = vld [vmem:[#allocation7 + $0x8] sm:$0xff]
    %v199 = vld [vmem:[#allocation7 + $0x10] sm:$0xff]
    %v200 = vld [vmem:[#allocation7 + $0x18] sm:$0xff]
    %v201 = vld [vmem:[#allocation7 + $0x20] sm:$0xff]
    %v202 = vld [vmem:[#allocation7 + $0x28] sm:$0xff]
    %v203 = vld [vmem:[#allocation7 + $0x30] sm:$0xff]
    %v204 = vld [vmem:[#allocation7 + $0x38] sm:$0xff]
    %v205 = vld [vmem:[#allocation7 + $0x40] sm:$0xff]
    %v206 = vld [vmem:[#allocation7 + $0x48] sm:$0xff]
    %v207 = vld [vmem:[#allocation7 + $0x50] sm:$0xff]
    %v208 = vld [vmem:[#allocation7 + $0x58] sm:$0xff]
    %v209 = vld [vmem:[#allocation7 + $0x60] sm:$0xff]
    %v210 = vld [vmem:[#allocation7 + $0x68] sm:$0xff]
    %v211 = vld [vmem:[#allocation7 + $0x70] sm:$0xff]
    %v212 = vld [vmem:[#allocation7 + $0x78] sm:$0xff]
    %v213 = vld [vmem:[#allocation7 + $0x80] sm:$0xff]
    %v214 = vld [vmem:[#allocation7 + $0x88] sm:$0xff]
    %v215 = vld [vmem:[#allocation7 + $0x90] sm:$0xff]
    %v216 = vld [vmem:[#allocation7 + $0x98] sm:$0xff]
    %v217 = vld [vmem:[#allocation7 + $0xa0] sm:$0xff]
    %v218 = vld [vmem:[#allocation7 + $0xa8] sm:$0xff]
    %v219 = vld [vmem:[#allocation7 + $0xb0] sm:$0xff]
    %v220 = vld [vmem:[#allocation7 + $0xb8] sm:$0xff]
    %v221 = vld [vmem:[#allocation7 + $0xc0] sm:$0xff]
    %v222 = vld [vmem:[#allocation7 + $0xc8] sm:$0xff]
    %v223 = vld [vmem:[#allocation7 + $0xd0] sm:$0xff]
    %v224 = vld [vmem:[#allocation7 + $0xd8] sm:$0xff]
    %v225 = vld [vmem:[#allocation7 + $0xe0] sm:$0xff]
    %v226 = vld [vmem:[#allocation7 + $0xe8] sm:$0xff]
    %v227 = vld [vmem:[#allocation7 + $0xf0] sm:$0xff]
    %v228 = vld [vmem:[#allocation7 + $0xf8] sm:$0xff]
    %v229 = vld [vmem:[#allocation7 + $0x100] sm:$0xff]
    %v230 = vld [vmem:[#allocation7 + $0x108] sm:$0xff]
    %v231 = vld [vmem:[#allocation7 + $0x110] sm:$0xff]
    %v232 = vld [vmem:[#allocation7 + $0x118] sm:$0xff]
    %v233 = vld [vmem:[#allocation7 + $0x120] sm:$0xff]
    %v234 = vld [vmem:[#allocation7 + $0x128] sm:$0xff]
    %v235 = vld [vmem:[#allocation7 + $0x130] sm:$0xff]
    %v236 = vld [vmem:[#allocation7 + $0x138] sm:$0xff]
    %v237 = vld [vmem:[#allocation7 + $0x140] sm:$0xff]
    %v238 = vld [vmem:[#allocation7 + $0x148] sm:$0xff]
    %v239 = vld [vmem:[#allocation7 + $0x150] sm:$0xff]
    %v240 = vld [vmem:[#allocation7 + $0x158] sm:$0xff]
    %v241 = vld [vmem:[#allocation7 + $0x160] sm:$0xff]
    %v242 = vld [vmem:[#allocation7 + $0x168] sm:$0xff]
    %v243 = vld [vmem:[#allocation7 + $0x170] sm:$0xff]
    %v244 = vld [vmem:[#allocation7 + $0x178] sm:$0xff]
    %v245 = vld [vmem:[#allocation7 + $0x180] sm:$0xff]
    %v246 = vld [vmem:[#allocation7 + $0x188] sm:$0xff]
    %v247 = vld [vmem:[#allocation7 + $0x190] sm:$0xff]
    %v248 = vld [vmem:[#allocation7 + $0x198] sm:$0xff]
    %v249 = vld [vmem:[#allocation7 + $0x1a0] sm:$0xff]
    %v250 = vld [vmem:[#allocation7 + $0x1a8] sm:$0xff]
    %v251 = vld [vmem:[#allocation7 + $0x1b0] sm:$0xff]
    %v252 = vld [vmem:[#allocation7 + $0x1b8] sm:$0xff]
    %v253 = vld [vmem:[#allocation7 + $0x1c0] sm:$0xff]
    %v254 = vld [vmem:[#allocation7 + $0x1c8] sm:$0xff]
    %v255 = vld [vmem:[#allocation7 + $0x1d0] sm:$0xff]
    %v256 = vld [vmem:[#allocation7 + $0x1d8] sm:$0xff]
    %v257 = vld [vmem:[#allocation7 + $0x1e0] sm:$0xff]
    %v258 = vld [vmem:[#allocation7 + $0x1e8] sm:$0xff]
    %v259 = vld [vmem:[#allocation7 + $0x1f0] sm:$0xff]
    %v260 = vld [vmem:[#allocation7 + $0x1f8] sm:$0xff]
    %v261 = vld [vmem:[#allocation7 + $0x200] sm:$0xff]
    %v262 = vld [vmem:[#allocation7 + $0x208] sm:$0xff]
    %v263 = vld [vmem:[#allocation7 + $0x210] sm:$0xff]
    %v264 = vld [vmem:[#allocation7 + $0x218] sm:$0xff]
    %v265 = vld [vmem:[#allocation7 + $0x220] sm:$0xff]
    %v266 = vld [vmem:[#allocation7 + $0x228] sm:$0xff]
    %v267 = vld [vmem:[#allocation7 + $0x230] sm:$0xff]
    %v268 = vld [vmem:[#allocation7 + $0x238] sm:$0xff]
    %v269 = vld [vmem:[#allocation7 + $0x240] sm:$0xff]
    %v270 = vld [vmem:[#allocation7 + $0x248] sm:$0xff]
    %v271 = vld [vmem:[#allocation7 + $0x250] sm:$0xff]
    %v272 = vld [vmem:[#allocation7 + $0x258] sm:$0xff]
    %v273 = vld [vmem:[#allocation7 + $0x260] sm:$0xff]
    %v274 = vld [vmem:[#allocation7 + $0x268] sm:$0xff]
    %v275 = vld [vmem:[#allocation7 + $0x270] sm:$0xff]
    %v276 = vld [vmem:[#allocation7 + $0x278] sm:$0xff]
    %v277 = vld [vmem:[#allocation7 + $0x280] sm:$0xff]
    %v278 = vld [vmem:[#allocation7 + $0x288] sm:$0xff]
    %v279 = vld [vmem:[#allocation7 + $0x290] sm:$0xff]
    %v280 = vld [vmem:[#allocation7 + $0x298] sm:$0xff]
    %v281 = vld [vmem:[#allocation7 + $0x2a0] sm:$0xff]
    %v282 = vld [vmem:[#allocation7 + $0x2a8] sm:$0xff]
    %v283 = vld [vmem:[#allocation7 + $0x2b0] sm:$0xff]
    %v284 = vld [vmem:[#allocation7 + $0x2b8] sm:$0xff]
    %v285 = vld [vmem:[#allocation7 + $0x2c0] sm:$0xff]
    %v286 = vld [vmem:[#allocation7 + $0x2c8] sm:$0xff]
    %v287 = vld [vmem:[#allocation7 + $0x2d0] sm:$0xff]
    %v288 = vld [vmem:[#allocation7 + $0x2d8] sm:$0xff]
    %v289 = vld [vmem:[#allocation7 + $0x2e0] sm:$0xff]
    %v290 = vld [vmem:[#allocation7 + $0x2e8] sm:$0xff]
    %v291 = vld [vmem:[#allocation7 + $0x2f0] sm:$0xff]
    %v292 = vld [vmem:[#allocation7 + $0x2f8] sm:$0xff]
    %v293 = vld [vmem:[#allocation7 + $0x300] sm:$0xff]
    %v294 = vld [vmem:[#allocation7 + $0x308] sm:$0xff]
    %v295 = vld [vmem:[#allocation7 + $0x310] sm:$0xff]
    %v296 = vld [vmem:[#allocation7 + $0x318] sm:$0xff]
    %v297 = vld [vmem:[#allocation7 + $0x320] sm:$0xff]
    %v298 = vld [vmem:[#allocation7 + $0x328] sm:$0xff]
    %v299 = vld [vmem:[#allocation7 + $0x330] sm:$0xff]
    %v300 = vld [vmem:[#allocation7 + $0x338] sm:$0xff]
    %v301 = vld [vmem:[#allocation7 + $0x340] sm:$0xff]
    %v302 = vld [vmem:[#allocation7 + $0x348] sm:$0xff]
    %v303 = vld [vmem:[#allocation7 + $0x350] sm:$0xff]
    %v304 = vld [vmem:[#allocation7 + $0x358] sm:$0xff]
    %v305 = vld [vmem:[#allocation7 + $0x360] sm:$0xff]
    %v306 = vld [vmem:[#allocation7 + $0x368] sm:$0xff]
    %v307 = vld [vmem:[#allocation7 + $0x370] sm:$0xff]
    %v308 = vld [vmem:[#allocation7 + $0x378] sm:$0xff]
    %v309 = vld [vmem:[#allocation7 + $0x380] sm:$0xff]
    %v310 = vld [vmem:[#allocation7 + $0x388] sm:$0xff]
    %v311 = vld [vmem:[#allocation7 + $0x390] sm:$0xff]
    %v312 = vld [vmem:[#allocation7 + $0x398] sm:$0xff]
    %v313 = vld [vmem:[#allocation7 + $0x3a0] sm:$0xff]
    %v314 = vld [vmem:[#allocation7 + $0x3a8] sm:$0xff]
    %v315 = vld [vmem:[#allocation7 + $0x3b0] sm:$0xff]
    %v316 = vld [vmem:[#allocation7 + $0x3b8] sm:$0xff]
    %v317 = vld [vmem:[#allocation7 + $0x3c0] sm:$0xff]
    %v318 = vld [vmem:[#allocation7 + $0x3c8] sm:$0xff]
    %v319 = vld [vmem:[#allocation7 + $0x3d0] sm:$0xff]
    %v320 = vld [vmem:[#allocation7 + $0x3d8] sm:$0xff]
    %v321 = vld [vmem:[#allocation7 + $0x3e0] sm:$0xff]
    %v322 = vld [vmem:[#allocation7 + $0x3e8] sm:$0xff]
    %v323 = vld [vmem:[#allocation7 + $0x3f0] sm:$0xff]
    %v324 = vld [vmem:[#allocation7 + $0x3f8] sm:$0xff]
    %v325 = vld [vmem:[#allocation7 + $0x400] sm:$0xff]
    %v326 = vld [vmem:[#allocation7 + $0x408] sm:$0xff]
    %v327 = vld [vmem:[#allocation7 + $0x410] sm:$0xff]
    %v328 = vld [vmem:[#allocation7 + $0x418] sm:$0xff]
    %v329 = vld [vmem:[#allocation7 + $0x420] sm:$0xff]
    %v330 = vld [vmem:[#allocation7 + $0x428] sm:$0xff]
    %v331 = vld [vmem:[#allocation7 + $0x430] sm:$0xff]
    %v332 = vld [vmem:[#allocation7 + $0x438] sm:$0xff]
    %v333 = vld [vmem:[#allocation7 + $0x440] sm:$0xff]
    %v334 = vld [vmem:[#allocation7 + $0x448] sm:$0xff]
    %v335 = vld [vmem:[#allocation7 + $0x450] sm:$0xff]
    %v336 = vld [vmem:[#allocation7 + $0x458] sm:$0xff]
    %v337 = vld [vmem:[#allocation7 + $0x460] sm:$0xff]
    %v338 = vld [vmem:[#allocation7 + $0x468] sm:$0xff]
    %v339 = vld [vmem:[#allocation7 + $0x470] sm:$0xff]
    %v340 = vld [vmem:[#allocation7 + $0x478] sm:$0xff]
    %v341 = vld [vmem:[#allocation7 + $0x480] sm:$0xff]
    %v342 = vld [vmem:[#allocation7 + $0x488] sm:$0xff]
    %v343 = vld [vmem:[#allocation7 + $0x490] sm:$0xff]
    %v344 = vld [vmem:[#allocation7 + $0x498] sm:$0xff]
    %v345 = vld [vmem:[#allocation7 + $0x4a0] sm:$0xff]
    %v346 = vld [vmem:[#allocation7 + $0x4a8] sm:$0xff]
    %v347 = vld [vmem:[#allocation7 + $0x4b0] sm:$0xff]
    %v348 = vld [vmem:[#allocation7 + $0x4b8] sm:$0xff]
    %v349 = vld [vmem:[#allocation7 + $0x4c0] sm:$0xff]
    %v350 = vld [vmem:[#allocation7 + $0x4c8] sm:$0xff]
    %v351 = vld [vmem:[#allocation7 + $0x4d0] sm:$0xff]
    %v352 = vld [vmem:[#allocation7 + $0x4d8] sm:$0xff]
    %v353 = vld [vmem:[#allocation7 + $0x4e0] sm:$0xff]
    %v354 = vld [vmem:[#allocation7 + $0x4e8] sm:$0xff]
    %v355 = vld [vmem:[#allocation7 + $0x4f0] sm:$0xff]
    %v356 = vld [vmem:[#allocation7 + $0x4f8] sm:$0xff]
    %v357 = vld [vmem:[#allocation7 + $0x500] sm:$0xff]
    %v358 = vld [vmem:[#allocation7 + $0x508] sm:$0xff]
    %v359 = vld [vmem:[#allocation7 + $0x510] sm:$0xff]
    %v360 = vld [vmem:[#allocation7 + $0x518] sm:$0xff]
    %v361 = vld [vmem:[#allocation7 + $0x520] sm:$0xff]
    %v362 = vld [vmem:[#allocation7 + $0x528] sm:$0xff]
    %v363 = vld [vmem:[#allocation7 + $0x530] sm:$0xff]
    %v364 = vld [vmem:[#allocation7 + $0x538] sm:$0xff]
    %v365 = vld [vmem:[#allocation7 + $0x540] sm:$0xff]
    %v366 = vld [vmem:[#allocation7 + $0x548] sm:$0xff]
    %v367 = vld [vmem:[#allocation7 + $0x550] sm:$0xff]
    %v368 = vld [vmem:[#allocation7 + $0x558] sm:$0xff]
    %v369 = vld [vmem:[#allocation7 + $0x560] sm:$0xff]
    %v370 = vld [vmem:[#allocation7 + $0x568] sm:$0xff]
    %v371 = vld [vmem:[#allocation7 + $0x570] sm:$0xff]
    %v372 = vld [vmem:[#allocation7 + $0x578] sm:$0xff]
    %v373 = vld [vmem:[#allocation7 + $0x580] sm:$0xff]
    %v374 = vld [vmem:[#allocation7 + $0x588] sm:$0xff]
    %v375 = vld [vmem:[#allocation7 + $0x590] sm:$0xff]
    %v376 = vld [vmem:[#allocation7 + $0x598] sm:$0xff]
    %v377 = vld [vmem:[#allocation7 + $0x5a0] sm:$0xff]
    %v378 = vld [vmem:[#allocation7 + $0x5a8] sm:$0xff]
    %v379 = vld [vmem:[#allocation7 + $0x5b0] sm:$0xff]
    %v380 = vld [vmem:[#allocation7 + $0x5b8] sm:$0xff]
    %v381 = vld [vmem:[#allocation7 + $0x5c0] sm:$0xff]
    %v382 = vld [vmem:[#allocation7 + $0x5c8] sm:$0xff]
    %v383 = vld [vmem:[#allocation7 + $0x5d0] sm:$0xff]
    %v384 = vld [vmem:[#allocation7 + $0x5d8] sm:$0xff]
    %v385 = vld [vmem:[#allocation7 + $0x5e0] sm:$0xff]
    %v386 = vld [vmem:[#allocation7 + $0x5e8] sm:$0xff]
    %v387 = vld [vmem:[#allocation7 + $0x5f0] sm:$0xff]
    %v388 = vld [vmem:[#allocation7 + $0x5f8] sm:$0xff]
    %v389 = vld [vmem:[#allocation7 + $0x600] sm:$0xff]
    %v390 = vld [vmem:[#allocation7 + $0x608] sm:$0xff]
    %v391 = vld [vmem:[#allocation7 + $0x610] sm:$0xff]
    %v392 = vld [vmem:[#allocation7 + $0x618] sm:$0xff]
    %v393 = vld [vmem:[#allocation7 + $0x620] sm:$0xff]
    %v394 = vld [vmem:[#allocation7 + $0x628] sm:$0xff]
    %v395 = vld [vmem:[#allocation7 + $0x630] sm:$0xff]
    %v396 = vld [vmem:[#allocation7 + $0x638] sm:$0xff]
    %v397 = vld [vmem:[#allocation7 + $0x640] sm:$0xff]
    %v398 = vld [vmem:[#allocation7 + $0x648] sm:$0xff]
    %v399 = vld [vmem:[#allocation7 + $0x650] sm:$0xff]
    %v400 = vld [vmem:[#allocation7 + $0x658] sm:$0xff]
    %v401 = vld [vmem:[#allocation7 + $0x660] sm:$0xff]
    %v402 = vld [vmem:[#allocation7 + $0x668] sm:$0xff]
    %v403 = vld [vmem:[#allocation7 + $0x670] sm:$0xff]
    %v404 = vld [vmem:[#allocation7 + $0x678] sm:$0xff]
    %v405 = vld [vmem:[#allocation7 + $0x680] sm:$0xff]
    %v406 = vld [vmem:[#allocation7 + $0x688] sm:$0xff]
    %v407 = vld [vmem:[#allocation7 + $0x690] sm:$0xff]
    %v408 = vld [vmem:[#allocation7 + $0x698] sm:$0xff]
    %v409 = vld [vmem:[#allocation7 + $0x6a0] sm:$0xff]
    %v410 = vld [vmem:[#allocation7 + $0x6a8] sm:$0xff]
    %v411 = vld [vmem:[#allocation7 + $0x6b0] sm:$0xff]
    %v412 = vld [vmem:[#allocation7 + $0x6b8] sm:$0xff]
    %v413 = vld [vmem:[#allocation7 + $0x6c0] sm:$0xff]
    %v414 = vld [vmem:[#allocation7 + $0x6c8] sm:$0xff]
    %v415 = vld [vmem:[#allocation7 + $0x6d0] sm:$0xff]
    %v416 = vld [vmem:[#allocation7 + $0x6d8] sm:$0xff]
    %v417 = vld [vmem:[#allocation7 + $0x6e0] sm:$0xff]
    %v418 = vld [vmem:[#allocation7 + $0x6e8] sm:$0xff]
    %v419 = vld [vmem:[#allocation7 + $0x6f0] sm:$0xff]
    %v420 = vld [vmem:[#allocation7 + $0x6f8] sm:$0xff]
    %v421 = vld [vmem:[#allocation7 + $0x700] sm:$0xff]
    %v422 = vld [vmem:[#allocation7 + $0x708] sm:$0xff]
    %v423 = vld [vmem:[#allocation7 + $0x710] sm:$0xff]
    %v424 = vld [vmem:[#allocation7 + $0x718] sm:$0xff]
    %v425 = vld [vmem:[#allocation7 + $0x720] sm:$0xff]
    %v426 = vld [vmem:[#allocation7 + $0x728] sm:$0xff]
    %v427 = vld [vmem:[#allocation7 + $0x730] sm:$0xff]
    %v428 = vld [vmem:[#allocation7 + $0x738] sm:$0xff]
    %v429 = vld [vmem:[#allocation7 + $0x740] sm:$0xff]
    %v430 = vld [vmem:[#allocation7 + $0x748] sm:$0xff]
    %v431 = vld [vmem:[#allocation7 + $0x750] sm:$0xff]
    %v432 = vld [vmem:[#allocation7 + $0x758] sm:$0xff]
    %v433 = vld [vmem:[#allocation7 + $0x760] sm:$0xff]
    %v434 = vld [vmem:[#allocation7 + $0x768] sm:$0xff]
    %v435 = vld [vmem:[#allocation7 + $0x770] sm:$0xff]
    %v436 = vld [vmem:[#allocation7 + $0x778] sm:$0xff]
    %v437 = vld [vmem:[#allocation7 + $0x780] sm:$0xff]
    %v438 = vld [vmem:[#allocation7 + $0x788] sm:$0xff]
    %v439 = vld [vmem:[#allocation7 + $0x790] sm:$0xff]
    %v440 = vld [vmem:[#allocation7 + $0x798] sm:$0xff]
    %v441 = vld [vmem:[#allocation7 + $0x7a0] sm:$0xff]
    %v442 = vld [vmem:[#allocation7 + $0x7a8] sm:$0xff]
    %v443 = vld [vmem:[#allocation7 + $0x7b0] sm:$0xff]
    %v444 = vld [vmem:[#allocation7 + $0x7b8] sm:$0xff]
    %v445 = vld [vmem:[#allocation7 + $0x7c0] sm:$0xff]
    %v446 = vld [vmem:[#allocation7 + $0x7c8] sm:$0xff]
    %v447 = vld [vmem:[#allocation7 + $0x7d0] sm:$0xff]
    %v448 = vld [vmem:[#allocation7 + $0x7d8] sm:$0xff]
    %v449 = vld [vmem:[#allocation7 + $0x7e0] sm:$0xff]
    %v450 = vld [vmem:[#allocation7 + $0x7e8] sm:$0xff]
    %v451 = vld [vmem:[#allocation7 + $0x7f0] sm:$0xff]
    %v452 = vld [vmem:[#allocation7 + $0x7f8] sm:$0xff]
    %v453 = vld [vmem:[#allocation7 + $0x800] sm:$0xff]
    %v454 = vld [vmem:[#allocation7 + $0x808] sm:$0xff]
    %v455 = vld [vmem:[#allocation7 + $0x810] sm:$0xff]
    %v456 = vld [vmem:[#allocation7 + $0x818] sm:$0xff]
    %v457 = vld [vmem:[#allocation7 + $0x820] sm:$0xff]
    %v458 = vld [vmem:[#allocation7 + $0x828] sm:$0xff]
    %v459 = vld [vmem:[#allocation7 + $0x830] sm:$0xff]
    %v460 = vld [vmem:[#allocation7 + $0x838] sm:$0xff]
    %v461 = vld [vmem:[#allocation7 + $0x840] sm:$0xff]
    %v462 = vld [vmem:[#allocation7 + $0x848] sm:$0xff]
    %v463 = vld [vmem:[#allocation7 + $0x850] sm:$0xff]
    %v464 = vld [vmem:[#allocation7 + $0x858] sm:$0xff]
    %v465 = vld [vmem:[#allocation7 + $0x860] sm:$0xff]
    %v466 = vld [vmem:[#allocation7 + $0x868] sm:$0xff]
    %v467 = vld [vmem:[#allocation7 + $0x870] sm:$0xff]
    %v468 = vld [vmem:[#allocation7 + $0x878] sm:$0xff]
    %v469 = vld [vmem:[#allocation7 + $0x880] sm:$0xff]
    %v470 = vld [vmem:[#allocation7 + $0x888] sm:$0xff]
    %v471 = vld [vmem:[#allocation7 + $0x890] sm:$0xff]
    %v472 = vld [vmem:[#allocation7 + $0x898] sm:$0xff]
    %v473 = vld [vmem:[#allocation7 + $0x8a0] sm:$0xff]
    %v474 = vld [vmem:[#allocation7 + $0x8a8] sm:$0xff]
    %v475 = vld [vmem:[#allocation7 + $0x8b0] sm:$0xff]
    %v476 = vld [vmem:[#allocation7 + $0x8b8] sm:$0xff]
    %v477 = vld [vmem:[#allocation7 + $0x8c0] sm:$0xff]
    %v478 = vld [vmem:[#allocation7 + $0x8c8] sm:$0xff]
    %v479 = vld [vmem:[#allocation7 + $0x8d0] sm:$0xff]
    %v480 = vld [vmem:[#allocation7 + $0x8d8] sm:$0xff]
    %v481 = vld [vmem:[#allocation7 + $0x8e0] sm:$0xff]
    %v482 = vld [vmem:[#allocation7 + $0x8e8] sm:$0xff]
    %v483 = vld [vmem:[#allocation7 + $0x8f0] sm:$0xff]
    %v484 = vld [vmem:[#allocation7 + $0x8f8] sm:$0xff]
    %v485 = vld [vmem:[#allocation7 + $0x900] sm:$0xff]
    %v486 = vld [vmem:[#allocation7 + $0x908] sm:$0xff]
    %v487 = vld [vmem:[#allocation7 + $0x910] sm:$0xff]
    %v488 = vld [vmem:[#allocation7 + $0x918] sm:$0xff]
    %v489 = vld [vmem:[#allocation7 + $0x920] sm:$0xff]
    %v490 = vld [vmem:[#allocation7 + $0x928] sm:$0xff]
    %v491 = vld [vmem:[#allocation7 + $0x930] sm:$0xff]
    %v492 = vld [vmem:[#allocation7 + $0x938] sm:$0xff]
    %v493 = vld [vmem:[#allocation7 + $0x940] sm:$0xff]
    %v494 = vld [vmem:[#allocation7 + $0x948] sm:$0xff]
    %v495 = vld [vmem:[#allocation7 + $0x950] sm:$0xff]
    %v496 = vld [vmem:[#allocation7 + $0x958] sm:$0xff]
    %v497 = vld [vmem:[#allocation7 + $0x960] sm:$0xff]
    %v498 = vld [vmem:[#allocation7 + $0x968] sm:$0xff]
    %v499 = vld [vmem:[#allocation7 + $0x970] sm:$0xff]
    %v500 = vld [vmem:[#allocation7 + $0x978] sm:$0xff]
    %v501 = vld [vmem:[#allocation7 + $0x980] sm:$0xff]
    %v502 = vld [vmem:[#allocation7 + $0x988] sm:$0xff]
    %v503 = vld [vmem:[#allocation7 + $0x990] sm:$0xff]
    %v504 = vld [vmem:[#allocation7 + $0x998] sm:$0xff]
    %v505 = vld [vmem:[#allocation7 + $0x9a0] sm:$0xff]
    %v506 = vld [vmem:[#allocation7 + $0x9a8] sm:$0xff]
    %v507 = vld [vmem:[#allocation7 + $0x9b0] sm:$0xff]
    %v508 = vld [vmem:[#allocation7 + $0x9b8] sm:$0xff]
    %v509 = vld [vmem:[#allocation7 + $0x9c0] sm:$0xff]
    %v510 = vld [vmem:[#allocation7 + $0x9c8] sm:$0xff]
    %v511 = vld [vmem:[#allocation7 + $0x9d0] sm:$0xff]
    %v512 = vld [vmem:[#allocation7 + $0x9d8] sm:$0xff]
    %v513 = vld [vmem:[#allocation7 + $0x9e0] sm:$0xff]
    %v514 = vld [vmem:[#allocation7 + $0x9e8] sm:$0xff]
    %v515 = vld [vmem:[#allocation7 + $0x9f0] sm:$0xff]
    %v516 = vld [vmem:[#allocation7 + $0x9f8] sm:$0xff]
    %v517 = vld [vmem:[#allocation7 + $0xa00] sm:$0xff]
    %v518 = vld [vmem:[#allocation7 + $0xa08] sm:$0xff]
    %v519 = vld [vmem:[#allocation7 + $0xa10] sm:$0xff]
    %v520 = vld [vmem:[#allocation7 + $0xa18] sm:$0xff]
    %v521 = vld [vmem:[#allocation7 + $0xa20] sm:$0xff]
    %v522 = vld [vmem:[#allocation7 + $0xa28] sm:$0xff]
    %v523 = vld [vmem:[#allocation7 + $0xa30] sm:$0xff]
    %v524 = vld [vmem:[#allocation7 + $0xa38] sm:$0xff]
    %v525 = vld [vmem:[#allocation7 + $0xa40] sm:$0xff]
    %v526 = vld [vmem:[#allocation7 + $0xa48] sm:$0xff]
    %v527 = vld [vmem:[#allocation7 + $0xa50] sm:$0xff]
    %v528 = vld [vmem:[#allocation7 + $0xa58] sm:$0xff]
    %v529 = vld [vmem:[#allocation7 + $0xa60] sm:$0xff]
    %v530 = vld [vmem:[#allocation7 + $0xa68] sm:$0xff]
    %v531 = vld [vmem:[#allocation7 + $0xa70] sm:$0xff]
    %v532 = vld [vmem:[#allocation7 + $0xa78] sm:$0xff]
    %v533 = vld [vmem:[#allocation7 + $0xa80] sm:$0xff]
    %v534 = vld [vmem:[#allocation7 + $0xa88] sm:$0xff]
    %v535 = vld [vmem:[#allocation7 + $0xa90] sm:$0xff]
    %v536 = vld [vmem:[#allocation7 + $0xa98] sm:$0xff]
    %v537 = vld [vmem:[#allocation7 + $0xaa0] sm:$0xff]
    %v538 = vld [vmem:[#allocation7 + $0xaa8] sm:$0xff]
    %v539 = vld [vmem:[#allocation7 + $0xab0] sm:$0xff]
    %v540 = vld [vmem:[#allocation7 + $0xab8] sm:$0xff]
    %v541 = vld [vmem:[#allocation7 + $0xac0] sm:$0xff]
    %v542 = vld [vmem:[#allocation7 + $0xac8] sm:$0xff]
    %v543 = vld [vmem:[#allocation7 + $0xad0] sm:$0xff]
    %v544 = vld [vmem:[#allocation7 + $0xad8] sm:$0xff]
    %v545 = vld [vmem:[#allocation7 + $0xae0] sm:$0xff]
    %v546 = vld [vmem:[#allocation7 + $0xae8] sm:$0xff]
    %v547 = vld [vmem:[#allocation7 + $0xaf0] sm:$0xff]
    %v548 = vld [vmem:[#allocation7 + $0xaf8] sm:$0xff]
    %v549 = vld [vmem:[#allocation7 + $0xb00] sm:$0xff]
    %v550 = vld [vmem:[#allocation7 + $0xb08] sm:$0xff]
    %v551 = vld [vmem:[#allocation7 + $0xb10] sm:$0xff]
    %v552 = vld [vmem:[#allocation7 + $0xb18] sm:$0xff]
    %v553 = vld [vmem:[#allocation7 + $0xb20] sm:$0xff]
    %v554 = vld [vmem:[#allocation7 + $0xb28] sm:$0xff]
    %v555 = vld [vmem:[#allocation7 + $0xb30] sm:$0xff]
    %v556 = vld [vmem:[#allocation7 + $0xb38] sm:$0xff]
    %v557 = vld [vmem:[#allocation7 + $0xb40] sm:$0xff]
    %v558 = vld [vmem:[#allocation7 + $0xb48] sm:$0xff]
    %v559 = vld [vmem:[#allocation7 + $0xb50] sm:$0xff]
    %v560 = vld [vmem:[#allocation7 + $0xb58] sm:$0xff]
    %v561 = vld [vmem:[#allocation7 + $0xb60] sm:$0xff]
    %v562 = vld [vmem:[#allocation7 + $0xb68] sm:$0xff]
    %v563 = vld [vmem:[#allocation7 + $0xb70] sm:$0xff]
    %v564 = vld [vmem:[#allocation7 + $0xb78] sm:$0xff]
    %v565 = vld [vmem:[#allocation7 + $0xb80] sm:$0xff]
    %v566 = vld [vmem:[#allocation7 + $0xb88] sm:$0xff]
    %v567 = vld [vmem:[#allocation7 + $0xb90] sm:$0xff]
    %v568 = vld [vmem:[#allocation7 + $0xb98] sm:$0xff]
    %v569 = vld [vmem:[#allocation7 + $0xba0] sm:$0xff]
    %v570 = vld [vmem:[#allocation7 + $0xba8] sm:$0xff]
    %v571 = vld [vmem:[#allocation7 + $0xbb0] sm:$0xff]
    %v572 = vld [vmem:[#allocation7 + $0xbb8] sm:$0xff]
    %v573 = vld [vmem:[#allocation7 + $0xbc0] sm:$0xff]
    %v574 = vld [vmem:[#allocation7 + $0xbc8] sm:$0xff]
    %v575 = vld [vmem:[#allocation7 + $0xbd0] sm:$0xff]
    %v576 = vld [vmem:[#allocation7 + $0xbd8] sm:$0xff]
    %v577 = vld [vmem:[#allocation7 + $0xbe0] sm:$0xff]
    %v578 = vld [vmem:[#allocation7 + $0xbe8] sm:$0xff]
    %v579 = vld [vmem:[#allocation7 + $0xbf0] sm:$0xff]
    %v580 = vld [vmem:[#allocation7 + $0xbf8] sm:$0xff]
    %v581 = vld [vmem:[#allocation7 + $0xc00] sm:$0xff]
    %v582 = vld [vmem:[#allocation7 + $0xc08] sm:$0xff]
    %v583 = vld [vmem:[#allocation7 + $0xc10] sm:$0xff]
    %v584 = vld [vmem:[#allocation7 + $0xc18] sm:$0xff]
    %v585 = vld [vmem:[#allocation7 + $0xc20] sm:$0xff]
    %v586 = vld [vmem:[#allocation7 + $0xc28] sm:$0xff]
    %v587 = vld [vmem:[#allocation7 + $0xc30] sm:$0xff]
    %v588 = vld [vmem:[#allocation7 + $0xc38] sm:$0xff]
    %v589 = vld [vmem:[#allocation7 + $0xc40] sm:$0xff]
    %v590 = vld [vmem:[#allocation7 + $0xc48] sm:$0xff]
    %v591 = vld [vmem:[#allocation7 + $0xc50] sm:$0xff]
    %v592 = vld [vmem:[#allocation7 + $0xc58] sm:$0xff]
    %v593 = vld [vmem:[#allocation7 + $0xc60] sm:$0xff]
    %v594 = vld [vmem:[#allocation7 + $0xc68] sm:$0xff]
    %v595 = vld [vmem:[#allocation7 + $0xc70] sm:$0xff]
    %v596 = vld [vmem:[#allocation7 + $0xc78] sm:$0xff]
    %v597 = vld [vmem:[#allocation7 + $0xc80] sm:$0xff]
    %v598 = vld [vmem:[#allocation7 + $0xc88] sm:$0xff]
    %v599 = vld [vmem:[#allocation7 + $0xc90] sm:$0xff]
    %v600 = vld [vmem:[#allocation7 + $0xc98] sm:$0xff]
    %v601 = vld [vmem:[#allocation7 + $0xca0] sm:$0xff]
    %v602 = vld [vmem:[#allocation7 + $0xca8] sm:$0xff]
    %v603 = vld [vmem:[#allocation7 + $0xcb0] sm:$0xff]
    %v604 = vld [vmem:[#allocation7 + $0xcb8] sm:$0xff]
    %v605 = vld [vmem:[#allocation7 + $0xcc0] sm:$0xff]
    %v606 = vld [vmem:[#allocation7 + $0xcc8] sm:$0xff]
    %v607 = vld [vmem:[#allocation7 + $0xcd0] sm:$0xff]
    %v608 = vld [vmem:[#allocation7 + $0xcd8] sm:$0xff]
    %v609 = vld [vmem:[#allocation7 + $0xce0] sm:$0xff]
    %v610 = vld [vmem:[#allocation7 + $0xce8] sm:$0xff]
    %v611 = vld [vmem:[#allocation7 + $0xcf0] sm:$0xff]
    %v612 = vld [vmem:[#allocation7 + $0xcf8] sm:$0xff]
    %v613 = vld [vmem:[#allocation7 + $0xd00] sm:$0xff]
    %v614 = vld [vmem:[#allocation7 + $0xd08] sm:$0xff]
    %v615 = vld [vmem:[#allocation7 + $0xd10] sm:$0xff]
    %v616 = vld [vmem:[#allocation7 + $0xd18] sm:$0xff]
    %v617 = vld [vmem:[#allocation7 + $0xd20] sm:$0xff]
    %v618 = vld [vmem:[#allocation7 + $0xd28] sm:$0xff]
    %v619 = vld [vmem:[#allocation7 + $0xd30] sm:$0xff]
    %v620 = vld [vmem:[#allocation7 + $0xd38] sm:$0xff]
    %v621 = vld [vmem:[#allocation7 + $0xd40] sm:$0xff]
    %v622 = vld [vmem:[#allocation7 + $0xd48] sm:$0xff]
    %v623 = vld [vmem:[#allocation7 + $0xd50] sm:$0xff]
    %v624 = vld [vmem:[#allocation7 + $0xd58] sm:$0xff]
    %v625 = vld [vmem:[#allocation7 + $0xd60] sm:$0xff]
    %v626 = vld [vmem:[#allocation7 + $0xd68] sm:$0xff]
    %v627 = vld [vmem:[#allocation7 + $0xd70] sm:$0xff]
    %v628 = vld [vmem:[#allocation7 + $0xd78] sm:$0xff]
    %v629 = vld [vmem:[#allocation7 + $0xd80] sm:$0xff]
    %v630 = vld [vmem:[#allocation7 + $0xd88] sm:$0xff]
    %v631 = vld [vmem:[#allocation7 + $0xd90] sm:$0xff]
    %v632 = vld [vmem:[#allocation7 + $0xd98] sm:$0xff]
    %v633 = vld [vmem:[#allocation7 + $0xda0] sm:$0xff]
    %v634 = vld [vmem:[#allocation7 + $0xda8] sm:$0xff]
    %v635 = vld [vmem:[#allocation7 + $0xdb0] sm:$0xff]
    %v636 = vld [vmem:[#allocation7 + $0xdb8] sm:$0xff]
    %v637 = vld [vmem:[#allocation7 + $0xdc0] sm:$0xff]
    %v638 = vld [vmem:[#allocation7 + $0xdc8] sm:$0xff]
    %v639 = vld [vmem:[#allocation7 + $0xdd0] sm:$0xff]
    %v640 = vld [vmem:[#allocation7 + $0xdd8] sm:$0xff]
    %v641 = vld [vmem:[#allocation7 + $0xde0] sm:$0xff]
    %v642 = vld [vmem:[#allocation7 + $0xde8] sm:$0xff]
    %v643 = vld [vmem:[#allocation7 + $0xdf0] sm:$0xff]
    %v644 = vld [vmem:[#allocation7 + $0xdf8] sm:$0xff]
    %v645 = vld [vmem:[#allocation7 + $0xe00] sm:$0xff]
    %v646 = vld [vmem:[#allocation7 + $0xe08] sm:$0xff]
    %v647 = vld [vmem:[#allocation7 + $0xe10] sm:$0xff]
    %v648 = vld [vmem:[#allocation7 + $0xe18] sm:$0xff]
    %v649 = vld [vmem:[#allocation7 + $0xe20] sm:$0xff]
    %v650 = vld [vmem:[#allocation7 + $0xe28] sm:$0xff]
    %v651 = vld [vmem:[#allocation7 + $0xe30] sm:$0xff]
    %v652 = vld [vmem:[#allocation7 + $0xe38] sm:$0xff]
    %v653 = vld [vmem:[#allocation7 + $0xe40] sm:$0xff]
    %v654 = vld [vmem:[#allocation7 + $0xe48] sm:$0xff]
    %v655 = vld [vmem:[#allocation7 + $0xe50] sm:$0xff]
    %v656 = vld [vmem:[#allocation7 + $0xe58] sm:$0xff]
    %v657 = vld [vmem:[#allocation7 + $0xe60] sm:$0xff]
    %v658 = vld [vmem:[#allocation7 + $0xe68] sm:$0xff]
    %v659 = vld [vmem:[#allocation7 + $0xe70] sm:$0xff]
    %v660 = vld [vmem:[#allocation7 + $0xe78] sm:$0xff]
    %v661 = vld [vmem:[#allocation7 + $0xe80] sm:$0xff]
    %v662 = vld [vmem:[#allocation7 + $0xe88] sm:$0xff]
    %v663 = vld [vmem:[#allocation7 + $0xe90] sm:$0xff]
    %v664 = vld [vmem:[#allocation7 + $0xe98] sm:$0xff]
    %v665 = vld [vmem:[#allocation7 + $0xea0] sm:$0xff]
    %v666 = vld [vmem:[#allocation7 + $0xea8] sm:$0xff]
    %v667 = vld [vmem:[#allocation7 + $0xeb0] sm:$0xff]
    %v668 = vld [vmem:[#allocation7 + $0xeb8] sm:$0xff]
    %v669 = vld [vmem:[#allocation7 + $0xec0] sm:$0xff]
    %v670 = vld [vmem:[#allocation7 + $0xec8] sm:$0xff]
    %v671 = vld [vmem:[#allocation7 + $0xed0] sm:$0xff]
    %v672 = vld [vmem:[#allocation7 + $0xed8] sm:$0xff]
    %v673 = vld [vmem:[#allocation7 + $0xee0] sm:$0xff]
    %v674 = vld [vmem:[#allocation7 + $0xee8] sm:$0xff]
    %v675 = vld [vmem:[#allocation7 + $0xef0] sm:$0xff]
    %v676 = vld [vmem:[#allocation7 + $0xef8] sm:$0xff]
    %v677 = vld [vmem:[#allocation8] sm:$0x3f]
    %v679 = vlaneseq
    %v680 = vshrl.u32 %v679, 7
    %v681 = vsub.s32 0, %v680
    %v682 = vrot.slane %v677, %v681
    %v683 = vlaneseq
    %v684 = vshrl.u32 %v683, 7
    %v685 = vsub.s32 1, %v684
    %v686 = vrot.slane %v677, %v685
    %v687 = vlaneseq
    %v688 = vshrl.u32 %v687, 7
    %v689 = vsub.s32 2, %v688
    %v690 = vrot.slane %v677, %v689
    %v691 = vlaneseq
    %v692 = vshrl.u32 %v691, 7
    %v693 = vsub.s32 3, %v692
    %v694 = vrot.slane %v677, %v693
    %v695 = vlaneseq
    %v696 = vshrl.u32 %v695, 7
    %v697 = vsub.s32 4, %v696
    %v698 = vrot.slane %v677, %v697
    %v699 = vlaneseq
    %v700 = vshrl.u32 %v699, 7
    %v701 = vsub.s32 5, %v700
    %v702 = vrot.slane %v677, %v701
    %v1189 = vunpack.c.l.b16 %v197
    %v1190 = vunpack.c.h.b16 %v197
    %v1191 = vunpack.c.l.b16 %v198
    %v1192 = vunpack.c.h.b16 %v198
    %v1193 = vunpack.c.l.b16 %v199
    %v1194 = vunpack.c.h.b16 %v199
    %v1195 = vunpack.c.l.b16 %v200
    %v1196 = vunpack.c.h.b16 %v200
    %v1197 = vunpack.c.l.b16 %v201
    %v1198 = vunpack.c.h.b16 %v201
    %v1199 = vunpack.c.l.b16 %v202
    %v1200 = vunpack.c.h.b16 %v202
    %v1201 = vunpack.c.l.b16 %v203
    %v1202 = vunpack.c.h.b16 %v203
    %v1203 = vunpack.c.l.b16 %v204
    %v1204 = vunpack.c.h.b16 %v204
    %v1205 = vunpack.c.l.b16 %v205
    %v1206 = vunpack.c.h.b16 %v205
    %v1207 = vunpack.c.l.b16 %v206
    %v1208 = vunpack.c.h.b16 %v206
    %v1209 = vunpack.c.l.b16 %v207
    %v1210 = vunpack.c.h.b16 %v207
    %v1211 = vunpack.c.l.b16 %v208
    %v1212 = vunpack.c.h.b16 %v208
    %v1213 = vunpack.c.l.b16 %v209
    %v1214 = vunpack.c.h.b16 %v209
    %v1215 = vunpack.c.l.b16 %v210
    %v1216 = vunpack.c.h.b16 %v210
    %v1217 = vunpack.c.l.b16 %v211
    %v1218 = vunpack.c.h.b16 %v211
    %v1219 = vunpack.c.l.b16 %v212
    %v1220 = vunpack.c.h.b16 %v212
    %v1221 = vunpack.c.l.b16 %v213
    %v1222 = vunpack.c.h.b16 %v213
    %v1223 = vunpack.c.l.b16 %v214
    %v1224 = vunpack.c.h.b16 %v214
    %v1225 = vunpack.c.l.b16 %v215
    %v1226 = vunpack.c.h.b16 %v215
    %v1227 = vunpack.c.l.b16 %v216
    %v1228 = vunpack.c.h.b16 %v216
    %v1229 = vunpack.c.l.b16 %v217
    %v1230 = vunpack.c.h.b16 %v217
    %v1231 = vunpack.c.l.b16 %v218
    %v1232 = vunpack.c.h.b16 %v218
    %v1233 = vunpack.c.l.b16 %v219
    %v1234 = vunpack.c.h.b16 %v219
    %v1235 = vunpack.c.l.b16 %v220
    %v1236 = vunpack.c.h.b16 %v220
    %v1237 = vunpack.c.l.b16 %v221
    %v1238 = vunpack.c.h.b16 %v221
    %v1239 = vunpack.c.l.b16 %v222
    %v1240 = vunpack.c.h.b16 %v222
    %v1241 = vunpack.c.l.b16 %v223
    %v1242 = vunpack.c.h.b16 %v223
    %v1243 = vunpack.c.l.b16 %v224
    %v1244 = vunpack.c.h.b16 %v224
    %v1245 = vunpack.c.l.b16 %v225
    %v1246 = vunpack.c.h.b16 %v225
    %v1247 = vunpack.c.l.b16 %v226
    %v1248 = vunpack.c.h.b16 %v226
    %v1249 = vunpack.c.l.b16 %v227
    %v1250 = vunpack.c.h.b16 %v227
    %v1251 = vunpack.c.l.b16 %v228
    %v1252 = vunpack.c.h.b16 %v228
    %v1253 = vunpack.c.l.b16 %v229
    %v1254 = vunpack.c.h.b16 %v229
    %v1255 = vunpack.c.l.b16 %v230
    %v1256 = vunpack.c.h.b16 %v230
    %v1257 = vunpack.c.l.b16 %v231
    %v1258 = vunpack.c.h.b16 %v231
    %v1259 = vunpack.c.l.b16 %v232
    %v1260 = vunpack.c.h.b16 %v232
    %v1261 = vunpack.c.l.b16 %v233
    %v1262 = vunpack.c.h.b16 %v233
    %v1263 = vunpack.c.l.b16 %v234
    %v1264 = vunpack.c.h.b16 %v234
    %v1265 = vunpack.c.l.b16 %v235
    %v1266 = vunpack.c.h.b16 %v235
    %v1267 = vunpack.c.l.b16 %v236
    %v1268 = vunpack.c.h.b16 %v236
    %v1269 = vunpack.c.l.b16 %v237
    %v1270 = vunpack.c.h.b16 %v237
    %v1271 = vunpack.c.l.b16 %v238
    %v1272 = vunpack.c.h.b16 %v238
    %v1273 = vunpack.c.l.b16 %v239
    %v1274 = vunpack.c.h.b16 %v239
    %v1275 = vunpack.c.l.b16 %v240
    %v1276 = vunpack.c.h.b16 %v240
    %v1277 = vunpack.c.l.b16 %v241
    %v1278 = vunpack.c.h.b16 %v241
    %v1279 = vunpack.c.l.b16 %v242
    %v1280 = vunpack.c.h.b16 %v242
    %v1281 = vunpack.c.l.b16 %v243
    %v1282 = vunpack.c.h.b16 %v243
    %v1283 = vunpack.c.l.b16 %v244
    %v1284 = vunpack.c.h.b16 %v244
    %v1285 = vunpack.c.l.b16 %v245
    %v1286 = vunpack.c.h.b16 %v245
    %v1287 = vunpack.c.l.b16 %v246
    %v1288 = vunpack.c.h.b16 %v246
    %v1289 = vunpack.c.l.b16 %v247
    %v1290 = vunpack.c.h.b16 %v247
    %v1291 = vunpack.c.l.b16 %v248
    %v1292 = vunpack.c.h.b16 %v248
    %v1293 = vunpack.c.l.b16 %v249
    %v1294 = vunpack.c.h.b16 %v249
    %v1295 = vunpack.c.l.b16 %v250
    %v1296 = vunpack.c.h.b16 %v250
    %v1297 = vunpack.c.l.b16 %v251
    %v1298 = vunpack.c.h.b16 %v251
    %v1299 = vunpack.c.l.b16 %v252
    %v1300 = vunpack.c.h.b16 %v252
    %v1301 = vunpack.c.l.b16 %v253
    %v1302 = vunpack.c.h.b16 %v253
    %v1303 = vunpack.c.l.b16 %v254
    %v1304 = vunpack.c.h.b16 %v254
    %v1305 = vunpack.c.l.b16 %v255
    %v1306 = vunpack.c.h.b16 %v255
    %v1307 = vunpack.c.l.b16 %v256
    %v1308 = vunpack.c.h.b16 %v256
    %v1309 = vunpack.c.l.b16 %v257
    %v1310 = vunpack.c.h.b16 %v257
    %v1311 = vunpack.c.l.b16 %v258
    %v1312 = vunpack.c.h.b16 %v258
    %v1313 = vunpack.c.l.b16 %v259
    %v1314 = vunpack.c.h.b16 %v259
    %v1315 = vunpack.c.l.b16 %v260
    %v1316 = vunpack.c.h.b16 %v260
    %v1317 = vunpack.c.l.b16 %v261
    %v1318 = vunpack.c.h.b16 %v261
    %v1319 = vunpack.c.l.b16 %v262
    %v1320 = vunpack.c.h.b16 %v262
    %v1321 = vunpack.c.l.b16 %v263
    %v1322 = vunpack.c.h.b16 %v263
    %v1323 = vunpack.c.l.b16 %v264
    %v1324 = vunpack.c.h.b16 %v264
    %v1325 = vunpack.c.l.b16 %v265
    %v1326 = vunpack.c.h.b16 %v265
    %v1327 = vunpack.c.l.b16 %v266
    %v1328 = vunpack.c.h.b16 %v266
    %v1329 = vunpack.c.l.b16 %v267
    %v1330 = vunpack.c.h.b16 %v267
    %v1331 = vunpack.c.l.b16 %v268
    %v1332 = vunpack.c.h.b16 %v268
    %v1333 = vunpack.c.l.b16 %v269
    %v1334 = vunpack.c.h.b16 %v269
    %v1335 = vunpack.c.l.b16 %v270
    %v1336 = vunpack.c.h.b16 %v270
    %v1337 = vunpack.c.l.b16 %v271
    %v1338 = vunpack.c.h.b16 %v271
    %v1339 = vunpack.c.l.b16 %v272
    %v1340 = vunpack.c.h.b16 %v272
    %v1341 = vunpack.c.l.b16 %v273
    %v1342 = vunpack.c.h.b16 %v273
    %v1343 = vunpack.c.l.b16 %v274
    %v1344 = vunpack.c.h.b16 %v274
    %v1345 = vunpack.c.l.b16 %v275
    %v1346 = vunpack.c.h.b16 %v275
    %v1347 = vunpack.c.l.b16 %v276
    %v1348 = vunpack.c.h.b16 %v276
    %v1349 = vunpack.c.l.b16 %v277
    %v1350 = vunpack.c.h.b16 %v277
    %v1351 = vunpack.c.l.b16 %v278
    %v1352 = vunpack.c.h.b16 %v278
    %v1353 = vunpack.c.l.b16 %v279
    %v1354 = vunpack.c.h.b16 %v279
    %v1355 = vunpack.c.l.b16 %v280
    %v1356 = vunpack.c.h.b16 %v280
    %v1357 = vunpack.c.l.b16 %v281
    %v1358 = vunpack.c.h.b16 %v281
    %v1359 = vunpack.c.l.b16 %v282
    %v1360 = vunpack.c.h.b16 %v282
    %v1361 = vunpack.c.l.b16 %v283
    %v1362 = vunpack.c.h.b16 %v283
    %v1363 = vunpack.c.l.b16 %v284
    %v1364 = vunpack.c.h.b16 %v284
    %v1365 = vunpack.c.l.b16 %v285
    %v1366 = vunpack.c.h.b16 %v285
    %v1367 = vunpack.c.l.b16 %v286
    %v1368 = vunpack.c.h.b16 %v286
    %v1369 = vunpack.c.l.b16 %v287
    %v1370 = vunpack.c.h.b16 %v287
    %v1371 = vunpack.c.l.b16 %v288
    %v1372 = vunpack.c.h.b16 %v288
    %v1373 = vunpack.c.l.b16 %v289
    %v1374 = vunpack.c.h.b16 %v289
    %v1375 = vunpack.c.l.b16 %v290
    %v1376 = vunpack.c.h.b16 %v290
    %v1377 = vunpack.c.l.b16 %v291
    %v1378 = vunpack.c.h.b16 %v291
    %v1379 = vunpack.c.l.b16 %v292
    %v1380 = vunpack.c.h.b16 %v292
    %v1381 = vunpack.c.l.b16 %v293
    %v1382 = vunpack.c.h.b16 %v293
    %v1383 = vunpack.c.l.b16 %v294
    %v1384 = vunpack.c.h.b16 %v294
    %v1385 = vunpack.c.l.b16 %v295
    %v1386 = vunpack.c.h.b16 %v295
    %v1387 = vunpack.c.l.b16 %v296
    %v1388 = vunpack.c.h.b16 %v296
    %v1389 = vunpack.c.l.b16 %v297
    %v1390 = vunpack.c.h.b16 %v297
    %v1391 = vunpack.c.l.b16 %v298
    %v1392 = vunpack.c.h.b16 %v298
    %v1393 = vunpack.c.l.b16 %v299
    %v1394 = vunpack.c.h.b16 %v299
    %v1395 = vunpack.c.l.b16 %v300
    %v1396 = vunpack.c.h.b16 %v300
    %v1397 = vunpack.c.l.b16 %v301
    %v1398 = vunpack.c.h.b16 %v301
    %v1399 = vunpack.c.l.b16 %v302
    %v1400 = vunpack.c.h.b16 %v302
    %v1401 = vunpack.c.l.b16 %v303
    %v1402 = vunpack.c.h.b16 %v303
    %v1403 = vunpack.c.l.b16 %v304
    %v1404 = vunpack.c.h.b16 %v304
    %v1405 = vunpack.c.l.b16 %v305
    %v1406 = vunpack.c.h.b16 %v305
    %v1407 = vunpack.c.l.b16 %v306
    %v1408 = vunpack.c.h.b16 %v306
    %v1409 = vunpack.c.l.b16 %v307
    %v1410 = vunpack.c.h.b16 %v307
    %v1411 = vunpack.c.l.b16 %v308
    %v1412 = vunpack.c.h.b16 %v308
    %v1413 = vunpack.c.l.b16 %v309
    %v1414 = vunpack.c.h.b16 %v309
    %v1415 = vunpack.c.l.b16 %v310
    %v1416 = vunpack.c.h.b16 %v310
    %v1417 = vunpack.c.l.b16 %v311
    %v1418 = vunpack.c.h.b16 %v311
    %v1419 = vunpack.c.l.b16 %v312
    %v1420 = vunpack.c.h.b16 %v312
    %v1421 = vunpack.c.l.b16 %v313
    %v1422 = vunpack.c.h.b16 %v313
    %v1423 = vunpack.c.l.b16 %v314
    %v1424 = vunpack.c.h.b16 %v314
    %v1425 = vunpack.c.l.b16 %v315
    %v1426 = vunpack.c.h.b16 %v315
    %v1427 = vunpack.c.l.b16 %v316
    %v1428 = vunpack.c.h.b16 %v316
    %v1429 = vunpack.c.l.b16 %v317
    %v1430 = vunpack.c.h.b16 %v317
    %v1431 = vunpack.c.l.b16 %v318
    %v1432 = vunpack.c.h.b16 %v318
    %v1433 = vunpack.c.l.b16 %v319
    %v1434 = vunpack.c.h.b16 %v319
    %v1435 = vunpack.c.l.b16 %v320
    %v1436 = vunpack.c.h.b16 %v320
    %v1437 = vunpack.c.l.b16 %v321
    %v1438 = vunpack.c.h.b16 %v321
    %v1439 = vunpack.c.l.b16 %v322
    %v1440 = vunpack.c.h.b16 %v322
    %v1441 = vunpack.c.l.b16 %v323
    %v1442 = vunpack.c.h.b16 %v323
    %v1443 = vunpack.c.l.b16 %v324
    %v1444 = vunpack.c.h.b16 %v324
    %v1445 = vunpack.c.l.b16 %v325
    %v1446 = vunpack.c.h.b16 %v325
    %v1447 = vunpack.c.l.b16 %v326
    %v1448 = vunpack.c.h.b16 %v326
    %v1449 = vunpack.c.l.b16 %v327
    %v1450 = vunpack.c.h.b16 %v327
    %v1451 = vunpack.c.l.b16 %v328
    %v1452 = vunpack.c.h.b16 %v328
    %v1453 = vunpack.c.l.b16 %v329
    %v1454 = vunpack.c.h.b16 %v329
    %v1455 = vunpack.c.l.b16 %v330
    %v1456 = vunpack.c.h.b16 %v330
    %v1457 = vunpack.c.l.b16 %v331
    %v1458 = vunpack.c.h.b16 %v331
    %v1459 = vunpack.c.l.b16 %v332
    %v1460 = vunpack.c.h.b16 %v332
    %v1461 = vunpack.c.l.b16 %v333
    %v1462 = vunpack.c.h.b16 %v333
    %v1463 = vunpack.c.l.b16 %v334
    %v1464 = vunpack.c.h.b16 %v334
    %v1465 = vunpack.c.l.b16 %v335
    %v1466 = vunpack.c.h.b16 %v335
    %v1467 = vunpack.c.l.b16 %v336
    %v1468 = vunpack.c.h.b16 %v336
    %v1469 = vunpack.c.l.b16 %v337
    %v1470 = vunpack.c.h.b16 %v337
    %v1471 = vunpack.c.l.b16 %v338
    %v1472 = vunpack.c.h.b16 %v338
    %v1473 = vunpack.c.l.b16 %v339
    %v1474 = vunpack.c.h.b16 %v339
    %v1475 = vunpack.c.l.b16 %v340
    %v1476 = vunpack.c.h.b16 %v340
    %v1477 = vunpack.c.l.b16 %v341
    %v1478 = vunpack.c.h.b16 %v341
    %v1479 = vunpack.c.l.b16 %v342
    %v1480 = vunpack.c.h.b16 %v342
    %v1481 = vunpack.c.l.b16 %v343
    %v1482 = vunpack.c.h.b16 %v343
    %v1483 = vunpack.c.l.b16 %v344
    %v1484 = vunpack.c.h.b16 %v344
    %v1485 = vunpack.c.l.b16 %v345
    %v1486 = vunpack.c.h.b16 %v345
    %v1487 = vunpack.c.l.b16 %v346
    %v1488 = vunpack.c.h.b16 %v346
    %v1489 = vunpack.c.l.b16 %v347
    %v1490 = vunpack.c.h.b16 %v347
    %v1491 = vunpack.c.l.b16 %v348
    %v1492 = vunpack.c.h.b16 %v348
    %v1493 = vunpack.c.l.b16 %v349
    %v1494 = vunpack.c.h.b16 %v349
    %v1495 = vunpack.c.l.b16 %v350
    %v1496 = vunpack.c.h.b16 %v350
    %v1497 = vunpack.c.l.b16 %v351
    %v1498 = vunpack.c.h.b16 %v351
    %v1499 = vunpack.c.l.b16 %v352
    %v1500 = vunpack.c.h.b16 %v352
    %v1501 = vunpack.c.l.b16 %v353
    %v1502 = vunpack.c.h.b16 %v353
    %v1503 = vunpack.c.l.b16 %v354
    %v1504 = vunpack.c.h.b16 %v354
    %v1505 = vunpack.c.l.b16 %v355
    %v1506 = vunpack.c.h.b16 %v355
    %v1507 = vunpack.c.l.b16 %v356
    %v1508 = vunpack.c.h.b16 %v356
    %v1509 = vunpack.c.l.b16 %v357
    %v1510 = vunpack.c.h.b16 %v357
    %v1511 = vunpack.c.l.b16 %v358
    %v1512 = vunpack.c.h.b16 %v358
    %v1513 = vunpack.c.l.b16 %v359
    %v1514 = vunpack.c.h.b16 %v359
    %v1515 = vunpack.c.l.b16 %v360
    %v1516 = vunpack.c.h.b16 %v360
    %v1517 = vunpack.c.l.b16 %v361
    %v1518 = vunpack.c.h.b16 %v361
    %v1519 = vunpack.c.l.b16 %v362
    %v1520 = vunpack.c.h.b16 %v362
    %v1521 = vunpack.c.l.b16 %v363
    %v1522 = vunpack.c.h.b16 %v363
    %v1523 = vunpack.c.l.b16 %v364
    %v1524 = vunpack.c.h.b16 %v364
    %v1525 = vunpack.c.l.b16 %v365
    %v1526 = vunpack.c.h.b16 %v365
    %v1527 = vunpack.c.l.b16 %v366
    %v1528 = vunpack.c.h.b16 %v366
    %v1529 = vunpack.c.l.b16 %v367
    %v1530 = vunpack.c.h.b16 %v367
    %v1531 = vunpack.c.l.b16 %v368
    %v1532 = vunpack.c.h.b16 %v368
    %v1533 = vunpack.c.l.b16 %v369
    %v1534 = vunpack.c.h.b16 %v369
    %v1535 = vunpack.c.l.b16 %v370
    %v1536 = vunpack.c.h.b16 %v370
    %v1537 = vunpack.c.l.b16 %v371
    %v1538 = vunpack.c.h.b16 %v371
    %v1539 = vunpack.c.l.b16 %v372
    %v1540 = vunpack.c.h.b16 %v372
    %v1541 = vunpack.c.l.b16 %v373
    %v1542 = vunpack.c.h.b16 %v373
    %v1543 = vunpack.c.l.b16 %v374
    %v1544 = vunpack.c.h.b16 %v374
    %v1545 = vunpack.c.l.b16 %v375
    %v1546 = vunpack.c.h.b16 %v375
    %v1547 = vunpack.c.l.b16 %v376
    %v1548 = vunpack.c.h.b16 %v376
    %v1549 = vunpack.c.l.b16 %v377
    %v1550 = vunpack.c.h.b16 %v377
    %v1551 = vunpack.c.l.b16 %v378
    %v1552 = vunpack.c.h.b16 %v378
    %v1553 = vunpack.c.l.b16 %v379
    %v1554 = vunpack.c.h.b16 %v379
    %v1555 = vunpack.c.l.b16 %v380
    %v1556 = vunpack.c.h.b16 %v380
    %v1557 = vunpack.c.l.b16 %v381
    %v1558 = vunpack.c.h.b16 %v381
    %v1559 = vunpack.c.l.b16 %v382
    %v1560 = vunpack.c.h.b16 %v382
    %v1561 = vunpack.c.l.b16 %v383
    %v1562 = vunpack.c.h.b16 %v383
    %v1563 = vunpack.c.l.b16 %v384
    %v1564 = vunpack.c.h.b16 %v384
    %v1565 = vunpack.c.l.b16 %v385
    %v1566 = vunpack.c.h.b16 %v385
    %v1567 = vunpack.c.l.b16 %v386
    %v1568 = vunpack.c.h.b16 %v386
    %v1569 = vunpack.c.l.b16 %v387
    %v1570 = vunpack.c.h.b16 %v387
    %v1571 = vunpack.c.l.b16 %v388
    %v1572 = vunpack.c.h.b16 %v388
    %v1573 = vunpack.c.l.b16 %v389
    %v1574 = vunpack.c.h.b16 %v389
    %v1575 = vunpack.c.l.b16 %v390
    %v1576 = vunpack.c.h.b16 %v390
    %v1577 = vunpack.c.l.b16 %v391
    %v1578 = vunpack.c.h.b16 %v391
    %v1579 = vunpack.c.l.b16 %v392
    %v1580 = vunpack.c.h.b16 %v392
    %v1581 = vunpack.c.l.b16 %v393
    %v1582 = vunpack.c.h.b16 %v393
    %v1583 = vunpack.c.l.b16 %v394
    %v1584 = vunpack.c.h.b16 %v394
    %v1585 = vunpack.c.l.b16 %v395
    %v1586 = vunpack.c.h.b16 %v395
    %v1587 = vunpack.c.l.b16 %v396
    %v1588 = vunpack.c.h.b16 %v396
    %v1589 = vunpack.c.l.b16 %v397
    %v1590 = vunpack.c.h.b16 %v397
    %v1591 = vunpack.c.l.b16 %v398
    %v1592 = vunpack.c.h.b16 %v398
    %v1593 = vunpack.c.l.b16 %v399
    %v1594 = vunpack.c.h.b16 %v399
    %v1595 = vunpack.c.l.b16 %v400
    %v1596 = vunpack.c.h.b16 %v400
    %v1597 = vunpack.c.l.b16 %v401
    %v1598 = vunpack.c.h.b16 %v401
    %v1599 = vunpack.c.l.b16 %v402
    %v1600 = vunpack.c.h.b16 %v402
    %v1601 = vunpack.c.l.b16 %v403
    %v1602 = vunpack.c.h.b16 %v403
    %v1603 = vunpack.c.l.b16 %v404
    %v1604 = vunpack.c.h.b16 %v404
    %v1605 = vunpack.c.l.b16 %v405
    %v1606 = vunpack.c.h.b16 %v405
    %v1607 = vunpack.c.l.b16 %v406
    %v1608 = vunpack.c.h.b16 %v406
    %v1609 = vunpack.c.l.b16 %v407
    %v1610 = vunpack.c.h.b16 %v407
    %v1611 = vunpack.c.l.b16 %v408
    %v1612 = vunpack.c.h.b16 %v408
    %v1613 = vunpack.c.l.b16 %v409
    %v1614 = vunpack.c.h.b16 %v409
    %v1615 = vunpack.c.l.b16 %v410
    %v1616 = vunpack.c.h.b16 %v410
    %v1617 = vunpack.c.l.b16 %v411
    %v1618 = vunpack.c.h.b16 %v411
    %v1619 = vunpack.c.l.b16 %v412
    %v1620 = vunpack.c.h.b16 %v412
    %v1621 = vunpack.c.l.b16 %v413
    %v1622 = vunpack.c.h.b16 %v413
    %v1623 = vunpack.c.l.b16 %v414
    %v1624 = vunpack.c.h.b16 %v414
    %v1625 = vunpack.c.l.b16 %v415
    %v1626 = vunpack.c.h.b16 %v415
    %v1627 = vunpack.c.l.b16 %v416
    %v1628 = vunpack.c.h.b16 %v416
    %v1629 = vunpack.c.l.b16 %v417
    %v1630 = vunpack.c.h.b16 %v417
    %v1631 = vunpack.c.l.b16 %v418
    %v1632 = vunpack.c.h.b16 %v418
    %v1633 = vunpack.c.l.b16 %v419
    %v1634 = vunpack.c.h.b16 %v419
    %v1635 = vunpack.c.l.b16 %v420
    %v1636 = vunpack.c.h.b16 %v420
    %v1637 = vunpack.c.l.b16 %v421
    %v1638 = vunpack.c.h.b16 %v421
    %v1639 = vunpack.c.l.b16 %v422
    %v1640 = vunpack.c.h.b16 %v422
    %v1641 = vunpack.c.l.b16 %v423
    %v1642 = vunpack.c.h.b16 %v423
    %v1643 = vunpack.c.l.b16 %v424
    %v1644 = vunpack.c.h.b16 %v424
    %v1645 = vunpack.c.l.b16 %v425
    %v1646 = vunpack.c.h.b16 %v425
    %v1647 = vunpack.c.l.b16 %v426
    %v1648 = vunpack.c.h.b16 %v426
    %v1649 = vunpack.c.l.b16 %v427
    %v1650 = vunpack.c.h.b16 %v427
    %v1651 = vunpack.c.l.b16 %v428
    %v1652 = vunpack.c.h.b16 %v428
    %v1653 = vunpack.c.l.b16 %v429
    %v1654 = vunpack.c.h.b16 %v429
    %v1655 = vunpack.c.l.b16 %v430
    %v1656 = vunpack.c.h.b16 %v430
    %v1657 = vunpack.c.l.b16 %v431
    %v1658 = vunpack.c.h.b16 %v431
    %v1659 = vunpack.c.l.b16 %v432
    %v1660 = vunpack.c.h.b16 %v432
    %v1661 = vunpack.c.l.b16 %v433
    %v1662 = vunpack.c.h.b16 %v433
    %v1663 = vunpack.c.l.b16 %v434
    %v1664 = vunpack.c.h.b16 %v434
    %v1665 = vunpack.c.l.b16 %v435
    %v1666 = vunpack.c.h.b16 %v435
    %v1667 = vunpack.c.l.b16 %v436
    %v1668 = vunpack.c.h.b16 %v436
    %v1669 = vunpack.c.l.b16 %v437
    %v1670 = vunpack.c.h.b16 %v437
    %v1671 = vunpack.c.l.b16 %v438
    %v1672 = vunpack.c.h.b16 %v438
    %v1673 = vunpack.c.l.b16 %v439
    %v1674 = vunpack.c.h.b16 %v439
    %v1675 = vunpack.c.l.b16 %v440
    %v1676 = vunpack.c.h.b16 %v440
    %v1677 = vunpack.c.l.b16 %v441
    %v1678 = vunpack.c.h.b16 %v441
    %v1679 = vunpack.c.l.b16 %v442
    %v1680 = vunpack.c.h.b16 %v442
    %v1681 = vunpack.c.l.b16 %v443
    %v1682 = vunpack.c.h.b16 %v443
    %v1683 = vunpack.c.l.b16 %v444
    %v1684 = vunpack.c.h.b16 %v444
    %v1685 = vunpack.c.l.b16 %v445
    %v1686 = vunpack.c.h.b16 %v445
    %v1687 = vunpack.c.l.b16 %v446
    %v1688 = vunpack.c.h.b16 %v446
    %v1689 = vunpack.c.l.b16 %v447
    %v1690 = vunpack.c.h.b16 %v447
    %v1691 = vunpack.c.l.b16 %v448
    %v1692 = vunpack.c.h.b16 %v448
    %v1693 = vunpack.c.l.b16 %v449
    %v1694 = vunpack.c.h.b16 %v449
    %v1695 = vunpack.c.l.b16 %v450
    %v1696 = vunpack.c.h.b16 %v450
    %v1697 = vunpack.c.l.b16 %v451
    %v1698 = vunpack.c.h.b16 %v451
    %v1699 = vunpack.c.l.b16 %v452
    %v1700 = vunpack.c.h.b16 %v452
    %v1701 = vunpack.c.l.b16 %v453
    %v1702 = vunpack.c.h.b16 %v453
    %v1703 = vunpack.c.l.b16 %v454
    %v1704 = vunpack.c.h.b16 %v454
    %v1705 = vunpack.c.l.b16 %v455
    %v1706 = vunpack.c.h.b16 %v455
    %v1707 = vunpack.c.l.b16 %v456
    %v1708 = vunpack.c.h.b16 %v456
    %v1709 = vunpack.c.l.b16 %v457
    %v1710 = vunpack.c.h.b16 %v457
    %v1711 = vunpack.c.l.b16 %v458
    %v1712 = vunpack.c.h.b16 %v458
    %v1713 = vunpack.c.l.b16 %v459
    %v1714 = vunpack.c.h.b16 %v459
    %v1715 = vunpack.c.l.b16 %v460
    %v1716 = vunpack.c.h.b16 %v460
    %v1717 = vunpack.c.l.b16 %v461
    %v1718 = vunpack.c.h.b16 %v461
    %v1719 = vunpack.c.l.b16 %v462
    %v1720 = vunpack.c.h.b16 %v462
    %v1721 = vunpack.c.l.b16 %v463
    %v1722 = vunpack.c.h.b16 %v463
    %v1723 = vunpack.c.l.b16 %v464
    %v1724 = vunpack.c.h.b16 %v464
    %v1725 = vunpack.c.l.b16 %v465
    %v1726 = vunpack.c.h.b16 %v465
    %v1727 = vunpack.c.l.b16 %v466
    %v1728 = vunpack.c.h.b16 %v466
    %v1729 = vunpack.c.l.b16 %v467
    %v1730 = vunpack.c.h.b16 %v467
    %v1731 = vunpack.c.l.b16 %v468
    %v1732 = vunpack.c.h.b16 %v468
    %v1733 = vunpack.c.l.b16 %v469
    %v1734 = vunpack.c.h.b16 %v469
    %v1735 = vunpack.c.l.b16 %v470
    %v1736 = vunpack.c.h.b16 %v470
    %v1737 = vunpack.c.l.b16 %v471
    %v1738 = vunpack.c.h.b16 %v471
    %v1739 = vunpack.c.l.b16 %v472
    %v1740 = vunpack.c.h.b16 %v472
    %v1741 = vunpack.c.l.b16 %v473
    %v1742 = vunpack.c.h.b16 %v473
    %v1743 = vunpack.c.l.b16 %v474
    %v1744 = vunpack.c.h.b16 %v474
    %v1745 = vunpack.c.l.b16 %v475
    %v1746 = vunpack.c.h.b16 %v475
    %v1747 = vunpack.c.l.b16 %v476
    %v1748 = vunpack.c.h.b16 %v476
    %v1749 = vunpack.c.l.b16 %v477
    %v1750 = vunpack.c.h.b16 %v477
    %v1751 = vunpack.c.l.b16 %v478
    %v1752 = vunpack.c.h.b16 %v478
    %v1753 = vunpack.c.l.b16 %v479
    %v1754 = vunpack.c.h.b16 %v479
    %v1755 = vunpack.c.l.b16 %v480
    %v1756 = vunpack.c.h.b16 %v480
    %v1757 = vunpack.c.l.b16 %v481
    %v1758 = vunpack.c.h.b16 %v481
    %v1759 = vunpack.c.l.b16 %v482
    %v1760 = vunpack.c.h.b16 %v482
    %v1761 = vunpack.c.l.b16 %v483
    %v1762 = vunpack.c.h.b16 %v483
    %v1763 = vunpack.c.l.b16 %v484
    %v1764 = vunpack.c.h.b16 %v484
    %v1765 = vunpack.c.l.b16 %v485
    %v1766 = vunpack.c.h.b16 %v485
    %v1767 = vunpack.c.l.b16 %v486
    %v1768 = vunpack.c.h.b16 %v486
    %v1769 = vunpack.c.l.b16 %v487
    %v1770 = vunpack.c.h.b16 %v487
    %v1771 = vunpack.c.l.b16 %v488
    %v1772 = vunpack.c.h.b16 %v488
    %v1773 = vunpack.c.l.b16 %v489
    %v1774 = vunpack.c.h.b16 %v489
    %v1775 = vunpack.c.l.b16 %v490
    %v1776 = vunpack.c.h.b16 %v490
    %v1777 = vunpack.c.l.b16 %v491
    %v1778 = vunpack.c.h.b16 %v491
    %v1779 = vunpack.c.l.b16 %v492
    %v1780 = vunpack.c.h.b16 %v492
    %v1781 = vunpack.c.l.b16 %v493
    %v1782 = vunpack.c.h.b16 %v493
    %v1783 = vunpack.c.l.b16 %v494
    %v1784 = vunpack.c.h.b16 %v494
    %v1785 = vunpack.c.l.b16 %v495
    %v1786 = vunpack.c.h.b16 %v495
    %v1787 = vunpack.c.l.b16 %v496
    %v1788 = vunpack.c.h.b16 %v496
    %v1789 = vunpack.c.l.b16 %v497
    %v1790 = vunpack.c.h.b16 %v497
    %v1791 = vunpack.c.l.b16 %v498
    %v1792 = vunpack.c.h.b16 %v498
    %v1793 = vunpack.c.l.b16 %v499
    %v1794 = vunpack.c.h.b16 %v499
    %v1795 = vunpack.c.l.b16 %v500
    %v1796 = vunpack.c.h.b16 %v500
    %v1797 = vunpack.c.l.b16 %v501
    %v1798 = vunpack.c.h.b16 %v501
    %v1799 = vunpack.c.l.b16 %v502
    %v1800 = vunpack.c.h.b16 %v502
    %v1801 = vunpack.c.l.b16 %v503
    %v1802 = vunpack.c.h.b16 %v503
    %v1803 = vunpack.c.l.b16 %v504
    %v1804 = vunpack.c.h.b16 %v504
    %v1805 = vunpack.c.l.b16 %v505
    %v1806 = vunpack.c.h.b16 %v505
    %v1807 = vunpack.c.l.b16 %v506
    %v1808 = vunpack.c.h.b16 %v506
    %v1809 = vunpack.c.l.b16 %v507
    %v1810 = vunpack.c.h.b16 %v507
    %v1811 = vunpack.c.l.b16 %v508
    %v1812 = vunpack.c.h.b16 %v508
    %v1813 = vunpack.c.l.b16 %v509
    %v1814 = vunpack.c.h.b16 %v509
    %v1815 = vunpack.c.l.b16 %v510
    %v1816 = vunpack.c.h.b16 %v510
    %v1817 = vunpack.c.l.b16 %v511
    %v1818 = vunpack.c.h.b16 %v511
    %v1819 = vunpack.c.l.b16 %v512
    %v1820 = vunpack.c.h.b16 %v512
    %v1821 = vunpack.c.l.b16 %v513
    %v1822 = vunpack.c.h.b16 %v513
    %v1823 = vunpack.c.l.b16 %v514
    %v1824 = vunpack.c.h.b16 %v514
    %v1825 = vunpack.c.l.b16 %v515
    %v1826 = vunpack.c.h.b16 %v515
    %v1827 = vunpack.c.l.b16 %v516
    %v1828 = vunpack.c.h.b16 %v516
    %v1829 = vunpack.c.l.b16 %v517
    %v1830 = vunpack.c.h.b16 %v517
    %v1831 = vunpack.c.l.b16 %v518
    %v1832 = vunpack.c.h.b16 %v518
    %v1833 = vunpack.c.l.b16 %v519
    %v1834 = vunpack.c.h.b16 %v519
    %v1835 = vunpack.c.l.b16 %v520
    %v1836 = vunpack.c.h.b16 %v520
    %v1837 = vunpack.c.l.b16 %v521
    %v1838 = vunpack.c.h.b16 %v521
    %v1839 = vunpack.c.l.b16 %v522
    %v1840 = vunpack.c.h.b16 %v522
    %v1841 = vunpack.c.l.b16 %v523
    %v1842 = vunpack.c.h.b16 %v523
    %v1843 = vunpack.c.l.b16 %v524
    %v1844 = vunpack.c.h.b16 %v524
    %v1845 = vunpack.c.l.b16 %v525
    %v1846 = vunpack.c.h.b16 %v525
    %v1847 = vunpack.c.l.b16 %v526
    %v1848 = vunpack.c.h.b16 %v526
    %v1849 = vunpack.c.l.b16 %v527
    %v1850 = vunpack.c.h.b16 %v527
    %v1851 = vunpack.c.l.b16 %v528
    %v1852 = vunpack.c.h.b16 %v528
    %v1853 = vunpack.c.l.b16 %v529
    %v1854 = vunpack.c.h.b16 %v529
    %v1855 = vunpack.c.l.b16 %v530
    %v1856 = vunpack.c.h.b16 %v530
    %v1857 = vunpack.c.l.b16 %v531
    %v1858 = vunpack.c.h.b16 %v531
    %v1859 = vunpack.c.l.b16 %v532
    %v1860 = vunpack.c.h.b16 %v532
    %v1861 = vunpack.c.l.b16 %v533
    %v1862 = vunpack.c.h.b16 %v533
    %v1863 = vunpack.c.l.b16 %v534
    %v1864 = vunpack.c.h.b16 %v534
    %v1865 = vunpack.c.l.b16 %v535
    %v1866 = vunpack.c.h.b16 %v535
    %v1867 = vunpack.c.l.b16 %v536
    %v1868 = vunpack.c.h.b16 %v536
    %v1869 = vunpack.c.l.b16 %v537
    %v1870 = vunpack.c.h.b16 %v537
    %v1871 = vunpack.c.l.b16 %v538
    %v1872 = vunpack.c.h.b16 %v538
    %v1873 = vunpack.c.l.b16 %v539
    %v1874 = vunpack.c.h.b16 %v539
    %v1875 = vunpack.c.l.b16 %v540
    %v1876 = vunpack.c.h.b16 %v540
    %v1877 = vunpack.c.l.b16 %v541
    %v1878 = vunpack.c.h.b16 %v541
    %v1879 = vunpack.c.l.b16 %v542
    %v1880 = vunpack.c.h.b16 %v542
    %v1881 = vunpack.c.l.b16 %v543
    %v1882 = vunpack.c.h.b16 %v543
    %v1883 = vunpack.c.l.b16 %v544
    %v1884 = vunpack.c.h.b16 %v544
    %v1885 = vunpack.c.l.b16 %v545
    %v1886 = vunpack.c.h.b16 %v545
    %v1887 = vunpack.c.l.b16 %v546
    %v1888 = vunpack.c.h.b16 %v546
    %v1889 = vunpack.c.l.b16 %v547
    %v1890 = vunpack.c.h.b16 %v547
    %v1891 = vunpack.c.l.b16 %v548
    %v1892 = vunpack.c.h.b16 %v548
    %v1893 = vunpack.c.l.b16 %v549
    %v1894 = vunpack.c.h.b16 %v549
    %v1895 = vunpack.c.l.b16 %v550
    %v1896 = vunpack.c.h.b16 %v550
    %v1897 = vunpack.c.l.b16 %v551
    %v1898 = vunpack.c.h.b16 %v551
    %v1899 = vunpack.c.l.b16 %v552
    %v1900 = vunpack.c.h.b16 %v552
    %v1901 = vunpack.c.l.b16 %v553
    %v1902 = vunpack.c.h.b16 %v553
    %v1903 = vunpack.c.l.b16 %v554
    %v1904 = vunpack.c.h.b16 %v554
    %v1905 = vunpack.c.l.b16 %v555
    %v1906 = vunpack.c.h.b16 %v555
    %v1907 = vunpack.c.l.b16 %v556
    %v1908 = vunpack.c.h.b16 %v556
    %v1909 = vunpack.c.l.b16 %v557
    %v1910 = vunpack.c.h.b16 %v557
    %v1911 = vunpack.c.l.b16 %v558
    %v1912 = vunpack.c.h.b16 %v558
    %v1913 = vunpack.c.l.b16 %v559
    %v1914 = vunpack.c.h.b16 %v559
    %v1915 = vunpack.c.l.b16 %v560
    %v1916 = vunpack.c.h.b16 %v560
    %v1917 = vunpack.c.l.b16 %v561
    %v1918 = vunpack.c.h.b16 %v561
    %v1919 = vunpack.c.l.b16 %v562
    %v1920 = vunpack.c.h.b16 %v562
    %v1921 = vunpack.c.l.b16 %v563
    %v1922 = vunpack.c.h.b16 %v563
    %v1923 = vunpack.c.l.b16 %v564
    %v1924 = vunpack.c.h.b16 %v564
    %v1925 = vunpack.c.l.b16 %v565
    %v1926 = vunpack.c.h.b16 %v565
    %v1927 = vunpack.c.l.b16 %v566
    %v1928 = vunpack.c.h.b16 %v566
    %v1929 = vunpack.c.l.b16 %v567
    %v1930 = vunpack.c.h.b16 %v567
    %v1931 = vunpack.c.l.b16 %v568
    %v1932 = vunpack.c.h.b16 %v568
    %v1933 = vunpack.c.l.b16 %v569
    %v1934 = vunpack.c.h.b16 %v569
    %v1935 = vunpack.c.l.b16 %v570
    %v1936 = vunpack.c.h.b16 %v570
    %v1937 = vunpack.c.l.b16 %v571
    %v1938 = vunpack.c.h.b16 %v571
    %v1939 = vunpack.c.l.b16 %v572
    %v1940 = vunpack.c.h.b16 %v572
    %v1941 = vunpack.c.l.b16 %v573
    %v1942 = vunpack.c.h.b16 %v573
    %v1943 = vunpack.c.l.b16 %v574
    %v1944 = vunpack.c.h.b16 %v574
    %v1945 = vunpack.c.l.b16 %v575
    %v1946 = vunpack.c.h.b16 %v575
    %v1947 = vunpack.c.l.b16 %v576
    %v1948 = vunpack.c.h.b16 %v576
    %v1949 = vunpack.c.l.b16 %v577
    %v1950 = vunpack.c.h.b16 %v577
    %v1951 = vunpack.c.l.b16 %v578
    %v1952 = vunpack.c.h.b16 %v578
    %v1953 = vunpack.c.l.b16 %v579
    %v1954 = vunpack.c.h.b16 %v579
    %v1955 = vunpack.c.l.b16 %v580
    %v1956 = vunpack.c.h.b16 %v580
    %v1957 = vunpack.c.l.b16 %v581
    %v1958 = vunpack.c.h.b16 %v581
    %v1959 = vunpack.c.l.b16 %v582
    %v1960 = vunpack.c.h.b16 %v582
    %v1961 = vunpack.c.l.b16 %v583
    %v1962 = vunpack.c.h.b16 %v583
    %v1963 = vunpack.c.l.b16 %v584
    %v1964 = vunpack.c.h.b16 %v584
    %v1965 = vunpack.c.l.b16 %v585
    %v1966 = vunpack.c.h.b16 %v585
    %v1967 = vunpack.c.l.b16 %v586
    %v1968 = vunpack.c.h.b16 %v586
    %v1969 = vunpack.c.l.b16 %v587
    %v1970 = vunpack.c.h.b16 %v587
    %v1971 = vunpack.c.l.b16 %v588
    %v1972 = vunpack.c.h.b16 %v588
    %v1973 = vunpack.c.l.b16 %v589
    %v1974 = vunpack.c.h.b16 %v589
    %v1975 = vunpack.c.l.b16 %v590
    %v1976 = vunpack.c.h.b16 %v590
    %v1977 = vunpack.c.l.b16 %v591
    %v1978 = vunpack.c.h.b16 %v591
    %v1979 = vunpack.c.l.b16 %v592
    %v1980 = vunpack.c.h.b16 %v592
    %v1981 = vunpack.c.l.b16 %v593
    %v1982 = vunpack.c.h.b16 %v593
    %v1983 = vunpack.c.l.b16 %v594
    %v1984 = vunpack.c.h.b16 %v594
    %v1985 = vunpack.c.l.b16 %v595
    %v1986 = vunpack.c.h.b16 %v595
    %v1987 = vunpack.c.l.b16 %v596
    %v1988 = vunpack.c.h.b16 %v596
    %v1989 = vunpack.c.l.b16 %v597
    %v1990 = vunpack.c.h.b16 %v597
    %v1991 = vunpack.c.l.b16 %v598
    %v1992 = vunpack.c.h.b16 %v598
    %v1993 = vunpack.c.l.b16 %v599
    %v1994 = vunpack.c.h.b16 %v599
    %v1995 = vunpack.c.l.b16 %v600
    %v1996 = vunpack.c.h.b16 %v600
    %v1997 = vunpack.c.l.b16 %v601
    %v1998 = vunpack.c.h.b16 %v601
    %v1999 = vunpack.c.l.b16 %v602
    %v2000 = vunpack.c.h.b16 %v602
    %v2001 = vunpack.c.l.b16 %v603
    %v2002 = vunpack.c.h.b16 %v603
    %v2003 = vunpack.c.l.b16 %v604
    %v2004 = vunpack.c.h.b16 %v604
    %v2005 = vunpack.c.l.b16 %v605
    %v2006 = vunpack.c.h.b16 %v605
    %v2007 = vunpack.c.l.b16 %v606
    %v2008 = vunpack.c.h.b16 %v606
    %v2009 = vunpack.c.l.b16 %v607
    %v2010 = vunpack.c.h.b16 %v607
    %v2011 = vunpack.c.l.b16 %v608
    %v2012 = vunpack.c.h.b16 %v608
    %v2013 = vunpack.c.l.b16 %v609
    %v2014 = vunpack.c.h.b16 %v609
    %v2015 = vunpack.c.l.b16 %v610
    %v2016 = vunpack.c.h.b16 %v610
    %v2017 = vunpack.c.l.b16 %v611
    %v2018 = vunpack.c.h.b16 %v611
    %v2019 = vunpack.c.l.b16 %v612
    %v2020 = vunpack.c.h.b16 %v612
    %v2021 = vunpack.c.l.b16 %v613
    %v2022 = vunpack.c.h.b16 %v613
    %v2023 = vunpack.c.l.b16 %v614
    %v2024 = vunpack.c.h.b16 %v614
    %v2025 = vunpack.c.l.b16 %v615
    %v2026 = vunpack.c.h.b16 %v615
    %v2027 = vunpack.c.l.b16 %v616
    %v2028 = vunpack.c.h.b16 %v616
    %v2029 = vunpack.c.l.b16 %v617
    %v2030 = vunpack.c.h.b16 %v617
    %v2031 = vunpack.c.l.b16 %v618
    %v2032 = vunpack.c.h.b16 %v618
    %v2033 = vunpack.c.l.b16 %v619
    %v2034 = vunpack.c.h.b16 %v619
    %v2035 = vunpack.c.l.b16 %v620
    %v2036 = vunpack.c.h.b16 %v620
    %v2037 = vunpack.c.l.b16 %v621
    %v2038 = vunpack.c.h.b16 %v621
    %v2039 = vunpack.c.l.b16 %v622
    %v2040 = vunpack.c.h.b16 %v622
    %v2041 = vunpack.c.l.b16 %v623
    %v2042 = vunpack.c.h.b16 %v623
    %v2043 = vunpack.c.l.b16 %v624
    %v2044 = vunpack.c.h.b16 %v624
    %v2045 = vunpack.c.l.b16 %v625
    %v2046 = vunpack.c.h.b16 %v625
    %v2047 = vunpack.c.l.b16 %v626
    %v2048 = vunpack.c.h.b16 %v626
    %v2049 = vunpack.c.l.b16 %v627
    %v2050 = vunpack.c.h.b16 %v627
    %v2051 = vunpack.c.l.b16 %v628
    %v2052 = vunpack.c.h.b16 %v628
    %v2053 = vunpack.c.l.b16 %v629
    %v2054 = vunpack.c.h.b16 %v629
    %v2055 = vunpack.c.l.b16 %v630
    %v2056 = vunpack.c.h.b16 %v630
    %v2057 = vunpack.c.l.b16 %v631
    %v2058 = vunpack.c.h.b16 %v631
    %v2059 = vunpack.c.l.b16 %v632
    %v2060 = vunpack.c.h.b16 %v632
    %v2061 = vunpack.c.l.b16 %v633
    %v2062 = vunpack.c.h.b16 %v633
    %v2063 = vunpack.c.l.b16 %v634
    %v2064 = vunpack.c.h.b16 %v634
    %v2065 = vunpack.c.l.b16 %v635
    %v2066 = vunpack.c.h.b16 %v635
    %v2067 = vunpack.c.l.b16 %v636
    %v2068 = vunpack.c.h.b16 %v636
    %v2069 = vunpack.c.l.b16 %v637
    %v2070 = vunpack.c.h.b16 %v637
    %v2071 = vunpack.c.l.b16 %v638
    %v2072 = vunpack.c.h.b16 %v638
    %v2073 = vunpack.c.l.b16 %v639
    %v2074 = vunpack.c.h.b16 %v639
    %v2075 = vunpack.c.l.b16 %v640
    %v2076 = vunpack.c.h.b16 %v640
    %v2077 = vunpack.c.l.b16 %v641
    %v2078 = vunpack.c.h.b16 %v641
    %v2079 = vunpack.c.l.b16 %v642
    %v2080 = vunpack.c.h.b16 %v642
    %v2081 = vunpack.c.l.b16 %v643
    %v2082 = vunpack.c.h.b16 %v643
    %v2083 = vunpack.c.l.b16 %v644
    %v2084 = vunpack.c.h.b16 %v644
    %v2085 = vunpack.c.l.b16 %v645
    %v2086 = vunpack.c.h.b16 %v645
    %v2087 = vunpack.c.l.b16 %v646
    %v2088 = vunpack.c.h.b16 %v646
    %v2089 = vunpack.c.l.b16 %v647
    %v2090 = vunpack.c.h.b16 %v647
    %v2091 = vunpack.c.l.b16 %v648
    %v2092 = vunpack.c.h.b16 %v648
    %v2093 = vunpack.c.l.b16 %v649
    %v2094 = vunpack.c.h.b16 %v649
    %v2095 = vunpack.c.l.b16 %v650
    %v2096 = vunpack.c.h.b16 %v650
    %v2097 = vunpack.c.l.b16 %v651
    %v2098 = vunpack.c.h.b16 %v651
    %v2099 = vunpack.c.l.b16 %v652
    %v2100 = vunpack.c.h.b16 %v652
    %v2101 = vunpack.c.l.b16 %v653
    %v2102 = vunpack.c.h.b16 %v653
    %v2103 = vunpack.c.l.b16 %v654
    %v2104 = vunpack.c.h.b16 %v654
    %v2105 = vunpack.c.l.b16 %v655
    %v2106 = vunpack.c.h.b16 %v655
    %v2107 = vunpack.c.l.b16 %v656
    %v2108 = vunpack.c.h.b16 %v656
    %v2109 = vunpack.c.l.b16 %v657
    %v2110 = vunpack.c.h.b16 %v657
    %v2111 = vunpack.c.l.b16 %v658
    %v2112 = vunpack.c.h.b16 %v658
    %v2113 = vunpack.c.l.b16 %v659
    %v2114 = vunpack.c.h.b16 %v659
    %v2115 = vunpack.c.l.b16 %v660
    %v2116 = vunpack.c.h.b16 %v660
    %v2117 = vunpack.c.l.b16 %v661
    %v2118 = vunpack.c.h.b16 %v661
    %v2119 = vunpack.c.l.b16 %v662
    %v2120 = vunpack.c.h.b16 %v662
    %v2121 = vunpack.c.l.b16 %v663
    %v2122 = vunpack.c.h.b16 %v663
    %v2123 = vunpack.c.l.b16 %v664
    %v2124 = vunpack.c.h.b16 %v664
    %v2125 = vunpack.c.l.b16 %v665
    %v2126 = vunpack.c.h.b16 %v665
    %v2127 = vunpack.c.l.b16 %v666
    %v2128 = vunpack.c.h.b16 %v666
    %v2129 = vunpack.c.l.b16 %v667
    %v2130 = vunpack.c.h.b16 %v667
    %v2131 = vunpack.c.l.b16 %v668
    %v2132 = vunpack.c.h.b16 %v668
    %v2133 = vunpack.c.l.b16 %v669
    %v2134 = vunpack.c.h.b16 %v669
    %v2135 = vunpack.c.l.b16 %v670
    %v2136 = vunpack.c.h.b16 %v670
    %v2137 = vunpack.c.l.b16 %v671
    %v2138 = vunpack.c.h.b16 %v671
    %v2139 = vunpack.c.l.b16 %v672
    %v2140 = vunpack.c.h.b16 %v672
    %v2141 = vunpack.c.l.b16 %v673
    %v2142 = vunpack.c.h.b16 %v673
    %v2143 = vunpack.c.l.b16 %v674
    %v2144 = vunpack.c.h.b16 %v674
    %v2145 = vunpack.c.l.b16 %v675
    %v2146 = vunpack.c.h.b16 %v675
    %v2147 = vunpack.c.l.b16 %v676
    %v2148 = vunpack.c.h.b16 %v676
    %v2149 = vpack.c.b16 %v1195, %v1189
    %v2150 = vpack.c.b16 %v1196, %v1190
    %v2151 = vpack.c.b16 %v1197, %v1191
    %v2152 = vpack.c.b16 %v1198, %v1192
    %v2153 = vpack.c.b16 %v1199, %v1193
    %v2154 = vpack.c.b16 %v1200, %v1194
    %v2155 = vpack.c.b16 %v1207, %v1201
    %v2156 = vpack.c.b16 %v1208, %v1202
    %v2157 = vpack.c.b16 %v1209, %v1203
    %v2158 = vpack.c.b16 %v1210, %v1204
    %v2159 = vpack.c.b16 %v1211, %v1205
    %v2160 = vpack.c.b16 %v1212, %v1206
    %v2161 = vpack.c.b16 %v1219, %v1213
    %v2162 = vpack.c.b16 %v1220, %v1214
    %v2163 = vpack.c.b16 %v1221, %v1215
    %v2164 = vpack.c.b16 %v1222, %v1216
    %v2165 = vpack.c.b16 %v1223, %v1217
    %v2166 = vpack.c.b16 %v1224, %v1218
    %v2167 = vpack.c.b16 %v1231, %v1225
    %v2168 = vpack.c.b16 %v1232, %v1226
    %v2169 = vpack.c.b16 %v1233, %v1227
    %v2170 = vpack.c.b16 %v1234, %v1228
    %v2171 = vpack.c.b16 %v1235, %v1229
    %v2172 = vpack.c.b16 %v1236, %v1230
    %v2173 = vpack.c.b16 %v1243, %v1237
    %v2174 = vpack.c.b16 %v1244, %v1238
    %v2175 = vpack.c.b16 %v1245, %v1239
    %v2176 = vpack.c.b16 %v1246, %v1240
    %v2177 = vpack.c.b16 %v1247, %v1241
    %v2178 = vpack.c.b16 %v1248, %v1242
    %v2179 = vpack.c.b16 %v1255, %v1249
    %v2180 = vpack.c.b16 %v1256, %v1250
    %v2181 = vpack.c.b16 %v1257, %v1251
    %v2182 = vpack.c.b16 %v1258, %v1252
    %v2183 = vpack.c.b16 %v1259, %v1253
    %v2184 = vpack.c.b16 %v1260, %v1254
    %v2185 = vpack.c.b16 %v1267, %v1261
    %v2186 = vpack.c.b16 %v1268, %v1262
    %v2187 = vpack.c.b16 %v1269, %v1263
    %v2188 = vpack.c.b16 %v1270, %v1264
    %v2189 = vpack.c.b16 %v1271, %v1265
    %v2190 = vpack.c.b16 %v1272, %v1266
    %v2191 = vpack.c.b16 %v1279, %v1273
    %v2192 = vpack.c.b16 %v1280, %v1274
    %v2193 = vpack.c.b16 %v1281, %v1275
    %v2194 = vpack.c.b16 %v1282, %v1276
    %v2195 = vpack.c.b16 %v1283, %v1277
    %v2196 = vpack.c.b16 %v1284, %v1278
    %v2197 = vpack.c.b16 %v1291, %v1285
    %v2198 = vpack.c.b16 %v1292, %v1286
    %v2199 = vpack.c.b16 %v1293, %v1287
    %v2200 = vpack.c.b16 %v1294, %v1288
    %v2201 = vpack.c.b16 %v1295, %v1289
    %v2202 = vpack.c.b16 %v1296, %v1290
    %v2203 = vpack.c.b16 %v1303, %v1297
    %v2204 = vpack.c.b16 %v1304, %v1298
    %v2205 = vpack.c.b16 %v1305, %v1299
    %v2206 = vpack.c.b16 %v1306, %v1300
    %v2207 = vpack.c.b16 %v1307, %v1301
    %v2208 = vpack.c.b16 %v1308, %v1302
    %v2209 = vpack.c.b16 %v1315, %v1309
    %v2210 = vpack.c.b16 %v1316, %v1310
    %v2211 = vpack.c.b16 %v1317, %v1311
    %v2212 = vpack.c.b16 %v1318, %v1312
    %v2213 = vpack.c.b16 %v1319, %v1313
    %v2214 = vpack.c.b16 %v1320, %v1314
    %v2215 = vpack.c.b16 %v1327, %v1321
    %v2216 = vpack.c.b16 %v1328, %v1322
    %v2217 = vpack.c.b16 %v1329, %v1323
    %v2218 = vpack.c.b16 %v1330, %v1324
    %v2219 = vpack.c.b16 %v1331, %v1325
    %v2220 = vpack.c.b16 %v1332, %v1326
    %v2221 = vpack.c.b16 %v1339, %v1333
    %v2222 = vpack.c.b16 %v1340, %v1334
    %v2223 = vpack.c.b16 %v1341, %v1335
    %v2224 = vpack.c.b16 %v1342, %v1336
    %v2225 = vpack.c.b16 %v1343, %v1337
    %v2226 = vpack.c.b16 %v1344, %v1338
    %v2227 = vpack.c.b16 %v1351, %v1345
    %v2228 = vpack.c.b16 %v1352, %v1346
    %v2229 = vpack.c.b16 %v1353, %v1347
    %v2230 = vpack.c.b16 %v1354, %v1348
    %v2231 = vpack.c.b16 %v1355, %v1349
    %v2232 = vpack.c.b16 %v1356, %v1350
    %v2233 = vpack.c.b16 %v1363, %v1357
    %v2234 = vpack.c.b16 %v1364, %v1358
    %v2235 = vpack.c.b16 %v1365, %v1359
    %v2236 = vpack.c.b16 %v1366, %v1360
    %v2237 = vpack.c.b16 %v1367, %v1361
    %v2238 = vpack.c.b16 %v1368, %v1362
    %v2239 = vpack.c.b16 %v1375, %v1369
    %v2240 = vpack.c.b16 %v1376, %v1370
    %v2241 = vpack.c.b16 %v1377, %v1371
    %v2242 = vpack.c.b16 %v1378, %v1372
    %v2243 = vpack.c.b16 %v1379, %v1373
    %v2244 = vpack.c.b16 %v1380, %v1374
    %v2245 = vpack.c.b16 %v1387, %v1381
    %v2246 = vpack.c.b16 %v1388, %v1382
    %v2247 = vpack.c.b16 %v1389, %v1383
    %v2248 = vpack.c.b16 %v1390, %v1384
    %v2249 = vpack.c.b16 %v1391, %v1385
    %v2250 = vpack.c.b16 %v1392, %v1386
    %v2251 = vpack.c.b16 %v1399, %v1393
    %v2252 = vpack.c.b16 %v1400, %v1394
    %v2253 = vpack.c.b16 %v1401, %v1395
    %v2254 = vpack.c.b16 %v1402, %v1396
    %v2255 = vpack.c.b16 %v1403, %v1397
    %v2256 = vpack.c.b16 %v1404, %v1398
    %v2257 = vpack.c.b16 %v1411, %v1405
    %v2258 = vpack.c.b16 %v1412, %v1406
    %v2259 = vpack.c.b16 %v1413, %v1407
    %v2260 = vpack.c.b16 %v1414, %v1408
    %v2261 = vpack.c.b16 %v1415, %v1409
    %v2262 = vpack.c.b16 %v1416, %v1410
    %v2263 = vpack.c.b16 %v1423, %v1417
    %v2264 = vpack.c.b16 %v1424, %v1418
    %v2265 = vpack.c.b16 %v1425, %v1419
    %v2266 = vpack.c.b16 %v1426, %v1420
    %v2267 = vpack.c.b16 %v1427, %v1421
    %v2268 = vpack.c.b16 %v1428, %v1422
    %v2269 = vpack.c.b16 %v1435, %v1429
    %v2270 = vpack.c.b16 %v1436, %v1430
    %v2271 = vpack.c.b16 %v1437, %v1431
    %v2272 = vpack.c.b16 %v1438, %v1432
    %v2273 = vpack.c.b16 %v1439, %v1433
    %v2274 = vpack.c.b16 %v1440, %v1434
    %v2275 = vpack.c.b16 %v1447, %v1441
    %v2276 = vpack.c.b16 %v1448, %v1442
    %v2277 = vpack.c.b16 %v1449, %v1443
    %v2278 = vpack.c.b16 %v1450, %v1444
    %v2279 = vpack.c.b16 %v1451, %v1445
    %v2280 = vpack.c.b16 %v1452, %v1446
    %v2281 = vpack.c.b16 %v1459, %v1453
    %v2282 = vpack.c.b16 %v1460, %v1454
    %v2283 = vpack.c.b16 %v1461, %v1455
    %v2284 = vpack.c.b16 %v1462, %v1456
    %v2285 = vpack.c.b16 %v1463, %v1457
    %v2286 = vpack.c.b16 %v1464, %v1458
    %v2287 = vpack.c.b16 %v1471, %v1465
    %v2288 = vpack.c.b16 %v1472, %v1466
    %v2289 = vpack.c.b16 %v1473, %v1467
    %v2290 = vpack.c.b16 %v1474, %v1468
    %v2291 = vpack.c.b16 %v1475, %v1469
    %v2292 = vpack.c.b16 %v1476, %v1470
    %v2293 = vpack.c.b16 %v1483, %v1477
    %v2294 = vpack.c.b16 %v1484, %v1478
    %v2295 = vpack.c.b16 %v1485, %v1479
    %v2296 = vpack.c.b16 %v1486, %v1480
    %v2297 = vpack.c.b16 %v1487, %v1481
    %v2298 = vpack.c.b16 %v1488, %v1482
    %v2299 = vpack.c.b16 %v1495, %v1489
    %v2300 = vpack.c.b16 %v1496, %v1490
    %v2301 = vpack.c.b16 %v1497, %v1491
    %v2302 = vpack.c.b16 %v1498, %v1492
    %v2303 = vpack.c.b16 %v1499, %v1493
    %v2304 = vpack.c.b16 %v1500, %v1494
    %v2305 = vpack.c.b16 %v1507, %v1501
    %v2306 = vpack.c.b16 %v1508, %v1502
    %v2307 = vpack.c.b16 %v1509, %v1503
    %v2308 = vpack.c.b16 %v1510, %v1504
    %v2309 = vpack.c.b16 %v1511, %v1505
    %v2310 = vpack.c.b16 %v1512, %v1506
    %v2311 = vpack.c.b16 %v1519, %v1513
    %v2312 = vpack.c.b16 %v1520, %v1514
    %v2313 = vpack.c.b16 %v1521, %v1515
    %v2314 = vpack.c.b16 %v1522, %v1516
    %v2315 = vpack.c.b16 %v1523, %v1517
    %v2316 = vpack.c.b16 %v1524, %v1518
    %v2317 = vpack.c.b16 %v1531, %v1525
    %v2318 = vpack.c.b16 %v1532, %v1526
    %v2319 = vpack.c.b16 %v1533, %v1527
    %v2320 = vpack.c.b16 %v1534, %v1528
    %v2321 = vpack.c.b16 %v1535, %v1529
    %v2322 = vpack.c.b16 %v1536, %v1530
    %v2323 = vpack.c.b16 %v1543, %v1537
    %v2324 = vpack.c.b16 %v1544, %v1538
    %v2325 = vpack.c.b16 %v1545, %v1539
    %v2326 = vpack.c.b16 %v1546, %v1540
    %v2327 = vpack.c.b16 %v1547, %v1541
    %v2328 = vpack.c.b16 %v1548, %v1542
    %v2329 = vpack.c.b16 %v1555, %v1549
    %v2330 = vpack.c.b16 %v1556, %v1550
    %v2331 = vpack.c.b16 %v1557, %v1551
    %v2332 = vpack.c.b16 %v1558, %v1552
    %v2333 = vpack.c.b16 %v1559, %v1553
    %v2334 = vpack.c.b16 %v1560, %v1554
    %v2335 = vpack.c.b16 %v1567, %v1561
    %v2336 = vpack.c.b16 %v1568, %v1562
    %v2337 = vpack.c.b16 %v1569, %v1563
    %v2338 = vpack.c.b16 %v1570, %v1564
    %v2339 = vpack.c.b16 %v1571, %v1565
    %v2340 = vpack.c.b16 %v1572, %v1566
    %v2341 = vpack.c.b16 %v1579, %v1573
    %v2342 = vpack.c.b16 %v1580, %v1574
    %v2343 = vpack.c.b16 %v1581, %v1575
    %v2344 = vpack.c.b16 %v1582, %v1576
    %v2345 = vpack.c.b16 %v1583, %v1577
    %v2346 = vpack.c.b16 %v1584, %v1578
    %v2347 = vpack.c.b16 %v1591, %v1585
    %v2348 = vpack.c.b16 %v1592, %v1586
    %v2349 = vpack.c.b16 %v1593, %v1587
    %v2350 = vpack.c.b16 %v1594, %v1588
    %v2351 = vpack.c.b16 %v1595, %v1589
    %v2352 = vpack.c.b16 %v1596, %v1590
    %v2353 = vpack.c.b16 %v1603, %v1597
    %v2354 = vpack.c.b16 %v1604, %v1598
    %v2355 = vpack.c.b16 %v1605, %v1599
    %v2356 = vpack.c.b16 %v1606, %v1600
    %v2357 = vpack.c.b16 %v1607, %v1601
    %v2358 = vpack.c.b16 %v1608, %v1602
    %v2359 = vpack.c.b16 %v1615, %v1609
    %v2360 = vpack.c.b16 %v1616, %v1610
    %v2361 = vpack.c.b16 %v1617, %v1611
    %v2362 = vpack.c.b16 %v1618, %v1612
    %v2363 = vpack.c.b16 %v1619, %v1613
    %v2364 = vpack.c.b16 %v1620, %v1614
    %v2365 = vpack.c.b16 %v1627, %v1621
    %v2366 = vpack.c.b16 %v1628, %v1622
    %v2367 = vpack.c.b16 %v1629, %v1623
    %v2368 = vpack.c.b16 %v1630, %v1624
    %v2369 = vpack.c.b16 %v1631, %v1625
    %v2370 = vpack.c.b16 %v1632, %v1626
    %v2371 = vpack.c.b16 %v1639, %v1633
    %v2372 = vpack.c.b16 %v1640, %v1634
    %v2373 = vpack.c.b16 %v1641, %v1635
    %v2374 = vpack.c.b16 %v1642, %v1636
    %v2375 = vpack.c.b16 %v1643, %v1637
    %v2376 = vpack.c.b16 %v1644, %v1638
    %v2377 = vpack.c.b16 %v1651, %v1645
    %v2378 = vpack.c.b16 %v1652, %v1646
    %v2379 = vpack.c.b16 %v1653, %v1647
    %v2380 = vpack.c.b16 %v1654, %v1648
    %v2381 = vpack.c.b16 %v1655, %v1649
    %v2382 = vpack.c.b16 %v1656, %v1650
    %v2383 = vpack.c.b16 %v1663, %v1657
    %v2384 = vpack.c.b16 %v1664, %v1658
    %v2385 = vpack.c.b16 %v1665, %v1659
    %v2386 = vpack.c.b16 %v1666, %v1660
    %v2387 = vpack.c.b16 %v1667, %v1661
    %v2388 = vpack.c.b16 %v1668, %v1662
    %v2389 = vpack.c.b16 %v1675, %v1669
    %v2390 = vpack.c.b16 %v1676, %v1670
    %v2391 = vpack.c.b16 %v1677, %v1671
    %v2392 = vpack.c.b16 %v1678, %v1672
    %v2393 = vpack.c.b16 %v1679, %v1673
    %v2394 = vpack.c.b16 %v1680, %v1674
    %v2395 = vpack.c.b16 %v1687, %v1681
    %v2396 = vpack.c.b16 %v1688, %v1682
    %v2397 = vpack.c.b16 %v1689, %v1683
    %v2398 = vpack.c.b16 %v1690, %v1684
    %v2399 = vpack.c.b16 %v1691, %v1685
    %v2400 = vpack.c.b16 %v1692, %v1686
    %v2401 = vpack.c.b16 %v1699, %v1693
    %v2402 = vpack.c.b16 %v1700, %v1694
    %v2403 = vpack.c.b16 %v1701, %v1695
    %v2404 = vpack.c.b16 %v1702, %v1696
    %v2405 = vpack.c.b16 %v1703, %v1697
    %v2406 = vpack.c.b16 %v1704, %v1698
    %v2407 = vpack.c.b16 %v1711, %v1705
    %v2408 = vpack.c.b16 %v1712, %v1706
    %v2409 = vpack.c.b16 %v1713, %v1707
    %v2410 = vpack.c.b16 %v1714, %v1708
    %v2411 = vpack.c.b16 %v1715, %v1709
    %v2412 = vpack.c.b16 %v1716, %v1710
    %v2413 = vpack.c.b16 %v1723, %v1717
    %v2414 = vpack.c.b16 %v1724, %v1718
    %v2415 = vpack.c.b16 %v1725, %v1719
    %v2416 = vpack.c.b16 %v1726, %v1720
    %v2417 = vpack.c.b16 %v1727, %v1721
    %v2418 = vpack.c.b16 %v1728, %v1722
    %v2419 = vpack.c.b16 %v1735, %v1729
    %v2420 = vpack.c.b16 %v1736, %v1730
    %v2421 = vpack.c.b16 %v1737, %v1731
    %v2422 = vpack.c.b16 %v1738, %v1732
    %v2423 = vpack.c.b16 %v1739, %v1733
    %v2424 = vpack.c.b16 %v1740, %v1734
    %v2425 = vpack.c.b16 %v1747, %v1741
    %v2426 = vpack.c.b16 %v1748, %v1742
    %v2427 = vpack.c.b16 %v1749, %v1743
    %v2428 = vpack.c.b16 %v1750, %v1744
    %v2429 = vpack.c.b16 %v1751, %v1745
    %v2430 = vpack.c.b16 %v1752, %v1746
    %v2431 = vpack.c.b16 %v1759, %v1753
    %v2432 = vpack.c.b16 %v1760, %v1754
    %v2433 = vpack.c.b16 %v1761, %v1755
    %v2434 = vpack.c.b16 %v1762, %v1756
    %v2435 = vpack.c.b16 %v1763, %v1757
    %v2436 = vpack.c.b16 %v1764, %v1758
    %v2437 = vpack.c.b16 %v1771, %v1765
    %v2438 = vpack.c.b16 %v1772, %v1766
    %v2439 = vpack.c.b16 %v1773, %v1767
    %v2440 = vpack.c.b16 %v1774, %v1768
    %v2441 = vpack.c.b16 %v1775, %v1769
    %v2442 = vpack.c.b16 %v1776, %v1770
    %v2443 = vpack.c.b16 %v1783, %v1777
    %v2444 = vpack.c.b16 %v1784, %v1778
    %v2445 = vpack.c.b16 %v1785, %v1779
    %v2446 = vpack.c.b16 %v1786, %v1780
    %v2447 = vpack.c.b16 %v1787, %v1781
    %v2448 = vpack.c.b16 %v1788, %v1782
    %v2449 = vpack.c.b16 %v1795, %v1789
    %v2450 = vpack.c.b16 %v1796, %v1790
    %v2451 = vpack.c.b16 %v1797, %v1791
    %v2452 = vpack.c.b16 %v1798, %v1792
    %v2453 = vpack.c.b16 %v1799, %v1793
    %v2454 = vpack.c.b16 %v1800, %v1794
    %v2455 = vpack.c.b16 %v1807, %v1801
    %v2456 = vpack.c.b16 %v1808, %v1802
    %v2457 = vpack.c.b16 %v1809, %v1803
    %v2458 = vpack.c.b16 %v1810, %v1804
    %v2459 = vpack.c.b16 %v1811, %v1805
    %v2460 = vpack.c.b16 %v1812, %v1806
    %v2461 = vpack.c.b16 %v1819, %v1813
    %v2462 = vpack.c.b16 %v1820, %v1814
    %v2463 = vpack.c.b16 %v1821, %v1815
    %v2464 = vpack.c.b16 %v1822, %v1816
    %v2465 = vpack.c.b16 %v1823, %v1817
    %v2466 = vpack.c.b16 %v1824, %v1818
    %v2467 = vpack.c.b16 %v1831, %v1825
    %v2468 = vpack.c.b16 %v1832, %v1826
    %v2469 = vpack.c.b16 %v1833, %v1827
    %v2470 = vpack.c.b16 %v1834, %v1828
    %v2471 = vpack.c.b16 %v1835, %v1829
    %v2472 = vpack.c.b16 %v1836, %v1830
    %v2473 = vpack.c.b16 %v1843, %v1837
    %v2474 = vpack.c.b16 %v1844, %v1838
    %v2475 = vpack.c.b16 %v1845, %v1839
    %v2476 = vpack.c.b16 %v1846, %v1840
    %v2477 = vpack.c.b16 %v1847, %v1841
    %v2478 = vpack.c.b16 %v1848, %v1842
    %v2479 = vpack.c.b16 %v1855, %v1849
    %v2480 = vpack.c.b16 %v1856, %v1850
    %v2481 = vpack.c.b16 %v1857, %v1851
    %v2482 = vpack.c.b16 %v1858, %v1852
    %v2483 = vpack.c.b16 %v1859, %v1853
    %v2484 = vpack.c.b16 %v1860, %v1854
    %v2485 = vpack.c.b16 %v1867, %v1861
    %v2486 = vpack.c.b16 %v1868, %v1862
    %v2487 = vpack.c.b16 %v1869, %v1863
    %v2488 = vpack.c.b16 %v1870, %v1864
    %v2489 = vpack.c.b16 %v1871, %v1865
    %v2490 = vpack.c.b16 %v1872, %v1866
    %v2491 = vpack.c.b16 %v1879, %v1873
    %v2492 = vpack.c.b16 %v1880, %v1874
    %v2493 = vpack.c.b16 %v1881, %v1875
    %v2494 = vpack.c.b16 %v1882, %v1876
    %v2495 = vpack.c.b16 %v1883, %v1877
    %v2496 = vpack.c.b16 %v1884, %v1878
    %v2497 = vpack.c.b16 %v1891, %v1885
    %v2498 = vpack.c.b16 %v1892, %v1886
    %v2499 = vpack.c.b16 %v1893, %v1887
    %v2500 = vpack.c.b16 %v1894, %v1888
    %v2501 = vpack.c.b16 %v1895, %v1889
    %v2502 = vpack.c.b16 %v1896, %v1890
    %v2503 = vpack.c.b16 %v1903, %v1897
    %v2504 = vpack.c.b16 %v1904, %v1898
    %v2505 = vpack.c.b16 %v1905, %v1899
    %v2506 = vpack.c.b16 %v1906, %v1900
    %v2507 = vpack.c.b16 %v1907, %v1901
    %v2508 = vpack.c.b16 %v1908, %v1902
    %v2509 = vpack.c.b16 %v1915, %v1909
    %v2510 = vpack.c.b16 %v1916, %v1910
    %v2511 = vpack.c.b16 %v1917, %v1911
    %v2512 = vpack.c.b16 %v1918, %v1912
    %v2513 = vpack.c.b16 %v1919, %v1913
    %v2514 = vpack.c.b16 %v1920, %v1914
    %v2515 = vpack.c.b16 %v1927, %v1921
    %v2516 = vpack.c.b16 %v1928, %v1922
    %v2517 = vpack.c.b16 %v1929, %v1923
    %v2518 = vpack.c.b16 %v1930, %v1924
    %v2519 = vpack.c.b16 %v1931, %v1925
    %v2520 = vpack.c.b16 %v1932, %v1926
    %v2521 = vpack.c.b16 %v1939, %v1933
    %v2522 = vpack.c.b16 %v1940, %v1934
    %v2523 = vpack.c.b16 %v1941, %v1935
    %v2524 = vpack.c.b16 %v1942, %v1936
    %v2525 = vpack.c.b16 %v1943, %v1937
    %v2526 = vpack.c.b16 %v1944, %v1938
    %v2527 = vpack.c.b16 %v1951, %v1945
    %v2528 = vpack.c.b16 %v1952, %v1946
    %v2529 = vpack.c.b16 %v1953, %v1947
    %v2530 = vpack.c.b16 %v1954, %v1948
    %v2531 = vpack.c.b16 %v1955, %v1949
    %v2532 = vpack.c.b16 %v1956, %v1950
    %v2533 = vpack.c.b16 %v1963, %v1957
    %v2534 = vpack.c.b16 %v1964, %v1958
    %v2535 = vpack.c.b16 %v1965, %v1959
    %v2536 = vpack.c.b16 %v1966, %v1960
    %v2537 = vpack.c.b16 %v1967, %v1961
    %v2538 = vpack.c.b16 %v1968, %v1962
    %v2539 = vpack.c.b16 %v1975, %v1969
    %v2540 = vpack.c.b16 %v1976, %v1970
    %v2541 = vpack.c.b16 %v1977, %v1971
    %v2542 = vpack.c.b16 %v1978, %v1972
    %v2543 = vpack.c.b16 %v1979, %v1973
    %v2544 = vpack.c.b16 %v1980, %v1974
    %v2545 = vpack.c.b16 %v1987, %v1981
    %v2546 = vpack.c.b16 %v1988, %v1982
    %v2547 = vpack.c.b16 %v1989, %v1983
    %v2548 = vpack.c.b16 %v1990, %v1984
    %v2549 = vpack.c.b16 %v1991, %v1985
    %v2550 = vpack.c.b16 %v1992, %v1986
    %v2551 = vpack.c.b16 %v1999, %v1993
    %v2552 = vpack.c.b16 %v2000, %v1994
    %v2553 = vpack.c.b16 %v2001, %v1995
    %v2554 = vpack.c.b16 %v2002, %v1996
    %v2555 = vpack.c.b16 %v2003, %v1997
    %v2556 = vpack.c.b16 %v2004, %v1998
    %v2557 = vpack.c.b16 %v2011, %v2005
    %v2558 = vpack.c.b16 %v2012, %v2006
    %v2559 = vpack.c.b16 %v2013, %v2007
    %v2560 = vpack.c.b16 %v2014, %v2008
    %v2561 = vpack.c.b16 %v2015, %v2009
    %v2562 = vpack.c.b16 %v2016, %v2010
    %v2563 = vpack.c.b16 %v2023, %v2017
    %v2564 = vpack.c.b16 %v2024, %v2018
    %v2565 = vpack.c.b16 %v2025, %v2019
    %v2566 = vpack.c.b16 %v2026, %v2020
    %v2567 = vpack.c.b16 %v2027, %v2021
    %v2568 = vpack.c.b16 %v2028, %v2022
    %v2569 = vpack.c.b16 %v2035, %v2029
    %v2570 = vpack.c.b16 %v2036, %v2030
    %v2571 = vpack.c.b16 %v2037, %v2031
    %v2572 = vpack.c.b16 %v2038, %v2032
    %v2573 = vpack.c.b16 %v2039, %v2033
    %v2574 = vpack.c.b16 %v2040, %v2034
    %v2575 = vpack.c.b16 %v2047, %v2041
    %v2576 = vpack.c.b16 %v2048, %v2042
    %v2577 = vpack.c.b16 %v2049, %v2043
    %v2578 = vpack.c.b16 %v2050, %v2044
    %v2579 = vpack.c.b16 %v2051, %v2045
    %v2580 = vpack.c.b16 %v2052, %v2046
    %v2581 = vpack.c.b16 %v2059, %v2053
    %v2582 = vpack.c.b16 %v2060, %v2054
    %v2583 = vpack.c.b16 %v2061, %v2055
    %v2584 = vpack.c.b16 %v2062, %v2056
    %v2585 = vpack.c.b16 %v2063, %v2057
    %v2586 = vpack.c.b16 %v2064, %v2058
    %v2587 = vpack.c.b16 %v2071, %v2065
    %v2588 = vpack.c.b16 %v2072, %v2066
    %v2589 = vpack.c.b16 %v2073, %v2067
    %v2590 = vpack.c.b16 %v2074, %v2068
    %v2591 = vpack.c.b16 %v2075, %v2069
    %v2592 = vpack.c.b16 %v2076, %v2070
    %v2593 = vpack.c.b16 %v2083, %v2077
    %v2594 = vpack.c.b16 %v2084, %v2078
    %v2595 = vpack.c.b16 %v2085, %v2079
    %v2596 = vpack.c.b16 %v2086, %v2080
    %v2597 = vpack.c.b16 %v2087, %v2081
    %v2598 = vpack.c.b16 %v2088, %v2082
    %v2599 = vpack.c.b16 %v2095, %v2089
    %v2600 = vpack.c.b16 %v2096, %v2090
    %v2601 = vpack.c.b16 %v2097, %v2091
    %v2602 = vpack.c.b16 %v2098, %v2092
    %v2603 = vpack.c.b16 %v2099, %v2093
    %v2604 = vpack.c.b16 %v2100, %v2094
    %v2605 = vpack.c.b16 %v2107, %v2101
    %v2606 = vpack.c.b16 %v2108, %v2102
    %v2607 = vpack.c.b16 %v2109, %v2103
    %v2608 = vpack.c.b16 %v2110, %v2104
    %v2609 = vpack.c.b16 %v2111, %v2105
    %v2610 = vpack.c.b16 %v2112, %v2106
    %v2611 = vpack.c.b16 %v2119, %v2113
    %v2612 = vpack.c.b16 %v2120, %v2114
    %v2613 = vpack.c.b16 %v2121, %v2115
    %v2614 = vpack.c.b16 %v2122, %v2116
    %v2615 = vpack.c.b16 %v2123, %v2117
    %v2616 = vpack.c.b16 %v2124, %v2118
    %v2617 = vpack.c.b16 %v2131, %v2125
    %v2618 = vpack.c.b16 %v2132, %v2126
    %v2619 = vpack.c.b16 %v2133, %v2127
    %v2620 = vpack.c.b16 %v2134, %v2128
    %v2621 = vpack.c.b16 %v2135, %v2129
    %v2622 = vpack.c.b16 %v2136, %v2130
    %v2623 = vpack.c.b16 %v2143, %v2137
    %v2624 = vpack.c.b16 %v2144, %v2138
    %v2625 = vpack.c.b16 %v2145, %v2139
    %v2626 = vpack.c.b16 %v2146, %v2140
    %v2627 = vpack.c.b16 %v2147, %v2141
    %v2628 = vpack.c.b16 %v2148, %v2142
    %3109 = vmatprep.subr.bf16.mxu0 %v2192
    %3110 = vmatpush1.bf16.msra.mxu0 %v2191
    %3111 = vmatprep.subr.bf16.mxu0 %v2186
    %3112 = vmatpush1.bf16.msra.mxu0 %v2185
    %3113 = vmatprep.subr.bf16.mxu0 %v2180
    %3114 = vmatpush1.bf16.msra.mxu0 %v2179
    %3115 = vmatprep.subr.bf16.mxu0 %v2174
    %3116 = vmatpush1.bf16.msra.mxu0 %v2173
    %3117 = vmatprep.subr.bf16.mxu0 %v2168
    %3118 = vmatpush1.bf16.msra.mxu0 %v2167
    %3119 = vmatprep.subr.bf16.mxu0 %v2162
    %3120 = vmatpush1.bf16.msra.mxu0 %v2161
    %3121 = vmatprep.subr.bf16.mxu0 %v2156
    %3122 = vmatpush1.bf16.msra.mxu0 %v2155
    %3123 = vmatprep.subr.bf16.mxu0 %v2150
    %3124 = vmatpush1.bf16.msra.mxu0 %v2149
    %3125 = vmatprep.subr.bf16.mxu0 %v2240
    %3126 = vmatpush2.bf16.msra.mxu0 %v2239
    %3127 = vmatprep.subr.bf16.mxu0 %v2234
    %3128 = vmatpush2.bf16.msra.mxu0 %v2233
    %3129 = vmatprep.subr.bf16.mxu0 %v2228
    %3130 = vmatpush2.bf16.msra.mxu0 %v2227
    %3131 = vmatprep.subr.bf16.mxu0 %v2222
    %3132 = vmatpush2.bf16.msra.mxu0 %v2221
    %3133 = vmatprep.subr.bf16.mxu0 %v2216
    %3134 = vmatpush2.bf16.msra.mxu0 %v2215
    %3135 = vmatprep.subr.bf16.mxu0 %v2210
    %3136 = vmatpush2.bf16.msra.mxu0 %v2209
    %3137 = vmatprep.subr.bf16.mxu0 %v2204
    %3138 = vmatpush2.bf16.msra.mxu0 %v2203
    %3139 = vmatprep.subr.bf16.mxu0 %v2198
    %3140 = vmatpush2.bf16.msra.mxu0 %v2197
    %3141 = vmatprep.mubr.bf16.mxu0 %v188
    %3142 = vmatmul.mubr.bf16.gmra.mxu0 %v187
    %v3143 = vpop.f32.mrf.mxu0
    %v3144 = vadd.f32 %v682, %v3143
    %v3145 = vpop.f32.mrf.mxu0
    %v3146 = vadd.f32 %v686, %v3145
    %v3147 = vpop.f32.mrf.mxu0
    %v3148 = vpop.f32.mrf.mxu0
    %3149 = vdwg.mxu0
    %3150 = vmatprep.subr.bf16.mxu0 %v2288
    %3151 = vmatpush1.bf16.msra.mxu0 %v2287
    %3152 = vmatprep.subr.bf16.mxu0 %v2282
    %3153 = vmatpush1.bf16.msra.mxu0 %v2281
    %3154 = vmatprep.subr.bf16.mxu0 %v2276
    %3155 = vmatpush1.bf16.msra.mxu0 %v2275
    %3156 = vmatprep.subr.bf16.mxu0 %v2270
    %3157 = vmatpush1.bf16.msra.mxu0 %v2269
    %3158 = vmatprep.subr.bf16.mxu0 %v2264
    %3159 = vmatpush1.bf16.msra.mxu0 %v2263
    %3160 = vmatprep.subr.bf16.mxu0 %v2258
    %3161 = vmatpush1.bf16.msra.mxu0 %v2257
    %3162 = vmatprep.subr.bf16.mxu0 %v2252
    %3163 = vmatpush1.bf16.msra.mxu0 %v2251
    %3164 = vmatprep.subr.bf16.mxu0 %v2246
    %3165 = vmatpush1.bf16.msra.mxu0 %v2245
    %3166 = vmatprep.subr.bf16.mxu0 %v2336
    %3167 = vmatpush2.bf16.msra.mxu0 %v2335
    %3168 = vmatprep.subr.bf16.mxu0 %v2330
    %3169 = vmatpush2.bf16.msra.mxu0 %v2329
    %3170 = vmatprep.subr.bf16.mxu0 %v2324
    %3171 = vmatpush2.bf16.msra.mxu0 %v2323
    %3172 = vmatprep.subr.bf16.mxu0 %v2318
    %3173 = vmatpush2.bf16.msra.mxu0 %v2317
    %3174 = vmatprep.subr.bf16.mxu0 %v2312
    %3175 = vmatpush2.bf16.msra.mxu0 %v2311
    %3176 = vmatprep.subr.bf16.mxu0 %v2306
    %3177 = vmatpush2.bf16.msra.mxu0 %v2305
    %3178 = vmatprep.subr.bf16.mxu0 %v2300
    %3179 = vmatpush2.bf16.msra.mxu0 %v2299
    %3180 = vmatprep.subr.bf16.mxu0 %v2294
    %3181 = vmatpush2.bf16.msra.mxu0 %v2293
    %3182 = vmatprep.mubr.bf16.mxu0 %v190
    %3183 = vmatmul.mubr.bf16.gmra.mxu0 %v189
    %v3184 = vpop.f32.mrf.mxu0
    %v3185 = vadd.f32 %v3144, %v3184
    %v3186 = vpop.f32.mrf.mxu0
    %v3187 = vadd.f32 %v3146, %v3186
    %v3188 = vpop.f32.mrf.mxu0
    %v3189 = vpop.f32.mrf.mxu0
    %3190 = vdwg.mxu0
    %3191 = vmatprep.subr.bf16.mxu0 %v2384
    %3192 = vmatpush1.bf16.msra.mxu0 %v2383
    %3193 = vmatprep.subr.bf16.mxu0 %v2378
    %3194 = vmatpush1.bf16.msra.mxu0 %v2377
    %3195 = vmatprep.subr.bf16.mxu0 %v2372
    %3196 = vmatpush1.bf16.msra.mxu0 %v2371
    %3197 = vmatprep.subr.bf16.mxu0 %v2366
    %3198 = vmatpush1.bf16.msra.mxu0 %v2365
    %3199 = vmatprep.subr.bf16.mxu0 %v2360
    %3200 = vmatpush1.bf16.msra.mxu0 %v2359
    %3201 = vmatprep.subr.bf16.mxu0 %v2354
    %3202 = vmatpush1.bf16.msra.mxu0 %v2353
    %3203 = vmatprep.subr.bf16.mxu0 %v2348
    %3204 = vmatpush1.bf16.msra.mxu0 %v2347
    %3205 = vmatprep.subr.bf16.mxu0 %v2342
    %3206 = vmatpush1.bf16.msra.mxu0 %v2341
    %3207 = vmatprep.subr.bf16.mxu0 %v2432
    %3208 = vmatpush2.bf16.msra.mxu0 %v2431
    %3209 = vmatprep.subr.bf16.mxu0 %v2426
    %3210 = vmatpush2.bf16.msra.mxu0 %v2425
    %3211 = vmatprep.subr.bf16.mxu0 %v2420
    %3212 = vmatpush2.bf16.msra.mxu0 %v2419
    %3213 = vmatprep.subr.bf16.mxu0 %v2414
    %3214 = vmatpush2.bf16.msra.mxu0 %v2413
    %3215 = vmatprep.subr.bf16.mxu0 %v2408
    %3216 = vmatpush2.bf16.msra.mxu0 %v2407
    %3217 = vmatprep.subr.bf16.mxu0 %v2402
    %3218 = vmatpush2.bf16.msra.mxu0 %v2401
    %3219 = vmatprep.subr.bf16.mxu0 %v2396
    %3220 = vmatpush2.bf16.msra.mxu0 %v2395
    %3221 = vmatprep.subr.bf16.mxu0 %v2390
    %3222 = vmatpush2.bf16.msra.mxu0 %v2389
    %3223 = vmatprep.mubr.bf16.mxu0 %v192
    %3224 = vmatmul.mubr.bf16.gmra.mxu0 %v191
    %v3225 = vpop.f32.mrf.mxu0
    %v3226 = vadd.f32 %v3185, %v3225
    %v3227 = vpop.f32.mrf.mxu0
    %v3228 = vadd.f32 %v3187, %v3227
    %v3229 = vpop.f32.mrf.mxu0
    %v3230 = vpop.f32.mrf.mxu0
    %3231 = vdwg.mxu0
    %3232 = vmatprep.subr.bf16.mxu0 %v2480
    %3233 = vmatpush1.bf16.msra.mxu0 %v2479
    %3234 = vmatprep.subr.bf16.mxu0 %v2474
    %3235 = vmatpush1.bf16.msra.mxu0 %v2473
    %3236 = vmatprep.subr.bf16.mxu0 %v2468
    %3237 = vmatpush1.bf16.msra.mxu0 %v2467
    %3238 = vmatprep.subr.bf16.mxu0 %v2462
    %3239 = vmatpush1.bf16.msra.mxu0 %v2461
    %3240 = vmatprep.subr.bf16.mxu0 %v2456
    %3241 = vmatpush1.bf16.msra.mxu0 %v2455
    %3242 = vmatprep.subr.bf16.mxu0 %v2450
    %3243 = vmatpush1.bf16.msra.mxu0 %v2449
    %3244 = vmatprep.subr.bf16.mxu0 %v2444
    %3245 = vmatpush1.bf16.msra.mxu0 %v2443
    %3246 = vmatprep.subr.bf16.mxu0 %v2438
    %3247 = vmatpush1.bf16.msra.mxu0 %v2437
    %3248 = vmatprep.subr.bf16.mxu0 %v2528
    %3249 = vmatpush2.bf16.msra.mxu0 %v2527
    %3250 = vmatprep.subr.bf16.mxu0 %v2522
    %3251 = vmatpush2.bf16.msra.mxu0 %v2521
    %3252 = vmatprep.subr.bf16.mxu0 %v2516
    %3253 = vmatpush2.bf16.msra.mxu0 %v2515
    %3254 = vmatprep.subr.bf16.mxu0 %v2510
    %3255 = vmatpush2.bf16.msra.mxu0 %v2509
    %3256 = vmatprep.subr.bf16.mxu0 %v2504
    %3257 = vmatpush2.bf16.msra.mxu0 %v2503
    %3258 = vmatprep.subr.bf16.mxu0 %v2498
    %3259 = vmatpush2.bf16.msra.mxu0 %v2497
    %3260 = vmatprep.subr.bf16.mxu0 %v2492
    %3261 = vmatpush2.bf16.msra.mxu0 %v2491
    %3262 = vmatprep.subr.bf16.mxu0 %v2486
    %3263 = vmatpush2.bf16.msra.mxu0 %v2485
    %3264 = vmatprep.mubr.bf16.mxu0 %v194
    %3265 = vmatmul.mubr.bf16.gmra.mxu0 %v193
    %v3266 = vpop.f32.mrf.mxu0
    %v3267 = vadd.f32 %v3226, %v3266
    %v3268 = vpop.f32.mrf.mxu0
    %v3269 = vadd.f32 %v3228, %v3268
    %v3270 = vpop.f32.mrf.mxu0
    %v3271 = vpop.f32.mrf.mxu0
    %3272 = vdwg.mxu0
    %3273 = vmatprep.subr.bf16.mxu0 %v2576
    %3274 = vmatpush1.bf16.msra.mxu0 %v2575
    %3275 = vmatprep.subr.bf16.mxu0 %v2570
    %3276 = vmatpush1.bf16.msra.mxu0 %v2569
    %3277 = vmatprep.subr.bf16.mxu0 %v2564
    %3278 = vmatpush1.bf16.msra.mxu0 %v2563
    %3279 = vmatprep.subr.bf16.mxu0 %v2558
    %3280 = vmatpush1.bf16.msra.mxu0 %v2557
    %3281 = vmatprep.subr.bf16.mxu0 %v2552
    %3282 = vmatpush1.bf16.msra.mxu0 %v2551
    %3283 = vmatprep.subr.bf16.mxu0 %v2546
    %3284 = vmatpush1.bf16.msra.mxu0 %v2545
    %3285 = vmatprep.subr.bf16.mxu0 %v2540
    %3286 = vmatpush1.bf16.msra.mxu0 %v2539
    %3287 = vmatprep.subr.bf16.mxu0 %v2534
    %3288 = vmatpush1.bf16.msra.mxu0 %v2533
    %3289 = vmatprep.subr.bf16.mxu0 %v2624
    %3290 = vmatpush2.bf16.msra.mxu0 %v2623
    %3291 = vmatprep.subr.bf16.mxu0 %v2618
    %3292 = vmatpush2.bf16.msra.mxu0 %v2617
    %3293 = vmatprep.subr.bf16.mxu0 %v2612
    %3294 = vmatpush2.bf16.msra.mxu0 %v2611
    %3295 = vmatprep.subr.bf16.mxu0 %v2606
    %3296 = vmatpush2.bf16.msra.mxu0 %v2605
    %3297 = vmatprep.subr.bf16.mxu0 %v2600
    %3298 = vmatpush2.bf16.msra.mxu0 %v2599
    %3299 = vmatprep.subr.bf16.mxu0 %v2594
    %3300 = vmatpush2.bf16.msra.mxu0 %v2593
    %3301 = vmatprep.subr.bf16.mxu0 %v2588
    %3302 = vmatpush2.bf16.msra.mxu0 %v2587
    %3303 = vmatprep.subr.bf16.mxu0 %v2582
    %3304 = vmatpush2.bf16.msra.mxu0 %v2581
    %3305 = vmatprep.mubr.bf16.mxu0 %v196
    %3306 = vmatmul.mubr.bf16.gmra.mxu0 %v195
    %v3307 = vpop.f32.mrf.mxu0
    %v3308 = vadd.f32 %v3267, %v3307
    %v3309 = vpop.f32.mrf.mxu0
    %v3310 = vadd.f32 %v3269, %v3309
    %v3311 = vpop.f32.mrf.mxu0
    %v3312 = vpop.f32.mrf.mxu0
    %3313 = vdwg.mxu0
    %3314 = vmatprep.subr.bf16.mxu0 %v2194
    %3315 = vmatpush1.bf16.msra.mxu0 %v2193
    %3316 = vmatprep.subr.bf16.mxu0 %v2188
    %3317 = vmatpush1.bf16.msra.mxu0 %v2187
    %3318 = vmatprep.subr.bf16.mxu0 %v2182
    %3319 = vmatpush1.bf16.msra.mxu0 %v2181
    %3320 = vmatprep.subr.bf16.mxu0 %v2176
    %3321 = vmatpush1.bf16.msra.mxu0 %v2175
    %3322 = vmatprep.subr.bf16.mxu0 %v2170
    %3323 = vmatpush1.bf16.msra.mxu0 %v2169
    %3324 = vmatprep.subr.bf16.mxu0 %v2164
    %3325 = vmatpush1.bf16.msra.mxu0 %v2163
    %3326 = vmatprep.subr.bf16.mxu0 %v2158
    %3327 = vmatpush1.bf16.msra.mxu0 %v2157
    %3328 = vmatprep.subr.bf16.mxu0 %v2152
    %3329 = vmatpush1.bf16.msra.mxu0 %v2151
    %3330 = vmatprep.subr.bf16.mxu0 %v2242
    %3331 = vmatpush2.bf16.msra.mxu0 %v2241
    %3332 = vmatprep.subr.bf16.mxu0 %v2236
    %3333 = vmatpush2.bf16.msra.mxu0 %v2235
    %3334 = vmatprep.subr.bf16.mxu0 %v2230
    %3335 = vmatpush2.bf16.msra.mxu0 %v2229
    %3336 = vmatprep.subr.bf16.mxu0 %v2224
    %3337 = vmatpush2.bf16.msra.mxu0 %v2223
    %3338 = vmatprep.subr.bf16.mxu0 %v2218
    %3339 = vmatpush2.bf16.msra.mxu0 %v2217
    %3340 = vmatprep.subr.bf16.mxu0 %v2212
    %3341 = vmatpush2.bf16.msra.mxu0 %v2211
    %3342 = vmatprep.subr.bf16.mxu0 %v2206
    %3343 = vmatpush2.bf16.msra.mxu0 %v2205
    %3344 = vmatprep.subr.bf16.mxu0 %v2200
    %3345 = vmatpush2.bf16.msra.mxu0 %v2199
    %3346 = vmatprep.mubr.bf16.mxu0 %v188
    %3347 = vmatmul.mubr.bf16.gmra.mxu0 %v187
    %v3348 = vpop.f32.mrf.mxu0
    %v3349 = vadd.f32 %v690, %v3348
    %v3350 = vpop.f32.mrf.mxu0
    %v3351 = vadd.f32 %v694, %v3350
    %v3352 = vpop.f32.mrf.mxu0
    %v3353 = vpop.f32.mrf.mxu0
    %3354 = vdwg.mxu0
    %3355 = vmatprep.subr.bf16.mxu0 %v2290
    %3356 = vmatpush1.bf16.msra.mxu0 %v2289
    %3357 = vmatprep.subr.bf16.mxu0 %v2284
    %3358 = vmatpush1.bf16.msra.mxu0 %v2283
    %3359 = vmatprep.subr.bf16.mxu0 %v2278
    %3360 = vmatpush1.bf16.msra.mxu0 %v2277
    %3361 = vmatprep.subr.bf16.mxu0 %v2272
    %3362 = vmatpush1.bf16.msra.mxu0 %v2271
    %3363 = vmatprep.subr.bf16.mxu0 %v2266
    %3364 = vmatpush1.bf16.msra.mxu0 %v2265
    %3365 = vmatprep.subr.bf16.mxu0 %v2260
    %3366 = vmatpush1.bf16.msra.mxu0 %v2259
    %3367 = vmatprep.subr.bf16.mxu0 %v2254
    %3368 = vmatpush1.bf16.msra.mxu0 %v2253
    %3369 = vmatprep.subr.bf16.mxu0 %v2248
    %3370 = vmatpush1.bf16.msra.mxu0 %v2247
    %3371 = vmatprep.subr.bf16.mxu0 %v2338
    %3372 = vmatpush2.bf16.msra.mxu0 %v2337
    %3373 = vmatprep.subr.bf16.mxu0 %v2332
    %3374 = vmatpush2.bf16.msra.mxu0 %v2331
    %3375 = vmatprep.subr.bf16.mxu0 %v2326
    %3376 = vmatpush2.bf16.msra.mxu0 %v2325
    %3377 = vmatprep.subr.bf16.mxu0 %v2320
    %3378 = vmatpush2.bf16.msra.mxu0 %v2319
    %3379 = vmatprep.subr.bf16.mxu0 %v2314
    %3380 = vmatpush2.bf16.msra.mxu0 %v2313
    %3381 = vmatprep.subr.bf16.mxu0 %v2308
    %3382 = vmatpush2.bf16.msra.mxu0 %v2307
    %3383 = vmatprep.subr.bf16.mxu0 %v2302
    %3384 = vmatpush2.bf16.msra.mxu0 %v2301
    %3385 = vmatprep.subr.bf16.mxu0 %v2296
    %3386 = vmatpush2.bf16.msra.mxu0 %v2295
    %3387 = vmatprep.mubr.bf16.mxu0 %v190
    %3388 = vmatmul.mubr.bf16.gmra.mxu0 %v189
    %v3389 = vpop.f32.mrf.mxu0
    %v3390 = vadd.f32 %v3349, %v3389
    %v3391 = vpop.f32.mrf.mxu0
    %v3392 = vadd.f32 %v3351, %v3391
    %v3393 = vpop.f32.mrf.mxu0
    %v3394 = vpop.f32.mrf.mxu0
    %3395 = vdwg.mxu0
    %3396 = vmatprep.subr.bf16.mxu0 %v2386
    %3397 = vmatpush1.bf16.msra.mxu0 %v2385
    %3398 = vmatprep.subr.bf16.mxu0 %v2380
    %3399 = vmatpush1.bf16.msra.mxu0 %v2379
    %3400 = vmatprep.subr.bf16.mxu0 %v2374
    %3401 = vmatpush1.bf16.msra.mxu0 %v2373
    %3402 = vmatprep.subr.bf16.mxu0 %v2368
    %3403 = vmatpush1.bf16.msra.mxu0 %v2367
    %3404 = vmatprep.subr.bf16.mxu0 %v2362
    %3405 = vmatpush1.bf16.msra.mxu0 %v2361
    %3406 = vmatprep.subr.bf16.mxu0 %v2356
    %3407 = vmatpush1.bf16.msra.mxu0 %v2355
    %3408 = vmatprep.subr.bf16.mxu0 %v2350
    %3409 = vmatpush1.bf16.msra.mxu0 %v2349
    %3410 = vmatprep.subr.bf16.mxu0 %v2344
    %3411 = vmatpush1.bf16.msra.mxu0 %v2343
    %3412 = vmatprep.subr.bf16.mxu0 %v2434
    %3413 = vmatpush2.bf16.msra.mxu0 %v2433
    %3414 = vmatprep.subr.bf16.mxu0 %v2428
    %3415 = vmatpush2.bf16.msra.mxu0 %v2427
    %3416 = vmatprep.subr.bf16.mxu0 %v2422
    %3417 = vmatpush2.bf16.msra.mxu0 %v2421
    %3418 = vmatprep.subr.bf16.mxu0 %v2416
    %3419 = vmatpush2.bf16.msra.mxu0 %v2415
    %3420 = vmatprep.subr.bf16.mxu0 %v2410
    %3421 = vmatpush2.bf16.msra.mxu0 %v2409
    %3422 = vmatprep.subr.bf16.mxu0 %v2404
    %3423 = vmatpush2.bf16.msra.mxu0 %v2403
    %3424 = vmatprep.subr.bf16.mxu0 %v2398
    %3425 = vmatpush2.bf16.msra.mxu0 %v2397
    %3426 = vmatprep.subr.bf16.mxu0 %v2392
    %3427 = vmatpush2.bf16.msra.mxu0 %v2391
    %3428 = vmatprep.mubr.bf16.mxu0 %v192
    %3429 = vmatmul.mubr.bf16.gmra.mxu0 %v191
    %v3430 = vpop.f32.mrf.mxu0
    %v3431 = vadd.f32 %v3390, %v3430
    %v3432 = vpop.f32.mrf.mxu0
    %v3433 = vadd.f32 %v3392, %v3432
    %v3434 = vpop.f32.mrf.mxu0
    %v3435 = vpop.f32.mrf.mxu0
    %3436 = vdwg.mxu0
    %3437 = vmatprep.subr.bf16.mxu0 %v2482
    %3438 = vmatpush1.bf16.msra.mxu0 %v2481
    %3439 = vmatprep.subr.bf16.mxu0 %v2476
    %3440 = vmatpush1.bf16.msra.mxu0 %v2475
    %3441 = vmatprep.subr.bf16.mxu0 %v2470
    %3442 = vmatpush1.bf16.msra.mxu0 %v2469
    %3443 = vmatprep.subr.bf16.mxu0 %v2464
    %3444 = vmatpush1.bf16.msra.mxu0 %v2463
    %3445 = vmatprep.subr.bf16.mxu0 %v2458
    %3446 = vmatpush1.bf16.msra.mxu0 %v2457
    %3447 = vmatprep.subr.bf16.mxu0 %v2452
    %3448 = vmatpush1.bf16.msra.mxu0 %v2451
    %3449 = vmatprep.subr.bf16.mxu0 %v2446
    %3450 = vmatpush1.bf16.msra.mxu0 %v2445
    %3451 = vmatprep.subr.bf16.mxu0 %v2440
    %3452 = vmatpush1.bf16.msra.mxu0 %v2439
    %3453 = vmatprep.subr.bf16.mxu0 %v2530
    %3454 = vmatpush2.bf16.msra.mxu0 %v2529
    %3455 = vmatprep.subr.bf16.mxu0 %v2524
    %3456 = vmatpush2.bf16.msra.mxu0 %v2523
    %3457 = vmatprep.subr.bf16.mxu0 %v2518
    %3458 = vmatpush2.bf16.msra.mxu0 %v2517
    %3459 = vmatprep.subr.bf16.mxu0 %v2512
    %3460 = vmatpush2.bf16.msra.mxu0 %v2511
    %3461 = vmatprep.subr.bf16.mxu0 %v2506
    %3462 = vmatpush2.bf16.msra.mxu0 %v2505
    %3463 = vmatprep.subr.bf16.mxu0 %v2500
    %3464 = vmatpush2.bf16.msra.mxu0 %v2499
    %3465 = vmatprep.subr.bf16.mxu0 %v2494
    %3466 = vmatpush2.bf16.msra.mxu0 %v2493
    %3467 = vmatprep.subr.bf16.mxu0 %v2488
    %3468 = vmatpush2.bf16.msra.mxu0 %v2487
    %3469 = vmatprep.mubr.bf16.mxu0 %v194
    %3470 = vmatmul.mubr.bf16.gmra.mxu0 %v193
    %v3471 = vpop.f32.mrf.mxu0
    %v3472 = vadd.f32 %v3431, %v3471
    %v3473 = vpop.f32.mrf.mxu0
    %v3474 = vadd.f32 %v3433, %v3473
    %v3475 = vpop.f32.mrf.mxu0
    %v3476 = vpop.f32.mrf.mxu0
    %3477 = vdwg.mxu0
    %3478 = vmatprep.subr.bf16.mxu0 %v2578
    %3479 = vmatpush1.bf16.msra.mxu0 %v2577
    %3480 = vmatprep.subr.bf16.mxu0 %v2572
    %3481 = vmatpush1.bf16.msra.mxu0 %v2571
    %3482 = vmatprep.subr.bf16.mxu0 %v2566
    %3483 = vmatpush1.bf16.msra.mxu0 %v2565
    %3484 = vmatprep.subr.bf16.mxu0 %v2560
    %3485 = vmatpush1.bf16.msra.mxu0 %v2559
    %3486 = vmatprep.subr.bf16.mxu0 %v2554
    %3487 = vmatpush1.bf16.msra.mxu0 %v2553
    %3488 = vmatprep.subr.bf16.mxu0 %v2548
    %3489 = vmatpush1.bf16.msra.mxu0 %v2547
    %3490 = vmatprep.subr.bf16.mxu0 %v2542
    %3491 = vmatpush1.bf16.msra.mxu0 %v2541
    %3492 = vmatprep.subr.bf16.mxu0 %v2536
    %3493 = vmatpush1.bf16.msra.mxu0 %v2535
    %3494 = vmatprep.subr.bf16.mxu0 %v2626
    %3495 = vmatpush2.bf16.msra.mxu0 %v2625
    %3496 = vmatprep.subr.bf16.mxu0 %v2620
    %3497 = vmatpush2.bf16.msra.mxu0 %v2619
    %3498 = vmatprep.subr.bf16.mxu0 %v2614
    %3499 = vmatpush2.bf16.msra.mxu0 %v2613
    %3500 = vmatprep.subr.bf16.mxu0 %v2608
    %3501 = vmatpush2.bf16.msra.mxu0 %v2607
    %3502 = vmatprep.subr.bf16.mxu0 %v2602
    %3503 = vmatpush2.bf16.msra.mxu0 %v2601
    %3504 = vmatprep.subr.bf16.mxu0 %v2596
    %3505 = vmatpush2.bf16.msra.mxu0 %v2595
    %3506 = vmatprep.subr.bf16.mxu0 %v2590
    %3507 = vmatpush2.bf16.msra.mxu0 %v2589
    %3508 = vmatprep.subr.bf16.mxu0 %v2584
    %3509 = vmatpush2.bf16.msra.mxu0 %v2583
    %3510 = vmatprep.mubr.bf16.mxu0 %v196
    %3511 = vmatmul.mubr.bf16.gmra.mxu0 %v195
    %v3512 = vpop.f32.mrf.mxu0
    %v3513 = vadd.f32 %v3472, %v3512
    %v3514 = vpop.f32.mrf.mxu0
    %v3515 = vadd.f32 %v3474, %v3514
    %v3516 = vpop.f32.mrf.mxu0
    %v3517 = vpop.f32.mrf.mxu0
    %3518 = vdwg.mxu0
    %3519 = vmatprep.subr.bf16.mxu0 %v2196
    %3520 = vmatpush1.bf16.msra.mxu0 %v2195
    %3521 = vmatprep.subr.bf16.mxu0 %v2190
    %3522 = vmatpush1.bf16.msra.mxu0 %v2189
    %3523 = vmatprep.subr.bf16.mxu0 %v2184
    %3524 = vmatpush1.bf16.msra.mxu0 %v2183
    %3525 = vmatprep.subr.bf16.mxu0 %v2178
    %3526 = vmatpush1.bf16.msra.mxu0 %v2177
    %3527 = vmatprep.subr.bf16.mxu0 %v2172
    %3528 = vmatpush1.bf16.msra.mxu0 %v2171
    %3529 = vmatprep.subr.bf16.mxu0 %v2166
    %3530 = vmatpush1.bf16.msra.mxu0 %v2165
    %3531 = vmatprep.subr.bf16.mxu0 %v2160
    %3532 = vmatpush1.bf16.msra.mxu0 %v2159
    %3533 = vmatprep.subr.bf16.mxu0 %v2154
    %3534 = vmatpush1.bf16.msra.mxu0 %v2153
    %3535 = vmatprep.subr.bf16.mxu0 %v2244
    %3536 = vmatpush2.bf16.msra.mxu0 %v2243
    %3537 = vmatprep.subr.bf16.mxu0 %v2238
    %3538 = vmatpush2.bf16.msra.mxu0 %v2237
    %3539 = vmatprep.subr.bf16.mxu0 %v2232
    %3540 = vmatpush2.bf16.msra.mxu0 %v2231
    %3541 = vmatprep.subr.bf16.mxu0 %v2226
    %3542 = vmatpush2.bf16.msra.mxu0 %v2225
    %3543 = vmatprep.subr.bf16.mxu0 %v2220
    %3544 = vmatpush2.bf16.msra.mxu0 %v2219
    %3545 = vmatprep.subr.bf16.mxu0 %v2214
    %3546 = vmatpush2.bf16.msra.mxu0 %v2213
    %3547 = vmatprep.subr.bf16.mxu0 %v2208
    %3548 = vmatpush2.bf16.msra.mxu0 %v2207
    %3549 = vmatprep.subr.bf16.mxu0 %v2202
    %3550 = vmatpush2.bf16.msra.mxu0 %v2201
    %3551 = vmatprep.mubr.bf16.mxu0 %v188
    %3552 = vmatmul.mubr.bf16.gmra.mxu0 %v187
    %v3553 = vpop.f32.mrf.mxu0
    %v3554 = vadd.f32 %v698, %v3553
    %v3555 = vpop.f32.mrf.mxu0
    %v3556 = vadd.f32 %v702, %v3555
    %v3557 = vpop.f32.mrf.mxu0
    %v3558 = vpop.f32.mrf.mxu0
    %3559 = vdwg.mxu0
    %3560 = vmatprep.subr.bf16.mxu0 %v2292
    %3561 = vmatpush1.bf16.msra.mxu0 %v2291
    %3562 = vmatprep.subr.bf16.mxu0 %v2286
    %3563 = vmatpush1.bf16.msra.mxu0 %v2285
    %3564 = vmatprep.subr.bf16.mxu0 %v2280
    %3565 = vmatpush1.bf16.msra.mxu0 %v2279
    %3566 = vmatprep.subr.bf16.mxu0 %v2274
    %3567 = vmatpush1.bf16.msra.mxu0 %v2273
    %3568 = vmatprep.subr.bf16.mxu0 %v2268
    %3569 = vmatpush1.bf16.msra.mxu0 %v2267
    %3570 = vmatprep.subr.bf16.mxu0 %v2262
    %3571 = vmatpush1.bf16.msra.mxu0 %v2261
    %3572 = vmatprep.subr.bf16.mxu0 %v2256
    %3573 = vmatpush1.bf16.msra.mxu0 %v2255
    %3574 = vmatprep.subr.bf16.mxu0 %v2250
    %3575 = vmatpush1.bf16.msra.mxu0 %v2249
    %3576 = vmatprep.subr.bf16.mxu0 %v2340
    %3577 = vmatpush2.bf16.msra.mxu0 %v2339
    %3578 = vmatprep.subr.bf16.mxu0 %v2334
    %3579 = vmatpush2.bf16.msra.mxu0 %v2333
    %3580 = vmatprep.subr.bf16.mxu0 %v2328
    %3581 = vmatpush2.bf16.msra.mxu0 %v2327
    %3582 = vmatprep.subr.bf16.mxu0 %v2322
    %3583 = vmatpush2.bf16.msra.mxu0 %v2321
    %3584 = vmatprep.subr.bf16.mxu0 %v2316
    %3585 = vmatpush2.bf16.msra.mxu0 %v2315
    %3586 = vmatprep.subr.bf16.mxu0 %v2310
    %3587 = vmatpush2.bf16.msra.mxu0 %v2309
    %3588 = vmatprep.subr.bf16.mxu0 %v2304
    %3589 = vmatpush2.bf16.msra.mxu0 %v2303
    %3590 = vmatprep.subr.bf16.mxu0 %v2298
    %3591 = vmatpush2.bf16.msra.mxu0 %v2297
    %3592 = vmatprep.mubr.bf16.mxu0 %v190
    %3593 = vmatmul.mubr.bf16.gmra.mxu0 %v189
    %v3594 = vpop.f32.mrf.mxu0
    %v3595 = vadd.f32 %v3554, %v3594
    %v3596 = vpop.f32.mrf.mxu0
    %v3597 = vadd.f32 %v3556, %v3596
    %v3598 = vpop.f32.mrf.mxu0
    %v3599 = vpop.f32.mrf.mxu0
    %3600 = vdwg.mxu0
    %3601 = vmatprep.subr.bf16.mxu0 %v2388
    %3602 = vmatpush1.bf16.msra.mxu0 %v2387
    %3603 = vmatprep.subr.bf16.mxu0 %v2382
    %3604 = vmatpush1.bf16.msra.mxu0 %v2381
    %3605 = vmatprep.subr.bf16.mxu0 %v2376
    %3606 = vmatpush1.bf16.msra.mxu0 %v2375
    %3607 = vmatprep.subr.bf16.mxu0 %v2370
    %3608 = vmatpush1.bf16.msra.mxu0 %v2369
    %3609 = vmatprep.subr.bf16.mxu0 %v2364
    %3610 = vmatpush1.bf16.msra.mxu0 %v2363
    %3611 = vmatprep.subr.bf16.mxu0 %v2358
    %3612 = vmatpush1.bf16.msra.mxu0 %v2357
    %3613 = vmatprep.subr.bf16.mxu0 %v2352
    %3614 = vmatpush1.bf16.msra.mxu0 %v2351
    %3615 = vmatprep.subr.bf16.mxu0 %v2346
    %3616 = vmatpush1.bf16.msra.mxu0 %v2345
    %3617 = vmatprep.subr.bf16.mxu0 %v2436
    %3618 = vmatpush2.bf16.msra.mxu0 %v2435
    %3619 = vmatprep.subr.bf16.mxu0 %v2430
    %3620 = vmatpush2.bf16.msra.mxu0 %v2429
    %3621 = vmatprep.subr.bf16.mxu0 %v2424
    %3622 = vmatpush2.bf16.msra.mxu0 %v2423
    %3623 = vmatprep.subr.bf16.mxu0 %v2418
    %3624 = vmatpush2.bf16.msra.mxu0 %v2417
    %3625 = vmatprep.subr.bf16.mxu0 %v2412
    %3626 = vmatpush2.bf16.msra.mxu0 %v2411
    %3627 = vmatprep.subr.bf16.mxu0 %v2406
    %3628 = vmatpush2.bf16.msra.mxu0 %v2405
    %3629 = vmatprep.subr.bf16.mxu0 %v2400
    %3630 = vmatpush2.bf16.msra.mxu0 %v2399
    %3631 = vmatprep.subr.bf16.mxu0 %v2394
    %3632 = vmatpush2.bf16.msra.mxu0 %v2393
    %3633 = vmatprep.mubr.bf16.mxu0 %v192
    %3634 = vmatmul.mubr.bf16.gmra.mxu0 %v191
    %v3635 = vpop.f32.mrf.mxu0
    %v3636 = vadd.f32 %v3595, %v3635
    %v3637 = vpop.f32.mrf.mxu0
    %v3638 = vadd.f32 %v3597, %v3637
    %v3639 = vpop.f32.mrf.mxu0
    %v3640 = vpop.f32.mrf.mxu0
    %3641 = vdwg.mxu0
    %3642 = vmatprep.subr.bf16.mxu0 %v2484
    %3643 = vmatpush1.bf16.msra.mxu0 %v2483
    %3644 = vmatprep.subr.bf16.mxu0 %v2478
    %3645 = vmatpush1.bf16.msra.mxu0 %v2477
    %3646 = vmatprep.subr.bf16.mxu0 %v2472
    %3647 = vmatpush1.bf16.msra.mxu0 %v2471
    %3648 = vmatprep.subr.bf16.mxu0 %v2466
    %3649 = vmatpush1.bf16.msra.mxu0 %v2465
    %3650 = vmatprep.subr.bf16.mxu0 %v2460
    %3651 = vmatpush1.bf16.msra.mxu0 %v2459
    %3652 = vmatprep.subr.bf16.mxu0 %v2454
    %3653 = vmatpush1.bf16.msra.mxu0 %v2453
    %3654 = vmatprep.subr.bf16.mxu0 %v2448
    %3655 = vmatpush1.bf16.msra.mxu0 %v2447
    %3656 = vmatprep.subr.bf16.mxu0 %v2442
    %3657 = vmatpush1.bf16.msra.mxu0 %v2441
    %3658 = vmatprep.subr.bf16.mxu0 %v2532
    %3659 = vmatpush2.bf16.msra.mxu0 %v2531
    %3660 = vmatprep.subr.bf16.mxu0 %v2526
    %3661 = vmatpush2.bf16.msra.mxu0 %v2525
    %3662 = vmatprep.subr.bf16.mxu0 %v2520
    %3663 = vmatpush2.bf16.msra.mxu0 %v2519
    %3664 = vmatprep.subr.bf16.mxu0 %v2514
    %3665 = vmatpush2.bf16.msra.mxu0 %v2513
    %3666 = vmatprep.subr.bf16.mxu0 %v2508
    %3667 = vmatpush2.bf16.msra.mxu0 %v2507
    %3668 = vmatprep.subr.bf16.mxu0 %v2502
    %3669 = vmatpush2.bf16.msra.mxu0 %v2501
    %3670 = vmatprep.subr.bf16.mxu0 %v2496
    %3671 = vmatpush2.bf16.msra.mxu0 %v2495
    %3672 = vmatprep.subr.bf16.mxu0 %v2490
    %3673 = vmatpush2.bf16.msra.mxu0 %v2489
    %3674 = vmatprep.mubr.bf16.mxu0 %v194
    %3675 = vmatmul.mubr.bf16.gmra.mxu0 %v193
    %v3676 = vpop.f32.mrf.mxu0
    %v3677 = vadd.f32 %v3636, %v3676
    %v3678 = vpop.f32.mrf.mxu0
    %v3679 = vadd.f32 %v3638, %v3678
    %v3680 = vpop.f32.mrf.mxu0
    %v3681 = vpop.f32.mrf.mxu0
    %3682 = vdwg.mxu0
    %3683 = vmatprep.subr.bf16.mxu0 %v2580
    %3684 = vmatpush1.bf16.msra.mxu0 %v2579
    %3685 = vmatprep.subr.bf16.mxu0 %v2574
    %3686 = vmatpush1.bf16.msra.mxu0 %v2573
    %3687 = vmatprep.subr.bf16.mxu0 %v2568
    %3688 = vmatpush1.bf16.msra.mxu0 %v2567
    %3689 = vmatprep.subr.bf16.mxu0 %v2562
    %3690 = vmatpush1.bf16.msra.mxu0 %v2561
    %3691 = vmatprep.subr.bf16.mxu0 %v2556
    %3692 = vmatpush1.bf16.msra.mxu0 %v2555
    %3693 = vmatprep.subr.bf16.mxu0 %v2550
    %3694 = vmatpush1.bf16.msra.mxu0 %v2549
    %3695 = vmatprep.subr.bf16.mxu0 %v2544
    %3696 = vmatpush1.bf16.msra.mxu0 %v2543
    %3697 = vmatprep.subr.bf16.mxu0 %v2538
    %3698 = vmatpush1.bf16.msra.mxu0 %v2537
    %3699 = vmatprep.subr.bf16.mxu0 %v2628
    %3700 = vmatpush2.bf16.msra.mxu0 %v2627
    %3701 = vmatprep.subr.bf16.mxu0 %v2622
    %3702 = vmatpush2.bf16.msra.mxu0 %v2621
    %3703 = vmatprep.subr.bf16.mxu0 %v2616
    %3704 = vmatpush2.bf16.msra.mxu0 %v2615
    %3705 = vmatprep.subr.bf16.mxu0 %v2610
    %3706 = vmatpush2.bf16.msra.mxu0 %v2609
    %3707 = vmatprep.subr.bf16.mxu0 %v2604
    %3708 = vmatpush2.bf16.msra.mxu0 %v2603
    %3709 = vmatprep.subr.bf16.mxu0 %v2598
    %3710 = vmatpush2.bf16.msra.mxu0 %v2597
    %3711 = vmatprep.subr.bf16.mxu0 %v2592
    %3712 = vmatpush2.bf16.msra.mxu0 %v2591
    %3713 = vmatprep.subr.bf16.mxu0 %v2586
    %3714 = vmatpush2.bf16.msra.mxu0 %v2585
    %3715 = vmatprep.mubr.bf16.mxu0 %v196
    %3716 = vmatmul.mubr.bf16.gmra.mxu0 %v195
    %v3717 = vpop.f32.mrf.mxu0
    %v3718 = vadd.f32 %v3677, %v3717
    %v3719 = vpop.f32.mrf.mxu0
    %v3720 = vadd.f32 %v3679, %v3719
    %v3721 = vpop.f32.mrf.mxu0
    %v3722 = vpop.f32.mrf.mxu0
    %3723 = vdwg.mxu0
    %v3724 = vld [vmem:[#allocation5] sm:$0xff]
    %v3725 = vld [vmem:[#allocation5 + $0x8] sm:$0xff]
    %v3726 = vld [vmem:[#allocation5 + $0x10] sm:$0xff]
    %v3727 = vld [vmem:[#allocation5 + $0x18] sm:$0xff]
    %v3728 = vld [vmem:[#allocation5 + $0x20] sm:$0xff]
    %v3729 = vld [vmem:[#allocation5 + $0x28] sm:$0xff]
    %v3730 = vpack.c.bf16 %v3724, %v3724
    %v3731 = vpack.c.bf16 %v3725, %v3725
    %v3732 = vpack.c.bf16 %v3726, %v3726
    %v3733 = vpack.c.bf16 %v3727, %v3727
    %v3734 = vpack.c.bf16 %v3728, %v3728
    %v3735 = vpack.c.bf16 %v3729, %v3729
    %v3736 = vld [vmem:[#allocation10] sm:$0xff]
    %v3737 = vld [vmem:[#allocation10 + $0x8] sm:$0xff]
    %v3738 = vld [vmem:[#allocation10 + $0x10] sm:$0xff]
    %v3739 = vld [vmem:[#allocation10 + $0x18] sm:$0xff]
    %v3740 = vld [vmem:[#allocation10 + $0x20] sm:$0xff]
    %v3741 = vld [vmem:[#allocation10 + $0x28] sm:$0xff]
    %v3742 = vld [vmem:[#allocation10 + $0x30] sm:$0xff]
    %v3743 = vld [vmem:[#allocation10 + $0x38] sm:$0xff]
    %v3744 = vld [vmem:[#allocation10 + $0x40] sm:$0xff]
    %v3745 = vld [vmem:[#allocation10 + $0x48] sm:$0xff]
    %v3746 = vld [vmem:[#allocation10 + $0x50] sm:$0xff]
    %v3747 = vld [vmem:[#allocation10 + $0x58] sm:$0xff]
    %v3748 = vld [vmem:[#allocation10 + $0x60] sm:$0xff]
    %v3749 = vld [vmem:[#allocation10 + $0x68] sm:$0xff]
    %v3750 = vld [vmem:[#allocation10 + $0x70] sm:$0xff]
    %v3751 = vld [vmem:[#allocation10 + $0x78] sm:$0xff]
    %v3752 = vld [vmem:[#allocation10 + $0x80] sm:$0xff]
    %v3753 = vld [vmem:[#allocation10 + $0x88] sm:$0xff]
    %v3754 = vld [vmem:[#allocation10 + $0x90] sm:$0xff]
    %v3755 = vld [vmem:[#allocation10 + $0x98] sm:$0xff]
    %v3756 = vld [vmem:[#allocation10 + $0xa0] sm:$0xff]
    %v3757 = vld [vmem:[#allocation10 + $0xa8] sm:$0xff]
    %v3758 = vld [vmem:[#allocation10 + $0xb0] sm:$0xff]
    %v3759 = vld [vmem:[#allocation10 + $0xb8] sm:$0xff]
    %v3760 = vld [vmem:[#allocation10 + $0xc0] sm:$0xff]
    %v3761 = vld [vmem:[#allocation10 + $0xc8] sm:$0xff]
    %v3762 = vld [vmem:[#allocation10 + $0xd0] sm:$0xff]
    %v3763 = vld [vmem:[#allocation10 + $0xd8] sm:$0xff]
    %v3764 = vld [vmem:[#allocation10 + $0xe0] sm:$0xff]
    %v3765 = vld [vmem:[#allocation10 + $0xe8] sm:$0xff]
    %v3766 = vld [vmem:[#allocation10 + $0xf0] sm:$0xff]
    %v3767 = vld [vmem:[#allocation10 + $0xf8] sm:$0xff]
    %v3768 = vld [vmem:[#allocation10 + $0x100] sm:$0xff]
    %v3769 = vld [vmem:[#allocation10 + $0x108] sm:$0xff]
    %v3770 = vld [vmem:[#allocation10 + $0x110] sm:$0xff]
    %v3771 = vld [vmem:[#allocation10 + $0x118] sm:$0xff]
    %v3772 = vld [vmem:[#allocation10 + $0x120] sm:$0xff]
    %v3773 = vld [vmem:[#allocation10 + $0x128] sm:$0xff]
    %v3774 = vld [vmem:[#allocation10 + $0x130] sm:$0xff]
    %v3775 = vld [vmem:[#allocation10 + $0x138] sm:$0xff]
    %v3776 = vld [vmem:[#allocation10 + $0x140] sm:$0xff]
    %v3777 = vld [vmem:[#allocation10 + $0x148] sm:$0xff]
    %v3778 = vld [vmem:[#allocation10 + $0x150] sm:$0xff]
    %v3779 = vld [vmem:[#allocation10 + $0x158] sm:$0xff]
    %v3780 = vld [vmem:[#allocation10 + $0x160] sm:$0xff]
    %v3781 = vld [vmem:[#allocation10 + $0x168] sm:$0xff]
    %v3782 = vld [vmem:[#allocation10 + $0x170] sm:$0xff]
    %v3783 = vld [vmem:[#allocation10 + $0x178] sm:$0xff]
    %v3784 = vld [vmem:[#allocation10 + $0x180] sm:$0xff]
    %v3785 = vld [vmem:[#allocation10 + $0x188] sm:$0xff]
    %v3786 = vld [vmem:[#allocation10 + $0x190] sm:$0xff]
    %v3787 = vld [vmem:[#allocation10 + $0x198] sm:$0xff]
    %v3788 = vld [vmem:[#allocation10 + $0x1a0] sm:$0xff]
    %v3789 = vld [vmem:[#allocation10 + $0x1a8] sm:$0xff]
    %v3790 = vld [vmem:[#allocation10 + $0x1b0] sm:$0xff]
    %v3791 = vld [vmem:[#allocation10 + $0x1b8] sm:$0xff]
    %v3792 = vld [vmem:[#allocation10 + $0x1c0] sm:$0xff]
    %v3793 = vld [vmem:[#allocation10 + $0x1c8] sm:$0xff]
    %v3794 = vld [vmem:[#allocation10 + $0x1d0] sm:$0xff]
    %v3795 = vld [vmem:[#allocation10 + $0x1d8] sm:$0xff]
    %v3796 = vld [vmem:[#allocation10 + $0x1e0] sm:$0xff]
    %v3797 = vld [vmem:[#allocation10 + $0x1e8] sm:$0xff]
    %v3798 = vld [vmem:[#allocation10 + $0x1f0] sm:$0xff]
    %v3799 = vld [vmem:[#allocation10 + $0x1f8] sm:$0xff]
    %v3800 = vld [vmem:[#allocation10 + $0x200] sm:$0xff]
    %v3801 = vld [vmem:[#allocation10 + $0x208] sm:$0xff]
    %v3802 = vld [vmem:[#allocation10 + $0x210] sm:$0xff]
    %v3803 = vld [vmem:[#allocation10 + $0x218] sm:$0xff]
    %v3804 = vld [vmem:[#allocation10 + $0x220] sm:$0xff]
    %v3805 = vld [vmem:[#allocation10 + $0x228] sm:$0xff]
    %v3806 = vld [vmem:[#allocation10 + $0x230] sm:$0xff]
    %v3807 = vld [vmem:[#allocation10 + $0x238] sm:$0xff]
    %v3808 = vld [vmem:[#allocation10 + $0x240] sm:$0xff]
    %v3809 = vld [vmem:[#allocation10 + $0x248] sm:$0xff]
    %v3810 = vld [vmem:[#allocation10 + $0x250] sm:$0xff]
    %v3811 = vld [vmem:[#allocation10 + $0x258] sm:$0xff]
    %v3812 = vld [vmem:[#allocation10 + $0x260] sm:$0xff]
    %v3813 = vld [vmem:[#allocation10 + $0x268] sm:$0xff]
    %v3814 = vld [vmem:[#allocation10 + $0x270] sm:$0xff]
    %v3815 = vld [vmem:[#allocation10 + $0x278] sm:$0xff]
    %v3816 = vld [vmem:[#allocation10 + $0x280] sm:$0xff]
    %v3817 = vld [vmem:[#allocation10 + $0x288] sm:$0xff]
    %v3818 = vld [vmem:[#allocation10 + $0x290] sm:$0xff]
    %v3819 = vld [vmem:[#allocation10 + $0x298] sm:$0xff]
    %v3820 = vld [vmem:[#allocation10 + $0x2a0] sm:$0xff]
    %v3821 = vld [vmem:[#allocation10 + $0x2a8] sm:$0xff]
    %v3822 = vld [vmem:[#allocation10 + $0x2b0] sm:$0xff]
    %v3823 = vld [vmem:[#allocation10 + $0x2b8] sm:$0xff]
    %v3824 = vld [vmem:[#allocation10 + $0x2c0] sm:$0xff]
    %v3825 = vld [vmem:[#allocation10 + $0x2c8] sm:$0xff]
    %v3826 = vld [vmem:[#allocation10 + $0x2d0] sm:$0xff]
    %v3827 = vld [vmem:[#allocation10 + $0x2d8] sm:$0xff]
    %v3828 = vld [vmem:[#allocation10 + $0x2e0] sm:$0xff]
    %v3829 = vld [vmem:[#allocation10 + $0x2e8] sm:$0xff]
    %v3830 = vld [vmem:[#allocation10 + $0x2f0] sm:$0xff]
    %v3831 = vld [vmem:[#allocation10 + $0x2f8] sm:$0xff]
    %v3832 = vld [vmem:[#allocation10 + $0x300] sm:$0xff]
    %v3833 = vld [vmem:[#allocation10 + $0x308] sm:$0xff]
    %v3834 = vld [vmem:[#allocation10 + $0x310] sm:$0xff]
    %v3835 = vld [vmem:[#allocation10 + $0x318] sm:$0xff]
    %v3836 = vld [vmem:[#allocation10 + $0x320] sm:$0xff]
    %v3837 = vld [vmem:[#allocation10 + $0x328] sm:$0xff]
    %v3838 = vld [vmem:[#allocation10 + $0x330] sm:$0xff]
    %v3839 = vld [vmem:[#allocation10 + $0x338] sm:$0xff]
    %v3840 = vld [vmem:[#allocation10 + $0x340] sm:$0xff]
    %v3841 = vld [vmem:[#allocation10 + $0x348] sm:$0xff]
    %v3842 = vld [vmem:[#allocation10 + $0x350] sm:$0xff]
    %v3843 = vld [vmem:[#allocation10 + $0x358] sm:$0xff]
    %v3844 = vld [vmem:[#allocation10 + $0x360] sm:$0xff]
    %v3845 = vld [vmem:[#allocation10 + $0x368] sm:$0xff]
    %v3846 = vld [vmem:[#allocation10 + $0x370] sm:$0xff]
    %v3847 = vld [vmem:[#allocation10 + $0x378] sm:$0xff]
    %v3848 = vld [vmem:[#allocation10 + $0x380] sm:$0xff]
    %v3849 = vld [vmem:[#allocation10 + $0x388] sm:$0xff]
    %v3850 = vld [vmem:[#allocation10 + $0x390] sm:$0xff]
    %v3851 = vld [vmem:[#allocation10 + $0x398] sm:$0xff]
    %v3852 = vld [vmem:[#allocation10 + $0x3a0] sm:$0xff]
    %v3853 = vld [vmem:[#allocation10 + $0x3a8] sm:$0xff]
    %v3854 = vld [vmem:[#allocation10 + $0x3b0] sm:$0xff]
    %v3855 = vld [vmem:[#allocation10 + $0x3b8] sm:$0xff]
    %v3856 = vld [vmem:[#allocation10 + $0x3c0] sm:$0xff]
    %v3857 = vld [vmem:[#allocation10 + $0x3c8] sm:$0xff]
    %v3858 = vld [vmem:[#allocation10 + $0x3d0] sm:$0xff]
    %v3859 = vld [vmem:[#allocation10 + $0x3d8] sm:$0xff]
    %v3860 = vld [vmem:[#allocation10 + $0x3e0] sm:$0xff]
    %v3861 = vld [vmem:[#allocation10 + $0x3e8] sm:$0xff]
    %v3862 = vld [vmem:[#allocation10 + $0x3f0] sm:$0xff]
    %v3863 = vld [vmem:[#allocation10 + $0x3f8] sm:$0xff]
    %v3864 = vld [vmem:[#allocation10 + $0x400] sm:$0xff]
    %v3865 = vld [vmem:[#allocation10 + $0x408] sm:$0xff]
    %v3866 = vld [vmem:[#allocation10 + $0x410] sm:$0xff]
    %v3867 = vld [vmem:[#allocation10 + $0x418] sm:$0xff]
    %v3868 = vld [vmem:[#allocation10 + $0x420] sm:$0xff]
    %v3869 = vld [vmem:[#allocation10 + $0x428] sm:$0xff]
    %v3870 = vld [vmem:[#allocation10 + $0x430] sm:$0xff]
    %v3871 = vld [vmem:[#allocation10 + $0x438] sm:$0xff]
    %v3872 = vld [vmem:[#allocation10 + $0x440] sm:$0xff]
    %v3873 = vld [vmem:[#allocation10 + $0x448] sm:$0xff]
    %v3874 = vld [vmem:[#allocation10 + $0x450] sm:$0xff]
    %v3875 = vld [vmem:[#allocation10 + $0x458] sm:$0xff]
    %v3876 = vld [vmem:[#allocation10 + $0x460] sm:$0xff]
    %v3877 = vld [vmem:[#allocation10 + $0x468] sm:$0xff]
    %v3878 = vld [vmem:[#allocation10 + $0x470] sm:$0xff]
    %v3879 = vld [vmem:[#allocation10 + $0x478] sm:$0xff]
    %v3880 = vld [vmem:[#allocation10 + $0x480] sm:$0xff]
    %v3881 = vld [vmem:[#allocation10 + $0x488] sm:$0xff]
    %v3882 = vld [vmem:[#allocation10 + $0x490] sm:$0xff]
    %v3883 = vld [vmem:[#allocation10 + $0x498] sm:$0xff]
    %v3884 = vld [vmem:[#allocation10 + $0x4a0] sm:$0xff]
    %v3885 = vld [vmem:[#allocation10 + $0x4a8] sm:$0xff]
    %v3886 = vld [vmem:[#allocation10 + $0x4b0] sm:$0xff]
    %v3887 = vld [vmem:[#allocation10 + $0x4b8] sm:$0xff]
    %v3888 = vld [vmem:[#allocation10 + $0x4c0] sm:$0xff]
    %v3889 = vld [vmem:[#allocation10 + $0x4c8] sm:$0xff]
    %v3890 = vld [vmem:[#allocation10 + $0x4d0] sm:$0xff]
    %v3891 = vld [vmem:[#allocation10 + $0x4d8] sm:$0xff]
    %v3892 = vld [vmem:[#allocation10 + $0x4e0] sm:$0xff]
    %v3893 = vld [vmem:[#allocation10 + $0x4e8] sm:$0xff]
    %v3894 = vld [vmem:[#allocation10 + $0x4f0] sm:$0xff]
    %v3895 = vld [vmem:[#allocation10 + $0x4f8] sm:$0xff]
    %v3896 = vld [vmem:[#allocation10 + $0x500] sm:$0xff]
    %v3897 = vld [vmem:[#allocation10 + $0x508] sm:$0xff]
    %v3898 = vld [vmem:[#allocation10 + $0x510] sm:$0xff]
    %v3899 = vld [vmem:[#allocation10 + $0x518] sm:$0xff]
    %v3900 = vld [vmem:[#allocation10 + $0x520] sm:$0xff]
    %v3901 = vld [vmem:[#allocation10 + $0x528] sm:$0xff]
    %v3902 = vld [vmem:[#allocation10 + $0x530] sm:$0xff]
    %v3903 = vld [vmem:[#allocation10 + $0x538] sm:$0xff]
    %v3904 = vld [vmem:[#allocation10 + $0x540] sm:$0xff]
    %v3905 = vld [vmem:[#allocation10 + $0x548] sm:$0xff]
    %v3906 = vld [vmem:[#allocation10 + $0x550] sm:$0xff]
    %v3907 = vld [vmem:[#allocation10 + $0x558] sm:$0xff]
    %v3908 = vld [vmem:[#allocation10 + $0x560] sm:$0xff]
    %v3909 = vld [vmem:[#allocation10 + $0x568] sm:$0xff]
    %v3910 = vld [vmem:[#allocation10 + $0x570] sm:$0xff]
    %v3911 = vld [vmem:[#allocation10 + $0x578] sm:$0xff]
    %v3912 = vld [vmem:[#allocation10 + $0x580] sm:$0xff]
    %v3913 = vld [vmem:[#allocation10 + $0x588] sm:$0xff]
    %v3914 = vld [vmem:[#allocation10 + $0x590] sm:$0xff]
    %v3915 = vld [vmem:[#allocation10 + $0x598] sm:$0xff]
    %v3916 = vld [vmem:[#allocation10 + $0x5a0] sm:$0xff]
    %v3917 = vld [vmem:[#allocation10 + $0x5a8] sm:$0xff]
    %v3918 = vld [vmem:[#allocation10 + $0x5b0] sm:$0xff]
    %v3919 = vld [vmem:[#allocation10 + $0x5b8] sm:$0xff]
    %v3920 = vld [vmem:[#allocation10 + $0x5c0] sm:$0xff]
    %v3921 = vld [vmem:[#allocation10 + $0x5c8] sm:$0xff]
    %v3922 = vld [vmem:[#allocation10 + $0x5d0] sm:$0xff]
    %v3923 = vld [vmem:[#allocation10 + $0x5d8] sm:$0xff]
    %v3924 = vld [vmem:[#allocation10 + $0x5e0] sm:$0xff]
    %v3925 = vld [vmem:[#allocation10 + $0x5e8] sm:$0xff]
    %v3926 = vld [vmem:[#allocation10 + $0x5f0] sm:$0xff]
    %v3927 = vld [vmem:[#allocation10 + $0x5f8] sm:$0xff]
    %v3928 = vld [vmem:[#allocation10 + $0x600] sm:$0xff]
    %v3929 = vld [vmem:[#allocation10 + $0x608] sm:$0xff]
    %v3930 = vld [vmem:[#allocation10 + $0x610] sm:$0xff]
    %v3931 = vld [vmem:[#allocation10 + $0x618] sm:$0xff]
    %v3932 = vld [vmem:[#allocation10 + $0x620] sm:$0xff]
    %v3933 = vld [vmem:[#allocation10 + $0x628] sm:$0xff]
    %v3934 = vld [vmem:[#allocation10 + $0x630] sm:$0xff]
    %v3935 = vld [vmem:[#allocation10 + $0x638] sm:$0xff]
    %v3936 = vld [vmem:[#allocation10 + $0x640] sm:$0xff]
    %v3937 = vld [vmem:[#allocation10 + $0x648] sm:$0xff]
    %v3938 = vld [vmem:[#allocation10 + $0x650] sm:$0xff]
    %v3939 = vld [vmem:[#allocation10 + $0x658] sm:$0xff]
    %v3940 = vld [vmem:[#allocation10 + $0x660] sm:$0xff]
    %v3941 = vld [vmem:[#allocation10 + $0x668] sm:$0xff]
    %v3942 = vld [vmem:[#allocation10 + $0x670] sm:$0xff]
    %v3943 = vld [vmem:[#allocation10 + $0x678] sm:$0xff]
    %v3944 = vld [vmem:[#allocation10 + $0x680] sm:$0xff]
    %v3945 = vld [vmem:[#allocation10 + $0x688] sm:$0xff]
    %v3946 = vld [vmem:[#allocation10 + $0x690] sm:$0xff]
    %v3947 = vld [vmem:[#allocation10 + $0x698] sm:$0xff]
    %v3948 = vld [vmem:[#allocation10 + $0x6a0] sm:$0xff]
    %v3949 = vld [vmem:[#allocation10 + $0x6a8] sm:$0xff]
    %v3950 = vld [vmem:[#allocation10 + $0x6b0] sm:$0xff]
    %v3951 = vld [vmem:[#allocation10 + $0x6b8] sm:$0xff]
    %v3952 = vld [vmem:[#allocation10 + $0x6c0] sm:$0xff]
    %v3953 = vld [vmem:[#allocation10 + $0x6c8] sm:$0xff]
    %v3954 = vld [vmem:[#allocation10 + $0x6d0] sm:$0xff]
    %v3955 = vld [vmem:[#allocation10 + $0x6d8] sm:$0xff]
    %v3956 = vld [vmem:[#allocation10 + $0x6e0] sm:$0xff]
    %v3957 = vld [vmem:[#allocation10 + $0x6e8] sm:$0xff]
    %v3958 = vld [vmem:[#allocation10 + $0x6f0] sm:$0xff]
    %v3959 = vld [vmem:[#allocation10 + $0x6f8] sm:$0xff]
    %v3960 = vld [vmem:[#allocation10 + $0x700] sm:$0xff]
    %v3961 = vld [vmem:[#allocation10 + $0x708] sm:$0xff]
    %v3962 = vld [vmem:[#allocation10 + $0x710] sm:$0xff]
    %v3963 = vld [vmem:[#allocation10 + $0x718] sm:$0xff]
    %v3964 = vld [vmem:[#allocation10 + $0x720] sm:$0xff]
    %v3965 = vld [vmem:[#allocation10 + $0x728] sm:$0xff]
    %v3966 = vld [vmem:[#allocation10 + $0x730] sm:$0xff]
    %v3967 = vld [vmem:[#allocation10 + $0x738] sm:$0xff]
    %v3968 = vld [vmem:[#allocation10 + $0x740] sm:$0xff]
    %v3969 = vld [vmem:[#allocation10 + $0x748] sm:$0xff]
    %v3970 = vld [vmem:[#allocation10 + $0x750] sm:$0xff]
    %v3971 = vld [vmem:[#allocation10 + $0x758] sm:$0xff]
    %v3972 = vld [vmem:[#allocation10 + $0x760] sm:$0xff]
    %v3973 = vld [vmem:[#allocation10 + $0x768] sm:$0xff]
    %v3974 = vld [vmem:[#allocation10 + $0x770] sm:$0xff]
    %v3975 = vld [vmem:[#allocation10 + $0x778] sm:$0xff]
    %v3976 = vld [vmem:[#allocation10 + $0x780] sm:$0xff]
    %v3977 = vld [vmem:[#allocation10 + $0x788] sm:$0xff]
    %v3978 = vld [vmem:[#allocation10 + $0x790] sm:$0xff]
    %v3979 = vld [vmem:[#allocation10 + $0x798] sm:$0xff]
    %v3980 = vld [vmem:[#allocation10 + $0x7a0] sm:$0xff]
    %v3981 = vld [vmem:[#allocation10 + $0x7a8] sm:$0xff]
    %v3982 = vld [vmem:[#allocation10 + $0x7b0] sm:$0xff]
    %v3983 = vld [vmem:[#allocation10 + $0x7b8] sm:$0xff]
    %v3984 = vld [vmem:[#allocation10 + $0x7c0] sm:$0xff]
    %v3985 = vld [vmem:[#allocation10 + $0x7c8] sm:$0xff]
    %v3986 = vld [vmem:[#allocation10 + $0x7d0] sm:$0xff]
    %v3987 = vld [vmem:[#allocation10 + $0x7d8] sm:$0xff]
    %v3988 = vld [vmem:[#allocation10 + $0x7e0] sm:$0xff]
    %v3989 = vld [vmem:[#allocation10 + $0x7e8] sm:$0xff]
    %v3990 = vld [vmem:[#allocation10 + $0x7f0] sm:$0xff]
    %v3991 = vld [vmem:[#allocation10 + $0x7f8] sm:$0xff]
    %v3992 = vld [vmem:[#allocation10 + $0x800] sm:$0xff]
    %v3993 = vld [vmem:[#allocation10 + $0x808] sm:$0xff]
    %v3994 = vld [vmem:[#allocation10 + $0x810] sm:$0xff]
    %v3995 = vld [vmem:[#allocation10 + $0x818] sm:$0xff]
    %v3996 = vld [vmem:[#allocation10 + $0x820] sm:$0xff]
    %v3997 = vld [vmem:[#allocation10 + $0x828] sm:$0xff]
    %v3998 = vld [vmem:[#allocation10 + $0x830] sm:$0xff]
    %v3999 = vld [vmem:[#allocation10 + $0x838] sm:$0xff]
    %v4000 = vld [vmem:[#allocation10 + $0x840] sm:$0xff]
    %v4001 = vld [vmem:[#allocation10 + $0x848] sm:$0xff]
    %v4002 = vld [vmem:[#allocation10 + $0x850] sm:$0xff]
    %v4003 = vld [vmem:[#allocation10 + $0x858] sm:$0xff]
    %v4004 = vld [vmem:[#allocation10 + $0x860] sm:$0xff]
    %v4005 = vld [vmem:[#allocation10 + $0x868] sm:$0xff]
    %v4006 = vld [vmem:[#allocation10 + $0x870] sm:$0xff]
    %v4007 = vld [vmem:[#allocation10 + $0x878] sm:$0xff]
    %v4008 = vld [vmem:[#allocation10 + $0x880] sm:$0xff]
    %v4009 = vld [vmem:[#allocation10 + $0x888] sm:$0xff]
    %v4010 = vld [vmem:[#allocation10 + $0x890] sm:$0xff]
    %v4011 = vld [vmem:[#allocation10 + $0x898] sm:$0xff]
    %v4012 = vld [vmem:[#allocation10 + $0x8a0] sm:$0xff]
    %v4013 = vld [vmem:[#allocation10 + $0x8a8] sm:$0xff]
    %v4014 = vld [vmem:[#allocation10 + $0x8b0] sm:$0xff]
    %v4015 = vld [vmem:[#allocation10 + $0x8b8] sm:$0xff]
    %v4016 = vld [vmem:[#allocation10 + $0x8c0] sm:$0xff]
    %v4017 = vld [vmem:[#allocation10 + $0x8c8] sm:$0xff]
    %v4018 = vld [vmem:[#allocation10 + $0x8d0] sm:$0xff]
    %v4019 = vld [vmem:[#allocation10 + $0x8d8] sm:$0xff]
    %v4020 = vld [vmem:[#allocation10 + $0x8e0] sm:$0xff]
    %v4021 = vld [vmem:[#allocation10 + $0x8e8] sm:$0xff]
    %v4022 = vld [vmem:[#allocation10 + $0x8f0] sm:$0xff]
    %v4023 = vld [vmem:[#allocation10 + $0x8f8] sm:$0xff]
    %v4024 = vld [vmem:[#allocation11] sm:$0x3f]
    %v4026 = vlaneseq
    %v4027 = vshrl.u32 %v4026, 7
    %v4028 = vsub.s32 0, %v4027
    %v4029 = vrot.slane %v4024, %v4028
    %v4030 = vlaneseq
    %v4031 = vshrl.u32 %v4030, 7
    %v4032 = vsub.s32 1, %v4031
    %v4033 = vrot.slane %v4024, %v4032
    %v4034 = vlaneseq
    %v4035 = vshrl.u32 %v4034, 7
    %v4036 = vsub.s32 2, %v4035
    %v4037 = vrot.slane %v4024, %v4036
    %v4038 = vlaneseq
    %v4039 = vshrl.u32 %v4038, 7
    %v4040 = vsub.s32 3, %v4039
    %v4041 = vrot.slane %v4024, %v4040
    %v4042 = vlaneseq
    %v4043 = vshrl.u32 %v4042, 7
    %v4044 = vsub.s32 4, %v4043
    %v4045 = vrot.slane %v4024, %v4044
    %v4046 = vlaneseq
    %v4047 = vshrl.u32 %v4046, 7
    %v4048 = vsub.s32 5, %v4047
    %v4049 = vrot.slane %v4024, %v4048
    %v4344 = vunpack.c.l.b16 %v3736
    %v4345 = vunpack.c.h.b16 %v3736
    %v4346 = vunpack.c.l.b16 %v3737
    %v4347 = vunpack.c.h.b16 %v3737
    %v4348 = vunpack.c.l.b16 %v3738
    %v4349 = vunpack.c.h.b16 %v3738
    %v4350 = vunpack.c.l.b16 %v3739
    %v4351 = vunpack.c.h.b16 %v3739
    %v4352 = vunpack.c.l.b16 %v3740
    %v4353 = vunpack.c.h.b16 %v3740
    %v4354 = vunpack.c.l.b16 %v3741
    %v4355 = vunpack.c.h.b16 %v3741
    %v4356 = vunpack.c.l.b16 %v3742
    %v4357 = vunpack.c.h.b16 %v3742
    %v4358 = vunpack.c.l.b16 %v3743
    %v4359 = vunpack.c.h.b16 %v3743
    %v4360 = vunpack.c.l.b16 %v3744
    %v4361 = vunpack.c.h.b16 %v3744
    %v4362 = vunpack.c.l.b16 %v3745
    %v4363 = vunpack.c.h.b16 %v3745
    %v4364 = vunpack.c.l.b16 %v3746
    %v4365 = vunpack.c.h.b16 %v3746
    %v4366 = vunpack.c.l.b16 %v3747
    %v4367 = vunpack.c.h.b16 %v3747
    %v4368 = vunpack.c.l.b16 %v3748
    %v4369 = vunpack.c.h.b16 %v3748
    %v4370 = vunpack.c.l.b16 %v3749
    %v4371 = vunpack.c.h.b16 %v3749
    %v4372 = vunpack.c.l.b16 %v3750
    %v4373 = vunpack.c.h.b16 %v3750
    %v4374 = vunpack.c.l.b16 %v3751
    %v4375 = vunpack.c.h.b16 %v3751
    %v4376 = vunpack.c.l.b16 %v3752
    %v4377 = vunpack.c.h.b16 %v3752
    %v4378 = vunpack.c.l.b16 %v3753
    %v4379 = vunpack.c.h.b16 %v3753
    %v4380 = vunpack.c.l.b16 %v3754
    %v4381 = vunpack.c.h.b16 %v3754
    %v4382 = vunpack.c.l.b16 %v3755
    %v4383 = vunpack.c.h.b16 %v3755
    %v4384 = vunpack.c.l.b16 %v3756
    %v4385 = vunpack.c.h.b16 %v3756
    %v4386 = vunpack.c.l.b16 %v3757
    %v4387 = vunpack.c.h.b16 %v3757
    %v4388 = vunpack.c.l.b16 %v3758
    %v4389 = vunpack.c.h.b16 %v3758
    %v4390 = vunpack.c.l.b16 %v3759
    %v4391 = vunpack.c.h.b16 %v3759
    %v4392 = vunpack.c.l.b16 %v3760
    %v4393 = vunpack.c.h.b16 %v3760
    %v4394 = vunpack.c.l.b16 %v3761
    %v4395 = vunpack.c.h.b16 %v3761
    %v4396 = vunpack.c.l.b16 %v3762
    %v4397 = vunpack.c.h.b16 %v3762
    %v4398 = vunpack.c.l.b16 %v3763
    %v4399 = vunpack.c.h.b16 %v3763
    %v4400 = vunpack.c.l.b16 %v3764
    %v4401 = vunpack.c.h.b16 %v3764
    %v4402 = vunpack.c.l.b16 %v3765
    %v4403 = vunpack.c.h.b16 %v3765
    %v4404 = vunpack.c.l.b16 %v3766
    %v4405 = vunpack.c.h.b16 %v3766
    %v4406 = vunpack.c.l.b16 %v3767
    %v4407 = vunpack.c.h.b16 %v3767
    %v4408 = vunpack.c.l.b16 %v3768
    %v4409 = vunpack.c.h.b16 %v3768
    %v4410 = vunpack.c.l.b16 %v3769
    %v4411 = vunpack.c.h.b16 %v3769
    %v4412 = vunpack.c.l.b16 %v3770
    %v4413 = vunpack.c.h.b16 %v3770
    %v4414 = vunpack.c.l.b16 %v3771
    %v4415 = vunpack.c.h.b16 %v3771
    %v4416 = vunpack.c.l.b16 %v3772
    %v4417 = vunpack.c.h.b16 %v3772
    %v4418 = vunpack.c.l.b16 %v3773
    %v4419 = vunpack.c.h.b16 %v3773
    %v4420 = vunpack.c.l.b16 %v3774
    %v4421 = vunpack.c.h.b16 %v3774
    %v4422 = vunpack.c.l.b16 %v3775
    %v4423 = vunpack.c.h.b16 %v3775
    %v4424 = vunpack.c.l.b16 %v3776
    %v4425 = vunpack.c.h.b16 %v3776
    %v4426 = vunpack.c.l.b16 %v3777
    %v4427 = vunpack.c.h.b16 %v3777
    %v4428 = vunpack.c.l.b16 %v3778
    %v4429 = vunpack.c.h.b16 %v3778
    %v4430 = vunpack.c.l.b16 %v3779
    %v4431 = vunpack.c.h.b16 %v3779
    %v4432 = vunpack.c.l.b16 %v3780
    %v4433 = vunpack.c.h.b16 %v3780
    %v4434 = vunpack.c.l.b16 %v3781
    %v4435 = vunpack.c.h.b16 %v3781
    %v4436 = vunpack.c.l.b16 %v3782
    %v4437 = vunpack.c.h.b16 %v3782
    %v4438 = vunpack.c.l.b16 %v3783
    %v4439 = vunpack.c.h.b16 %v3783
    %v4440 = vunpack.c.l.b16 %v3784
    %v4441 = vunpack.c.h.b16 %v3784
    %v4442 = vunpack.c.l.b16 %v3785
    %v4443 = vunpack.c.h.b16 %v3785
    %v4444 = vunpack.c.l.b16 %v3786
    %v4445 = vunpack.c.h.b16 %v3786
    %v4446 = vunpack.c.l.b16 %v3787
    %v4447 = vunpack.c.h.b16 %v3787
    %v4448 = vunpack.c.l.b16 %v3788
    %v4449 = vunpack.c.h.b16 %v3788
    %v4450 = vunpack.c.l.b16 %v3789
    %v4451 = vunpack.c.h.b16 %v3789
    %v4452 = vunpack.c.l.b16 %v3790
    %v4453 = vunpack.c.h.b16 %v3790
    %v4454 = vunpack.c.l.b16 %v3791
    %v4455 = vunpack.c.h.b16 %v3791
    %v4456 = vunpack.c.l.b16 %v3792
    %v4457 = vunpack.c.h.b16 %v3792
    %v4458 = vunpack.c.l.b16 %v3793
    %v4459 = vunpack.c.h.b16 %v3793
    %v4460 = vunpack.c.l.b16 %v3794
    %v4461 = vunpack.c.h.b16 %v3794
    %v4462 = vunpack.c.l.b16 %v3795
    %v4463 = vunpack.c.h.b16 %v3795
    %v4464 = vunpack.c.l.b16 %v3796
    %v4465 = vunpack.c.h.b16 %v3796
    %v4466 = vunpack.c.l.b16 %v3797
    %v4467 = vunpack.c.h.b16 %v3797
    %v4468 = vunpack.c.l.b16 %v3798
    %v4469 = vunpack.c.h.b16 %v3798
    %v4470 = vunpack.c.l.b16 %v3799
    %v4471 = vunpack.c.h.b16 %v3799
    %v4472 = vunpack.c.l.b16 %v3800
    %v4473 = vunpack.c.h.b16 %v3800
    %v4474 = vunpack.c.l.b16 %v3801
    %v4475 = vunpack.c.h.b16 %v3801
    %v4476 = vunpack.c.l.b16 %v3802
    %v4477 = vunpack.c.h.b16 %v3802
    %v4478 = vunpack.c.l.b16 %v3803
    %v4479 = vunpack.c.h.b16 %v3803
    %v4480 = vunpack.c.l.b16 %v3804
    %v4481 = vunpack.c.h.b16 %v3804
    %v4482 = vunpack.c.l.b16 %v3805
    %v4483 = vunpack.c.h.b16 %v3805
    %v4484 = vunpack.c.l.b16 %v3806
    %v4485 = vunpack.c.h.b16 %v3806
    %v4486 = vunpack.c.l.b16 %v3807
    %v4487 = vunpack.c.h.b16 %v3807
    %v4488 = vunpack.c.l.b16 %v3808
    %v4489 = vunpack.c.h.b16 %v3808
    %v4490 = vunpack.c.l.b16 %v3809
    %v4491 = vunpack.c.h.b16 %v3809
    %v4492 = vunpack.c.l.b16 %v3810
    %v4493 = vunpack.c.h.b16 %v3810
    %v4494 = vunpack.c.l.b16 %v3811
    %v4495 = vunpack.c.h.b16 %v3811
    %v4496 = vunpack.c.l.b16 %v3812
    %v4497 = vunpack.c.h.b16 %v3812
    %v4498 = vunpack.c.l.b16 %v3813
    %v4499 = vunpack.c.h.b16 %v3813
    %v4500 = vunpack.c.l.b16 %v3814
    %v4501 = vunpack.c.h.b16 %v3814
    %v4502 = vunpack.c.l.b16 %v3815
    %v4503 = vunpack.c.h.b16 %v3815
    %v4504 = vunpack.c.l.b16 %v3816
    %v4505 = vunpack.c.h.b16 %v3816
    %v4506 = vunpack.c.l.b16 %v3817
    %v4507 = vunpack.c.h.b16 %v3817
    %v4508 = vunpack.c.l.b16 %v3818
    %v4509 = vunpack.c.h.b16 %v3818
    %v4510 = vunpack.c.l.b16 %v3819
    %v4511 = vunpack.c.h.b16 %v3819
    %v4512 = vunpack.c.l.b16 %v3820
    %v4513 = vunpack.c.h.b16 %v3820
    %v4514 = vunpack.c.l.b16 %v3821
    %v4515 = vunpack.c.h.b16 %v3821
    %v4516 = vunpack.c.l.b16 %v3822
    %v4517 = vunpack.c.h.b16 %v3822
    %v4518 = vunpack.c.l.b16 %v3823
    %v4519 = vunpack.c.h.b16 %v3823
    %v4520 = vunpack.c.l.b16 %v3824
    %v4521 = vunpack.c.h.b16 %v3824
    %v4522 = vunpack.c.l.b16 %v3825
    %v4523 = vunpack.c.h.b16 %v3825
    %v4524 = vunpack.c.l.b16 %v3826
    %v4525 = vunpack.c.h.b16 %v3826
    %v4526 = vunpack.c.l.b16 %v3827
    %v4527 = vunpack.c.h.b16 %v3827
    %v4528 = vunpack.c.l.b16 %v3828
    %v4529 = vunpack.c.h.b16 %v3828
    %v4530 = vunpack.c.l.b16 %v3829
    %v4531 = vunpack.c.h.b16 %v3829
    %v4532 = vunpack.c.l.b16 %v3830
    %v4533 = vunpack.c.h.b16 %v3830
    %v4534 = vunpack.c.l.b16 %v3831
    %v4535 = vunpack.c.h.b16 %v3831
    %v4536 = vunpack.c.l.b16 %v3832
    %v4537 = vunpack.c.h.b16 %v3832
    %v4538 = vunpack.c.l.b16 %v3833
    %v4539 = vunpack.c.h.b16 %v3833
    %v4540 = vunpack.c.l.b16 %v3834
    %v4541 = vunpack.c.h.b16 %v3834
    %v4542 = vunpack.c.l.b16 %v3835
    %v4543 = vunpack.c.h.b16 %v3835
    %v4544 = vunpack.c.l.b16 %v3836
    %v4545 = vunpack.c.h.b16 %v3836
    %v4546 = vunpack.c.l.b16 %v3837
    %v4547 = vunpack.c.h.b16 %v3837
    %v4548 = vunpack.c.l.b16 %v3838
    %v4549 = vunpack.c.h.b16 %v3838
    %v4550 = vunpack.c.l.b16 %v3839
    %v4551 = vunpack.c.h.b16 %v3839
    %v4552 = vunpack.c.l.b16 %v3840
    %v4553 = vunpack.c.h.b16 %v3840
    %v4554 = vunpack.c.l.b16 %v3841
    %v4555 = vunpack.c.h.b16 %v3841
    %v4556 = vunpack.c.l.b16 %v3842
    %v4557 = vunpack.c.h.b16 %v3842
    %v4558 = vunpack.c.l.b16 %v3843
    %v4559 = vunpack.c.h.b16 %v3843
    %v4560 = vunpack.c.l.b16 %v3844
    %v4561 = vunpack.c.h.b16 %v3844
    %v4562 = vunpack.c.l.b16 %v3845
    %v4563 = vunpack.c.h.b16 %v3845
    %v4564 = vunpack.c.l.b16 %v3846
    %v4565 = vunpack.c.h.b16 %v3846
    %v4566 = vunpack.c.l.b16 %v3847
    %v4567 = vunpack.c.h.b16 %v3847
    %v4568 = vunpack.c.l.b16 %v3848
    %v4569 = vunpack.c.h.b16 %v3848
    %v4570 = vunpack.c.l.b16 %v3849
    %v4571 = vunpack.c.h.b16 %v3849
    %v4572 = vunpack.c.l.b16 %v3850
    %v4573 = vunpack.c.h.b16 %v3850
    %v4574 = vunpack.c.l.b16 %v3851
    %v4575 = vunpack.c.h.b16 %v3851
    %v4576 = vunpack.c.l.b16 %v3852
    %v4577 = vunpack.c.h.b16 %v3852
    %v4578 = vunpack.c.l.b16 %v3853
    %v4579 = vunpack.c.h.b16 %v3853
    %v4580 = vunpack.c.l.b16 %v3854
    %v4581 = vunpack.c.h.b16 %v3854
    %v4582 = vunpack.c.l.b16 %v3855
    %v4583 = vunpack.c.h.b16 %v3855
    %v4584 = vunpack.c.l.b16 %v3856
    %v4585 = vunpack.c.h.b16 %v3856
    %v4586 = vunpack.c.l.b16 %v3857
    %v4587 = vunpack.c.h.b16 %v3857
    %v4588 = vunpack.c.l.b16 %v3858
    %v4589 = vunpack.c.h.b16 %v3858
    %v4590 = vunpack.c.l.b16 %v3859
    %v4591 = vunpack.c.h.b16 %v3859
    %v4592 = vunpack.c.l.b16 %v3860
    %v4593 = vunpack.c.h.b16 %v3860
    %v4594 = vunpack.c.l.b16 %v3861
    %v4595 = vunpack.c.h.b16 %v3861
    %v4596 = vunpack.c.l.b16 %v3862
    %v4597 = vunpack.c.h.b16 %v3862
    %v4598 = vunpack.c.l.b16 %v3863
    %v4599 = vunpack.c.h.b16 %v3863
    %v4600 = vunpack.c.l.b16 %v3864
    %v4601 = vunpack.c.h.b16 %v3864
    %v4602 = vunpack.c.l.b16 %v3865
    %v4603 = vunpack.c.h.b16 %v3865
    %v4604 = vunpack.c.l.b16 %v3866
    %v4605 = vunpack.c.h.b16 %v3866
    %v4606 = vunpack.c.l.b16 %v3867
    %v4607 = vunpack.c.h.b16 %v3867
    %v4608 = vunpack.c.l.b16 %v3868
    %v4609 = vunpack.c.h.b16 %v3868
    %v4610 = vunpack.c.l.b16 %v3869
    %v4611 = vunpack.c.h.b16 %v3869
    %v4612 = vunpack.c.l.b16 %v3870
    %v4613 = vunpack.c.h.b16 %v3870
    %v4614 = vunpack.c.l.b16 %v3871
    %v4615 = vunpack.c.h.b16 %v3871
    %v4616 = vunpack.c.l.b16 %v3872
    %v4617 = vunpack.c.h.b16 %v3872
    %v4618 = vunpack.c.l.b16 %v3873
    %v4619 = vunpack.c.h.b16 %v3873
    %v4620 = vunpack.c.l.b16 %v3874
    %v4621 = vunpack.c.h.b16 %v3874
    %v4622 = vunpack.c.l.b16 %v3875
    %v4623 = vunpack.c.h.b16 %v3875
    %v4624 = vunpack.c.l.b16 %v3876
    %v4625 = vunpack.c.h.b16 %v3876
    %v4626 = vunpack.c.l.b16 %v3877
    %v4627 = vunpack.c.h.b16 %v3877
    %v4628 = vunpack.c.l.b16 %v3878
    %v4629 = vunpack.c.h.b16 %v3878
    %v4630 = vunpack.c.l.b16 %v3879
    %v4631 = vunpack.c.h.b16 %v3879
    %v4632 = vunpack.c.l.b16 %v3880
    %v4633 = vunpack.c.h.b16 %v3880
    %v4634 = vunpack.c.l.b16 %v3881
    %v4635 = vunpack.c.h.b16 %v3881
    %v4636 = vunpack.c.l.b16 %v3882
    %v4637 = vunpack.c.h.b16 %v3882
    %v4638 = vunpack.c.l.b16 %v3883
    %v4639 = vunpack.c.h.b16 %v3883
    %v4640 = vunpack.c.l.b16 %v3884
    %v4641 = vunpack.c.h.b16 %v3884
    %v4642 = vunpack.c.l.b16 %v3885
    %v4643 = vunpack.c.h.b16 %v3885
    %v4644 = vunpack.c.l.b16 %v3886
    %v4645 = vunpack.c.h.b16 %v3886
    %v4646 = vunpack.c.l.b16 %v3887
    %v4647 = vunpack.c.h.b16 %v3887
    %v4648 = vunpack.c.l.b16 %v3888
    %v4649 = vunpack.c.h.b16 %v3888
    %v4650 = vunpack.c.l.b16 %v3889
    %v4651 = vunpack.c.h.b16 %v3889
    %v4652 = vunpack.c.l.b16 %v3890
    %v4653 = vunpack.c.h.b16 %v3890
    %v4654 = vunpack.c.l.b16 %v3891
    %v4655 = vunpack.c.h.b16 %v3891
    %v4656 = vunpack.c.l.b16 %v3892
    %v4657 = vunpack.c.h.b16 %v3892
    %v4658 = vunpack.c.l.b16 %v3893
    %v4659 = vunpack.c.h.b16 %v3893
    %v4660 = vunpack.c.l.b16 %v3894
    %v4661 = vunpack.c.h.b16 %v3894
    %v4662 = vunpack.c.l.b16 %v3895
    %v4663 = vunpack.c.h.b16 %v3895
    %v4664 = vunpack.c.l.b16 %v3896
    %v4665 = vunpack.c.h.b16 %v3896
    %v4666 = vunpack.c.l.b16 %v3897
    %v4667 = vunpack.c.h.b16 %v3897
    %v4668 = vunpack.c.l.b16 %v3898
    %v4669 = vunpack.c.h.b16 %v3898
    %v4670 = vunpack.c.l.b16 %v3899
    %v4671 = vunpack.c.h.b16 %v3899
    %v4672 = vunpack.c.l.b16 %v3900
    %v4673 = vunpack.c.h.b16 %v3900
    %v4674 = vunpack.c.l.b16 %v3901
    %v4675 = vunpack.c.h.b16 %v3901
    %v4676 = vunpack.c.l.b16 %v3902
    %v4677 = vunpack.c.h.b16 %v3902
    %v4678 = vunpack.c.l.b16 %v3903
    %v4679 = vunpack.c.h.b16 %v3903
    %v4680 = vunpack.c.l.b16 %v3904
    %v4681 = vunpack.c.h.b16 %v3904
    %v4682 = vunpack.c.l.b16 %v3905
    %v4683 = vunpack.c.h.b16 %v3905
    %v4684 = vunpack.c.l.b16 %v3906
    %v4685 = vunpack.c.h.b16 %v3906
    %v4686 = vunpack.c.l.b16 %v3907
    %v4687 = vunpack.c.h.b16 %v3907
    %v4688 = vunpack.c.l.b16 %v3908
    %v4689 = vunpack.c.h.b16 %v3908
    %v4690 = vunpack.c.l.b16 %v3909
    %v4691 = vunpack.c.h.b16 %v3909
    %v4692 = vunpack.c.l.b16 %v3910
    %v4693 = vunpack.c.h.b16 %v3910
    %v4694 = vunpack.c.l.b16 %v3911
    %v4695 = vunpack.c.h.b16 %v3911
    %v4696 = vunpack.c.l.b16 %v3912
    %v4697 = vunpack.c.h.b16 %v3912
    %v4698 = vunpack.c.l.b16 %v3913
    %v4699 = vunpack.c.h.b16 %v3913
    %v4700 = vunpack.c.l.b16 %v3914
    %v4701 = vunpack.c.h.b16 %v3914
    %v4702 = vunpack.c.l.b16 %v3915
    %v4703 = vunpack.c.h.b16 %v3915
    %v4704 = vunpack.c.l.b16 %v3916
    %v4705 = vunpack.c.h.b16 %v3916
    %v4706 = vunpack.c.l.b16 %v3917
    %v4707 = vunpack.c.h.b16 %v3917
    %v4708 = vunpack.c.l.b16 %v3918
    %v4709 = vunpack.c.h.b16 %v3918
    %v4710 = vunpack.c.l.b16 %v3919
    %v4711 = vunpack.c.h.b16 %v3919
    %v4712 = vunpack.c.l.b16 %v3920
    %v4713 = vunpack.c.h.b16 %v3920
    %v4714 = vunpack.c.l.b16 %v3921
    %v4715 = vunpack.c.h.b16 %v3921
    %v4716 = vunpack.c.l.b16 %v3922
    %v4717 = vunpack.c.h.b16 %v3922
    %v4718 = vunpack.c.l.b16 %v3923
    %v4719 = vunpack.c.h.b16 %v3923
    %v4720 = vunpack.c.l.b16 %v3924
    %v4721 = vunpack.c.h.b16 %v3924
    %v4722 = vunpack.c.l.b16 %v3925
    %v4723 = vunpack.c.h.b16 %v3925
    %v4724 = vunpack.c.l.b16 %v3926
    %v4725 = vunpack.c.h.b16 %v3926
    %v4726 = vunpack.c.l.b16 %v3927
    %v4727 = vunpack.c.h.b16 %v3927
    %v4728 = vunpack.c.l.b16 %v3928
    %v4729 = vunpack.c.h.b16 %v3928
    %v4730 = vunpack.c.l.b16 %v3929
    %v4731 = vunpack.c.h.b16 %v3929
    %v4732 = vunpack.c.l.b16 %v3930
    %v4733 = vunpack.c.h.b16 %v3930
    %v4734 = vunpack.c.l.b16 %v3931
    %v4735 = vunpack.c.h.b16 %v3931
    %v4736 = vunpack.c.l.b16 %v3932
    %v4737 = vunpack.c.h.b16 %v3932
    %v4738 = vunpack.c.l.b16 %v3933
    %v4739 = vunpack.c.h.b16 %v3933
    %v4740 = vunpack.c.l.b16 %v3934
    %v4741 = vunpack.c.h.b16 %v3934
    %v4742 = vunpack.c.l.b16 %v3935
    %v4743 = vunpack.c.h.b16 %v3935
    %v4744 = vunpack.c.l.b16 %v3936
    %v4745 = vunpack.c.h.b16 %v3936
    %v4746 = vunpack.c.l.b16 %v3937
    %v4747 = vunpack.c.h.b16 %v3937
    %v4748 = vunpack.c.l.b16 %v3938
    %v4749 = vunpack.c.h.b16 %v3938
    %v4750 = vunpack.c.l.b16 %v3939
    %v4751 = vunpack.c.h.b16 %v3939
    %v4752 = vunpack.c.l.b16 %v3940
    %v4753 = vunpack.c.h.b16 %v3940
    %v4754 = vunpack.c.l.b16 %v3941
    %v4755 = vunpack.c.h.b16 %v3941
    %v4756 = vunpack.c.l.b16 %v3942
    %v4757 = vunpack.c.h.b16 %v3942
    %v4758 = vunpack.c.l.b16 %v3943
    %v4759 = vunpack.c.h.b16 %v3943
    %v4760 = vunpack.c.l.b16 %v3944
    %v4761 = vunpack.c.h.b16 %v3944
    %v4762 = vunpack.c.l.b16 %v3945
    %v4763 = vunpack.c.h.b16 %v3945
    %v4764 = vunpack.c.l.b16 %v3946
    %v4765 = vunpack.c.h.b16 %v3946
    %v4766 = vunpack.c.l.b16 %v3947
    %v4767 = vunpack.c.h.b16 %v3947
    %v4768 = vunpack.c.l.b16 %v3948
    %v4769 = vunpack.c.h.b16 %v3948
    %v4770 = vunpack.c.l.b16 %v3949
    %v4771 = vunpack.c.h.b16 %v3949
    %v4772 = vunpack.c.l.b16 %v3950
    %v4773 = vunpack.c.h.b16 %v3950
    %v4774 = vunpack.c.l.b16 %v3951
    %v4775 = vunpack.c.h.b16 %v3951
    %v4776 = vunpack.c.l.b16 %v3952
    %v4777 = vunpack.c.h.b16 %v3952
    %v4778 = vunpack.c.l.b16 %v3953
    %v4779 = vunpack.c.h.b16 %v3953
    %v4780 = vunpack.c.l.b16 %v3954
    %v4781 = vunpack.c.h.b16 %v3954
    %v4782 = vunpack.c.l.b16 %v3955
    %v4783 = vunpack.c.h.b16 %v3955
    %v4784 = vunpack.c.l.b16 %v3956
    %v4785 = vunpack.c.h.b16 %v3956
    %v4786 = vunpack.c.l.b16 %v3957
    %v4787 = vunpack.c.h.b16 %v3957
    %v4788 = vunpack.c.l.b16 %v3958
    %v4789 = vunpack.c.h.b16 %v3958
    %v4790 = vunpack.c.l.b16 %v3959
    %v4791 = vunpack.c.h.b16 %v3959
    %v4792 = vunpack.c.l.b16 %v3960
    %v4793 = vunpack.c.h.b16 %v3960
    %v4794 = vunpack.c.l.b16 %v3961
    %v4795 = vunpack.c.h.b16 %v3961
    %v4796 = vunpack.c.l.b16 %v3962
    %v4797 = vunpack.c.h.b16 %v3962
    %v4798 = vunpack.c.l.b16 %v3963
    %v4799 = vunpack.c.h.b16 %v3963
    %v4800 = vunpack.c.l.b16 %v3964
    %v4801 = vunpack.c.h.b16 %v3964
    %v4802 = vunpack.c.l.b16 %v3965
    %v4803 = vunpack.c.h.b16 %v3965
    %v4804 = vunpack.c.l.b16 %v3966
    %v4805 = vunpack.c.h.b16 %v3966
    %v4806 = vunpack.c.l.b16 %v3967
    %v4807 = vunpack.c.h.b16 %v3967
    %v4808 = vunpack.c.l.b16 %v3968
    %v4809 = vunpack.c.h.b16 %v3968
    %v4810 = vunpack.c.l.b16 %v3969
    %v4811 = vunpack.c.h.b16 %v3969
    %v4812 = vunpack.c.l.b16 %v3970
    %v4813 = vunpack.c.h.b16 %v3970
    %v4814 = vunpack.c.l.b16 %v3971
    %v4815 = vunpack.c.h.b16 %v3971
    %v4816 = vunpack.c.l.b16 %v3972
    %v4817 = vunpack.c.h.b16 %v3972
    %v4818 = vunpack.c.l.b16 %v3973
    %v4819 = vunpack.c.h.b16 %v3973
    %v4820 = vunpack.c.l.b16 %v3974
    %v4821 = vunpack.c.h.b16 %v3974
    %v4822 = vunpack.c.l.b16 %v3975
    %v4823 = vunpack.c.h.b16 %v3975
    %v4824 = vunpack.c.l.b16 %v3976
    %v4825 = vunpack.c.h.b16 %v3976
    %v4826 = vunpack.c.l.b16 %v3977
    %v4827 = vunpack.c.h.b16 %v3977
    %v4828 = vunpack.c.l.b16 %v3978
    %v4829 = vunpack.c.h.b16 %v3978
    %v4830 = vunpack.c.l.b16 %v3979
    %v4831 = vunpack.c.h.b16 %v3979
    %v4832 = vunpack.c.l.b16 %v3980
    %v4833 = vunpack.c.h.b16 %v3980
    %v4834 = vunpack.c.l.b16 %v3981
    %v4835 = vunpack.c.h.b16 %v3981
    %v4836 = vunpack.c.l.b16 %v3982
    %v4837 = vunpack.c.h.b16 %v3982
    %v4838 = vunpack.c.l.b16 %v3983
    %v4839 = vunpack.c.h.b16 %v3983
    %v4840 = vunpack.c.l.b16 %v3984
    %v4841 = vunpack.c.h.b16 %v3984
    %v4842 = vunpack.c.l.b16 %v3985
    %v4843 = vunpack.c.h.b16 %v3985
    %v4844 = vunpack.c.l.b16 %v3986
    %v4845 = vunpack.c.h.b16 %v3986
    %v4846 = vunpack.c.l.b16 %v3987
    %v4847 = vunpack.c.h.b16 %v3987
    %v4848 = vunpack.c.l.b16 %v3988
    %v4849 = vunpack.c.h.b16 %v3988
    %v4850 = vunpack.c.l.b16 %v3989
    %v4851 = vunpack.c.h.b16 %v3989
    %v4852 = vunpack.c.l.b16 %v3990
    %v4853 = vunpack.c.h.b16 %v3990
    %v4854 = vunpack.c.l.b16 %v3991
    %v4855 = vunpack.c.h.b16 %v3991
    %v4856 = vunpack.c.l.b16 %v3992
    %v4857 = vunpack.c.h.b16 %v3992
    %v4858 = vunpack.c.l.b16 %v3993
    %v4859 = vunpack.c.h.b16 %v3993
    %v4860 = vunpack.c.l.b16 %v3994
    %v4861 = vunpack.c.h.b16 %v3994
    %v4862 = vunpack.c.l.b16 %v3995
    %v4863 = vunpack.c.h.b16 %v3995
    %v4864 = vunpack.c.l.b16 %v3996
    %v4865 = vunpack.c.h.b16 %v3996
    %v4866 = vunpack.c.l.b16 %v3997
    %v4867 = vunpack.c.h.b16 %v3997
    %v4868 = vunpack.c.l.b16 %v3998
    %v4869 = vunpack.c.h.b16 %v3998
    %v4870 = vunpack.c.l.b16 %v3999
    %v4871 = vunpack.c.h.b16 %v3999
    %v4872 = vunpack.c.l.b16 %v4000
    %v4873 = vunpack.c.h.b16 %v4000
    %v4874 = vunpack.c.l.b16 %v4001
    %v4875 = vunpack.c.h.b16 %v4001
    %v4876 = vunpack.c.l.b16 %v4002
    %v4877 = vunpack.c.h.b16 %v4002
    %v4878 = vunpack.c.l.b16 %v4003
    %v4879 = vunpack.c.h.b16 %v4003
    %v4880 = vunpack.c.l.b16 %v4004
    %v4881 = vunpack.c.h.b16 %v4004
    %v4882 = vunpack.c.l.b16 %v4005
    %v4883 = vunpack.c.h.b16 %v4005
    %v4884 = vunpack.c.l.b16 %v4006
    %v4885 = vunpack.c.h.b16 %v4006
    %v4886 = vunpack.c.l.b16 %v4007
    %v4887 = vunpack.c.h.b16 %v4007
    %v4888 = vunpack.c.l.b16 %v4008
    %v4889 = vunpack.c.h.b16 %v4008
    %v4890 = vunpack.c.l.b16 %v4009
    %v4891 = vunpack.c.h.b16 %v4009
    %v4892 = vunpack.c.l.b16 %v4010
    %v4893 = vunpack.c.h.b16 %v4010
    %v4894 = vunpack.c.l.b16 %v4011
    %v4895 = vunpack.c.h.b16 %v4011
    %v4896 = vunpack.c.l.b16 %v4012
    %v4897 = vunpack.c.h.b16 %v4012
    %v4898 = vunpack.c.l.b16 %v4013
    %v4899 = vunpack.c.h.b16 %v4013
    %v4900 = vunpack.c.l.b16 %v4014
    %v4901 = vunpack.c.h.b16 %v4014
    %v4902 = vunpack.c.l.b16 %v4015
    %v4903 = vunpack.c.h.b16 %v4015
    %v4904 = vunpack.c.l.b16 %v4016
    %v4905 = vunpack.c.h.b16 %v4016
    %v4906 = vunpack.c.l.b16 %v4017
    %v4907 = vunpack.c.h.b16 %v4017
    %v4908 = vunpack.c.l.b16 %v4018
    %v4909 = vunpack.c.h.b16 %v4018
    %v4910 = vunpack.c.l.b16 %v4019
    %v4911 = vunpack.c.h.b16 %v4019
    %v4912 = vunpack.c.l.b16 %v4020
    %v4913 = vunpack.c.h.b16 %v4020
    %v4914 = vunpack.c.l.b16 %v4021
    %v4915 = vunpack.c.h.b16 %v4021
    %v4916 = vunpack.c.l.b16 %v4022
    %v4917 = vunpack.c.h.b16 %v4022
    %v4918 = vunpack.c.l.b16 %v4023
    %v4919 = vunpack.c.h.b16 %v4023
    %v4920 = vpack.c.b16 %v4350, %v4344
    %v4921 = vpack.c.b16 %v4351, %v4345
    %v4922 = vpack.c.b16 %v4352, %v4346
    %v4923 = vpack.c.b16 %v4353, %v4347
    %v4924 = vpack.c.b16 %v4354, %v4348
    %v4925 = vpack.c.b16 %v4355, %v4349
    %v4926 = vpack.c.b16 %v4362, %v4356
    %v4927 = vpack.c.b16 %v4363, %v4357
    %v4928 = vpack.c.b16 %v4364, %v4358
    %v4929 = vpack.c.b16 %v4365, %v4359
    %v4930 = vpack.c.b16 %v4366, %v4360
    %v4931 = vpack.c.b16 %v4367, %v4361
    %v4932 = vpack.c.b16 %v4374, %v4368
    %v4933 = vpack.c.b16 %v4375, %v4369
    %v4934 = vpack.c.b16 %v4376, %v4370
    %v4935 = vpack.c.b16 %v4377, %v4371
    %v4936 = vpack.c.b16 %v4378, %v4372
    %v4937 = vpack.c.b16 %v4379, %v4373
    %v4938 = vpack.c.b16 %v4386, %v4380
    %v4939 = vpack.c.b16 %v4387, %v4381
    %v4940 = vpack.c.b16 %v4388, %v4382
    %v4941 = vpack.c.b16 %v4389, %v4383
    %v4942 = vpack.c.b16 %v4390, %v4384
    %v4943 = vpack.c.b16 %v4391, %v4385
    %v4944 = vpack.c.b16 %v4398, %v4392
    %v4945 = vpack.c.b16 %v4399, %v4393
    %v4946 = vpack.c.b16 %v4400, %v4394
    %v4947 = vpack.c.b16 %v4401, %v4395
    %v4948 = vpack.c.b16 %v4402, %v4396
    %v4949 = vpack.c.b16 %v4403, %v4397
    %v4950 = vpack.c.b16 %v4410, %v4404
    %v4951 = vpack.c.b16 %v4411, %v4405
    %v4952 = vpack.c.b16 %v4412, %v4406
    %v4953 = vpack.c.b16 %v4413, %v4407
    %v4954 = vpack.c.b16 %v4414, %v4408
    %v4955 = vpack.c.b16 %v4415, %v4409
    %v4956 = vpack.c.b16 %v4422, %v4416
    %v4957 = vpack.c.b16 %v4423, %v4417
    %v4958 = vpack.c.b16 %v4424, %v4418
    %v4959 = vpack.c.b16 %v4425, %v4419
    %v4960 = vpack.c.b16 %v4426, %v4420
    %v4961 = vpack.c.b16 %v4427, %v4421
    %v4962 = vpack.c.b16 %v4434, %v4428
    %v4963 = vpack.c.b16 %v4435, %v4429
    %v4964 = vpack.c.b16 %v4436, %v4430
    %v4965 = vpack.c.b16 %v4437, %v4431
    %v4966 = vpack.c.b16 %v4438, %v4432
    %v4967 = vpack.c.b16 %v4439, %v4433
    %v4968 = vpack.c.b16 %v4446, %v4440
    %v4969 = vpack.c.b16 %v4447, %v4441
    %v4970 = vpack.c.b16 %v4448, %v4442
    %v4971 = vpack.c.b16 %v4449, %v4443
    %v4972 = vpack.c.b16 %v4450, %v4444
    %v4973 = vpack.c.b16 %v4451, %v4445
    %v4974 = vpack.c.b16 %v4458, %v4452
    %v4975 = vpack.c.b16 %v4459, %v4453
    %v4976 = vpack.c.b16 %v4460, %v4454
    %v4977 = vpack.c.b16 %v4461, %v4455
    %v4978 = vpack.c.b16 %v4462, %v4456
    %v4979 = vpack.c.b16 %v4463, %v4457
    %v4980 = vpack.c.b16 %v4470, %v4464
    %v4981 = vpack.c.b16 %v4471, %v4465
    %v4982 = vpack.c.b16 %v4472, %v4466
    %v4983 = vpack.c.b16 %v4473, %v4467
    %v4984 = vpack.c.b16 %v4474, %v4468
    %v4985 = vpack.c.b16 %v4475, %v4469
    %v4986 = vpack.c.b16 %v4482, %v4476
    %v4987 = vpack.c.b16 %v4483, %v4477
    %v4988 = vpack.c.b16 %v4484, %v4478
    %v4989 = vpack.c.b16 %v4485, %v4479
    %v4990 = vpack.c.b16 %v4486, %v4480
    %v4991 = vpack.c.b16 %v4487, %v4481
    %v4992 = vpack.c.b16 %v4494, %v4488
    %v4993 = vpack.c.b16 %v4495, %v4489
    %v4994 = vpack.c.b16 %v4496, %v4490
    %v4995 = vpack.c.b16 %v4497, %v4491
    %v4996 = vpack.c.b16 %v4498, %v4492
    %v4997 = vpack.c.b16 %v4499, %v4493
    %v4998 = vpack.c.b16 %v4506, %v4500
    %v4999 = vpack.c.b16 %v4507, %v4501
    %v5000 = vpack.c.b16 %v4508, %v4502
    %v5001 = vpack.c.b16 %v4509, %v4503
    %v5002 = vpack.c.b16 %v4510, %v4504
    %v5003 = vpack.c.b16 %v4511, %v4505
    %v5004 = vpack.c.b16 %v4518, %v4512
    %v5005 = vpack.c.b16 %v4519, %v4513
    %v5006 = vpack.c.b16 %v4520, %v4514
    %v5007 = vpack.c.b16 %v4521, %v4515
    %v5008 = vpack.c.b16 %v4522, %v4516
    %v5009 = vpack.c.b16 %v4523, %v4517
    %v5010 = vpack.c.b16 %v4530, %v4524
    %v5011 = vpack.c.b16 %v4531, %v4525
    %v5012 = vpack.c.b16 %v4532, %v4526
    %v5013 = vpack.c.b16 %v4533, %v4527
    %v5014 = vpack.c.b16 %v4534, %v4528
    %v5015 = vpack.c.b16 %v4535, %v4529
    %v5016 = vpack.c.b16 %v4542, %v4536
    %v5017 = vpack.c.b16 %v4543, %v4537
    %v5018 = vpack.c.b16 %v4544, %v4538
    %v5019 = vpack.c.b16 %v4545, %v4539
    %v5020 = vpack.c.b16 %v4546, %v4540
    %v5021 = vpack.c.b16 %v4547, %v4541
    %v5022 = vpack.c.b16 %v4554, %v4548
    %v5023 = vpack.c.b16 %v4555, %v4549
    %v5024 = vpack.c.b16 %v4556, %v4550
    %v5025 = vpack.c.b16 %v4557, %v4551
    %v5026 = vpack.c.b16 %v4558, %v4552
    %v5027 = vpack.c.b16 %v4559, %v4553
    %v5028 = vpack.c.b16 %v4566, %v4560
    %v5029 = vpack.c.b16 %v4567, %v4561
    %v5030 = vpack.c.b16 %v4568, %v4562
    %v5031 = vpack.c.b16 %v4569, %v4563
    %v5032 = vpack.c.b16 %v4570, %v4564
    %v5033 = vpack.c.b16 %v4571, %v4565
    %v5034 = vpack.c.b16 %v4578, %v4572
    %v5035 = vpack.c.b16 %v4579, %v4573
    %v5036 = vpack.c.b16 %v4580, %v4574
    %v5037 = vpack.c.b16 %v4581, %v4575
    %v5038 = vpack.c.b16 %v4582, %v4576
    %v5039 = vpack.c.b16 %v4583, %v4577
    %v5040 = vpack.c.b16 %v4590, %v4584
    %v5041 = vpack.c.b16 %v4591, %v4585
    %v5042 = vpack.c.b16 %v4592, %v4586
    %v5043 = vpack.c.b16 %v4593, %v4587
    %v5044 = vpack.c.b16 %v4594, %v4588
    %v5045 = vpack.c.b16 %v4595, %v4589
    %v5046 = vpack.c.b16 %v4602, %v4596
    %v5047 = vpack.c.b16 %v4603, %v4597
    %v5048 = vpack.c.b16 %v4604, %v4598
    %v5049 = vpack.c.b16 %v4605, %v4599
    %v5050 = vpack.c.b16 %v4606, %v4600
    %v5051 = vpack.c.b16 %v4607, %v4601
    %v5052 = vpack.c.b16 %v4614, %v4608
    %v5053 = vpack.c.b16 %v4615, %v4609
    %v5054 = vpack.c.b16 %v4616, %v4610
    %v5055 = vpack.c.b16 %v4617, %v4611
    %v5056 = vpack.c.b16 %v4618, %v4612
    %v5057 = vpack.c.b16 %v4619, %v4613
    %v5058 = vpack.c.b16 %v4626, %v4620
    %v5059 = vpack.c.b16 %v4627, %v4621
    %v5060 = vpack.c.b16 %v4628, %v4622
    %v5061 = vpack.c.b16 %v4629, %v4623
    %v5062 = vpack.c.b16 %v4630, %v4624
    %v5063 = vpack.c.b16 %v4631, %v4625
    %v5064 = vpack.c.b16 %v4638, %v4632
    %v5065 = vpack.c.b16 %v4639, %v4633
    %v5066 = vpack.c.b16 %v4640, %v4634
    %v5067 = vpack.c.b16 %v4641, %v4635
    %v5068 = vpack.c.b16 %v4642, %v4636
    %v5069 = vpack.c.b16 %v4643, %v4637
    %v5070 = vpack.c.b16 %v4650, %v4644
    %v5071 = vpack.c.b16 %v4651, %v4645
    %v5072 = vpack.c.b16 %v4652, %v4646
    %v5073 = vpack.c.b16 %v4653, %v4647
    %v5074 = vpack.c.b16 %v4654, %v4648
    %v5075 = vpack.c.b16 %v4655, %v4649
    %v5076 = vpack.c.b16 %v4662, %v4656
    %v5077 = vpack.c.b16 %v4663, %v4657
    %v5078 = vpack.c.b16 %v4664, %v4658
    %v5079 = vpack.c.b16 %v4665, %v4659
    %v5080 = vpack.c.b16 %v4666, %v4660
    %v5081 = vpack.c.b16 %v4667, %v4661
    %v5082 = vpack.c.b16 %v4674, %v4668
    %v5083 = vpack.c.b16 %v4675, %v4669
    %v5084 = vpack.c.b16 %v4676, %v4670
    %v5085 = vpack.c.b16 %v4677, %v4671
    %v5086 = vpack.c.b16 %v4678, %v4672
    %v5087 = vpack.c.b16 %v4679, %v4673
    %v5088 = vpack.c.b16 %v4686, %v4680
    %v5089 = vpack.c.b16 %v4687, %v4681
    %v5090 = vpack.c.b16 %v4688, %v4682
    %v5091 = vpack.c.b16 %v4689, %v4683
    %v5092 = vpack.c.b16 %v4690, %v4684
    %v5093 = vpack.c.b16 %v4691, %v4685
    %v5094 = vpack.c.b16 %v4698, %v4692
    %v5095 = vpack.c.b16 %v4699, %v4693
    %v5096 = vpack.c.b16 %v4700, %v4694
    %v5097 = vpack.c.b16 %v4701, %v4695
    %v5098 = vpack.c.b16 %v4702, %v4696
    %v5099 = vpack.c.b16 %v4703, %v4697
    %v5100 = vpack.c.b16 %v4710, %v4704
    %v5101 = vpack.c.b16 %v4711, %v4705
    %v5102 = vpack.c.b16 %v4712, %v4706
    %v5103 = vpack.c.b16 %v4713, %v4707
    %v5104 = vpack.c.b16 %v4714, %v4708
    %v5105 = vpack.c.b16 %v4715, %v4709
    %v5106 = vpack.c.b16 %v4722, %v4716
    %v5107 = vpack.c.b16 %v4723, %v4717
    %v5108 = vpack.c.b16 %v4724, %v4718
    %v5109 = vpack.c.b16 %v4725, %v4719
    %v5110 = vpack.c.b16 %v4726, %v4720
    %v5111 = vpack.c.b16 %v4727, %v4721
    %v5112 = vpack.c.b16 %v4734, %v4728
    %v5113 = vpack.c.b16 %v4735, %v4729
    %v5114 = vpack.c.b16 %v4736, %v4730
    %v5115 = vpack.c.b16 %v4737, %v4731
    %v5116 = vpack.c.b16 %v4738, %v4732
    %v5117 = vpack.c.b16 %v4739, %v4733
    %v5118 = vpack.c.b16 %v4746, %v4740
    %v5119 = vpack.c.b16 %v4747, %v4741
    %v5120 = vpack.c.b16 %v4748, %v4742
    %v5121 = vpack.c.b16 %v4749, %v4743
    %v5122 = vpack.c.b16 %v4750, %v4744
    %v5123 = vpack.c.b16 %v4751, %v4745
    %v5124 = vpack.c.b16 %v4758, %v4752
    %v5125 = vpack.c.b16 %v4759, %v4753
    %v5126 = vpack.c.b16 %v4760, %v4754
    %v5127 = vpack.c.b16 %v4761, %v4755
    %v5128 = vpack.c.b16 %v4762, %v4756
    %v5129 = vpack.c.b16 %v4763, %v4757
    %v5130 = vpack.c.b16 %v4770, %v4764
    %v5131 = vpack.c.b16 %v4771, %v4765
    %v5132 = vpack.c.b16 %v4772, %v4766
    %v5133 = vpack.c.b16 %v4773, %v4767
    %v5134 = vpack.c.b16 %v4774, %v4768
    %v5135 = vpack.c.b16 %v4775, %v4769
    %v5136 = vpack.c.b16 %v4782, %v4776
    %v5137 = vpack.c.b16 %v4783, %v4777
    %v5138 = vpack.c.b16 %v4784, %v4778
    %v5139 = vpack.c.b16 %v4785, %v4779
    %v5140 = vpack.c.b16 %v4786, %v4780
    %v5141 = vpack.c.b16 %v4787, %v4781
    %v5142 = vpack.c.b16 %v4794, %v4788
    %v5143 = vpack.c.b16 %v4795, %v4789
    %v5144 = vpack.c.b16 %v4796, %v4790
    %v5145 = vpack.c.b16 %v4797, %v4791
    %v5146 = vpack.c.b16 %v4798, %v4792
    %v5147 = vpack.c.b16 %v4799, %v4793
    %v5148 = vpack.c.b16 %v4806, %v4800
    %v5149 = vpack.c.b16 %v4807, %v4801
    %v5150 = vpack.c.b16 %v4808, %v4802
    %v5151 = vpack.c.b16 %v4809, %v4803
    %v5152 = vpack.c.b16 %v4810, %v4804
    %v5153 = vpack.c.b16 %v4811, %v4805
    %v5154 = vpack.c.b16 %v4818, %v4812
    %v5155 = vpack.c.b16 %v4819, %v4813
    %v5156 = vpack.c.b16 %v4820, %v4814
    %v5157 = vpack.c.b16 %v4821, %v4815
    %v5158 = vpack.c.b16 %v4822, %v4816
    %v5159 = vpack.c.b16 %v4823, %v4817
    %v5160 = vpack.c.b16 %v4830, %v4824
    %v5161 = vpack.c.b16 %v4831, %v4825
    %v5162 = vpack.c.b16 %v4832, %v4826
    %v5163 = vpack.c.b16 %v4833, %v4827
    %v5164 = vpack.c.b16 %v4834, %v4828
    %v5165 = vpack.c.b16 %v4835, %v4829
    %v5166 = vpack.c.b16 %v4842, %v4836
    %v5167 = vpack.c.b16 %v4843, %v4837
    %v5168 = vpack.c.b16 %v4844, %v4838
    %v5169 = vpack.c.b16 %v4845, %v4839
    %v5170 = vpack.c.b16 %v4846, %v4840
    %v5171 = vpack.c.b16 %v4847, %v4841
    %v5172 = vpack.c.b16 %v4854, %v4848
    %v5173 = vpack.c.b16 %v4855, %v4849
    %v5174 = vpack.c.b16 %v4856, %v4850
    %v5175 = vpack.c.b16 %v4857, %v4851
    %v5176 = vpack.c.b16 %v4858, %v4852
    %v5177 = vpack.c.b16 %v4859, %v4853
    %v5178 = vpack.c.b16 %v4866, %v4860
    %v5179 = vpack.c.b16 %v4867, %v4861
    %v5180 = vpack.c.b16 %v4868, %v4862
    %v5181 = vpack.c.b16 %v4869, %v4863
    %v5182 = vpack.c.b16 %v4870, %v4864
    %v5183 = vpack.c.b16 %v4871, %v4865
    %v5184 = vpack.c.b16 %v4878, %v4872
    %v5185 = vpack.c.b16 %v4879, %v4873
    %v5186 = vpack.c.b16 %v4880, %v4874
    %v5187 = vpack.c.b16 %v4881, %v4875
    %v5188 = vpack.c.b16 %v4882, %v4876
    %v5189 = vpack.c.b16 %v4883, %v4877
    %v5190 = vpack.c.b16 %v4890, %v4884
    %v5191 = vpack.c.b16 %v4891, %v4885
    %v5192 = vpack.c.b16 %v4892, %v4886
    %v5193 = vpack.c.b16 %v4893, %v4887
    %v5194 = vpack.c.b16 %v4894, %v4888
    %v5195 = vpack.c.b16 %v4895, %v4889
    %v5196 = vpack.c.b16 %v4902, %v4896
    %v5197 = vpack.c.b16 %v4903, %v4897
    %v5198 = vpack.c.b16 %v4904, %v4898
    %v5199 = vpack.c.b16 %v4905, %v4899
    %v5200 = vpack.c.b16 %v4906, %v4900
    %v5201 = vpack.c.b16 %v4907, %v4901
    %v5202 = vpack.c.b16 %v4914, %v4908
    %v5203 = vpack.c.b16 %v4915, %v4909
    %v5204 = vpack.c.b16 %v4916, %v4910
    %v5205 = vpack.c.b16 %v4917, %v4911
    %v5206 = vpack.c.b16 %v4918, %v4912
    %v5207 = vpack.c.b16 %v4919, %v4913
    %5496 = vmatprep.subr.bf16.mxu0 %v4963
    %5497 = vmatpush1.bf16.msra.mxu0 %v4962
    %5498 = vmatprep.subr.bf16.mxu0 %v4957
    %5499 = vmatpush1.bf16.msra.mxu0 %v4956
    %5500 = vmatprep.subr.bf16.mxu0 %v4951
    %5501 = vmatpush1.bf16.msra.mxu0 %v4950
    %5502 = vmatprep.subr.bf16.mxu0 %v4945
    %5503 = vmatpush1.bf16.msra.mxu0 %v4944
    %5504 = vmatprep.subr.bf16.mxu0 %v4939
    %5505 = vmatpush1.bf16.msra.mxu0 %v4938
    %5506 = vmatprep.subr.bf16.mxu0 %v4933
    %5507 = vmatpush1.bf16.msra.mxu0 %v4932
    %5508 = vmatprep.subr.bf16.mxu0 %v4927
    %5509 = vmatpush1.bf16.msra.mxu0 %v4926
    %5510 = vmatprep.subr.bf16.mxu0 %v4921
    %5511 = vmatpush1.bf16.msra.mxu0 %v4920
    %5512 = vmatprep.subr.bf16.mxu0 %v5011
    %5513 = vmatpush2.bf16.msra.mxu0 %v5010
    %5514 = vmatprep.subr.bf16.mxu0 %v5005
    %5515 = vmatpush2.bf16.msra.mxu0 %v5004
    %5516 = vmatprep.subr.bf16.mxu0 %v4999
    %5517 = vmatpush2.bf16.msra.mxu0 %v4998
    %5518 = vmatprep.subr.bf16.mxu0 %v4993
    %5519 = vmatpush2.bf16.msra.mxu0 %v4992
    %5520 = vmatprep.subr.bf16.mxu0 %v4987
    %5521 = vmatpush2.bf16.msra.mxu0 %v4986
    %5522 = vmatprep.subr.bf16.mxu0 %v4981
    %5523 = vmatpush2.bf16.msra.mxu0 %v4980
    %5524 = vmatprep.subr.bf16.mxu0 %v4975
    %5525 = vmatpush2.bf16.msra.mxu0 %v4974
    %5526 = vmatprep.subr.bf16.mxu0 %v4969
    %5527 = vmatpush2.bf16.msra.mxu0 %v4968
    %5528 = vmatprep.mubr.bf16.mxu0 %v3731
    %5529 = vmatmul.mubr.bf16.gmra.mxu0 %v3730
    %v5530 = vpop.f32.mrf.mxu0
    %v5531 = vadd.f32 %v4029, %v5530
    %v5532 = vpop.f32.mrf.mxu0
    %v5533 = vadd.f32 %v4033, %v5532
    %v5534 = vpop.f32.mrf.mxu0
    %v5535 = vpop.f32.mrf.mxu0
    %5536 = vdwg.mxu0
    %5537 = vmatprep.subr.bf16.mxu0 %v5059
    %5538 = vmatpush1.bf16.msra.mxu0 %v5058
    %5539 = vmatprep.subr.bf16.mxu0 %v5053
    %5540 = vmatpush1.bf16.msra.mxu0 %v5052
    %5541 = vmatprep.subr.bf16.mxu0 %v5047
    %5542 = vmatpush1.bf16.msra.mxu0 %v5046
    %5543 = vmatprep.subr.bf16.mxu0 %v5041
    %5544 = vmatpush1.bf16.msra.mxu0 %v5040
    %5545 = vmatprep.subr.bf16.mxu0 %v5035
    %5546 = vmatpush1.bf16.msra.mxu0 %v5034
    %5547 = vmatprep.subr.bf16.mxu0 %v5029
    %5548 = vmatpush1.bf16.msra.mxu0 %v5028
    %5549 = vmatprep.subr.bf16.mxu0 %v5023
    %5550 = vmatpush1.bf16.msra.mxu0 %v5022
    %5551 = vmatprep.subr.bf16.mxu0 %v5017
    %5552 = vmatpush1.bf16.msra.mxu0 %v5016
    %5553 = vmatprep.subr.bf16.mxu0 %v5107
    %5554 = vmatpush2.bf16.msra.mxu0 %v5106
    %5555 = vmatprep.subr.bf16.mxu0 %v5101
    %5556 = vmatpush2.bf16.msra.mxu0 %v5100
    %5557 = vmatprep.subr.bf16.mxu0 %v5095
    %5558 = vmatpush2.bf16.msra.mxu0 %v5094
    %5559 = vmatprep.subr.bf16.mxu0 %v5089
    %5560 = vmatpush2.bf16.msra.mxu0 %v5088
    %5561 = vmatprep.subr.bf16.mxu0 %v5083
    %5562 = vmatpush2.bf16.msra.mxu0 %v5082
    %5563 = vmatprep.subr.bf16.mxu0 %v5077
    %5564 = vmatpush2.bf16.msra.mxu0 %v5076
    %5565 = vmatprep.subr.bf16.mxu0 %v5071
    %5566 = vmatpush2.bf16.msra.mxu0 %v5070
    %5567 = vmatprep.subr.bf16.mxu0 %v5065
    %5568 = vmatpush2.bf16.msra.mxu0 %v5064
    %5569 = vmatprep.mubr.bf16.mxu0 %v3733
    %5570 = vmatmul.mubr.bf16.gmra.mxu0 %v3732
    %v5571 = vpop.f32.mrf.mxu0
    %v5572 = vadd.f32 %v5531, %v5571
    %v5573 = vpop.f32.mrf.mxu0
    %v5574 = vadd.f32 %v5533, %v5573
    %v5575 = vpop.f32.mrf.mxu0
    %v5576 = vpop.f32.mrf.mxu0
    %5577 = vdwg.mxu0
    %5578 = vmatprep.subr.bf16.mxu0 %v5155
    %5579 = vmatpush1.bf16.msra.mxu0 %v5154
    %5580 = vmatprep.subr.bf16.mxu0 %v5149
    %5581 = vmatpush1.bf16.msra.mxu0 %v5148
    %5582 = vmatprep.subr.bf16.mxu0 %v5143
    %5583 = vmatpush1.bf16.msra.mxu0 %v5142
    %5584 = vmatprep.subr.bf16.mxu0 %v5137
    %5585 = vmatpush1.bf16.msra.mxu0 %v5136
    %5586 = vmatprep.subr.bf16.mxu0 %v5131
    %5587 = vmatpush1.bf16.msra.mxu0 %v5130
    %5588 = vmatprep.subr.bf16.mxu0 %v5125
    %5589 = vmatpush1.bf16.msra.mxu0 %v5124
    %5590 = vmatprep.subr.bf16.mxu0 %v5119
    %5591 = vmatpush1.bf16.msra.mxu0 %v5118
    %5592 = vmatprep.subr.bf16.mxu0 %v5113
    %5593 = vmatpush1.bf16.msra.mxu0 %v5112
    %5594 = vmatprep.subr.bf16.mxu0 %v5203
    %5595 = vmatpush2.bf16.msra.mxu0 %v5202
    %5596 = vmatprep.subr.bf16.mxu0 %v5197
    %5597 = vmatpush2.bf16.msra.mxu0 %v5196
    %5598 = vmatprep.subr.bf16.mxu0 %v5191
    %5599 = vmatpush2.bf16.msra.mxu0 %v5190
    %5600 = vmatprep.subr.bf16.mxu0 %v5185
    %5601 = vmatpush2.bf16.msra.mxu0 %v5184
    %5602 = vmatprep.subr.bf16.mxu0 %v5179
    %5603 = vmatpush2.bf16.msra.mxu0 %v5178
    %5604 = vmatprep.subr.bf16.mxu0 %v5173
    %5605 = vmatpush2.bf16.msra.mxu0 %v5172
    %5606 = vmatprep.subr.bf16.mxu0 %v5167
    %5607 = vmatpush2.bf16.msra.mxu0 %v5166
    %5608 = vmatprep.subr.bf16.mxu0 %v5161
    %5609 = vmatpush2.bf16.msra.mxu0 %v5160
    %5610 = vmatprep.mubr.bf16.mxu0 %v3735
    %5611 = vmatmul.mubr.bf16.gmra.mxu0 %v3734
    %v5612 = vpop.f32.mrf.mxu0
    %v5613 = vadd.f32 %v5572, %v5612
    %v5614 = vpop.f32.mrf.mxu0
    %v5615 = vadd.f32 %v5574, %v5614
    %v5616 = vpop.f32.mrf.mxu0
    %v5617 = vpop.f32.mrf.mxu0
    %5618 = vdwg.mxu0
    %5619 = vmatprep.subr.bf16.mxu0 %v4965
    %5620 = vmatpush1.bf16.msra.mxu0 %v4964
    %5621 = vmatprep.subr.bf16.mxu0 %v4959
    %5622 = vmatpush1.bf16.msra.mxu0 %v4958
    %5623 = vmatprep.subr.bf16.mxu0 %v4953
    %5624 = vmatpush1.bf16.msra.mxu0 %v4952
    %5625 = vmatprep.subr.bf16.mxu0 %v4947
    %5626 = vmatpush1.bf16.msra.mxu0 %v4946
    %5627 = vmatprep.subr.bf16.mxu0 %v4941
    %5628 = vmatpush1.bf16.msra.mxu0 %v4940
    %5629 = vmatprep.subr.bf16.mxu0 %v4935
    %5630 = vmatpush1.bf16.msra.mxu0 %v4934
    %5631 = vmatprep.subr.bf16.mxu0 %v4929
    %5632 = vmatpush1.bf16.msra.mxu0 %v4928
    %5633 = vmatprep.subr.bf16.mxu0 %v4923
    %5634 = vmatpush1.bf16.msra.mxu0 %v4922
    %5635 = vmatprep.subr.bf16.mxu0 %v5013
    %5636 = vmatpush2.bf16.msra.mxu0 %v5012
    %5637 = vmatprep.subr.bf16.mxu0 %v5007
    %5638 = vmatpush2.bf16.msra.mxu0 %v5006
    %5639 = vmatprep.subr.bf16.mxu0 %v5001
    %5640 = vmatpush2.bf16.msra.mxu0 %v5000
    %5641 = vmatprep.subr.bf16.mxu0 %v4995
    %5642 = vmatpush2.bf16.msra.mxu0 %v4994
    %5643 = vmatprep.subr.bf16.mxu0 %v4989
    %5644 = vmatpush2.bf16.msra.mxu0 %v4988
    %5645 = vmatprep.subr.bf16.mxu0 %v4983
    %5646 = vmatpush2.bf16.msra.mxu0 %v4982
    %5647 = vmatprep.subr.bf16.mxu0 %v4977
    %5648 = vmatpush2.bf16.msra.mxu0 %v4976
    %5649 = vmatprep.subr.bf16.mxu0 %v4971
    %5650 = vmatpush2.bf16.msra.mxu0 %v4970
    %5651 = vmatprep.mubr.bf16.mxu0 %v3731
    %5652 = vmatmul.mubr.bf16.gmra.mxu0 %v3730
    %v5653 = vpop.f32.mrf.mxu0
    %v5654 = vadd.f32 %v4037, %v5653
    %v5655 = vpop.f32.mrf.mxu0
    %v5656 = vadd.f32 %v4041, %v5655
    %v5657 = vpop.f32.mrf.mxu0
    %v5658 = vpop.f32.mrf.mxu0
    %5659 = vdwg.mxu0
    %5660 = vmatprep.subr.bf16.mxu0 %v5061
    %5661 = vmatpush1.bf16.msra.mxu0 %v5060
    %5662 = vmatprep.subr.bf16.mxu0 %v5055
    %5663 = vmatpush1.bf16.msra.mxu0 %v5054
    %5664 = vmatprep.subr.bf16.mxu0 %v5049
    %5665 = vmatpush1.bf16.msra.mxu0 %v5048
    %5666 = vmatprep.subr.bf16.mxu0 %v5043
    %5667 = vmatpush1.bf16.msra.mxu0 %v5042
    %5668 = vmatprep.subr.bf16.mxu0 %v5037
    %5669 = vmatpush1.bf16.msra.mxu0 %v5036
    %5670 = vmatprep.subr.bf16.mxu0 %v5031
    %5671 = vmatpush1.bf16.msra.mxu0 %v5030
    %5672 = vmatprep.subr.bf16.mxu0 %v5025
    %5673 = vmatpush1.bf16.msra.mxu0 %v5024
    %5674 = vmatprep.subr.bf16.mxu0 %v5019
    %5675 = vmatpush1.bf16.msra.mxu0 %v5018
    %5676 = vmatprep.subr.bf16.mxu0 %v5109
    %5677 = vmatpush2.bf16.msra.mxu0 %v5108
    %5678 = vmatprep.subr.bf16.mxu0 %v5103
    %5679 = vmatpush2.bf16.msra.mxu0 %v5102
    %5680 = vmatprep.subr.bf16.mxu0 %v5097
    %5681 = vmatpush2.bf16.msra.mxu0 %v5096
    %5682 = vmatprep.subr.bf16.mxu0 %v5091
    %5683 = vmatpush2.bf16.msra.mxu0 %v5090
    %5684 = vmatprep.subr.bf16.mxu0 %v5085
    %5685 = vmatpush2.bf16.msra.mxu0 %v5084
    %5686 = vmatprep.subr.bf16.mxu0 %v5079
    %5687 = vmatpush2.bf16.msra.mxu0 %v5078
    %5688 = vmatprep.subr.bf16.mxu0 %v5073
    %5689 = vmatpush2.bf16.msra.mxu0 %v5072
    %5690 = vmatprep.subr.bf16.mxu0 %v5067
    %5691 = vmatpush2.bf16.msra.mxu0 %v5066
    %5692 = vmatprep.mubr.bf16.mxu0 %v3733
    %5693 = vmatmul.mubr.bf16.gmra.mxu0 %v3732
    %v5694 = vpop.f32.mrf.mxu0
    %v5695 = vadd.f32 %v5654, %v5694
    %v5696 = vpop.f32.mrf.mxu0
    %v5697 = vadd.f32 %v5656, %v5696
    %v5698 = vpop.f32.mrf.mxu0
    %v5699 = vpop.f32.mrf.mxu0
    %5700 = vdwg.mxu0
    %5701 = vmatprep.subr.bf16.mxu0 %v5157
    %5702 = vmatpush1.bf16.msra.mxu0 %v5156
    %5703 = vmatprep.subr.bf16.mxu0 %v5151
    %5704 = vmatpush1.bf16.msra.mxu0 %v5150
    %5705 = vmatprep.subr.bf16.mxu0 %v5145
    %5706 = vmatpush1.bf16.msra.mxu0 %v5144
    %5707 = vmatprep.subr.bf16.mxu0 %v5139
    %5708 = vmatpush1.bf16.msra.mxu0 %v5138
    %5709 = vmatprep.subr.bf16.mxu0 %v5133
    %5710 = vmatpush1.bf16.msra.mxu0 %v5132
    %5711 = vmatprep.subr.bf16.mxu0 %v5127
    %5712 = vmatpush1.bf16.msra.mxu0 %v5126
    %5713 = vmatprep.subr.bf16.mxu0 %v5121
    %5714 = vmatpush1.bf16.msra.mxu0 %v5120
    %5715 = vmatprep.subr.bf16.mxu0 %v5115
    %5716 = vmatpush1.bf16.msra.mxu0 %v5114
    %5717 = vmatprep.subr.bf16.mxu0 %v5205
    %5718 = vmatpush2.bf16.msra.mxu0 %v5204
    %5719 = vmatprep.subr.bf16.mxu0 %v5199
    %5720 = vmatpush2.bf16.msra.mxu0 %v5198
    %5721 = vmatprep.subr.bf16.mxu0 %v5193
    %5722 = vmatpush2.bf16.msra.mxu0 %v5192
    %5723 = vmatprep.subr.bf16.mxu0 %v5187
    %5724 = vmatpush2.bf16.msra.mxu0 %v5186
    %5725 = vmatprep.subr.bf16.mxu0 %v5181
    %5726 = vmatpush2.bf16.msra.mxu0 %v5180
    %5727 = vmatprep.subr.bf16.mxu0 %v5175
    %5728 = vmatpush2.bf16.msra.mxu0 %v5174
    %5729 = vmatprep.subr.bf16.mxu0 %v5169
    %5730 = vmatpush2.bf16.msra.mxu0 %v5168
    %5731 = vmatprep.subr.bf16.mxu0 %v5163
    %5732 = vmatpush2.bf16.msra.mxu0 %v5162
    %5733 = vmatprep.mubr.bf16.mxu0 %v3735
    %5734 = vmatmul.mubr.bf16.gmra.mxu0 %v3734
    %v5735 = vpop.f32.mrf.mxu0
    %v5736 = vadd.f32 %v5695, %v5735
    %v5737 = vpop.f32.mrf.mxu0
    %v5738 = vadd.f32 %v5697, %v5737
    %v5739 = vpop.f32.mrf.mxu0
    %v5740 = vpop.f32.mrf.mxu0
    %5741 = vdwg.mxu0
    %5742 = vmatprep.subr.bf16.mxu0 %v4967
    %5743 = vmatpush1.bf16.msra.mxu0 %v4966
    %5744 = vmatprep.subr.bf16.mxu0 %v4961
    %5745 = vmatpush1.bf16.msra.mxu0 %v4960
    %5746 = vmatprep.subr.bf16.mxu0 %v4955
    %5747 = vmatpush1.bf16.msra.mxu0 %v4954
    %5748 = vmatprep.subr.bf16.mxu0 %v4949
    %5749 = vmatpush1.bf16.msra.mxu0 %v4948
    %5750 = vmatprep.subr.bf16.mxu0 %v4943
    %5751 = vmatpush1.bf16.msra.mxu0 %v4942
    %5752 = vmatprep.subr.bf16.mxu0 %v4937
    %5753 = vmatpush1.bf16.msra.mxu0 %v4936
    %5754 = vmatprep.subr.bf16.mxu0 %v4931
    %5755 = vmatpush1.bf16.msra.mxu0 %v4930
    %5756 = vmatprep.subr.bf16.mxu0 %v4925
    %5757 = vmatpush1.bf16.msra.mxu0 %v4924
    %5758 = vmatprep.subr.bf16.mxu0 %v5015
    %5759 = vmatpush2.bf16.msra.mxu0 %v5014
    %5760 = vmatprep.subr.bf16.mxu0 %v5009
    %5761 = vmatpush2.bf16.msra.mxu0 %v5008
    %5762 = vmatprep.subr.bf16.mxu0 %v5003
    %5763 = vmatpush2.bf16.msra.mxu0 %v5002
    %5764 = vmatprep.subr.bf16.mxu0 %v4997
    %5765 = vmatpush2.bf16.msra.mxu0 %v4996
    %5766 = vmatprep.subr.bf16.mxu0 %v4991
    %5767 = vmatpush2.bf16.msra.mxu0 %v4990
    %5768 = vmatprep.subr.bf16.mxu0 %v4985
    %5769 = vmatpush2.bf16.msra.mxu0 %v4984
    %5770 = vmatprep.subr.bf16.mxu0 %v4979
    %5771 = vmatpush2.bf16.msra.mxu0 %v4978
    %5772 = vmatprep.subr.bf16.mxu0 %v4973
    %5773 = vmatpush2.bf16.msra.mxu0 %v4972
    %5774 = vmatprep.mubr.bf16.mxu0 %v3731
    %5775 = vmatmul.mubr.bf16.gmra.mxu0 %v3730
    %v5776 = vpop.f32.mrf.mxu0
    %v5777 = vadd.f32 %v4045, %v5776
    %v5778 = vpop.f32.mrf.mxu0
    %v5779 = vadd.f32 %v4049, %v5778
    %v5780 = vpop.f32.mrf.mxu0
    %v5781 = vpop.f32.mrf.mxu0
    %5782 = vdwg.mxu0
    %5783 = vmatprep.subr.bf16.mxu0 %v5063
    %5784 = vmatpush1.bf16.msra.mxu0 %v5062
    %5785 = vmatprep.subr.bf16.mxu0 %v5057
    %5786 = vmatpush1.bf16.msra.mxu0 %v5056
    %5787 = vmatprep.subr.bf16.mxu0 %v5051
    %5788 = vmatpush1.bf16.msra.mxu0 %v5050
    %5789 = vmatprep.subr.bf16.mxu0 %v5045
    %5790 = vmatpush1.bf16.msra.mxu0 %v5044
    %5791 = vmatprep.subr.bf16.mxu0 %v5039
    %5792 = vmatpush1.bf16.msra.mxu0 %v5038
    %5793 = vmatprep.subr.bf16.mxu0 %v5033
    %5794 = vmatpush1.bf16.msra.mxu0 %v5032
    %5795 = vmatprep.subr.bf16.mxu0 %v5027
    %5796 = vmatpush1.bf16.msra.mxu0 %v5026
    %5797 = vmatprep.subr.bf16.mxu0 %v5021
    %5798 = vmatpush1.bf16.msra.mxu0 %v5020
    %5799 = vmatprep.subr.bf16.mxu0 %v5111
    %5800 = vmatpush2.bf16.msra.mxu0 %v5110
    %5801 = vmatprep.subr.bf16.mxu0 %v5105
    %5802 = vmatpush2.bf16.msra.mxu0 %v5104
    %5803 = vmatprep.subr.bf16.mxu0 %v5099
    %5804 = vmatpush2.bf16.msra.mxu0 %v5098
    %5805 = vmatprep.subr.bf16.mxu0 %v5093
    %5806 = vmatpush2.bf16.msra.mxu0 %v5092
    %5807 = vmatprep.subr.bf16.mxu0 %v5087
    %5808 = vmatpush2.bf16.msra.mxu0 %v5086
    %5809 = vmatprep.subr.bf16.mxu0 %v5081
    %5810 = vmatpush2.bf16.msra.mxu0 %v5080
    %5811 = vmatprep.subr.bf16.mxu0 %v5075
    %5812 = vmatpush2.bf16.msra.mxu0 %v5074
    %5813 = vmatprep.subr.bf16.mxu0 %v5069
    %5814 = vmatpush2.bf16.msra.mxu0 %v5068
    %5815 = vmatprep.mubr.bf16.mxu0 %v3733
    %5816 = vmatmul.mubr.bf16.gmra.mxu0 %v3732
    %v5817 = vpop.f32.mrf.mxu0
    %v5818 = vadd.f32 %v5777, %v5817
    %v5819 = vpop.f32.mrf.mxu0
    %v5820 = vadd.f32 %v5779, %v5819
    %v5821 = vpop.f32.mrf.mxu0
    %v5822 = vpop.f32.mrf.mxu0
    %5823 = vdwg.mxu0
    %5824 = vmatprep.subr.bf16.mxu0 %v5159
    %5825 = vmatpush1.bf16.msra.mxu0 %v5158
    %5826 = vmatprep.subr.bf16.mxu0 %v5153
    %5827 = vmatpush1.bf16.msra.mxu0 %v5152
    %5828 = vmatprep.subr.bf16.mxu0 %v5147
    %5829 = vmatpush1.bf16.msra.mxu0 %v5146
    %5830 = vmatprep.subr.bf16.mxu0 %v5141
    %5831 = vmatpush1.bf16.msra.mxu0 %v5140
    %5832 = vmatprep.subr.bf16.mxu0 %v5135
    %5833 = vmatpush1.bf16.msra.mxu0 %v5134
    %5834 = vmatprep.subr.bf16.mxu0 %v5129
    %5835 = vmatpush1.bf16.msra.mxu0 %v5128
    %5836 = vmatprep.subr.bf16.mxu0 %v5123
    %5837 = vmatpush1.bf16.msra.mxu0 %v5122
    %5838 = vmatprep.subr.bf16.mxu0 %v5117
    %5839 = vmatpush1.bf16.msra.mxu0 %v5116
    %5840 = vmatprep.subr.bf16.mxu0 %v5207
    %5841 = vmatpush2.bf16.msra.mxu0 %v5206
    %5842 = vmatprep.subr.bf16.mxu0 %v5201
    %5843 = vmatpush2.bf16.msra.mxu0 %v5200
    %5844 = vmatprep.subr.bf16.mxu0 %v5195
    %5845 = vmatpush2.bf16.msra.mxu0 %v5194
    %5846 = vmatprep.subr.bf16.mxu0 %v5189
    %5847 = vmatpush2.bf16.msra.mxu0 %v5188
    %5848 = vmatprep.subr.bf16.mxu0 %v5183
    %5849 = vmatpush2.bf16.msra.mxu0 %v5182
    %5850 = vmatprep.subr.bf16.mxu0 %v5177
    %5851 = vmatpush2.bf16.msra.mxu0 %v5176
    %5852 = vmatprep.subr.bf16.mxu0 %v5171
    %5853 = vmatpush2.bf16.msra.mxu0 %v5170
    %5854 = vmatprep.subr.bf16.mxu0 %v5165
    %5855 = vmatpush2.bf16.msra.mxu0 %v5164
    %5856 = vmatprep.mubr.bf16.mxu0 %v3735
    %5857 = vmatmul.mubr.bf16.gmra.mxu0 %v3734
    %v5858 = vpop.f32.mrf.mxu0
    %v5859 = vadd.f32 %v5818, %v5858
    %v5860 = vpop.f32.mrf.mxu0
    %v5861 = vadd.f32 %v5820, %v5860
    %v5862 = vpop.f32.mrf.mxu0
    %v5863 = vpop.f32.mrf.mxu0
    %5864 = vdwg.mxu0
    %v5865 = vpack.c.bf16 %v3308, %v3308
    %v5866 = vpack.c.bf16 %v3310, %v3310
    %v5867 = vpack.c.bf16 %v3513, %v3513
    %v5868 = vpack.c.bf16 %v3515, %v3515
    %v5869 = vpack.c.bf16 %v3718, %v3718
    %v5870 = vpack.c.bf16 %v3720, %v3720
    %v5871 = vld [vmem:[#allocation13] sm:$0xff]
    %v5872 = vld [vmem:[#allocation13 + $0x8] sm:$0xff]
    %v5873 = vld [vmem:[#allocation13 + $0x10] sm:$0xff]
    %v5874 = vld [vmem:[#allocation13 + $0x18] sm:$0xff]
    %v5875 = vld [vmem:[#allocation13 + $0x20] sm:$0xff]
    %v5876 = vld [vmem:[#allocation13 + $0x28] sm:$0xff]
    %v5877 = vld [vmem:[#allocation13 + $0x30] sm:$0xff]
    %v5878 = vld [vmem:[#allocation13 + $0x38] sm:$0xff]
    %v5879 = vld [vmem:[#allocation13 + $0x40] sm:$0xff]
    %v5880 = vld [vmem:[#allocation13 + $0x48] sm:$0xff]
    %v5881 = vld [vmem:[#allocation13 + $0x50] sm:$0xff]
    %v5882 = vld [vmem:[#allocation13 + $0x58] sm:$0xff]
    %v5883 = vld [vmem:[#allocation13 + $0x60] sm:$0xff]
    %v5884 = vld [vmem:[#allocation13 + $0x68] sm:$0xff]
    %v5885 = vld [vmem:[#allocation13 + $0x70] sm:$0xff]
    %v5886 = vld [vmem:[#allocation13 + $0x78] sm:$0xff]
    %v5887 = vld [vmem:[#allocation13 + $0x80] sm:$0xff]
    %v5888 = vld [vmem:[#allocation13 + $0x88] sm:$0xff]
    %v5889 = vld [vmem:[#allocation13 + $0x90] sm:$0xff]
    %v5890 = vld [vmem:[#allocation13 + $0x98] sm:$0xff]
    %v5891 = vld [vmem:[#allocation13 + $0xa0] sm:$0xff]
    %v5892 = vld [vmem:[#allocation13 + $0xa8] sm:$0xff]
    %v5893 = vld [vmem:[#allocation13 + $0xb0] sm:$0xff]
    %v5894 = vld [vmem:[#allocation13 + $0xb8] sm:$0xff]
    %v5895 = vld [vmem:[#allocation13 + $0xc0] sm:$0xff]
    %v5896 = vld [vmem:[#allocation13 + $0xc8] sm:$0xff]
    %v5897 = vld [vmem:[#allocation13 + $0xd0] sm:$0xff]
    %v5898 = vld [vmem:[#allocation13 + $0xd8] sm:$0xff]
    %v5899 = vld [vmem:[#allocation13 + $0xe0] sm:$0xff]
    %v5900 = vld [vmem:[#allocation13 + $0xe8] sm:$0xff]
    %v5901 = vld [vmem:[#allocation13 + $0xf0] sm:$0xff]
    %v5902 = vld [vmem:[#allocation13 + $0xf8] sm:$0xff]
    %v5903 = vld [vmem:[#allocation13 + $0x100] sm:$0xff]
    %v5904 = vld [vmem:[#allocation13 + $0x108] sm:$0xff]
    %v5905 = vld [vmem:[#allocation13 + $0x110] sm:$0xff]
    %v5906 = vld [vmem:[#allocation13 + $0x118] sm:$0xff]
    %v5907 = vld [vmem:[#allocation13 + $0x120] sm:$0xff]
    %v5908 = vld [vmem:[#allocation13 + $0x128] sm:$0xff]
    %v5909 = vld [vmem:[#allocation13 + $0x130] sm:$0xff]
    %v5910 = vld [vmem:[#allocation13 + $0x138] sm:$0xff]
    %v5911 = vld [vmem:[#allocation13 + $0x140] sm:$0xff]
    %v5912 = vld [vmem:[#allocation13 + $0x148] sm:$0xff]
    %v5913 = vld [vmem:[#allocation13 + $0x150] sm:$0xff]
    %v5914 = vld [vmem:[#allocation13 + $0x158] sm:$0xff]
    %v5915 = vld [vmem:[#allocation13 + $0x160] sm:$0xff]
    %v5916 = vld [vmem:[#allocation13 + $0x168] sm:$0xff]
    %v5917 = vld [vmem:[#allocation13 + $0x170] sm:$0xff]
    %v5918 = vld [vmem:[#allocation13 + $0x178] sm:$0xff]
    %v5919 = vld [vmem:[#allocation13 + $0x180] sm:$0xff]
    %v5920 = vld [vmem:[#allocation13 + $0x188] sm:$0xff]
    %v5921 = vld [vmem:[#allocation13 + $0x190] sm:$0xff]
    %v5922 = vld [vmem:[#allocation13 + $0x198] sm:$0xff]
    %v5923 = vld [vmem:[#allocation13 + $0x1a0] sm:$0xff]
    %v5924 = vld [vmem:[#allocation13 + $0x1a8] sm:$0xff]
    %v5925 = vld [vmem:[#allocation13 + $0x1b0] sm:$0xff]
    %v5926 = vld [vmem:[#allocation13 + $0x1b8] sm:$0xff]
    %v5927 = vld [vmem:[#allocation13 + $0x1c0] sm:$0xff]
    %v5928 = vld [vmem:[#allocation13 + $0x1c8] sm:$0xff]
    %v5929 = vld [vmem:[#allocation13 + $0x1d0] sm:$0xff]
    %v5930 = vld [vmem:[#allocation13 + $0x1d8] sm:$0xff]
    %v5931 = vld [vmem:[#allocation13 + $0x1e0] sm:$0xff]
    %v5932 = vld [vmem:[#allocation13 + $0x1e8] sm:$0xff]
    %v5933 = vld [vmem:[#allocation13 + $0x1f0] sm:$0xff]
    %v5934 = vld [vmem:[#allocation13 + $0x1f8] sm:$0xff]
    %v5935 = vld [vmem:[#allocation13 + $0x200] sm:$0xff]
    %v5936 = vld [vmem:[#allocation13 + $0x208] sm:$0xff]
    %v5937 = vld [vmem:[#allocation13 + $0x210] sm:$0xff]
    %v5938 = vld [vmem:[#allocation13 + $0x218] sm:$0xff]
    %v5939 = vld [vmem:[#allocation13 + $0x220] sm:$0xff]
    %v5940 = vld [vmem:[#allocation13 + $0x228] sm:$0xff]
    %v5941 = vld [vmem:[#allocation13 + $0x230] sm:$0xff]
    %v5942 = vld [vmem:[#allocation13 + $0x238] sm:$0xff]
    %v5943 = vld [vmem:[#allocation13 + $0x240] sm:$0xff]
    %v5944 = vld [vmem:[#allocation13 + $0x248] sm:$0xff]
    %v5945 = vld [vmem:[#allocation13 + $0x250] sm:$0xff]
    %v5946 = vld [vmem:[#allocation13 + $0x258] sm:$0xff]
    %v5947 = vld [vmem:[#allocation13 + $0x260] sm:$0xff]
    %v5948 = vld [vmem:[#allocation13 + $0x268] sm:$0xff]
    %v5949 = vld [vmem:[#allocation13 + $0x270] sm:$0xff]
    %v5950 = vld [vmem:[#allocation13 + $0x278] sm:$0xff]
    %v5951 = vld [vmem:[#allocation13 + $0x280] sm:$0xff]
    %v5952 = vld [vmem:[#allocation13 + $0x288] sm:$0xff]
    %v5953 = vld [vmem:[#allocation13 + $0x290] sm:$0xff]
    %v5954 = vld [vmem:[#allocation13 + $0x298] sm:$0xff]
    %v5955 = vld [vmem:[#allocation13 + $0x2a0] sm:$0xff]
    %v5956 = vld [vmem:[#allocation13 + $0x2a8] sm:$0xff]
    %v5957 = vld [vmem:[#allocation13 + $0x2b0] sm:$0xff]
    %v5958 = vld [vmem:[#allocation13 + $0x2b8] sm:$0xff]
    %v5959 = vld [vmem:[#allocation13 + $0x2c0] sm:$0xff]
    %v5960 = vld [vmem:[#allocation13 + $0x2c8] sm:$0xff]
    %v5961 = vld [vmem:[#allocation13 + $0x2d0] sm:$0xff]
    %v5962 = vld [vmem:[#allocation13 + $0x2d8] sm:$0xff]
    %v5963 = vld [vmem:[#allocation13 + $0x2e0] sm:$0xff]
    %v5964 = vld [vmem:[#allocation13 + $0x2e8] sm:$0xff]
    %v5965 = vld [vmem:[#allocation13 + $0x2f0] sm:$0xff]
    %v5966 = vld [vmem:[#allocation13 + $0x2f8] sm:$0xff]
    %v5967 = vld [vmem:[#allocation13 + $0x300] sm:$0xff]
    %v5968 = vld [vmem:[#allocation13 + $0x308] sm:$0xff]
    %v5969 = vld [vmem:[#allocation13 + $0x310] sm:$0xff]
    %v5970 = vld [vmem:[#allocation13 + $0x318] sm:$0xff]
    %v5971 = vld [vmem:[#allocation13 + $0x320] sm:$0xff]
    %v5972 = vld [vmem:[#allocation13 + $0x328] sm:$0xff]
    %v5973 = vld [vmem:[#allocation13 + $0x330] sm:$0xff]
    %v5974 = vld [vmem:[#allocation13 + $0x338] sm:$0xff]
    %v5975 = vld [vmem:[#allocation13 + $0x340] sm:$0xff]
    %v5976 = vld [vmem:[#allocation13 + $0x348] sm:$0xff]
    %v5977 = vld [vmem:[#allocation13 + $0x350] sm:$0xff]
    %v5978 = vld [vmem:[#allocation13 + $0x358] sm:$0xff]
    %v5979 = vld [vmem:[#allocation13 + $0x360] sm:$0xff]
    %v5980 = vld [vmem:[#allocation13 + $0x368] sm:$0xff]
    %v5981 = vld [vmem:[#allocation13 + $0x370] sm:$0xff]
    %v5982 = vld [vmem:[#allocation13 + $0x378] sm:$0xff]
    %v5983 = vld [vmem:[#allocation13 + $0x380] sm:$0xff]
    %v5984 = vld [vmem:[#allocation13 + $0x388] sm:$0xff]
    %v5985 = vld [vmem:[#allocation13 + $0x390] sm:$0xff]
    %v5986 = vld [vmem:[#allocation13 + $0x398] sm:$0xff]
    %v5987 = vld [vmem:[#allocation13 + $0x3a0] sm:$0xff]
    %v5988 = vld [vmem:[#allocation13 + $0x3a8] sm:$0xff]
    %v5989 = vld [vmem:[#allocation13 + $0x3b0] sm:$0xff]
    %v5990 = vld [vmem:[#allocation13 + $0x3b8] sm:$0xff]
    %v5991 = vld [vmem:[#allocation13 + $0x3c0] sm:$0xff]
    %v5992 = vld [vmem:[#allocation13 + $0x3c8] sm:$0xff]
    %v5993 = vld [vmem:[#allocation13 + $0x3d0] sm:$0xff]
    %v5994 = vld [vmem:[#allocation13 + $0x3d8] sm:$0xff]
    %v5995 = vld [vmem:[#allocation13 + $0x3e0] sm:$0xff]
    %v5996 = vld [vmem:[#allocation13 + $0x3e8] sm:$0xff]
    %v5997 = vld [vmem:[#allocation13 + $0x3f0] sm:$0xff]
    %v5998 = vld [vmem:[#allocation13 + $0x3f8] sm:$0xff]
    %v5999 = vld [vmem:[#allocation13 + $0x400] sm:$0xff]
    %v6000 = vld [vmem:[#allocation13 + $0x408] sm:$0xff]
    %v6001 = vld [vmem:[#allocation13 + $0x410] sm:$0xff]
    %v6002 = vld [vmem:[#allocation13 + $0x418] sm:$0xff]
    %v6003 = vld [vmem:[#allocation13 + $0x420] sm:$0xff]
    %v6004 = vld [vmem:[#allocation13 + $0x428] sm:$0xff]
    %v6005 = vld [vmem:[#allocation13 + $0x430] sm:$0xff]
    %v6006 = vld [vmem:[#allocation13 + $0x438] sm:$0xff]
    %v6007 = vld [vmem:[#allocation13 + $0x440] sm:$0xff]
    %v6008 = vld [vmem:[#allocation13 + $0x448] sm:$0xff]
    %v6009 = vld [vmem:[#allocation13 + $0x450] sm:$0xff]
    %v6010 = vld [vmem:[#allocation13 + $0x458] sm:$0xff]
    %v6011 = vld [vmem:[#allocation13 + $0x460] sm:$0xff]
    %v6012 = vld [vmem:[#allocation13 + $0x468] sm:$0xff]
    %v6013 = vld [vmem:[#allocation13 + $0x470] sm:$0xff]
    %v6014 = vld [vmem:[#allocation13 + $0x478] sm:$0xff]
    %v6015 = vld [vmem:[#allocation13 + $0x480] sm:$0xff]
    %v6016 = vld [vmem:[#allocation13 + $0x488] sm:$0xff]
    %v6017 = vld [vmem:[#allocation13 + $0x490] sm:$0xff]
    %v6018 = vld [vmem:[#allocation13 + $0x498] sm:$0xff]
    %v6019 = vld [vmem:[#allocation13 + $0x4a0] sm:$0xff]
    %v6020 = vld [vmem:[#allocation13 + $0x4a8] sm:$0xff]
    %v6021 = vld [vmem:[#allocation13 + $0x4b0] sm:$0xff]
    %v6022 = vld [vmem:[#allocation13 + $0x4b8] sm:$0xff]
    %v6023 = vld [vmem:[#allocation13 + $0x4c0] sm:$0xff]
    %v6024 = vld [vmem:[#allocation13 + $0x4c8] sm:$0xff]
    %v6025 = vld [vmem:[#allocation13 + $0x4d0] sm:$0xff]
    %v6026 = vld [vmem:[#allocation13 + $0x4d8] sm:$0xff]
    %v6027 = vld [vmem:[#allocation13 + $0x4e0] sm:$0xff]
    %v6028 = vld [vmem:[#allocation13 + $0x4e8] sm:$0xff]
    %v6029 = vld [vmem:[#allocation13 + $0x4f0] sm:$0xff]
    %v6030 = vld [vmem:[#allocation13 + $0x4f8] sm:$0xff]
    %v6031 = vld [vmem:[#allocation13 + $0x500] sm:$0xff]
    %v6032 = vld [vmem:[#allocation13 + $0x508] sm:$0xff]
    %v6033 = vld [vmem:[#allocation13 + $0x510] sm:$0xff]
    %v6034 = vld [vmem:[#allocation13 + $0x518] sm:$0xff]
    %v6035 = vld [vmem:[#allocation13 + $0x520] sm:$0xff]
    %v6036 = vld [vmem:[#allocation13 + $0x528] sm:$0xff]
    %v6037 = vld [vmem:[#allocation13 + $0x530] sm:$0xff]
    %v6038 = vld [vmem:[#allocation13 + $0x538] sm:$0xff]
    %v6039 = vld [vmem:[#allocation13 + $0x540] sm:$0xff]
    %v6040 = vld [vmem:[#allocation13 + $0x548] sm:$0xff]
    %v6041 = vld [vmem:[#allocation13 + $0x550] sm:$0xff]
    %v6042 = vld [vmem:[#allocation13 + $0x558] sm:$0xff]
    %v6043 = vld [vmem:[#allocation13 + $0x560] sm:$0xff]
    %v6044 = vld [vmem:[#allocation13 + $0x568] sm:$0xff]
    %v6045 = vld [vmem:[#allocation13 + $0x570] sm:$0xff]
    %v6046 = vld [vmem:[#allocation13 + $0x578] sm:$0xff]
    %v6047 = vld [vmem:[#allocation13 + $0x580] sm:$0xff]
    %v6048 = vld [vmem:[#allocation13 + $0x588] sm:$0xff]
    %v6049 = vld [vmem:[#allocation13 + $0x590] sm:$0xff]
    %v6050 = vld [vmem:[#allocation13 + $0x598] sm:$0xff]
    %v6051 = vld [vmem:[#allocation13 + $0x5a0] sm:$0xff]
    %v6052 = vld [vmem:[#allocation13 + $0x5a8] sm:$0xff]
    %v6053 = vld [vmem:[#allocation13 + $0x5b0] sm:$0xff]
    %v6054 = vld [vmem:[#allocation13 + $0x5b8] sm:$0xff]
    %v6055 = vld [vmem:[#allocation13 + $0x5c0] sm:$0xff]
    %v6056 = vld [vmem:[#allocation13 + $0x5c8] sm:$0xff]
    %v6057 = vld [vmem:[#allocation13 + $0x5d0] sm:$0xff]
    %v6058 = vld [vmem:[#allocation13 + $0x5d8] sm:$0xff]
    %v6059 = vld [vmem:[#allocation13 + $0x5e0] sm:$0xff]
    %v6060 = vld [vmem:[#allocation13 + $0x5e8] sm:$0xff]
    %v6061 = vld [vmem:[#allocation13 + $0x5f0] sm:$0xff]
    %v6062 = vld [vmem:[#allocation13 + $0x5f8] sm:$0xff]
    %v6063 = vld [vmem:[#allocation13 + $0x600] sm:$0xff]
    %v6064 = vld [vmem:[#allocation13 + $0x608] sm:$0xff]
    %v6065 = vld [vmem:[#allocation13 + $0x610] sm:$0xff]
    %v6066 = vld [vmem:[#allocation13 + $0x618] sm:$0xff]
    %v6067 = vld [vmem:[#allocation13 + $0x620] sm:$0xff]
    %v6068 = vld [vmem:[#allocation13 + $0x628] sm:$0xff]
    %v6069 = vld [vmem:[#allocation13 + $0x630] sm:$0xff]
    %v6070 = vld [vmem:[#allocation13 + $0x638] sm:$0xff]
    %v6071 = vld [vmem:[#allocation13 + $0x640] sm:$0xff]
    %v6072 = vld [vmem:[#allocation13 + $0x648] sm:$0xff]
    %v6073 = vld [vmem:[#allocation13 + $0x650] sm:$0xff]
    %v6074 = vld [vmem:[#allocation13 + $0x658] sm:$0xff]
    %v6075 = vld [vmem:[#allocation13 + $0x660] sm:$0xff]
    %v6076 = vld [vmem:[#allocation13 + $0x668] sm:$0xff]
    %v6077 = vld [vmem:[#allocation13 + $0x670] sm:$0xff]
    %v6078 = vld [vmem:[#allocation13 + $0x678] sm:$0xff]
    %v6079 = vld [vmem:[#allocation13 + $0x680] sm:$0xff]
    %v6080 = vld [vmem:[#allocation13 + $0x688] sm:$0xff]
    %v6081 = vld [vmem:[#allocation13 + $0x690] sm:$0xff]
    %v6082 = vld [vmem:[#allocation13 + $0x698] sm:$0xff]
    %v6083 = vld [vmem:[#allocation13 + $0x6a0] sm:$0xff]
    %v6084 = vld [vmem:[#allocation13 + $0x6a8] sm:$0xff]
    %v6085 = vld [vmem:[#allocation13 + $0x6b0] sm:$0xff]
    %v6086 = vld [vmem:[#allocation13 + $0x6b8] sm:$0xff]
    %v6087 = vld [vmem:[#allocation13 + $0x6c0] sm:$0xff]
    %v6088 = vld [vmem:[#allocation13 + $0x6c8] sm:$0xff]
    %v6089 = vld [vmem:[#allocation13 + $0x6d0] sm:$0xff]
    %v6090 = vld [vmem:[#allocation13 + $0x6d8] sm:$0xff]
    %v6091 = vld [vmem:[#allocation13 + $0x6e0] sm:$0xff]
    %v6092 = vld [vmem:[#allocation13 + $0x6e8] sm:$0xff]
    %v6093 = vld [vmem:[#allocation13 + $0x6f0] sm:$0xff]
    %v6094 = vld [vmem:[#allocation13 + $0x6f8] sm:$0xff]
    %v6095 = vld [vmem:[#allocation13 + $0x700] sm:$0xff]
    %v6096 = vld [vmem:[#allocation13 + $0x708] sm:$0xff]
    %v6097 = vld [vmem:[#allocation13 + $0x710] sm:$0xff]
    %v6098 = vld [vmem:[#allocation13 + $0x718] sm:$0xff]
    %v6099 = vld [vmem:[#allocation13 + $0x720] sm:$0xff]
    %v6100 = vld [vmem:[#allocation13 + $0x728] sm:$0xff]
    %v6101 = vld [vmem:[#allocation13 + $0x730] sm:$0xff]
    %v6102 = vld [vmem:[#allocation13 + $0x738] sm:$0xff]
    %v6103 = vld [vmem:[#allocation13 + $0x740] sm:$0xff]
    %v6104 = vld [vmem:[#allocation13 + $0x748] sm:$0xff]
    %v6105 = vld [vmem:[#allocation13 + $0x750] sm:$0xff]
    %v6106 = vld [vmem:[#allocation13 + $0x758] sm:$0xff]
    %v6107 = vld [vmem:[#allocation13 + $0x760] sm:$0xff]
    %v6108 = vld [vmem:[#allocation13 + $0x768] sm:$0xff]
    %v6109 = vld [vmem:[#allocation13 + $0x770] sm:$0xff]
    %v6110 = vld [vmem:[#allocation13 + $0x778] sm:$0xff]
    %v6111 = vld [vmem:[#allocation13 + $0x780] sm:$0xff]
    %v6112 = vld [vmem:[#allocation13 + $0x788] sm:$0xff]
    %v6113 = vld [vmem:[#allocation13 + $0x790] sm:$0xff]
    %v6114 = vld [vmem:[#allocation13 + $0x798] sm:$0xff]
    %v6115 = vld [vmem:[#allocation13 + $0x7a0] sm:$0xff]
    %v6116 = vld [vmem:[#allocation13 + $0x7a8] sm:$0xff]
    %v6117 = vld [vmem:[#allocation13 + $0x7b0] sm:$0xff]
    %v6118 = vld [vmem:[#allocation13 + $0x7b8] sm:$0xff]
    %v6119 = vld [vmem:[#allocation13 + $0x7c0] sm:$0xff]
    %v6120 = vld [vmem:[#allocation13 + $0x7c8] sm:$0xff]
    %v6121 = vld [vmem:[#allocation13 + $0x7d0] sm:$0xff]
    %v6122 = vld [vmem:[#allocation13 + $0x7d8] sm:$0xff]
    %v6123 = vld [vmem:[#allocation13 + $0x7e0] sm:$0xff]
    %v6124 = vld [vmem:[#allocation13 + $0x7e8] sm:$0xff]
    %v6125 = vld [vmem:[#allocation13 + $0x7f0] sm:$0xff]
    %v6126 = vld [vmem:[#allocation13 + $0x7f8] sm:$0xff]
    %v6127 = vld [vmem:[#allocation13 + $0x800] sm:$0xff]
    %v6128 = vld [vmem:[#allocation13 + $0x808] sm:$0xff]
    %v6129 = vld [vmem:[#allocation13 + $0x810] sm:$0xff]
    %v6130 = vld [vmem:[#allocation13 + $0x818] sm:$0xff]
    %v6131 = vld [vmem:[#allocation13 + $0x820] sm:$0xff]
    %v6132 = vld [vmem:[#allocation13 + $0x828] sm:$0xff]
    %v6133 = vld [vmem:[#allocation13 + $0x830] sm:$0xff]
    %v6134 = vld [vmem:[#allocation13 + $0x838] sm:$0xff]
    %v6135 = vld [vmem:[#allocation13 + $0x840] sm:$0xff]
    %v6136 = vld [vmem:[#allocation13 + $0x848] sm:$0xff]
    %v6137 = vld [vmem:[#allocation13 + $0x850] sm:$0xff]
    %v6138 = vld [vmem:[#allocation13 + $0x858] sm:$0xff]
    %v6139 = vld [vmem:[#allocation13 + $0x860] sm:$0xff]
    %v6140 = vld [vmem:[#allocation13 + $0x868] sm:$0xff]
    %v6141 = vld [vmem:[#allocation13 + $0x870] sm:$0xff]
    %v6142 = vld [vmem:[#allocation13 + $0x878] sm:$0xff]
    %v6143 = vld [vmem:[#allocation13 + $0x880] sm:$0xff]
    %v6144 = vld [vmem:[#allocation13 + $0x888] sm:$0xff]
    %v6145 = vld [vmem:[#allocation13 + $0x890] sm:$0xff]
    %v6146 = vld [vmem:[#allocation13 + $0x898] sm:$0xff]
    %v6147 = vld [vmem:[#allocation13 + $0x8a0] sm:$0xff]
    %v6148 = vld [vmem:[#allocation13 + $0x8a8] sm:$0xff]
    %v6149 = vld [vmem:[#allocation13 + $0x8b0] sm:$0xff]
    %v6150 = vld [vmem:[#allocation13 + $0x8b8] sm:$0xff]
    %v6151 = vld [vmem:[#allocation13 + $0x8c0] sm:$0xff]
    %v6152 = vld [vmem:[#allocation13 + $0x8c8] sm:$0xff]
    %v6153 = vld [vmem:[#allocation13 + $0x8d0] sm:$0xff]
    %v6154 = vld [vmem:[#allocation13 + $0x8d8] sm:$0xff]
    %v6155 = vld [vmem:[#allocation13 + $0x8e0] sm:$0xff]
    %v6156 = vld [vmem:[#allocation13 + $0x8e8] sm:$0xff]
    %v6157 = vld [vmem:[#allocation13 + $0x8f0] sm:$0xff]
    %v6158 = vld [vmem:[#allocation13 + $0x8f8] sm:$0xff]
    %v6159 = vld [vmem:[#allocation13 + $0x900] sm:$0xff]
    %v6160 = vld [vmem:[#allocation13 + $0x908] sm:$0xff]
    %v6161 = vld [vmem:[#allocation13 + $0x910] sm:$0xff]
    %v6162 = vld [vmem:[#allocation13 + $0x918] sm:$0xff]
    %v6163 = vld [vmem:[#allocation13 + $0x920] sm:$0xff]
    %v6164 = vld [vmem:[#allocation13 + $0x928] sm:$0xff]
    %v6165 = vld [vmem:[#allocation13 + $0x930] sm:$0xff]
    %v6166 = vld [vmem:[#allocation13 + $0x938] sm:$0xff]
    %v6167 = vld [vmem:[#allocation13 + $0x940] sm:$0xff]
    %v6168 = vld [vmem:[#allocation13 + $0x948] sm:$0xff]
    %v6169 = vld [vmem:[#allocation13 + $0x950] sm:$0xff]
    %v6170 = vld [vmem:[#allocation13 + $0x958] sm:$0xff]
    %v6171 = vld [vmem:[#allocation13 + $0x960] sm:$0xff]
    %v6172 = vld [vmem:[#allocation13 + $0x968] sm:$0xff]
    %v6173 = vld [vmem:[#allocation13 + $0x970] sm:$0xff]
    %v6174 = vld [vmem:[#allocation13 + $0x978] sm:$0xff]
    %v6175 = vld [vmem:[#allocation13 + $0x980] sm:$0xff]
    %v6176 = vld [vmem:[#allocation13 + $0x988] sm:$0xff]
    %v6177 = vld [vmem:[#allocation13 + $0x990] sm:$0xff]
    %v6178 = vld [vmem:[#allocation13 + $0x998] sm:$0xff]
    %v6179 = vld [vmem:[#allocation13 + $0x9a0] sm:$0xff]
    %v6180 = vld [vmem:[#allocation13 + $0x9a8] sm:$0xff]
    %v6181 = vld [vmem:[#allocation13 + $0x9b0] sm:$0xff]
    %v6182 = vld [vmem:[#allocation13 + $0x9b8] sm:$0xff]
    %v6183 = vld [vmem:[#allocation13 + $0x9c0] sm:$0xff]
    %v6184 = vld [vmem:[#allocation13 + $0x9c8] sm:$0xff]
    %v6185 = vld [vmem:[#allocation13 + $0x9d0] sm:$0xff]
    %v6186 = vld [vmem:[#allocation13 + $0x9d8] sm:$0xff]
    %v6187 = vld [vmem:[#allocation13 + $0x9e0] sm:$0xff]
    %v6188 = vld [vmem:[#allocation13 + $0x9e8] sm:$0xff]
    %v6189 = vld [vmem:[#allocation13 + $0x9f0] sm:$0xff]
    %v6190 = vld [vmem:[#allocation13 + $0x9f8] sm:$0xff]
    %v6191 = vld [vmem:[#allocation13 + $0xa00] sm:$0xff]
    %v6192 = vld [vmem:[#allocation13 + $0xa08] sm:$0xff]
    %v6193 = vld [vmem:[#allocation13 + $0xa10] sm:$0xff]
    %v6194 = vld [vmem:[#allocation13 + $0xa18] sm:$0xff]
    %v6195 = vld [vmem:[#allocation13 + $0xa20] sm:$0xff]
    %v6196 = vld [vmem:[#allocation13 + $0xa28] sm:$0xff]
    %v6197 = vld [vmem:[#allocation13 + $0xa30] sm:$0xff]
    %v6198 = vld [vmem:[#allocation13 + $0xa38] sm:$0xff]
    %v6199 = vld [vmem:[#allocation13 + $0xa40] sm:$0xff]
    %v6200 = vld [vmem:[#allocation13 + $0xa48] sm:$0xff]
    %v6201 = vld [vmem:[#allocation13 + $0xa50] sm:$0xff]
    %v6202 = vld [vmem:[#allocation13 + $0xa58] sm:$0xff]
    %v6203 = vld [vmem:[#allocation13 + $0xa60] sm:$0xff]
    %v6204 = vld [vmem:[#allocation13 + $0xa68] sm:$0xff]
    %v6205 = vld [vmem:[#allocation13 + $0xa70] sm:$0xff]
    %v6206 = vld [vmem:[#allocation13 + $0xa78] sm:$0xff]
    %v6207 = vld [vmem:[#allocation13 + $0xa80] sm:$0xff]
    %v6208 = vld [vmem:[#allocation13 + $0xa88] sm:$0xff]
    %v6209 = vld [vmem:[#allocation13 + $0xa90] sm:$0xff]
    %v6210 = vld [vmem:[#allocation13 + $0xa98] sm:$0xff]
    %v6211 = vld [vmem:[#allocation13 + $0xaa0] sm:$0xff]
    %v6212 = vld [vmem:[#allocation13 + $0xaa8] sm:$0xff]
    %v6213 = vld [vmem:[#allocation13 + $0xab0] sm:$0xff]
    %v6214 = vld [vmem:[#allocation13 + $0xab8] sm:$0xff]
    %v6215 = vld [vmem:[#allocation13 + $0xac0] sm:$0xff]
    %v6216 = vld [vmem:[#allocation13 + $0xac8] sm:$0xff]
    %v6217 = vld [vmem:[#allocation13 + $0xad0] sm:$0xff]
    %v6218 = vld [vmem:[#allocation13 + $0xad8] sm:$0xff]
    %v6219 = vld [vmem:[#allocation13 + $0xae0] sm:$0xff]
    %v6220 = vld [vmem:[#allocation13 + $0xae8] sm:$0xff]
    %v6221 = vld [vmem:[#allocation13 + $0xaf0] sm:$0xff]
    %v6222 = vld [vmem:[#allocation13 + $0xaf8] sm:$0xff]
    %v6223 = vld [vmem:[#allocation13 + $0xb00] sm:$0xff]
    %v6224 = vld [vmem:[#allocation13 + $0xb08] sm:$0xff]
    %v6225 = vld [vmem:[#allocation13 + $0xb10] sm:$0xff]
    %v6226 = vld [vmem:[#allocation13 + $0xb18] sm:$0xff]
    %v6227 = vld [vmem:[#allocation13 + $0xb20] sm:$0xff]
    %v6228 = vld [vmem:[#allocation13 + $0xb28] sm:$0xff]
    %v6229 = vld [vmem:[#allocation13 + $0xb30] sm:$0xff]
    %v6230 = vld [vmem:[#allocation13 + $0xb38] sm:$0xff]
    %v6231 = vld [vmem:[#allocation13 + $0xb40] sm:$0xff]
    %v6232 = vld [vmem:[#allocation13 + $0xb48] sm:$0xff]
    %v6233 = vld [vmem:[#allocation13 + $0xb50] sm:$0xff]
    %v6234 = vld [vmem:[#allocation13 + $0xb58] sm:$0xff]
    %v6235 = vld [vmem:[#allocation13 + $0xb60] sm:$0xff]
    %v6236 = vld [vmem:[#allocation13 + $0xb68] sm:$0xff]
    %v6237 = vld [vmem:[#allocation13 + $0xb70] sm:$0xff]
    %v6238 = vld [vmem:[#allocation13 + $0xb78] sm:$0xff]
    %v6239 = vld [vmem:[#allocation13 + $0xb80] sm:$0xff]
    %v6240 = vld [vmem:[#allocation13 + $0xb88] sm:$0xff]
    %v6241 = vld [vmem:[#allocation13 + $0xb90] sm:$0xff]
    %v6242 = vld [vmem:[#allocation13 + $0xb98] sm:$0xff]
    %v6243 = vld [vmem:[#allocation13 + $0xba0] sm:$0xff]
    %v6244 = vld [vmem:[#allocation13 + $0xba8] sm:$0xff]
    %v6245 = vld [vmem:[#allocation13 + $0xbb0] sm:$0xff]
    %v6246 = vld [vmem:[#allocation13 + $0xbb8] sm:$0xff]
    %v6247 = vld [vmem:[#allocation13 + $0xbc0] sm:$0xff]
    %v6248 = vld [vmem:[#allocation13 + $0xbc8] sm:$0xff]
    %v6249 = vld [vmem:[#allocation13 + $0xbd0] sm:$0xff]
    %v6250 = vld [vmem:[#allocation13 + $0xbd8] sm:$0xff]
    %v6251 = vld [vmem:[#allocation13 + $0xbe0] sm:$0xff]
    %v6252 = vld [vmem:[#allocation13 + $0xbe8] sm:$0xff]
    %v6253 = vld [vmem:[#allocation13 + $0xbf0] sm:$0xff]
    %v6254 = vld [vmem:[#allocation13 + $0xbf8] sm:$0xff]
    %v6255 = vpack.c.bf16 %v5613, %v5613
    %v6256 = vpack.c.bf16 %v5615, %v5615
    %v6257 = vpack.c.bf16 %v5736, %v5736
    %v6258 = vpack.c.bf16 %v5738, %v5738
    %v6259 = vpack.c.bf16 %v5859, %v5859
    %v6260 = vpack.c.bf16 %v5861, %v5861
    %v6261 = vld [vmem:[#allocation14] sm:$0xff]
    %v6262 = vld [vmem:[#allocation14 + $0x8] sm:$0xff]
    %v6263 = vld [vmem:[#allocation14 + $0x10] sm:$0xff]
    %v6264 = vld [vmem:[#allocation14 + $0x18] sm:$0xff]
    %v6265 = vld [vmem:[#allocation14 + $0x20] sm:$0xff]
    %v6266 = vld [vmem:[#allocation14 + $0x28] sm:$0xff]
    %v6267 = vld [vmem:[#allocation14 + $0x30] sm:$0xff]
    %v6268 = vld [vmem:[#allocation14 + $0x38] sm:$0xff]
    %v6269 = vld [vmem:[#allocation14 + $0x40] sm:$0xff]
    %v6270 = vld [vmem:[#allocation14 + $0x48] sm:$0xff]
    %v6271 = vld [vmem:[#allocation14 + $0x50] sm:$0xff]
    %v6272 = vld [vmem:[#allocation14 + $0x58] sm:$0xff]
    %v6273 = vld [vmem:[#allocation14 + $0x60] sm:$0xff]
    %v6274 = vld [vmem:[#allocation14 + $0x68] sm:$0xff]
    %v6275 = vld [vmem:[#allocation14 + $0x70] sm:$0xff]
    %v6276 = vld [vmem:[#allocation14 + $0x78] sm:$0xff]
    %v6277 = vld [vmem:[#allocation14 + $0x80] sm:$0xff]
    %v6278 = vld [vmem:[#allocation14 + $0x88] sm:$0xff]
    %v6279 = vld [vmem:[#allocation14 + $0x90] sm:$0xff]
    %v6280 = vld [vmem:[#allocation14 + $0x98] sm:$0xff]
    %v6281 = vld [vmem:[#allocation14 + $0xa0] sm:$0xff]
    %v6282 = vld [vmem:[#allocation14 + $0xa8] sm:$0xff]
    %v6283 = vld [vmem:[#allocation14 + $0xb0] sm:$0xff]
    %v6284 = vld [vmem:[#allocation14 + $0xb8] sm:$0xff]
    %v6285 = vld [vmem:[#allocation14 + $0xc0] sm:$0xff]
    %v6286 = vld [vmem:[#allocation14 + $0xc8] sm:$0xff]
    %v6287 = vld [vmem:[#allocation14 + $0xd0] sm:$0xff]
    %v6288 = vld [vmem:[#allocation14 + $0xd8] sm:$0xff]
    %v6289 = vld [vmem:[#allocation14 + $0xe0] sm:$0xff]
    %v6290 = vld [vmem:[#allocation14 + $0xe8] sm:$0xff]
    %v6291 = vld [vmem:[#allocation14 + $0xf0] sm:$0xff]
    %v6292 = vld [vmem:[#allocation14 + $0xf8] sm:$0xff]
    %v6293 = vld [vmem:[#allocation14 + $0x100] sm:$0xff]
    %v6294 = vld [vmem:[#allocation14 + $0x108] sm:$0xff]
    %v6295 = vld [vmem:[#allocation14 + $0x110] sm:$0xff]
    %v6296 = vld [vmem:[#allocation14 + $0x118] sm:$0xff]
    %v6297 = vld [vmem:[#allocation14 + $0x120] sm:$0xff]
    %v6298 = vld [vmem:[#allocation14 + $0x128] sm:$0xff]
    %v6299 = vld [vmem:[#allocation14 + $0x130] sm:$0xff]
    %v6300 = vld [vmem:[#allocation14 + $0x138] sm:$0xff]
    %v6301 = vld [vmem:[#allocation14 + $0x140] sm:$0xff]
    %v6302 = vld [vmem:[#allocation14 + $0x148] sm:$0xff]
    %v6303 = vld [vmem:[#allocation14 + $0x150] sm:$0xff]
    %v6304 = vld [vmem:[#allocation14 + $0x158] sm:$0xff]
    %v6305 = vld [vmem:[#allocation14 + $0x160] sm:$0xff]
    %v6306 = vld [vmem:[#allocation14 + $0x168] sm:$0xff]
    %v6307 = vld [vmem:[#allocation14 + $0x170] sm:$0xff]
    %v6308 = vld [vmem:[#allocation14 + $0x178] sm:$0xff]
    %v6309 = vld [vmem:[#allocation14 + $0x180] sm:$0xff]
    %v6310 = vld [vmem:[#allocation14 + $0x188] sm:$0xff]
    %v6311 = vld [vmem:[#allocation14 + $0x190] sm:$0xff]
    %v6312 = vld [vmem:[#allocation14 + $0x198] sm:$0xff]
    %v6313 = vld [vmem:[#allocation14 + $0x1a0] sm:$0xff]
    %v6314 = vld [vmem:[#allocation14 + $0x1a8] sm:$0xff]
    %v6315 = vld [vmem:[#allocation14 + $0x1b0] sm:$0xff]
    %v6316 = vld [vmem:[#allocation14 + $0x1b8] sm:$0xff]
    %v6317 = vld [vmem:[#allocation14 + $0x1c0] sm:$0xff]
    %v6318 = vld [vmem:[#allocation14 + $0x1c8] sm:$0xff]
    %v6319 = vld [vmem:[#allocation14 + $0x1d0] sm:$0xff]
    %v6320 = vld [vmem:[#allocation14 + $0x1d8] sm:$0xff]
    %v6321 = vld [vmem:[#allocation14 + $0x1e0] sm:$0xff]
    %v6322 = vld [vmem:[#allocation14 + $0x1e8] sm:$0xff]
    %v6323 = vld [vmem:[#allocation14 + $0x1f0] sm:$0xff]
    %v6324 = vld [vmem:[#allocation14 + $0x1f8] sm:$0xff]
    %v6325 = vld [vmem:[#allocation14 + $0x200] sm:$0xff]
    %v6326 = vld [vmem:[#allocation14 + $0x208] sm:$0xff]
    %v6327 = vld [vmem:[#allocation14 + $0x210] sm:$0xff]
    %v6328 = vld [vmem:[#allocation14 + $0x218] sm:$0xff]
    %v6329 = vld [vmem:[#allocation14 + $0x220] sm:$0xff]
    %v6330 = vld [vmem:[#allocation14 + $0x228] sm:$0xff]
    %v6331 = vld [vmem:[#allocation14 + $0x230] sm:$0xff]
    %v6332 = vld [vmem:[#allocation14 + $0x238] sm:$0xff]
    %v6333 = vld [vmem:[#allocation14 + $0x240] sm:$0xff]
    %v6334 = vld [vmem:[#allocation14 + $0x248] sm:$0xff]
    %v6335 = vld [vmem:[#allocation14 + $0x250] sm:$0xff]
    %v6336 = vld [vmem:[#allocation14 + $0x258] sm:$0xff]
    %v6337 = vld [vmem:[#allocation14 + $0x260] sm:$0xff]
    %v6338 = vld [vmem:[#allocation14 + $0x268] sm:$0xff]
    %v6339 = vld [vmem:[#allocation14 + $0x270] sm:$0xff]
    %v6340 = vld [vmem:[#allocation14 + $0x278] sm:$0xff]
    %v6341 = vld [vmem:[#allocation14 + $0x280] sm:$0xff]
    %v6342 = vld [vmem:[#allocation14 + $0x288] sm:$0xff]
    %v6343 = vld [vmem:[#allocation14 + $0x290] sm:$0xff]
    %v6344 = vld [vmem:[#allocation14 + $0x298] sm:$0xff]
    %v6345 = vld [vmem:[#allocation14 + $0x2a0] sm:$0xff]
    %v6346 = vld [vmem:[#allocation14 + $0x2a8] sm:$0xff]
    %v6347 = vld [vmem:[#allocation14 + $0x2b0] sm:$0xff]
    %v6348 = vld [vmem:[#allocation14 + $0x2b8] sm:$0xff]
    %v6349 = vld [vmem:[#allocation14 + $0x2c0] sm:$0xff]
    %v6350 = vld [vmem:[#allocation14 + $0x2c8] sm:$0xff]
    %v6351 = vld [vmem:[#allocation14 + $0x2d0] sm:$0xff]
    %v6352 = vld [vmem:[#allocation14 + $0x2d8] sm:$0xff]
    %v6353 = vld [vmem:[#allocation14 + $0x2e0] sm:$0xff]
    %v6354 = vld [vmem:[#allocation14 + $0x2e8] sm:$0xff]
    %v6355 = vld [vmem:[#allocation14 + $0x2f0] sm:$0xff]
    %v6356 = vld [vmem:[#allocation14 + $0x2f8] sm:$0xff]
    %v6357 = vld [vmem:[#allocation14 + $0x300] sm:$0xff]
    %v6358 = vld [vmem:[#allocation14 + $0x308] sm:$0xff]
    %v6359 = vld [vmem:[#allocation14 + $0x310] sm:$0xff]
    %v6360 = vld [vmem:[#allocation14 + $0x318] sm:$0xff]
    %v6361 = vld [vmem:[#allocation14 + $0x320] sm:$0xff]
    %v6362 = vld [vmem:[#allocation14 + $0x328] sm:$0xff]
    %v6363 = vld [vmem:[#allocation14 + $0x330] sm:$0xff]
    %v6364 = vld [vmem:[#allocation14 + $0x338] sm:$0xff]
    %v6365 = vld [vmem:[#allocation14 + $0x340] sm:$0xff]
    %v6366 = vld [vmem:[#allocation14 + $0x348] sm:$0xff]
    %v6367 = vld [vmem:[#allocation14 + $0x350] sm:$0xff]
    %v6368 = vld [vmem:[#allocation14 + $0x358] sm:$0xff]
    %v6369 = vld [vmem:[#allocation14 + $0x360] sm:$0xff]
    %v6370 = vld [vmem:[#allocation14 + $0x368] sm:$0xff]
    %v6371 = vld [vmem:[#allocation14 + $0x370] sm:$0xff]
    %v6372 = vld [vmem:[#allocation14 + $0x378] sm:$0xff]
    %v6373 = vld [vmem:[#allocation14 + $0x380] sm:$0xff]
    %v6374 = vld [vmem:[#allocation14 + $0x388] sm:$0xff]
    %v6375 = vld [vmem:[#allocation14 + $0x390] sm:$0xff]
    %v6376 = vld [vmem:[#allocation14 + $0x398] sm:$0xff]
    %v6377 = vld [vmem:[#allocation14 + $0x3a0] sm:$0xff]
    %v6378 = vld [vmem:[#allocation14 + $0x3a8] sm:$0xff]
    %v6379 = vld [vmem:[#allocation14 + $0x3b0] sm:$0xff]
    %v6380 = vld [vmem:[#allocation14 + $0x3b8] sm:$0xff]
    %v6381 = vld [vmem:[#allocation14 + $0x3c0] sm:$0xff]
    %v6382 = vld [vmem:[#allocation14 + $0x3c8] sm:$0xff]
    %v6383 = vld [vmem:[#allocation14 + $0x3d0] sm:$0xff]
    %v6384 = vld [vmem:[#allocation14 + $0x3d8] sm:$0xff]
    %v6385 = vld [vmem:[#allocation14 + $0x3e0] sm:$0xff]
    %v6386 = vld [vmem:[#allocation14 + $0x3e8] sm:$0xff]
    %v6387 = vld [vmem:[#allocation14 + $0x3f0] sm:$0xff]
    %v6388 = vld [vmem:[#allocation14 + $0x3f8] sm:$0xff]
    %v6389 = vld [vmem:[#allocation14 + $0x400] sm:$0xff]
    %v6390 = vld [vmem:[#allocation14 + $0x408] sm:$0xff]
    %v6391 = vld [vmem:[#allocation14 + $0x410] sm:$0xff]
    %v6392 = vld [vmem:[#allocation14 + $0x418] sm:$0xff]
    %v6393 = vld [vmem:[#allocation14 + $0x420] sm:$0xff]
    %v6394 = vld [vmem:[#allocation14 + $0x428] sm:$0xff]
    %v6395 = vld [vmem:[#allocation14 + $0x430] sm:$0xff]
    %v6396 = vld [vmem:[#allocation14 + $0x438] sm:$0xff]
    %v6397 = vld [vmem:[#allocation14 + $0x440] sm:$0xff]
    %v6398 = vld [vmem:[#allocation14 + $0x448] sm:$0xff]
    %v6399 = vld [vmem:[#allocation14 + $0x450] sm:$0xff]
    %v6400 = vld [vmem:[#allocation14 + $0x458] sm:$0xff]
    %v6401 = vld [vmem:[#allocation14 + $0x460] sm:$0xff]
    %v6402 = vld [vmem:[#allocation14 + $0x468] sm:$0xff]
    %v6403 = vld [vmem:[#allocation14 + $0x470] sm:$0xff]
    %v6404 = vld [vmem:[#allocation14 + $0x478] sm:$0xff]
    %v6405 = vld [vmem:[#allocation14 + $0x480] sm:$0xff]
    %v6406 = vld [vmem:[#allocation14 + $0x488] sm:$0xff]
    %v6407 = vld [vmem:[#allocation14 + $0x490] sm:$0xff]
    %v6408 = vld [vmem:[#allocation14 + $0x498] sm:$0xff]
    %v6409 = vld [vmem:[#allocation14 + $0x4a0] sm:$0xff]
    %v6410 = vld [vmem:[#allocation14 + $0x4a8] sm:$0xff]
    %v6411 = vld [vmem:[#allocation14 + $0x4b0] sm:$0xff]
    %v6412 = vld [vmem:[#allocation14 + $0x4b8] sm:$0xff]
    %v6413 = vld [vmem:[#allocation14 + $0x4c0] sm:$0xff]
    %v6414 = vld [vmem:[#allocation14 + $0x4c8] sm:$0xff]
    %v6415 = vld [vmem:[#allocation14 + $0x4d0] sm:$0xff]
    %v6416 = vld [vmem:[#allocation14 + $0x4d8] sm:$0xff]
    %v6417 = vld [vmem:[#allocation14 + $0x4e0] sm:$0xff]
    %v6418 = vld [vmem:[#allocation14 + $0x4e8] sm:$0xff]
    %v6419 = vld [vmem:[#allocation14 + $0x4f0] sm:$0xff]
    %v6420 = vld [vmem:[#allocation14 + $0x4f8] sm:$0xff]
    %v6421 = vld [vmem:[#allocation14 + $0x500] sm:$0xff]
    %v6422 = vld [vmem:[#allocation14 + $0x508] sm:$0xff]
    %v6423 = vld [vmem:[#allocation14 + $0x510] sm:$0xff]
    %v6424 = vld [vmem:[#allocation14 + $0x518] sm:$0xff]
    %v6425 = vld [vmem:[#allocation14 + $0x520] sm:$0xff]
    %v6426 = vld [vmem:[#allocation14 + $0x528] sm:$0xff]
    %v6427 = vld [vmem:[#allocation14 + $0x530] sm:$0xff]
    %v6428 = vld [vmem:[#allocation14 + $0x538] sm:$0xff]
    %v6429 = vld [vmem:[#allocation14 + $0x540] sm:$0xff]
    %v6430 = vld [vmem:[#allocation14 + $0x548] sm:$0xff]
    %v6431 = vld [vmem:[#allocation14 + $0x550] sm:$0xff]
    %v6432 = vld [vmem:[#allocation14 + $0x558] sm:$0xff]
    %v6433 = vld [vmem:[#allocation14 + $0x560] sm:$0xff]
    %v6434 = vld [vmem:[#allocation14 + $0x568] sm:$0xff]
    %v6435 = vld [vmem:[#allocation14 + $0x570] sm:$0xff]
    %v6436 = vld [vmem:[#allocation14 + $0x578] sm:$0xff]
    %v6437 = vld [vmem:[#allocation14 + $0x580] sm:$0xff]
    %v6438 = vld [vmem:[#allocation14 + $0x588] sm:$0xff]
    %v6439 = vld [vmem:[#allocation14 + $0x590] sm:$0xff]
    %v6440 = vld [vmem:[#allocation14 + $0x598] sm:$0xff]
    %v6441 = vld [vmem:[#allocation14 + $0x5a0] sm:$0xff]
    %v6442 = vld [vmem:[#allocation14 + $0x5a8] sm:$0xff]
    %v6443 = vld [vmem:[#allocation14 + $0x5b0] sm:$0xff]
    %v6444 = vld [vmem:[#allocation14 + $0x5b8] sm:$0xff]
    %v6445 = vld [vmem:[#allocation14 + $0x5c0] sm:$0xff]
    %v6446 = vld [vmem:[#allocation14 + $0x5c8] sm:$0xff]
    %v6447 = vld [vmem:[#allocation14 + $0x5d0] sm:$0xff]
    %v6448 = vld [vmem:[#allocation14 + $0x5d8] sm:$0xff]
    %v6449 = vld [vmem:[#allocation14 + $0x5e0] sm:$0xff]
    %v6450 = vld [vmem:[#allocation14 + $0x5e8] sm:$0xff]
    %v6451 = vld [vmem:[#allocation14 + $0x5f0] sm:$0xff]
    %v6452 = vld [vmem:[#allocation14 + $0x5f8] sm:$0xff]
    %v6453 = vld [vmem:[#allocation14 + $0x600] sm:$0xff]
    %v6454 = vld [vmem:[#allocation14 + $0x608] sm:$0xff]
    %v6455 = vld [vmem:[#allocation14 + $0x610] sm:$0xff]
    %v6456 = vld [vmem:[#allocation14 + $0x618] sm:$0xff]
    %v6457 = vld [vmem:[#allocation14 + $0x620] sm:$0xff]
    %v6458 = vld [vmem:[#allocation14 + $0x628] sm:$0xff]
    %v6459 = vld [vmem:[#allocation14 + $0x630] sm:$0xff]
    %v6460 = vld [vmem:[#allocation14 + $0x638] sm:$0xff]
    %v6461 = vld [vmem:[#allocation14 + $0x640] sm:$0xff]
    %v6462 = vld [vmem:[#allocation14 + $0x648] sm:$0xff]
    %v6463 = vld [vmem:[#allocation14 + $0x650] sm:$0xff]
    %v6464 = vld [vmem:[#allocation14 + $0x658] sm:$0xff]
    %v6465 = vld [vmem:[#allocation14 + $0x660] sm:$0xff]
    %v6466 = vld [vmem:[#allocation14 + $0x668] sm:$0xff]
    %v6467 = vld [vmem:[#allocation14 + $0x670] sm:$0xff]
    %v6468 = vld [vmem:[#allocation14 + $0x678] sm:$0xff]
    %v6469 = vld [vmem:[#allocation14 + $0x680] sm:$0xff]
    %v6470 = vld [vmem:[#allocation14 + $0x688] sm:$0xff]
    %v6471 = vld [vmem:[#allocation14 + $0x690] sm:$0xff]
    %v6472 = vld [vmem:[#allocation14 + $0x698] sm:$0xff]
    %v6473 = vld [vmem:[#allocation14 + $0x6a0] sm:$0xff]
    %v6474 = vld [vmem:[#allocation14 + $0x6a8] sm:$0xff]
    %v6475 = vld [vmem:[#allocation14 + $0x6b0] sm:$0xff]
    %v6476 = vld [vmem:[#allocation14 + $0x6b8] sm:$0xff]
    %v6477 = vld [vmem:[#allocation14 + $0x6c0] sm:$0xff]
    %v6478 = vld [vmem:[#allocation14 + $0x6c8] sm:$0xff]
    %v6479 = vld [vmem:[#allocation14 + $0x6d0] sm:$0xff]
    %v6480 = vld [vmem:[#allocation14 + $0x6d8] sm:$0xff]
    %v6481 = vld [vmem:[#allocation14 + $0x6e0] sm:$0xff]
    %v6482 = vld [vmem:[#allocation14 + $0x6e8] sm:$0xff]
    %v6483 = vld [vmem:[#allocation14 + $0x6f0] sm:$0xff]
    %v6484 = vld [vmem:[#allocation14 + $0x6f8] sm:$0xff]
    %v6485 = vld [vmem:[#allocation14 + $0x700] sm:$0xff]
    %v6486 = vld [vmem:[#allocation14 + $0x708] sm:$0xff]
    %v6487 = vld [vmem:[#allocation14 + $0x710] sm:$0xff]
    %v6488 = vld [vmem:[#allocation14 + $0x718] sm:$0xff]
    %v6489 = vld [vmem:[#allocation14 + $0x720] sm:$0xff]
    %v6490 = vld [vmem:[#allocation14 + $0x728] sm:$0xff]
    %v6491 = vld [vmem:[#allocation14 + $0x730] sm:$0xff]
    %v6492 = vld [vmem:[#allocation14 + $0x738] sm:$0xff]
    %v6493 = vld [vmem:[#allocation14 + $0x740] sm:$0xff]
    %v6494 = vld [vmem:[#allocation14 + $0x748] sm:$0xff]
    %v6495 = vld [vmem:[#allocation14 + $0x750] sm:$0xff]
    %v6496 = vld [vmem:[#allocation14 + $0x758] sm:$0xff]
    %v6497 = vld [vmem:[#allocation14 + $0x760] sm:$0xff]
    %v6498 = vld [vmem:[#allocation14 + $0x768] sm:$0xff]
    %v6499 = vld [vmem:[#allocation14 + $0x770] sm:$0xff]
    %v6500 = vld [vmem:[#allocation14 + $0x778] sm:$0xff]
    %v6501 = vld [vmem:[#allocation14 + $0x780] sm:$0xff]
    %v6502 = vld [vmem:[#allocation14 + $0x788] sm:$0xff]
    %v6503 = vld [vmem:[#allocation14 + $0x790] sm:$0xff]
    %v6504 = vld [vmem:[#allocation14 + $0x798] sm:$0xff]
    %v6505 = vld [vmem:[#allocation14 + $0x7a0] sm:$0xff]
    %v6506 = vld [vmem:[#allocation14 + $0x7a8] sm:$0xff]
    %v6507 = vld [vmem:[#allocation14 + $0x7b0] sm:$0xff]
    %v6508 = vld [vmem:[#allocation14 + $0x7b8] sm:$0xff]
    %v6509 = vld [vmem:[#allocation14 + $0x7c0] sm:$0xff]
    %v6510 = vld [vmem:[#allocation14 + $0x7c8] sm:$0xff]
    %v6511 = vld [vmem:[#allocation14 + $0x7d0] sm:$0xff]
    %v6512 = vld [vmem:[#allocation14 + $0x7d8] sm:$0xff]
    %v6513 = vld [vmem:[#allocation14 + $0x7e0] sm:$0xff]
    %v6514 = vld [vmem:[#allocation14 + $0x7e8] sm:$0xff]
    %v6515 = vld [vmem:[#allocation14 + $0x7f0] sm:$0xff]
    %v6516 = vld [vmem:[#allocation14 + $0x7f8] sm:$0xff]
    %v6517 = vld [vmem:[#allocation14 + $0x800] sm:$0xff]
    %v6518 = vld [vmem:[#allocation14 + $0x808] sm:$0xff]
    %v6519 = vld [vmem:[#allocation14 + $0x810] sm:$0xff]
    %v6520 = vld [vmem:[#allocation14 + $0x818] sm:$0xff]
    %v6521 = vld [vmem:[#allocation14 + $0x820] sm:$0xff]
    %v6522 = vld [vmem:[#allocation14 + $0x828] sm:$0xff]
    %v6523 = vld [vmem:[#allocation14 + $0x830] sm:$0xff]
    %v6524 = vld [vmem:[#allocation14 + $0x838] sm:$0xff]
    %v6525 = vld [vmem:[#allocation14 + $0x840] sm:$0xff]
    %v6526 = vld [vmem:[#allocation14 + $0x848] sm:$0xff]
    %v6527 = vld [vmem:[#allocation14 + $0x850] sm:$0xff]
    %v6528 = vld [vmem:[#allocation14 + $0x858] sm:$0xff]
    %v6529 = vld [vmem:[#allocation14 + $0x860] sm:$0xff]
    %v6530 = vld [vmem:[#allocation14 + $0x868] sm:$0xff]
    %v6531 = vld [vmem:[#allocation14 + $0x870] sm:$0xff]
    %v6532 = vld [vmem:[#allocation14 + $0x878] sm:$0xff]
    %v6533 = vld [vmem:[#allocation14 + $0x880] sm:$0xff]
    %v6534 = vld [vmem:[#allocation14 + $0x888] sm:$0xff]
    %v6535 = vld [vmem:[#allocation14 + $0x890] sm:$0xff]
    %v6536 = vld [vmem:[#allocation14 + $0x898] sm:$0xff]
    %v6537 = vld [vmem:[#allocation14 + $0x8a0] sm:$0xff]
    %v6538 = vld [vmem:[#allocation14 + $0x8a8] sm:$0xff]
    %v6539 = vld [vmem:[#allocation14 + $0x8b0] sm:$0xff]
    %v6540 = vld [vmem:[#allocation14 + $0x8b8] sm:$0xff]
    %v6541 = vld [vmem:[#allocation14 + $0x8c0] sm:$0xff]
    %v6542 = vld [vmem:[#allocation14 + $0x8c8] sm:$0xff]
    %v6543 = vld [vmem:[#allocation14 + $0x8d0] sm:$0xff]
    %v6544 = vld [vmem:[#allocation14 + $0x8d8] sm:$0xff]
    %v6545 = vld [vmem:[#allocation14 + $0x8e0] sm:$0xff]
    %v6546 = vld [vmem:[#allocation14 + $0x8e8] sm:$0xff]
    %v6547 = vld [vmem:[#allocation14 + $0x8f0] sm:$0xff]
    %v6548 = vld [vmem:[#allocation14 + $0x8f8] sm:$0xff]
    %v6549 = vld [vmem:[#allocation14 + $0x900] sm:$0xff]
    %v6550 = vld [vmem:[#allocation14 + $0x908] sm:$0xff]
    %v6551 = vld [vmem:[#allocation14 + $0x910] sm:$0xff]
    %v6552 = vld [vmem:[#allocation14 + $0x918] sm:$0xff]
    %v6553 = vld [vmem:[#allocation14 + $0x920] sm:$0xff]
    %v6554 = vld [vmem:[#allocation14 + $0x928] sm:$0xff]
    %v6555 = vld [vmem:[#allocation14 + $0x930] sm:$0xff]
    %v6556 = vld [vmem:[#allocation14 + $0x938] sm:$0xff]
    %v6557 = vld [vmem:[#allocation14 + $0x940] sm:$0xff]
    %v6558 = vld [vmem:[#allocation14 + $0x948] sm:$0xff]
    %v6559 = vld [vmem:[#allocation14 + $0x950] sm:$0xff]
    %v6560 = vld [vmem:[#allocation14 + $0x958] sm:$0xff]
    %v6561 = vld [vmem:[#allocation14 + $0x960] sm:$0xff]
    %v6562 = vld [vmem:[#allocation14 + $0x968] sm:$0xff]
    %v6563 = vld [vmem:[#allocation14 + $0x970] sm:$0xff]
    %v6564 = vld [vmem:[#allocation14 + $0x978] sm:$0xff]
    %v6565 = vld [vmem:[#allocation14 + $0x980] sm:$0xff]
    %v6566 = vld [vmem:[#allocation14 + $0x988] sm:$0xff]
    %v6567 = vld [vmem:[#allocation14 + $0x990] sm:$0xff]
    %v6568 = vld [vmem:[#allocation14 + $0x998] sm:$0xff]
    %v6569 = vld [vmem:[#allocation14 + $0x9a0] sm:$0xff]
    %v6570 = vld [vmem:[#allocation14 + $0x9a8] sm:$0xff]
    %v6571 = vld [vmem:[#allocation14 + $0x9b0] sm:$0xff]
    %v6572 = vld [vmem:[#allocation14 + $0x9b8] sm:$0xff]
    %v6573 = vld [vmem:[#allocation14 + $0x9c0] sm:$0xff]
    %v6574 = vld [vmem:[#allocation14 + $0x9c8] sm:$0xff]
    %v6575 = vld [vmem:[#allocation14 + $0x9d0] sm:$0xff]
    %v6576 = vld [vmem:[#allocation14 + $0x9d8] sm:$0xff]
    %v6577 = vld [vmem:[#allocation14 + $0x9e0] sm:$0xff]
    %v6578 = vld [vmem:[#allocation14 + $0x9e8] sm:$0xff]
    %v6579 = vld [vmem:[#allocation14 + $0x9f0] sm:$0xff]
    %v6580 = vld [vmem:[#allocation14 + $0x9f8] sm:$0xff]
    %v6581 = vld [vmem:[#allocation14 + $0xa00] sm:$0xff]
    %v6582 = vld [vmem:[#allocation14 + $0xa08] sm:$0xff]
    %v6583 = vld [vmem:[#allocation14 + $0xa10] sm:$0xff]
    %v6584 = vld [vmem:[#allocation14 + $0xa18] sm:$0xff]
    %v6585 = vld [vmem:[#allocation14 + $0xa20] sm:$0xff]
    %v6586 = vld [vmem:[#allocation14 + $0xa28] sm:$0xff]
    %v6587 = vld [vmem:[#allocation14 + $0xa30] sm:$0xff]
    %v6588 = vld [vmem:[#allocation14 + $0xa38] sm:$0xff]
    %v6589 = vld [vmem:[#allocation14 + $0xa40] sm:$0xff]
    %v6590 = vld [vmem:[#allocation14 + $0xa48] sm:$0xff]
    %v6591 = vld [vmem:[#allocation14 + $0xa50] sm:$0xff]
    %v6592 = vld [vmem:[#allocation14 + $0xa58] sm:$0xff]
    %v6593 = vld [vmem:[#allocation14 + $0xa60] sm:$0xff]
    %v6594 = vld [vmem:[#allocation14 + $0xa68] sm:$0xff]
    %v6595 = vld [vmem:[#allocation14 + $0xa70] sm:$0xff]
    %v6596 = vld [vmem:[#allocation14 + $0xa78] sm:$0xff]
    %v6597 = vld [vmem:[#allocation14 + $0xa80] sm:$0xff]
    %v6598 = vld [vmem:[#allocation14 + $0xa88] sm:$0xff]
    %v6599 = vld [vmem:[#allocation14 + $0xa90] sm:$0xff]
    %v6600 = vld [vmem:[#allocation14 + $0xa98] sm:$0xff]
    %v6601 = vld [vmem:[#allocation14 + $0xaa0] sm:$0xff]
    %v6602 = vld [vmem:[#allocation14 + $0xaa8] sm:$0xff]
    %v6603 = vld [vmem:[#allocation14 + $0xab0] sm:$0xff]
    %v6604 = vld [vmem:[#allocation14 + $0xab8] sm:$0xff]
    %v6605 = vld [vmem:[#allocation14 + $0xac0] sm:$0xff]
    %v6606 = vld [vmem:[#allocation14 + $0xac8] sm:$0xff]
    %v6607 = vld [vmem:[#allocation14 + $0xad0] sm:$0xff]
    %v6608 = vld [vmem:[#allocation14 + $0xad8] sm:$0xff]
    %v6609 = vld [vmem:[#allocation14 + $0xae0] sm:$0xff]
    %v6610 = vld [vmem:[#allocation14 + $0xae8] sm:$0xff]
    %v6611 = vld [vmem:[#allocation14 + $0xaf0] sm:$0xff]
    %v6612 = vld [vmem:[#allocation14 + $0xaf8] sm:$0xff]
    %v6613 = vld [vmem:[#allocation14 + $0xb00] sm:$0xff]
    %v6614 = vld [vmem:[#allocation14 + $0xb08] sm:$0xff]
    %v6615 = vld [vmem:[#allocation14 + $0xb10] sm:$0xff]
    %v6616 = vld [vmem:[#allocation14 + $0xb18] sm:$0xff]
    %v6617 = vld [vmem:[#allocation14 + $0xb20] sm:$0xff]
    %v6618 = vld [vmem:[#allocation14 + $0xb28] sm:$0xff]
    %v6619 = vld [vmem:[#allocation14 + $0xb30] sm:$0xff]
    %v6620 = vld [vmem:[#allocation14 + $0xb38] sm:$0xff]
    %v6621 = vld [vmem:[#allocation14 + $0xb40] sm:$0xff]
    %v6622 = vld [vmem:[#allocation14 + $0xb48] sm:$0xff]
    %v6623 = vld [vmem:[#allocation14 + $0xb50] sm:$0xff]
    %v6624 = vld [vmem:[#allocation14 + $0xb58] sm:$0xff]
    %v6625 = vld [vmem:[#allocation14 + $0xb60] sm:$0xff]
    %v6626 = vld [vmem:[#allocation14 + $0xb68] sm:$0xff]
    %v6627 = vld [vmem:[#allocation14 + $0xb70] sm:$0xff]
    %v6628 = vld [vmem:[#allocation14 + $0xb78] sm:$0xff]
    %v6629 = vld [vmem:[#allocation14 + $0xb80] sm:$0xff]
    %v6630 = vld [vmem:[#allocation14 + $0xb88] sm:$0xff]
    %v6631 = vld [vmem:[#allocation14 + $0xb90] sm:$0xff]
    %v6632 = vld [vmem:[#allocation14 + $0xb98] sm:$0xff]
    %v6633 = vld [vmem:[#allocation14 + $0xba0] sm:$0xff]
    %v6634 = vld [vmem:[#allocation14 + $0xba8] sm:$0xff]
    %v6635 = vld [vmem:[#allocation14 + $0xbb0] sm:$0xff]
    %v6636 = vld [vmem:[#allocation14 + $0xbb8] sm:$0xff]
    %v6637 = vld [vmem:[#allocation14 + $0xbc0] sm:$0xff]
    %v6638 = vld [vmem:[#allocation14 + $0xbc8] sm:$0xff]
    %v6639 = vld [vmem:[#allocation14 + $0xbd0] sm:$0xff]
    %v6640 = vld [vmem:[#allocation14 + $0xbd8] sm:$0xff]
    %v6641 = vld [vmem:[#allocation14 + $0xbe0] sm:$0xff]
    %v6642 = vld [vmem:[#allocation14 + $0xbe8] sm:$0xff]
    %v6643 = vld [vmem:[#allocation14 + $0xbf0] sm:$0xff]
    %v6644 = vld [vmem:[#allocation14 + $0xbf8] sm:$0xff]
    %v7029 = vunpack.c.l.b16 %v6261
    %v7030 = vunpack.c.h.b16 %v6261
    %v7031 = vunpack.c.l.b16 %v6262
    %v7032 = vunpack.c.h.b16 %v6262
    %v7033 = vunpack.c.l.b16 %v6263
    %v7034 = vunpack.c.h.b16 %v6263
    %v7035 = vunpack.c.l.b16 %v6264
    %v7036 = vunpack.c.h.b16 %v6264
    %v7037 = vunpack.c.l.b16 %v6265
    %v7038 = vunpack.c.h.b16 %v6265
    %v7039 = vunpack.c.l.b16 %v6266
    %v7040 = vunpack.c.h.b16 %v6266
    %v7041 = vunpack.c.l.b16 %v6267
    %v7042 = vunpack.c.h.b16 %v6267
    %v7043 = vunpack.c.l.b16 %v6268
    %v7044 = vunpack.c.h.b16 %v6268
    %v7045 = vunpack.c.l.b16 %v6269
    %v7046 = vunpack.c.h.b16 %v6269
    %v7047 = vunpack.c.l.b16 %v6270
    %v7048 = vunpack.c.h.b16 %v6270
    %v7049 = vunpack.c.l.b16 %v6271
    %v7050 = vunpack.c.h.b16 %v6271
    %v7051 = vunpack.c.l.b16 %v6272
    %v7052 = vunpack.c.h.b16 %v6272
    %v7053 = vunpack.c.l.b16 %v6273
    %v7054 = vunpack.c.h.b16 %v6273
    %v7055 = vunpack.c.l.b16 %v6274
    %v7056 = vunpack.c.h.b16 %v6274
    %v7057 = vunpack.c.l.b16 %v6275
    %v7058 = vunpack.c.h.b16 %v6275
    %v7059 = vunpack.c.l.b16 %v6276
    %v7060 = vunpack.c.h.b16 %v6276
    %v7061 = vunpack.c.l.b16 %v6277
    %v7062 = vunpack.c.h.b16 %v6277
    %v7063 = vunpack.c.l.b16 %v6278
    %v7064 = vunpack.c.h.b16 %v6278
    %v7065 = vunpack.c.l.b16 %v6279
    %v7066 = vunpack.c.h.b16 %v6279
    %v7067 = vunpack.c.l.b16 %v6280
    %v7068 = vunpack.c.h.b16 %v6280
    %v7069 = vunpack.c.l.b16 %v6281
    %v7070 = vunpack.c.h.b16 %v6281
    %v7071 = vunpack.c.l.b16 %v6282
    %v7072 = vunpack.c.h.b16 %v6282
    %v7073 = vunpack.c.l.b16 %v6283
    %v7074 = vunpack.c.h.b16 %v6283
    %v7075 = vunpack.c.l.b16 %v6284
    %v7076 = vunpack.c.h.b16 %v6284
    %v7077 = vunpack.c.l.b16 %v6285
    %v7078 = vunpack.c.h.b16 %v6285
    %v7079 = vunpack.c.l.b16 %v6286
    %v7080 = vunpack.c.h.b16 %v6286
    %v7081 = vunpack.c.l.b16 %v6287
    %v7082 = vunpack.c.h.b16 %v6287
    %v7083 = vunpack.c.l.b16 %v6288
    %v7084 = vunpack.c.h.b16 %v6288
    %v7085 = vunpack.c.l.b16 %v6289
    %v7086 = vunpack.c.h.b16 %v6289
    %v7087 = vunpack.c.l.b16 %v6290
    %v7088 = vunpack.c.h.b16 %v6290
    %v7089 = vunpack.c.l.b16 %v6291
    %v7090 = vunpack.c.h.b16 %v6291
    %v7091 = vunpack.c.l.b16 %v6292
    %v7092 = vunpack.c.h.b16 %v6292
    %v7093 = vunpack.c.l.b16 %v6293
    %v7094 = vunpack.c.h.b16 %v6293
    %v7095 = vunpack.c.l.b16 %v6294
    %v7096 = vunpack.c.h.b16 %v6294
    %v7097 = vunpack.c.l.b16 %v6295
    %v7098 = vunpack.c.h.b16 %v6295
    %v7099 = vunpack.c.l.b16 %v6296
    %v7100 = vunpack.c.h.b16 %v6296
    %v7101 = vunpack.c.l.b16 %v6297
    %v7102 = vunpack.c.h.b16 %v6297
    %v7103 = vunpack.c.l.b16 %v6298
    %v7104 = vunpack.c.h.b16 %v6298
    %v7105 = vunpack.c.l.b16 %v6299
    %v7106 = vunpack.c.h.b16 %v6299
    %v7107 = vunpack.c.l.b16 %v6300
    %v7108 = vunpack.c.h.b16 %v6300
    %v7109 = vunpack.c.l.b16 %v6301
    %v7110 = vunpack.c.h.b16 %v6301
    %v7111 = vunpack.c.l.b16 %v6302
    %v7112 = vunpack.c.h.b16 %v6302
    %v7113 = vunpack.c.l.b16 %v6303
    %v7114 = vunpack.c.h.b16 %v6303
    %v7115 = vunpack.c.l.b16 %v6304
    %v7116 = vunpack.c.h.b16 %v6304
    %v7117 = vunpack.c.l.b16 %v6305
    %v7118 = vunpack.c.h.b16 %v6305
    %v7119 = vunpack.c.l.b16 %v6306
    %v7120 = vunpack.c.h.b16 %v6306
    %v7121 = vunpack.c.l.b16 %v6307
    %v7122 = vunpack.c.h.b16 %v6307
    %v7123 = vunpack.c.l.b16 %v6308
    %v7124 = vunpack.c.h.b16 %v6308
    %v7125 = vunpack.c.l.b16 %v6309
    %v7126 = vunpack.c.h.b16 %v6309
    %v7127 = vunpack.c.l.b16 %v6310
    %v7128 = vunpack.c.h.b16 %v6310
    %v7129 = vunpack.c.l.b16 %v6311
    %v7130 = vunpack.c.h.b16 %v6311
    %v7131 = vunpack.c.l.b16 %v6312
    %v7132 = vunpack.c.h.b16 %v6312
    %v7133 = vunpack.c.l.b16 %v6313
    %v7134 = vunpack.c.h.b16 %v6313
    %v7135 = vunpack.c.l.b16 %v6314
    %v7136 = vunpack.c.h.b16 %v6314
    %v7137 = vunpack.c.l.b16 %v6315
    %v7138 = vunpack.c.h.b16 %v6315
    %v7139 = vunpack.c.l.b16 %v6316
    %v7140 = vunpack.c.h.b16 %v6316
    %v7141 = vunpack.c.l.b16 %v6317
    %v7142 = vunpack.c.h.b16 %v6317
    %v7143 = vunpack.c.l.b16 %v6318
    %v7144 = vunpack.c.h.b16 %v6318
    %v7145 = vunpack.c.l.b16 %v6319
    %v7146 = vunpack.c.h.b16 %v6319
    %v7147 = vunpack.c.l.b16 %v6320
    %v7148 = vunpack.c.h.b16 %v6320
    %v7149 = vunpack.c.l.b16 %v6321
    %v7150 = vunpack.c.h.b16 %v6321
    %v7151 = vunpack.c.l.b16 %v6322
    %v7152 = vunpack.c.h.b16 %v6322
    %v7153 = vunpack.c.l.b16 %v6323
    %v7154 = vunpack.c.h.b16 %v6323
    %v7155 = vunpack.c.l.b16 %v6324
    %v7156 = vunpack.c.h.b16 %v6324
    %v7157 = vunpack.c.l.b16 %v6325
    %v7158 = vunpack.c.h.b16 %v6325
    %v7159 = vunpack.c.l.b16 %v6326
    %v7160 = vunpack.c.h.b16 %v6326
    %v7161 = vunpack.c.l.b16 %v6327
    %v7162 = vunpack.c.h.b16 %v6327
    %v7163 = vunpack.c.l.b16 %v6328
    %v7164 = vunpack.c.h.b16 %v6328
    %v7165 = vunpack.c.l.b16 %v6329
    %v7166 = vunpack.c.h.b16 %v6329
    %v7167 = vunpack.c.l.b16 %v6330
    %v7168 = vunpack.c.h.b16 %v6330
    %v7169 = vunpack.c.l.b16 %v6331
    %v7170 = vunpack.c.h.b16 %v6331
    %v7171 = vunpack.c.l.b16 %v6332
    %v7172 = vunpack.c.h.b16 %v6332
    %v7173 = vunpack.c.l.b16 %v6333
    %v7174 = vunpack.c.h.b16 %v6333
    %v7175 = vunpack.c.l.b16 %v6334
    %v7176 = vunpack.c.h.b16 %v6334
    %v7177 = vunpack.c.l.b16 %v6335
    %v7178 = vunpack.c.h.b16 %v6335
    %v7179 = vunpack.c.l.b16 %v6336
    %v7180 = vunpack.c.h.b16 %v6336
    %v7181 = vunpack.c.l.b16 %v6337
    %v7182 = vunpack.c.h.b16 %v6337
    %v7183 = vunpack.c.l.b16 %v6338
    %v7184 = vunpack.c.h.b16 %v6338
    %v7185 = vunpack.c.l.b16 %v6339
    %v7186 = vunpack.c.h.b16 %v6339
    %v7187 = vunpack.c.l.b16 %v6340
    %v7188 = vunpack.c.h.b16 %v6340
    %v7189 = vunpack.c.l.b16 %v6341
    %v7190 = vunpack.c.h.b16 %v6341
    %v7191 = vunpack.c.l.b16 %v6342
    %v7192 = vunpack.c.h.b16 %v6342
    %v7193 = vunpack.c.l.b16 %v6343
    %v7194 = vunpack.c.h.b16 %v6343
    %v7195 = vunpack.c.l.b16 %v6344
    %v7196 = vunpack.c.h.b16 %v6344
    %v7197 = vunpack.c.l.b16 %v6345
    %v7198 = vunpack.c.h.b16 %v6345
    %v7199 = vunpack.c.l.b16 %v6346
    %v7200 = vunpack.c.h.b16 %v6346
    %v7201 = vunpack.c.l.b16 %v6347
    %v7202 = vunpack.c.h.b16 %v6347
    %v7203 = vunpack.c.l.b16 %v6348
    %v7204 = vunpack.c.h.b16 %v6348
    %v7205 = vunpack.c.l.b16 %v6349
    %v7206 = vunpack.c.h.b16 %v6349
    %v7207 = vunpack.c.l.b16 %v6350
    %v7208 = vunpack.c.h.b16 %v6350
    %v7209 = vunpack.c.l.b16 %v6351
    %v7210 = vunpack.c.h.b16 %v6351
    %v7211 = vunpack.c.l.b16 %v6352
    %v7212 = vunpack.c.h.b16 %v6352
    %v7213 = vunpack.c.l.b16 %v6353
    %v7214 = vunpack.c.h.b16 %v6353
    %v7215 = vunpack.c.l.b16 %v6354
    %v7216 = vunpack.c.h.b16 %v6354
    %v7217 = vunpack.c.l.b16 %v6355
    %v7218 = vunpack.c.h.b16 %v6355
    %v7219 = vunpack.c.l.b16 %v6356
    %v7220 = vunpack.c.h.b16 %v6356
    %v7221 = vunpack.c.l.b16 %v6357
    %v7222 = vunpack.c.h.b16 %v6357
    %v7223 = vunpack.c.l.b16 %v6358
    %v7224 = vunpack.c.h.b16 %v6358
    %v7225 = vunpack.c.l.b16 %v6359
    %v7226 = vunpack.c.h.b16 %v6359
    %v7227 = vunpack.c.l.b16 %v6360
    %v7228 = vunpack.c.h.b16 %v6360
    %v7229 = vunpack.c.l.b16 %v6361
    %v7230 = vunpack.c.h.b16 %v6361
    %v7231 = vunpack.c.l.b16 %v6362
    %v7232 = vunpack.c.h.b16 %v6362
    %v7233 = vunpack.c.l.b16 %v6363
    %v7234 = vunpack.c.h.b16 %v6363
    %v7235 = vunpack.c.l.b16 %v6364
    %v7236 = vunpack.c.h.b16 %v6364
    %v7237 = vunpack.c.l.b16 %v6365
    %v7238 = vunpack.c.h.b16 %v6365
    %v7239 = vunpack.c.l.b16 %v6366
    %v7240 = vunpack.c.h.b16 %v6366
    %v7241 = vunpack.c.l.b16 %v6367
    %v7242 = vunpack.c.h.b16 %v6367
    %v7243 = vunpack.c.l.b16 %v6368
    %v7244 = vunpack.c.h.b16 %v6368
    %v7245 = vunpack.c.l.b16 %v6369
    %v7246 = vunpack.c.h.b16 %v6369
    %v7247 = vunpack.c.l.b16 %v6370
    %v7248 = vunpack.c.h.b16 %v6370
    %v7249 = vunpack.c.l.b16 %v6371
    %v7250 = vunpack.c.h.b16 %v6371
    %v7251 = vunpack.c.l.b16 %v6372
    %v7252 = vunpack.c.h.b16 %v6372
    %v7253 = vunpack.c.l.b16 %v6373
    %v7254 = vunpack.c.h.b16 %v6373
    %v7255 = vunpack.c.l.b16 %v6374
    %v7256 = vunpack.c.h.b16 %v6374
    %v7257 = vunpack.c.l.b16 %v6375
    %v7258 = vunpack.c.h.b16 %v6375
    %v7259 = vunpack.c.l.b16 %v6376
    %v7260 = vunpack.c.h.b16 %v6376
    %v7261 = vunpack.c.l.b16 %v6377
    %v7262 = vunpack.c.h.b16 %v6377
    %v7263 = vunpack.c.l.b16 %v6378
    %v7264 = vunpack.c.h.b16 %v6378
    %v7265 = vunpack.c.l.b16 %v6379
    %v7266 = vunpack.c.h.b16 %v6379
    %v7267 = vunpack.c.l.b16 %v6380
    %v7268 = vunpack.c.h.b16 %v6380
    %v7269 = vunpack.c.l.b16 %v6381
    %v7270 = vunpack.c.h.b16 %v6381
    %v7271 = vunpack.c.l.b16 %v6382
    %v7272 = vunpack.c.h.b16 %v6382
    %v7273 = vunpack.c.l.b16 %v6383
    %v7274 = vunpack.c.h.b16 %v6383
    %v7275 = vunpack.c.l.b16 %v6384
    %v7276 = vunpack.c.h.b16 %v6384
    %v7277 = vunpack.c.l.b16 %v6385
    %v7278 = vunpack.c.h.b16 %v6385
    %v7279 = vunpack.c.l.b16 %v6386
    %v7280 = vunpack.c.h.b16 %v6386
    %v7281 = vunpack.c.l.b16 %v6387
    %v7282 = vunpack.c.h.b16 %v6387
    %v7283 = vunpack.c.l.b16 %v6388
    %v7284 = vunpack.c.h.b16 %v6388
    %v7285 = vunpack.c.l.b16 %v6389
    %v7286 = vunpack.c.h.b16 %v6389
    %v7287 = vunpack.c.l.b16 %v6390
    %v7288 = vunpack.c.h.b16 %v6390
    %v7289 = vunpack.c.l.b16 %v6391
    %v7290 = vunpack.c.h.b16 %v6391
    %v7291 = vunpack.c.l.b16 %v6392
    %v7292 = vunpack.c.h.b16 %v6392
    %v7293 = vunpack.c.l.b16 %v6393
    %v7294 = vunpack.c.h.b16 %v6393
    %v7295 = vunpack.c.l.b16 %v6394
    %v7296 = vunpack.c.h.b16 %v6394
    %v7297 = vunpack.c.l.b16 %v6395
    %v7298 = vunpack.c.h.b16 %v6395
    %v7299 = vunpack.c.l.b16 %v6396
    %v7300 = vunpack.c.h.b16 %v6396
    %v7301 = vunpack.c.l.b16 %v6397
    %v7302 = vunpack.c.h.b16 %v6397
    %v7303 = vunpack.c.l.b16 %v6398
    %v7304 = vunpack.c.h.b16 %v6398
    %v7305 = vunpack.c.l.b16 %v6399
    %v7306 = vunpack.c.h.b16 %v6399
    %v7307 = vunpack.c.l.b16 %v6400
    %v7308 = vunpack.c.h.b16 %v6400
    %v7309 = vunpack.c.l.b16 %v6401
    %v7310 = vunpack.c.h.b16 %v6401
    %v7311 = vunpack.c.l.b16 %v6402
    %v7312 = vunpack.c.h.b16 %v6402
    %v7313 = vunpack.c.l.b16 %v6403
    %v7314 = vunpack.c.h.b16 %v6403
    %v7315 = vunpack.c.l.b16 %v6404
    %v7316 = vunpack.c.h.b16 %v6404
    %v7317 = vunpack.c.l.b16 %v6405
    %v7318 = vunpack.c.h.b16 %v6405
    %v7319 = vunpack.c.l.b16 %v6406
    %v7320 = vunpack.c.h.b16 %v6406
    %v7321 = vunpack.c.l.b16 %v6407
    %v7322 = vunpack.c.h.b16 %v6407
    %v7323 = vunpack.c.l.b16 %v6408
    %v7324 = vunpack.c.h.b16 %v6408
    %v7325 = vunpack.c.l.b16 %v6409
    %v7326 = vunpack.c.h.b16 %v6409
    %v7327 = vunpack.c.l.b16 %v6410
    %v7328 = vunpack.c.h.b16 %v6410
    %v7329 = vunpack.c.l.b16 %v6411
    %v7330 = vunpack.c.h.b16 %v6411
    %v7331 = vunpack.c.l.b16 %v6412
    %v7332 = vunpack.c.h.b16 %v6412
    %v7333 = vunpack.c.l.b16 %v6413
    %v7334 = vunpack.c.h.b16 %v6413
    %v7335 = vunpack.c.l.b16 %v6414
    %v7336 = vunpack.c.h.b16 %v6414
    %v7337 = vunpack.c.l.b16 %v6415
    %v7338 = vunpack.c.h.b16 %v6415
    %v7339 = vunpack.c.l.b16 %v6416
    %v7340 = vunpack.c.h.b16 %v6416
    %v7341 = vunpack.c.l.b16 %v6417
    %v7342 = vunpack.c.h.b16 %v6417
    %v7343 = vunpack.c.l.b16 %v6418
    %v7344 = vunpack.c.h.b16 %v6418
    %v7345 = vunpack.c.l.b16 %v6419
    %v7346 = vunpack.c.h.b16 %v6419
    %v7347 = vunpack.c.l.b16 %v6420
    %v7348 = vunpack.c.h.b16 %v6420
    %v7349 = vunpack.c.l.b16 %v6421
    %v7350 = vunpack.c.h.b16 %v6421
    %v7351 = vunpack.c.l.b16 %v6422
    %v7352 = vunpack.c.h.b16 %v6422
    %v7353 = vunpack.c.l.b16 %v6423
    %v7354 = vunpack.c.h.b16 %v6423
    %v7355 = vunpack.c.l.b16 %v6424
    %v7356 = vunpack.c.h.b16 %v6424
    %v7357 = vunpack.c.l.b16 %v6425
    %v7358 = vunpack.c.h.b16 %v6425
    %v7359 = vunpack.c.l.b16 %v6426
    %v7360 = vunpack.c.h.b16 %v6426
    %v7361 = vunpack.c.l.b16 %v6427
    %v7362 = vunpack.c.h.b16 %v6427
    %v7363 = vunpack.c.l.b16 %v6428
    %v7364 = vunpack.c.h.b16 %v6428
    %v7365 = vunpack.c.l.b16 %v6429
    %v7366 = vunpack.c.h.b16 %v6429
    %v7367 = vunpack.c.l.b16 %v6430
    %v7368 = vunpack.c.h.b16 %v6430
    %v7369 = vunpack.c.l.b16 %v6431
    %v7370 = vunpack.c.h.b16 %v6431
    %v7371 = vunpack.c.l.b16 %v6432
    %v7372 = vunpack.c.h.b16 %v6432
    %v7373 = vunpack.c.l.b16 %v6433
    %v7374 = vunpack.c.h.b16 %v6433
    %v7375 = vunpack.c.l.b16 %v6434
    %v7376 = vunpack.c.h.b16 %v6434
    %v7377 = vunpack.c.l.b16 %v6435
    %v7378 = vunpack.c.h.b16 %v6435
    %v7379 = vunpack.c.l.b16 %v6436
    %v7380 = vunpack.c.h.b16 %v6436
    %v7381 = vunpack.c.l.b16 %v6437
    %v7382 = vunpack.c.h.b16 %v6437
    %v7383 = vunpack.c.l.b16 %v6438
    %v7384 = vunpack.c.h.b16 %v6438
    %v7385 = vunpack.c.l.b16 %v6439
    %v7386 = vunpack.c.h.b16 %v6439
    %v7387 = vunpack.c.l.b16 %v6440
    %v7388 = vunpack.c.h.b16 %v6440
    %v7389 = vunpack.c.l.b16 %v6441
    %v7390 = vunpack.c.h.b16 %v6441
    %v7391 = vunpack.c.l.b16 %v6442
    %v7392 = vunpack.c.h.b16 %v6442
    %v7393 = vunpack.c.l.b16 %v6443
    %v7394 = vunpack.c.h.b16 %v6443
    %v7395 = vunpack.c.l.b16 %v6444
    %v7396 = vunpack.c.h.b16 %v6444
    %v7397 = vunpack.c.l.b16 %v6445
    %v7398 = vunpack.c.h.b16 %v6445
    %v7399 = vunpack.c.l.b16 %v6446
    %v7400 = vunpack.c.h.b16 %v6446
    %v7401 = vunpack.c.l.b16 %v6447
    %v7402 = vunpack.c.h.b16 %v6447
    %v7403 = vunpack.c.l.b16 %v6448
    %v7404 = vunpack.c.h.b16 %v6448
    %v7405 = vunpack.c.l.b16 %v6449
    %v7406 = vunpack.c.h.b16 %v6449
    %v7407 = vunpack.c.l.b16 %v6450
    %v7408 = vunpack.c.h.b16 %v6450
    %v7409 = vunpack.c.l.b16 %v6451
    %v7410 = vunpack.c.h.b16 %v6451
    %v7411 = vunpack.c.l.b16 %v6452
    %v7412 = vunpack.c.h.b16 %v6452
    %v7413 = vunpack.c.l.b16 %v6453
    %v7414 = vunpack.c.h.b16 %v6453
    %v7415 = vunpack.c.l.b16 %v6454
    %v7416 = vunpack.c.h.b16 %v6454
    %v7417 = vunpack.c.l.b16 %v6455
    %v7418 = vunpack.c.h.b16 %v6455
    %v7419 = vunpack.c.l.b16 %v6456
    %v7420 = vunpack.c.h.b16 %v6456
    %v7421 = vunpack.c.l.b16 %v6457
    %v7422 = vunpack.c.h.b16 %v6457
    %v7423 = vunpack.c.l.b16 %v6458
    %v7424 = vunpack.c.h.b16 %v6458
    %v7425 = vunpack.c.l.b16 %v6459
    %v7426 = vunpack.c.h.b16 %v6459
    %v7427 = vunpack.c.l.b16 %v6460
    %v7428 = vunpack.c.h.b16 %v6460
    %v7429 = vunpack.c.l.b16 %v6461
    %v7430 = vunpack.c.h.b16 %v6461
    %v7431 = vunpack.c.l.b16 %v6462
    %v7432 = vunpack.c.h.b16 %v6462
    %v7433 = vunpack.c.l.b16 %v6463
    %v7434 = vunpack.c.h.b16 %v6463
    %v7435 = vunpack.c.l.b16 %v6464
    %v7436 = vunpack.c.h.b16 %v6464
    %v7437 = vunpack.c.l.b16 %v6465
    %v7438 = vunpack.c.h.b16 %v6465
    %v7439 = vunpack.c.l.b16 %v6466
    %v7440 = vunpack.c.h.b16 %v6466
    %v7441 = vunpack.c.l.b16 %v6467
    %v7442 = vunpack.c.h.b16 %v6467
    %v7443 = vunpack.c.l.b16 %v6468
    %v7444 = vunpack.c.h.b16 %v6468
    %v7445 = vunpack.c.l.b16 %v6469
    %v7446 = vunpack.c.h.b16 %v6469
    %v7447 = vunpack.c.l.b16 %v6470
    %v7448 = vunpack.c.h.b16 %v6470
    %v7449 = vunpack.c.l.b16 %v6471
    %v7450 = vunpack.c.h.b16 %v6471
    %v7451 = vunpack.c.l.b16 %v6472
    %v7452 = vunpack.c.h.b16 %v6472
    %v7453 = vunpack.c.l.b16 %v6473
    %v7454 = vunpack.c.h.b16 %v6473
    %v7455 = vunpack.c.l.b16 %v6474
    %v7456 = vunpack.c.h.b16 %v6474
    %v7457 = vunpack.c.l.b16 %v6475
    %v7458 = vunpack.c.h.b16 %v6475
    %v7459 = vunpack.c.l.b16 %v6476
    %v7460 = vunpack.c.h.b16 %v6476
    %v7461 = vunpack.c.l.b16 %v6477
    %v7462 = vunpack.c.h.b16 %v6477
    %v7463 = vunpack.c.l.b16 %v6478
    %v7464 = vunpack.c.h.b16 %v6478
    %v7465 = vunpack.c.l.b16 %v6479
    %v7466 = vunpack.c.h.b16 %v6479
    %v7467 = vunpack.c.l.b16 %v6480
    %v7468 = vunpack.c.h.b16 %v6480
    %v7469 = vunpack.c.l.b16 %v6481
    %v7470 = vunpack.c.h.b16 %v6481
    %v7471 = vunpack.c.l.b16 %v6482
    %v7472 = vunpack.c.h.b16 %v6482
    %v7473 = vunpack.c.l.b16 %v6483
    %v7474 = vunpack.c.h.b16 %v6483
    %v7475 = vunpack.c.l.b16 %v6484
    %v7476 = vunpack.c.h.b16 %v6484
    %v7477 = vunpack.c.l.b16 %v6485
    %v7478 = vunpack.c.h.b16 %v6485
    %v7479 = vunpack.c.l.b16 %v6486
    %v7480 = vunpack.c.h.b16 %v6486
    %v7481 = vunpack.c.l.b16 %v6487
    %v7482 = vunpack.c.h.b16 %v6487
    %v7483 = vunpack.c.l.b16 %v6488
    %v7484 = vunpack.c.h.b16 %v6488
    %v7485 = vunpack.c.l.b16 %v6489
    %v7486 = vunpack.c.h.b16 %v6489
    %v7487 = vunpack.c.l.b16 %v6490
    %v7488 = vunpack.c.h.b16 %v6490
    %v7489 = vunpack.c.l.b16 %v6491
    %v7490 = vunpack.c.h.b16 %v6491
    %v7491 = vunpack.c.l.b16 %v6492
    %v7492 = vunpack.c.h.b16 %v6492
    %v7493 = vunpack.c.l.b16 %v6493
    %v7494 = vunpack.c.h.b16 %v6493
    %v7495 = vunpack.c.l.b16 %v6494
    %v7496 = vunpack.c.h.b16 %v6494
    %v7497 = vunpack.c.l.b16 %v6495
    %v7498 = vunpack.c.h.b16 %v6495
    %v7499 = vunpack.c.l.b16 %v6496
    %v7500 = vunpack.c.h.b16 %v6496
    %v7501 = vunpack.c.l.b16 %v6497
    %v7502 = vunpack.c.h.b16 %v6497
    %v7503 = vunpack.c.l.b16 %v6498
    %v7504 = vunpack.c.h.b16 %v6498
    %v7505 = vunpack.c.l.b16 %v6499
    %v7506 = vunpack.c.h.b16 %v6499
    %v7507 = vunpack.c.l.b16 %v6500
    %v7508 = vunpack.c.h.b16 %v6500
    %v7509 = vunpack.c.l.b16 %v6501
    %v7510 = vunpack.c.h.b16 %v6501
    %v7511 = vunpack.c.l.b16 %v6502
    %v7512 = vunpack.c.h.b16 %v6502
    %v7513 = vunpack.c.l.b16 %v6503
    %v7514 = vunpack.c.h.b16 %v6503
    %v7515 = vunpack.c.l.b16 %v6504
    %v7516 = vunpack.c.h.b16 %v6504
    %v7517 = vunpack.c.l.b16 %v6505
    %v7518 = vunpack.c.h.b16 %v6505
    %v7519 = vunpack.c.l.b16 %v6506
    %v7520 = vunpack.c.h.b16 %v6506
    %v7521 = vunpack.c.l.b16 %v6507
    %v7522 = vunpack.c.h.b16 %v6507
    %v7523 = vunpack.c.l.b16 %v6508
    %v7524 = vunpack.c.h.b16 %v6508
    %v7525 = vunpack.c.l.b16 %v6509
    %v7526 = vunpack.c.h.b16 %v6509
    %v7527 = vunpack.c.l.b16 %v6510
    %v7528 = vunpack.c.h.b16 %v6510
    %v7529 = vunpack.c.l.b16 %v6511
    %v7530 = vunpack.c.h.b16 %v6511
    %v7531 = vunpack.c.l.b16 %v6512
    %v7532 = vunpack.c.h.b16 %v6512
    %v7533 = vunpack.c.l.b16 %v6513
    %v7534 = vunpack.c.h.b16 %v6513
    %v7535 = vunpack.c.l.b16 %v6514
    %v7536 = vunpack.c.h.b16 %v6514
    %v7537 = vunpack.c.l.b16 %v6515
    %v7538 = vunpack.c.h.b16 %v6515
    %v7539 = vunpack.c.l.b16 %v6516
    %v7540 = vunpack.c.h.b16 %v6516
    %v7541 = vunpack.c.l.b16 %v6517
    %v7542 = vunpack.c.h.b16 %v6517
    %v7543 = vunpack.c.l.b16 %v6518
    %v7544 = vunpack.c.h.b16 %v6518
    %v7545 = vunpack.c.l.b16 %v6519
    %v7546 = vunpack.c.h.b16 %v6519
    %v7547 = vunpack.c.l.b16 %v6520
    %v7548 = vunpack.c.h.b16 %v6520
    %v7549 = vunpack.c.l.b16 %v6521
    %v7550 = vunpack.c.h.b16 %v6521
    %v7551 = vunpack.c.l.b16 %v6522
    %v7552 = vunpack.c.h.b16 %v6522
    %v7553 = vunpack.c.l.b16 %v6523
    %v7554 = vunpack.c.h.b16 %v6523
    %v7555 = vunpack.c.l.b16 %v6524
    %v7556 = vunpack.c.h.b16 %v6524
    %v7557 = vunpack.c.l.b16 %v6525
    %v7558 = vunpack.c.h.b16 %v6525
    %v7559 = vunpack.c.l.b16 %v6526
    %v7560 = vunpack.c.h.b16 %v6526
    %v7561 = vunpack.c.l.b16 %v6527
    %v7562 = vunpack.c.h.b16 %v6527
    %v7563 = vunpack.c.l.b16 %v6528
    %v7564 = vunpack.c.h.b16 %v6528
    %v7565 = vunpack.c.l.b16 %v6529
    %v7566 = vunpack.c.h.b16 %v6529
    %v7567 = vunpack.c.l.b16 %v6530
    %v7568 = vunpack.c.h.b16 %v6530
    %v7569 = vunpack.c.l.b16 %v6531
    %v7570 = vunpack.c.h.b16 %v6531
    %v7571 = vunpack.c.l.b16 %v6532
    %v7572 = vunpack.c.h.b16 %v6532
    %v7573 = vunpack.c.l.b16 %v6533
    %v7574 = vunpack.c.h.b16 %v6533
    %v7575 = vunpack.c.l.b16 %v6534
    %v7576 = vunpack.c.h.b16 %v6534
    %v7577 = vunpack.c.l.b16 %v6535
    %v7578 = vunpack.c.h.b16 %v6535
    %v7579 = vunpack.c.l.b16 %v6536
    %v7580 = vunpack.c.h.b16 %v6536
    %v7581 = vunpack.c.l.b16 %v6537
    %v7582 = vunpack.c.h.b16 %v6537
    %v7583 = vunpack.c.l.b16 %v6538
    %v7584 = vunpack.c.h.b16 %v6538
    %v7585 = vunpack.c.l.b16 %v6539
    %v7586 = vunpack.c.h.b16 %v6539
    %v7587 = vunpack.c.l.b16 %v6540
    %v7588 = vunpack.c.h.b16 %v6540
    %v7589 = vunpack.c.l.b16 %v6541
    %v7590 = vunpack.c.h.b16 %v6541
    %v7591 = vunpack.c.l.b16 %v6542
    %v7592 = vunpack.c.h.b16 %v6542
    %v7593 = vunpack.c.l.b16 %v6543
    %v7594 = vunpack.c.h.b16 %v6543
    %v7595 = vunpack.c.l.b16 %v6544
    %v7596 = vunpack.c.h.b16 %v6544
    %v7597 = vunpack.c.l.b16 %v6545
    %v7598 = vunpack.c.h.b16 %v6545
    %v7599 = vunpack.c.l.b16 %v6546
    %v7600 = vunpack.c.h.b16 %v6546
    %v7601 = vunpack.c.l.b16 %v6547
    %v7602 = vunpack.c.h.b16 %v6547
    %v7603 = vunpack.c.l.b16 %v6548
    %v7604 = vunpack.c.h.b16 %v6548
    %v7605 = vunpack.c.l.b16 %v6549
    %v7606 = vunpack.c.h.b16 %v6549
    %v7607 = vunpack.c.l.b16 %v6550
    %v7608 = vunpack.c.h.b16 %v6550
    %v7609 = vunpack.c.l.b16 %v6551
    %v7610 = vunpack.c.h.b16 %v6551
    %v7611 = vunpack.c.l.b16 %v6552
    %v7612 = vunpack.c.h.b16 %v6552
    %v7613 = vunpack.c.l.b16 %v6553
    %v7614 = vunpack.c.h.b16 %v6553
    %v7615 = vunpack.c.l.b16 %v6554
    %v7616 = vunpack.c.h.b16 %v6554
    %v7617 = vunpack.c.l.b16 %v6555
    %v7618 = vunpack.c.h.b16 %v6555
    %v7619 = vunpack.c.l.b16 %v6556
    %v7620 = vunpack.c.h.b16 %v6556
    %v7621 = vunpack.c.l.b16 %v6557
    %v7622 = vunpack.c.h.b16 %v6557
    %v7623 = vunpack.c.l.b16 %v6558
    %v7624 = vunpack.c.h.b16 %v6558
    %v7625 = vunpack.c.l.b16 %v6559
    %v7626 = vunpack.c.h.b16 %v6559
    %v7627 = vunpack.c.l.b16 %v6560
    %v7628 = vunpack.c.h.b16 %v6560
    %v7629 = vunpack.c.l.b16 %v6561
    %v7630 = vunpack.c.h.b16 %v6561
    %v7631 = vunpack.c.l.b16 %v6562
    %v7632 = vunpack.c.h.b16 %v6562
    %v7633 = vunpack.c.l.b16 %v6563
    %v7634 = vunpack.c.h.b16 %v6563
    %v7635 = vunpack.c.l.b16 %v6564
    %v7636 = vunpack.c.h.b16 %v6564
    %v7637 = vunpack.c.l.b16 %v6565
    %v7638 = vunpack.c.h.b16 %v6565
    %v7639 = vunpack.c.l.b16 %v6566
    %v7640 = vunpack.c.h.b16 %v6566
    %v7641 = vunpack.c.l.b16 %v6567
    %v7642 = vunpack.c.h.b16 %v6567
    %v7643 = vunpack.c.l.b16 %v6568
    %v7644 = vunpack.c.h.b16 %v6568
    %v7645 = vunpack.c.l.b16 %v6569
    %v7646 = vunpack.c.h.b16 %v6569
    %v7647 = vunpack.c.l.b16 %v6570
    %v7648 = vunpack.c.h.b16 %v6570
    %v7649 = vunpack.c.l.b16 %v6571
    %v7650 = vunpack.c.h.b16 %v6571
    %v7651 = vunpack.c.l.b16 %v6572
    %v7652 = vunpack.c.h.b16 %v6572
    %v7653 = vunpack.c.l.b16 %v6573
    %v7654 = vunpack.c.h.b16 %v6573
    %v7655 = vunpack.c.l.b16 %v6574
    %v7656 = vunpack.c.h.b16 %v6574
    %v7657 = vunpack.c.l.b16 %v6575
    %v7658 = vunpack.c.h.b16 %v6575
    %v7659 = vunpack.c.l.b16 %v6576
    %v7660 = vunpack.c.h.b16 %v6576
    %v7661 = vunpack.c.l.b16 %v6577
    %v7662 = vunpack.c.h.b16 %v6577
    %v7663 = vunpack.c.l.b16 %v6578
    %v7664 = vunpack.c.h.b16 %v6578
    %v7665 = vunpack.c.l.b16 %v6579
    %v7666 = vunpack.c.h.b16 %v6579
    %v7667 = vunpack.c.l.b16 %v6580
    %v7668 = vunpack.c.h.b16 %v6580
    %v7669 = vunpack.c.l.b16 %v6581
    %v7670 = vunpack.c.h.b16 %v6581
    %v7671 = vunpack.c.l.b16 %v6582
    %v7672 = vunpack.c.h.b16 %v6582
    %v7673 = vunpack.c.l.b16 %v6583
    %v7674 = vunpack.c.h.b16 %v6583
    %v7675 = vunpack.c.l.b16 %v6584
    %v7676 = vunpack.c.h.b16 %v6584
    %v7677 = vunpack.c.l.b16 %v6585
    %v7678 = vunpack.c.h.b16 %v6585
    %v7679 = vunpack.c.l.b16 %v6586
    %v7680 = vunpack.c.h.b16 %v6586
    %v7681 = vunpack.c.l.b16 %v6587
    %v7682 = vunpack.c.h.b16 %v6587
    %v7683 = vunpack.c.l.b16 %v6588
    %v7684 = vunpack.c.h.b16 %v6588
    %v7685 = vunpack.c.l.b16 %v6589
    %v7686 = vunpack.c.h.b16 %v6589
    %v7687 = vunpack.c.l.b16 %v6590
    %v7688 = vunpack.c.h.b16 %v6590
    %v7689 = vunpack.c.l.b16 %v6591
    %v7690 = vunpack.c.h.b16 %v6591
    %v7691 = vunpack.c.l.b16 %v6592
    %v7692 = vunpack.c.h.b16 %v6592
    %v7693 = vunpack.c.l.b16 %v6593
    %v7694 = vunpack.c.h.b16 %v6593
    %v7695 = vunpack.c.l.b16 %v6594
    %v7696 = vunpack.c.h.b16 %v6594
    %v7697 = vunpack.c.l.b16 %v6595
    %v7698 = vunpack.c.h.b16 %v6595
    %v7699 = vunpack.c.l.b16 %v6596
    %v7700 = vunpack.c.h.b16 %v6596
    %v7701 = vunpack.c.l.b16 %v6597
    %v7702 = vunpack.c.h.b16 %v6597
    %v7703 = vunpack.c.l.b16 %v6598
    %v7704 = vunpack.c.h.b16 %v6598
    %v7705 = vunpack.c.l.b16 %v6599
    %v7706 = vunpack.c.h.b16 %v6599
    %v7707 = vunpack.c.l.b16 %v6600
    %v7708 = vunpack.c.h.b16 %v6600
    %v7709 = vunpack.c.l.b16 %v6601
    %v7710 = vunpack.c.h.b16 %v6601
    %v7711 = vunpack.c.l.b16 %v6602
    %v7712 = vunpack.c.h.b16 %v6602
    %v7713 = vunpack.c.l.b16 %v6603
    %v7714 = vunpack.c.h.b16 %v6603
    %v7715 = vunpack.c.l.b16 %v6604
    %v7716 = vunpack.c.h.b16 %v6604
    %v7717 = vunpack.c.l.b16 %v6605
    %v7718 = vunpack.c.h.b16 %v6605
    %v7719 = vunpack.c.l.b16 %v6606
    %v7720 = vunpack.c.h.b16 %v6606
    %v7721 = vunpack.c.l.b16 %v6607
    %v7722 = vunpack.c.h.b16 %v6607
    %v7723 = vunpack.c.l.b16 %v6608
    %v7724 = vunpack.c.h.b16 %v6608
    %v7725 = vunpack.c.l.b16 %v6609
    %v7726 = vunpack.c.h.b16 %v6609
    %v7727 = vunpack.c.l.b16 %v6610
    %v7728 = vunpack.c.h.b16 %v6610
    %v7729 = vunpack.c.l.b16 %v6611
    %v7730 = vunpack.c.h.b16 %v6611
    %v7731 = vunpack.c.l.b16 %v6612
    %v7732 = vunpack.c.h.b16 %v6612
    %v7733 = vunpack.c.l.b16 %v6613
    %v7734 = vunpack.c.h.b16 %v6613
    %v7735 = vunpack.c.l.b16 %v6614
    %v7736 = vunpack.c.h.b16 %v6614
    %v7737 = vunpack.c.l.b16 %v6615
    %v7738 = vunpack.c.h.b16 %v6615
    %v7739 = vunpack.c.l.b16 %v6616
    %v7740 = vunpack.c.h.b16 %v6616
    %v7741 = vunpack.c.l.b16 %v6617
    %v7742 = vunpack.c.h.b16 %v6617
    %v7743 = vunpack.c.l.b16 %v6618
    %v7744 = vunpack.c.h.b16 %v6618
    %v7745 = vunpack.c.l.b16 %v6619
    %v7746 = vunpack.c.h.b16 %v6619
    %v7747 = vunpack.c.l.b16 %v6620
    %v7748 = vunpack.c.h.b16 %v6620
    %v7749 = vunpack.c.l.b16 %v6621
    %v7750 = vunpack.c.h.b16 %v6621
    %v7751 = vunpack.c.l.b16 %v6622
    %v7752 = vunpack.c.h.b16 %v6622
    %v7753 = vunpack.c.l.b16 %v6623
    %v7754 = vunpack.c.h.b16 %v6623
    %v7755 = vunpack.c.l.b16 %v6624
    %v7756 = vunpack.c.h.b16 %v6624
    %v7757 = vunpack.c.l.b16 %v6625
    %v7758 = vunpack.c.h.b16 %v6625
    %v7759 = vunpack.c.l.b16 %v6626
    %v7760 = vunpack.c.h.b16 %v6626
    %v7761 = vunpack.c.l.b16 %v6627
    %v7762 = vunpack.c.h.b16 %v6627
    %v7763 = vunpack.c.l.b16 %v6628
    %v7764 = vunpack.c.h.b16 %v6628
    %v7765 = vunpack.c.l.b16 %v6629
    %v7766 = vunpack.c.h.b16 %v6629
    %v7767 = vunpack.c.l.b16 %v6630
    %v7768 = vunpack.c.h.b16 %v6630
    %v7769 = vunpack.c.l.b16 %v6631
    %v7770 = vunpack.c.h.b16 %v6631
    %v7771 = vunpack.c.l.b16 %v6632
    %v7772 = vunpack.c.h.b16 %v6632
    %v7773 = vunpack.c.l.b16 %v6633
    %v7774 = vunpack.c.h.b16 %v6633
    %v7775 = vunpack.c.l.b16 %v6634
    %v7776 = vunpack.c.h.b16 %v6634
    %v7777 = vunpack.c.l.b16 %v6635
    %v7778 = vunpack.c.h.b16 %v6635
    %v7779 = vunpack.c.l.b16 %v6636
    %v7780 = vunpack.c.h.b16 %v6636
    %v7781 = vunpack.c.l.b16 %v6637
    %v7782 = vunpack.c.h.b16 %v6637
    %v7783 = vunpack.c.l.b16 %v6638
    %v7784 = vunpack.c.h.b16 %v6638
    %v7785 = vunpack.c.l.b16 %v6639
    %v7786 = vunpack.c.h.b16 %v6639
    %v7787 = vunpack.c.l.b16 %v6640
    %v7788 = vunpack.c.h.b16 %v6640
    %v7789 = vunpack.c.l.b16 %v6641
    %v7790 = vunpack.c.h.b16 %v6641
    %v7791 = vunpack.c.l.b16 %v6642
    %v7792 = vunpack.c.h.b16 %v6642
    %v7793 = vunpack.c.l.b16 %v6643
    %v7794 = vunpack.c.h.b16 %v6643
    %v7795 = vunpack.c.l.b16 %v6644
    %v7796 = vunpack.c.h.b16 %v6644
    %v7797 = vpack.c.b16 %v7037, %v7029
    %v7798 = vpack.c.b16 %v7038, %v7030
    %v7799 = vpack.c.b16 %v7039, %v7031
    %v7800 = vpack.c.b16 %v7040, %v7032
    %v7801 = vpack.c.b16 %v7041, %v7033
    %v7802 = vpack.c.b16 %v7042, %v7034
    %v7803 = vpack.c.b16 %v7043, %v7035
    %v7804 = vpack.c.b16 %v7044, %v7036
    %v7805 = vpack.c.b16 %v7053, %v7045
    %v7806 = vpack.c.b16 %v7054, %v7046
    %v7807 = vpack.c.b16 %v7055, %v7047
    %v7808 = vpack.c.b16 %v7056, %v7048
    %v7809 = vpack.c.b16 %v7057, %v7049
    %v7810 = vpack.c.b16 %v7058, %v7050
    %v7811 = vpack.c.b16 %v7059, %v7051
    %v7812 = vpack.c.b16 %v7060, %v7052
    %v7813 = vpack.c.b16 %v7069, %v7061
    %v7814 = vpack.c.b16 %v7070, %v7062
    %v7815 = vpack.c.b16 %v7071, %v7063
    %v7816 = vpack.c.b16 %v7072, %v7064
    %v7817 = vpack.c.b16 %v7073, %v7065
    %v7818 = vpack.c.b16 %v7074, %v7066
    %v7819 = vpack.c.b16 %v7075, %v7067
    %v7820 = vpack.c.b16 %v7076, %v7068
    %v7821 = vpack.c.b16 %v7085, %v7077
    %v7822 = vpack.c.b16 %v7086, %v7078
    %v7823 = vpack.c.b16 %v7087, %v7079
    %v7824 = vpack.c.b16 %v7088, %v7080
    %v7825 = vpack.c.b16 %v7089, %v7081
    %v7826 = vpack.c.b16 %v7090, %v7082
    %v7827 = vpack.c.b16 %v7091, %v7083
    %v7828 = vpack.c.b16 %v7092, %v7084
    %v7829 = vpack.c.b16 %v7101, %v7093
    %v7830 = vpack.c.b16 %v7102, %v7094
    %v7831 = vpack.c.b16 %v7103, %v7095
    %v7832 = vpack.c.b16 %v7104, %v7096
    %v7833 = vpack.c.b16 %v7105, %v7097
    %v7834 = vpack.c.b16 %v7106, %v7098
    %v7835 = vpack.c.b16 %v7107, %v7099
    %v7836 = vpack.c.b16 %v7108, %v7100
    %v7837 = vpack.c.b16 %v7117, %v7109
    %v7838 = vpack.c.b16 %v7118, %v7110
    %v7839 = vpack.c.b16 %v7119, %v7111
    %v7840 = vpack.c.b16 %v7120, %v7112
    %v7841 = vpack.c.b16 %v7121, %v7113
    %v7842 = vpack.c.b16 %v7122, %v7114
    %v7843 = vpack.c.b16 %v7123, %v7115
    %v7844 = vpack.c.b16 %v7124, %v7116
    %v7845 = vpack.c.b16 %v7133, %v7125
    %v7846 = vpack.c.b16 %v7134, %v7126
    %v7847 = vpack.c.b16 %v7135, %v7127
    %v7848 = vpack.c.b16 %v7136, %v7128
    %v7849 = vpack.c.b16 %v7137, %v7129
    %v7850 = vpack.c.b16 %v7138, %v7130
    %v7851 = vpack.c.b16 %v7139, %v7131
    %v7852 = vpack.c.b16 %v7140, %v7132
    %v7853 = vpack.c.b16 %v7149, %v7141
    %v7854 = vpack.c.b16 %v7150, %v7142
    %v7855 = vpack.c.b16 %v7151, %v7143
    %v7856 = vpack.c.b16 %v7152, %v7144
    %v7857 = vpack.c.b16 %v7153, %v7145
    %v7858 = vpack.c.b16 %v7154, %v7146
    %v7859 = vpack.c.b16 %v7155, %v7147
    %v7860 = vpack.c.b16 %v7156, %v7148
    %v7861 = vpack.c.b16 %v7165, %v7157
    %v7862 = vpack.c.b16 %v7166, %v7158
    %v7863 = vpack.c.b16 %v7167, %v7159
    %v7864 = vpack.c.b16 %v7168, %v7160
    %v7865 = vpack.c.b16 %v7169, %v7161
    %v7866 = vpack.c.b16 %v7170, %v7162
    %v7867 = vpack.c.b16 %v7171, %v7163
    %v7868 = vpack.c.b16 %v7172, %v7164
    %v7869 = vpack.c.b16 %v7181, %v7173
    %v7870 = vpack.c.b16 %v7182, %v7174
    %v7871 = vpack.c.b16 %v7183, %v7175
    %v7872 = vpack.c.b16 %v7184, %v7176
    %v7873 = vpack.c.b16 %v7185, %v7177
    %v7874 = vpack.c.b16 %v7186, %v7178
    %v7875 = vpack.c.b16 %v7187, %v7179
    %v7876 = vpack.c.b16 %v7188, %v7180
    %v7877 = vpack.c.b16 %v7197, %v7189
    %v7878 = vpack.c.b16 %v7198, %v7190
    %v7879 = vpack.c.b16 %v7199, %v7191
    %v7880 = vpack.c.b16 %v7200, %v7192
    %v7881 = vpack.c.b16 %v7201, %v7193
    %v7882 = vpack.c.b16 %v7202, %v7194
    %v7883 = vpack.c.b16 %v7203, %v7195
    %v7884 = vpack.c.b16 %v7204, %v7196
    %v7885 = vpack.c.b16 %v7213, %v7205
    %v7886 = vpack.c.b16 %v7214, %v7206
    %v7887 = vpack.c.b16 %v7215, %v7207
    %v7888 = vpack.c.b16 %v7216, %v7208
    %v7889 = vpack.c.b16 %v7217, %v7209
    %v7890 = vpack.c.b16 %v7218, %v7210
    %v7891 = vpack.c.b16 %v7219, %v7211
    %v7892 = vpack.c.b16 %v7220, %v7212
    %v7893 = vpack.c.b16 %v7229, %v7221
    %v7894 = vpack.c.b16 %v7230, %v7222
    %v7895 = vpack.c.b16 %v7231, %v7223
    %v7896 = vpack.c.b16 %v7232, %v7224
    %v7897 = vpack.c.b16 %v7233, %v7225
    %v7898 = vpack.c.b16 %v7234, %v7226
    %v7899 = vpack.c.b16 %v7235, %v7227
    %v7900 = vpack.c.b16 %v7236, %v7228
    %v7901 = vpack.c.b16 %v7245, %v7237
    %v7902 = vpack.c.b16 %v7246, %v7238
    %v7903 = vpack.c.b16 %v7247, %v7239
    %v7904 = vpack.c.b16 %v7248, %v7240
    %v7905 = vpack.c.b16 %v7249, %v7241
    %v7906 = vpack.c.b16 %v7250, %v7242
    %v7907 = vpack.c.b16 %v7251, %v7243
    %v7908 = vpack.c.b16 %v7252, %v7244
    %v7909 = vpack.c.b16 %v7261, %v7253
    %v7910 = vpack.c.b16 %v7262, %v7254
    %v7911 = vpack.c.b16 %v7263, %v7255
    %v7912 = vpack.c.b16 %v7264, %v7256
    %v7913 = vpack.c.b16 %v7265, %v7257
    %v7914 = vpack.c.b16 %v7266, %v7258
    %v7915 = vpack.c.b16 %v7267, %v7259
    %v7916 = vpack.c.b16 %v7268, %v7260
    %v7917 = vpack.c.b16 %v7277, %v7269
    %v7918 = vpack.c.b16 %v7278, %v7270
    %v7919 = vpack.c.b16 %v7279, %v7271
    %v7920 = vpack.c.b16 %v7280, %v7272
    %v7921 = vpack.c.b16 %v7281, %v7273
    %v7922 = vpack.c.b16 %v7282, %v7274
    %v7923 = vpack.c.b16 %v7283, %v7275
    %v7924 = vpack.c.b16 %v7284, %v7276
    %v7925 = vpack.c.b16 %v7293, %v7285
    %v7926 = vpack.c.b16 %v7294, %v7286
    %v7927 = vpack.c.b16 %v7295, %v7287
    %v7928 = vpack.c.b16 %v7296, %v7288
    %v7929 = vpack.c.b16 %v7297, %v7289
    %v7930 = vpack.c.b16 %v7298, %v7290
    %v7931 = vpack.c.b16 %v7299, %v7291
    %v7932 = vpack.c.b16 %v7300, %v7292
    %v7933 = vpack.c.b16 %v7309, %v7301
    %v7934 = vpack.c.b16 %v7310, %v7302
    %v7935 = vpack.c.b16 %v7311, %v7303
    %v7936 = vpack.c.b16 %v7312, %v7304
    %v7937 = vpack.c.b16 %v7313, %v7305
    %v7938 = vpack.c.b16 %v7314, %v7306
    %v7939 = vpack.c.b16 %v7315, %v7307
    %v7940 = vpack.c.b16 %v7316, %v7308
    %v7941 = vpack.c.b16 %v7325, %v7317
    %v7942 = vpack.c.b16 %v7326, %v7318
    %v7943 = vpack.c.b16 %v7327, %v7319
    %v7944 = vpack.c.b16 %v7328, %v7320
    %v7945 = vpack.c.b16 %v7329, %v7321
    %v7946 = vpack.c.b16 %v7330, %v7322
    %v7947 = vpack.c.b16 %v7331, %v7323
    %v7948 = vpack.c.b16 %v7332, %v7324
    %v7949 = vpack.c.b16 %v7341, %v7333
    %v7950 = vpack.c.b16 %v7342, %v7334
    %v7951 = vpack.c.b16 %v7343, %v7335
    %v7952 = vpack.c.b16 %v7344, %v7336
    %v7953 = vpack.c.b16 %v7345, %v7337
    %v7954 = vpack.c.b16 %v7346, %v7338
    %v7955 = vpack.c.b16 %v7347, %v7339
    %v7956 = vpack.c.b16 %v7348, %v7340
    %v7957 = vpack.c.b16 %v7357, %v7349
    %v7958 = vpack.c.b16 %v7358, %v7350
    %v7959 = vpack.c.b16 %v7359, %v7351
    %v7960 = vpack.c.b16 %v7360, %v7352
    %v7961 = vpack.c.b16 %v7361, %v7353
    %v7962 = vpack.c.b16 %v7362, %v7354
    %v7963 = vpack.c.b16 %v7363, %v7355
    %v7964 = vpack.c.b16 %v7364, %v7356
    %v7965 = vpack.c.b16 %v7373, %v7365
    %v7966 = vpack.c.b16 %v7374, %v7366
    %v7967 = vpack.c.b16 %v7375, %v7367
    %v7968 = vpack.c.b16 %v7376, %v7368
    %v7969 = vpack.c.b16 %v7377, %v7369
    %v7970 = vpack.c.b16 %v7378, %v7370
    %v7971 = vpack.c.b16 %v7379, %v7371
    %v7972 = vpack.c.b16 %v7380, %v7372
    %v7973 = vpack.c.b16 %v7389, %v7381
    %v7974 = vpack.c.b16 %v7390, %v7382
    %v7975 = vpack.c.b16 %v7391, %v7383
    %v7976 = vpack.c.b16 %v7392, %v7384
    %v7977 = vpack.c.b16 %v7393, %v7385
    %v7978 = vpack.c.b16 %v7394, %v7386
    %v7979 = vpack.c.b16 %v7395, %v7387
    %v7980 = vpack.c.b16 %v7396, %v7388
    %v7981 = vpack.c.b16 %v7405, %v7397
    %v7982 = vpack.c.b16 %v7406, %v7398
    %v7983 = vpack.c.b16 %v7407, %v7399
    %v7984 = vpack.c.b16 %v7408, %v7400
    %v7985 = vpack.c.b16 %v7409, %v7401
    %v7986 = vpack.c.b16 %v7410, %v7402
    %v7987 = vpack.c.b16 %v7411, %v7403
    %v7988 = vpack.c.b16 %v7412, %v7404
    %v7989 = vpack.c.b16 %v7421, %v7413
    %v7990 = vpack.c.b16 %v7422, %v7414
    %v7991 = vpack.c.b16 %v7423, %v7415
    %v7992 = vpack.c.b16 %v7424, %v7416
    %v7993 = vpack.c.b16 %v7425, %v7417
    %v7994 = vpack.c.b16 %v7426, %v7418
    %v7995 = vpack.c.b16 %v7427, %v7419
    %v7996 = vpack.c.b16 %v7428, %v7420
    %v7997 = vpack.c.b16 %v7437, %v7429
    %v7998 = vpack.c.b16 %v7438, %v7430
    %v7999 = vpack.c.b16 %v7439, %v7431
    %v8000 = vpack.c.b16 %v7440, %v7432
    %v8001 = vpack.c.b16 %v7441, %v7433
    %v8002 = vpack.c.b16 %v7442, %v7434
    %v8003 = vpack.c.b16 %v7443, %v7435
    %v8004 = vpack.c.b16 %v7444, %v7436
    %v8005 = vpack.c.b16 %v7453, %v7445
    %v8006 = vpack.c.b16 %v7454, %v7446
    %v8007 = vpack.c.b16 %v7455, %v7447
    %v8008 = vpack.c.b16 %v7456, %v7448
    %v8009 = vpack.c.b16 %v7457, %v7449
    %v8010 = vpack.c.b16 %v7458, %v7450
    %v8011 = vpack.c.b16 %v7459, %v7451
    %v8012 = vpack.c.b16 %v7460, %v7452
    %v8013 = vpack.c.b16 %v7469, %v7461
    %v8014 = vpack.c.b16 %v7470, %v7462
    %v8015 = vpack.c.b16 %v7471, %v7463
    %v8016 = vpack.c.b16 %v7472, %v7464
    %v8017 = vpack.c.b16 %v7473, %v7465
    %v8018 = vpack.c.b16 %v7474, %v7466
    %v8019 = vpack.c.b16 %v7475, %v7467
    %v8020 = vpack.c.b16 %v7476, %v7468
    %v8021 = vpack.c.b16 %v7485, %v7477
    %v8022 = vpack.c.b16 %v7486, %v7478
    %v8023 = vpack.c.b16 %v7487, %v7479
    %v8024 = vpack.c.b16 %v7488, %v7480
    %v8025 = vpack.c.b16 %v7489, %v7481
    %v8026 = vpack.c.b16 %v7490, %v7482
    %v8027 = vpack.c.b16 %v7491, %v7483
    %v8028 = vpack.c.b16 %v7492, %v7484
    %v8029 = vpack.c.b16 %v7501, %v7493
    %v8030 = vpack.c.b16 %v7502, %v7494
    %v8031 = vpack.c.b16 %v7503, %v7495
    %v8032 = vpack.c.b16 %v7504, %v7496
    %v8033 = vpack.c.b16 %v7505, %v7497
    %v8034 = vpack.c.b16 %v7506, %v7498
    %v8035 = vpack.c.b16 %v7507, %v7499
    %v8036 = vpack.c.b16 %v7508, %v7500
    %v8037 = vpack.c.b16 %v7517, %v7509
    %v8038 = vpack.c.b16 %v7518, %v7510
    %v8039 = vpack.c.b16 %v7519, %v7511
    %v8040 = vpack.c.b16 %v7520, %v7512
    %v8041 = vpack.c.b16 %v7521, %v7513
    %v8042 = vpack.c.b16 %v7522, %v7514
    %v8043 = vpack.c.b16 %v7523, %v7515
    %v8044 = vpack.c.b16 %v7524, %v7516
    %v8045 = vpack.c.b16 %v7533, %v7525
    %v8046 = vpack.c.b16 %v7534, %v7526
    %v8047 = vpack.c.b16 %v7535, %v7527
    %v8048 = vpack.c.b16 %v7536, %v7528
    %v8049 = vpack.c.b16 %v7537, %v7529
    %v8050 = vpack.c.b16 %v7538, %v7530
    %v8051 = vpack.c.b16 %v7539, %v7531
    %v8052 = vpack.c.b16 %v7540, %v7532
    %v8053 = vpack.c.b16 %v7549, %v7541
    %v8054 = vpack.c.b16 %v7550, %v7542
    %v8055 = vpack.c.b16 %v7551, %v7543
    %v8056 = vpack.c.b16 %v7552, %v7544
    %v8057 = vpack.c.b16 %v7553, %v7545
    %v8058 = vpack.c.b16 %v7554, %v7546
    %v8059 = vpack.c.b16 %v7555, %v7547
    %v8060 = vpack.c.b16 %v7556, %v7548
    %v8061 = vpack.c.b16 %v7565, %v7557
    %v8062 = vpack.c.b16 %v7566, %v7558
    %v8063 = vpack.c.b16 %v7567, %v7559
    %v8064 = vpack.c.b16 %v7568, %v7560
    %v8065 = vpack.c.b16 %v7569, %v7561
    %v8066 = vpack.c.b16 %v7570, %v7562
    %v8067 = vpack.c.b16 %v7571, %v7563
    %v8068 = vpack.c.b16 %v7572, %v7564
    %v8069 = vpack.c.b16 %v7581, %v7573
    %v8070 = vpack.c.b16 %v7582, %v7574
    %v8071 = vpack.c.b16 %v7583, %v7575
    %v8072 = vpack.c.b16 %v7584, %v7576
    %v8073 = vpack.c.b16 %v7585, %v7577
    %v8074 = vpack.c.b16 %v7586, %v7578
    %v8075 = vpack.c.b16 %v7587, %v7579
    %v8076 = vpack.c.b16 %v7588, %v7580
    %v8077 = vpack.c.b16 %v7597, %v7589
    %v8078 = vpack.c.b16 %v7598, %v7590
    %v8079 = vpack.c.b16 %v7599, %v7591
    %v8080 = vpack.c.b16 %v7600, %v7592
    %v8081 = vpack.c.b16 %v7601, %v7593
    %v8082 = vpack.c.b16 %v7602, %v7594
    %v8083 = vpack.c.b16 %v7603, %v7595
    %v8084 = vpack.c.b16 %v7604, %v7596
    %v8085 = vpack.c.b16 %v7613, %v7605
    %v8086 = vpack.c.b16 %v7614, %v7606
    %v8087 = vpack.c.b16 %v7615, %v7607
    %v8088 = vpack.c.b16 %v7616, %v7608
    %v8089 = vpack.c.b16 %v7617, %v7609
    %v8090 = vpack.c.b16 %v7618, %v7610
    %v8091 = vpack.c.b16 %v7619, %v7611
    %v8092 = vpack.c.b16 %v7620, %v7612
    %v8093 = vpack.c.b16 %v7629, %v7621
    %v8094 = vpack.c.b16 %v7630, %v7622
    %v8095 = vpack.c.b16 %v7631, %v7623
    %v8096 = vpack.c.b16 %v7632, %v7624
    %v8097 = vpack.c.b16 %v7633, %v7625
    %v8098 = vpack.c.b16 %v7634, %v7626
    %v8099 = vpack.c.b16 %v7635, %v7627
    %v8100 = vpack.c.b16 %v7636, %v7628
    %v8101 = vpack.c.b16 %v7645, %v7637
    %v8102 = vpack.c.b16 %v7646, %v7638
    %v8103 = vpack.c.b16 %v7647, %v7639
    %v8104 = vpack.c.b16 %v7648, %v7640
    %v8105 = vpack.c.b16 %v7649, %v7641
    %v8106 = vpack.c.b16 %v7650, %v7642
    %v8107 = vpack.c.b16 %v7651, %v7643
    %v8108 = vpack.c.b16 %v7652, %v7644
    %v8109 = vpack.c.b16 %v7661, %v7653
    %v8110 = vpack.c.b16 %v7662, %v7654
    %v8111 = vpack.c.b16 %v7663, %v7655
    %v8112 = vpack.c.b16 %v7664, %v7656
    %v8113 = vpack.c.b16 %v7665, %v7657
    %v8114 = vpack.c.b16 %v7666, %v7658
    %v8115 = vpack.c.b16 %v7667, %v7659
    %v8116 = vpack.c.b16 %v7668, %v7660
    %v8117 = vpack.c.b16 %v7677, %v7669
    %v8118 = vpack.c.b16 %v7678, %v7670
    %v8119 = vpack.c.b16 %v7679, %v7671
    %v8120 = vpack.c.b16 %v7680, %v7672
    %v8121 = vpack.c.b16 %v7681, %v7673
    %v8122 = vpack.c.b16 %v7682, %v7674
    %v8123 = vpack.c.b16 %v7683, %v7675
    %v8124 = vpack.c.b16 %v7684, %v7676
    %v8125 = vpack.c.b16 %v7693, %v7685
    %v8126 = vpack.c.b16 %v7694, %v7686
    %v8127 = vpack.c.b16 %v7695, %v7687
    %v8128 = vpack.c.b16 %v7696, %v7688
    %v8129 = vpack.c.b16 %v7697, %v7689
    %v8130 = vpack.c.b16 %v7698, %v7690
    %v8131 = vpack.c.b16 %v7699, %v7691
    %v8132 = vpack.c.b16 %v7700, %v7692
    %v8133 = vpack.c.b16 %v7709, %v7701
    %v8134 = vpack.c.b16 %v7710, %v7702
    %v8135 = vpack.c.b16 %v7711, %v7703
    %v8136 = vpack.c.b16 %v7712, %v7704
    %v8137 = vpack.c.b16 %v7713, %v7705
    %v8138 = vpack.c.b16 %v7714, %v7706
    %v8139 = vpack.c.b16 %v7715, %v7707
    %v8140 = vpack.c.b16 %v7716, %v7708
    %v8141 = vpack.c.b16 %v7725, %v7717
    %v8142 = vpack.c.b16 %v7726, %v7718
    %v8143 = vpack.c.b16 %v7727, %v7719
    %v8144 = vpack.c.b16 %v7728, %v7720
    %v8145 = vpack.c.b16 %v7729, %v7721
    %v8146 = vpack.c.b16 %v7730, %v7722
    %v8147 = vpack.c.b16 %v7731, %v7723
    %v8148 = vpack.c.b16 %v7732, %v7724
    %v8149 = vpack.c.b16 %v7741, %v7733
    %v8150 = vpack.c.b16 %v7742, %v7734
    %v8151 = vpack.c.b16 %v7743, %v7735
    %v8152 = vpack.c.b16 %v7744, %v7736
    %v8153 = vpack.c.b16 %v7745, %v7737
    %v8154 = vpack.c.b16 %v7746, %v7738
    %v8155 = vpack.c.b16 %v7747, %v7739
    %v8156 = vpack.c.b16 %v7748, %v7740
    %v8157 = vpack.c.b16 %v7757, %v7749
    %v8158 = vpack.c.b16 %v7758, %v7750
    %v8159 = vpack.c.b16 %v7759, %v7751
    %v8160 = vpack.c.b16 %v7760, %v7752
    %v8161 = vpack.c.b16 %v7761, %v7753
    %v8162 = vpack.c.b16 %v7762, %v7754
    %v8163 = vpack.c.b16 %v7763, %v7755
    %v8164 = vpack.c.b16 %v7764, %v7756
    %v8165 = vpack.c.b16 %v7773, %v7765
    %v8166 = vpack.c.b16 %v7774, %v7766
    %v8167 = vpack.c.b16 %v7775, %v7767
    %v8168 = vpack.c.b16 %v7776, %v7768
    %v8169 = vpack.c.b16 %v7777, %v7769
    %v8170 = vpack.c.b16 %v7778, %v7770
    %v8171 = vpack.c.b16 %v7779, %v7771
    %v8172 = vpack.c.b16 %v7780, %v7772
    %v8173 = vpack.c.b16 %v7789, %v7781
    %v8174 = vpack.c.b16 %v7790, %v7782
    %v8175 = vpack.c.b16 %v7791, %v7783
    %v8176 = vpack.c.b16 %v7792, %v7784
    %v8177 = vpack.c.b16 %v7793, %v7785
    %v8178 = vpack.c.b16 %v7794, %v7786
    %v8179 = vpack.c.b16 %v7795, %v7787
    %v8180 = vpack.c.b16 %v7796, %v7788
    %8565 = vmatprep.subr.bf16.mxu0 %v7854
    %8566 = vmatpush1.bf16.msra.mxu0 %v7853
    %8567 = vmatprep.subr.bf16.mxu0 %v7846
    %8568 = vmatpush1.bf16.msra.mxu0 %v7845
    %8569 = vmatprep.subr.bf16.mxu0 %v7838
    %8570 = vmatpush1.bf16.msra.mxu0 %v7837
    %8571 = vmatprep.subr.bf16.mxu0 %v7830
    %8572 = vmatpush1.bf16.msra.mxu0 %v7829
    %8573 = vmatprep.subr.bf16.mxu0 %v7822
    %8574 = vmatpush1.bf16.msra.mxu0 %v7821
    %8575 = vmatprep.subr.bf16.mxu0 %v7814
    %8576 = vmatpush1.bf16.msra.mxu0 %v7813
    %8577 = vmatprep.subr.bf16.mxu0 %v7806
    %8578 = vmatpush1.bf16.msra.mxu0 %v7805
    %8579 = vmatprep.subr.bf16.mxu0 %v7798
    %8580 = vmatpush1.bf16.msra.mxu0 %v7797
    %8581 = vmatprep.subr.bf16.mxu0 %v7918
    %8582 = vmatpush2.bf16.msra.mxu0 %v7917
    %8583 = vmatprep.subr.bf16.mxu0 %v7910
    %8584 = vmatpush2.bf16.msra.mxu0 %v7909
    %8585 = vmatprep.subr.bf16.mxu0 %v7902
    %8586 = vmatpush2.bf16.msra.mxu0 %v7901
    %8587 = vmatprep.subr.bf16.mxu0 %v7894
    %8588 = vmatpush2.bf16.msra.mxu0 %v7893
    %8589 = vmatprep.subr.bf16.mxu0 %v7886
    %8590 = vmatpush2.bf16.msra.mxu0 %v7885
    %8591 = vmatprep.subr.bf16.mxu0 %v7878
    %8592 = vmatpush2.bf16.msra.mxu0 %v7877
    %8593 = vmatprep.subr.bf16.mxu0 %v7870
    %8594 = vmatpush2.bf16.msra.mxu0 %v7869
    %8595 = vmatprep.subr.bf16.mxu0 %v7862
    %8596 = vmatpush2.bf16.msra.mxu0 %v7861
    %8597 = vmatprep.mubr.bf16.mxu0 %v6256
    %8598 = vmatmul.mubr.bf16.gmra.mxu0 %v6255
    %v8599 = vpop.f32.mrf.mxu0
    %v8600 = vadd.f32 0.0, %v8599
    %v8601 = vpop.f32.mrf.mxu0
    %v8602 = vadd.f32 0.0, %v8601
    %v8603 = vpop.f32.mrf.mxu0
    %v8604 = vpop.f32.mrf.mxu0
    %8605 = vdwg.mxu0
    %8606 = vmatprep.subr.bf16.mxu0 %v7982
    %8607 = vmatpush1.bf16.msra.mxu0 %v7981
    %8608 = vmatprep.subr.bf16.mxu0 %v7974
    %8609 = vmatpush1.bf16.msra.mxu0 %v7973
    %8610 = vmatprep.subr.bf16.mxu0 %v7966
    %8611 = vmatpush1.bf16.msra.mxu0 %v7965
    %8612 = vmatprep.subr.bf16.mxu0 %v7958
    %8613 = vmatpush1.bf16.msra.mxu0 %v7957
    %8614 = vmatprep.subr.bf16.mxu0 %v7950
    %8615 = vmatpush1.bf16.msra.mxu0 %v7949
    %8616 = vmatprep.subr.bf16.mxu0 %v7942
    %8617 = vmatpush1.bf16.msra.mxu0 %v7941
    %8618 = vmatprep.subr.bf16.mxu0 %v7934
    %8619 = vmatpush1.bf16.msra.mxu0 %v7933
    %8620 = vmatprep.subr.bf16.mxu0 %v7926
    %8621 = vmatpush1.bf16.msra.mxu0 %v7925
    %8622 = vmatprep.subr.bf16.mxu0 %v8046
    %8623 = vmatpush2.bf16.msra.mxu0 %v8045
    %8624 = vmatprep.subr.bf16.mxu0 %v8038
    %8625 = vmatpush2.bf16.msra.mxu0 %v8037
    %8626 = vmatprep.subr.bf16.mxu0 %v8030
    %8627 = vmatpush2.bf16.msra.mxu0 %v8029
    %8628 = vmatprep.subr.bf16.mxu0 %v8022
    %8629 = vmatpush2.bf16.msra.mxu0 %v8021
    %8630 = vmatprep.subr.bf16.mxu0 %v8014
    %8631 = vmatpush2.bf16.msra.mxu0 %v8013
    %8632 = vmatprep.subr.bf16.mxu0 %v8006
    %8633 = vmatpush2.bf16.msra.mxu0 %v8005
    %8634 = vmatprep.subr.bf16.mxu0 %v7998
    %8635 = vmatpush2.bf16.msra.mxu0 %v7997
    %8636 = vmatprep.subr.bf16.mxu0 %v7990
    %8637 = vmatpush2.bf16.msra.mxu0 %v7989
    %8638 = vmatprep.mubr.bf16.mxu0 %v6258
    %8639 = vmatmul.mubr.bf16.gmra.mxu0 %v6257
    %v8640 = vpop.f32.mrf.mxu0
    %v8641 = vadd.f32 %v8600, %v8640
    %v8642 = vpop.f32.mrf.mxu0
    %v8643 = vadd.f32 %v8602, %v8642
    %v8644 = vpop.f32.mrf.mxu0
    %v8645 = vpop.f32.mrf.mxu0
    %8646 = vdwg.mxu0
    %8647 = vmatprep.subr.bf16.mxu0 %v8110
    %8648 = vmatpush1.bf16.msra.mxu0 %v8109
    %8649 = vmatprep.subr.bf16.mxu0 %v8102
    %8650 = vmatpush1.bf16.msra.mxu0 %v8101
    %8651 = vmatprep.subr.bf16.mxu0 %v8094
    %8652 = vmatpush1.bf16.msra.mxu0 %v8093
    %8653 = vmatprep.subr.bf16.mxu0 %v8086
    %8654 = vmatpush1.bf16.msra.mxu0 %v8085
    %8655 = vmatprep.subr.bf16.mxu0 %v8078
    %8656 = vmatpush1.bf16.msra.mxu0 %v8077
    %8657 = vmatprep.subr.bf16.mxu0 %v8070
    %8658 = vmatpush1.bf16.msra.mxu0 %v8069
    %8659 = vmatprep.subr.bf16.mxu0 %v8062
    %8660 = vmatpush1.bf16.msra.mxu0 %v8061
    %8661 = vmatprep.subr.bf16.mxu0 %v8054
    %8662 = vmatpush1.bf16.msra.mxu0 %v8053
    %8663 = vmatprep.subr.bf16.mxu0 %v8174
    %8664 = vmatpush2.bf16.msra.mxu0 %v8173
    %8665 = vmatprep.subr.bf16.mxu0 %v8166
    %8666 = vmatpush2.bf16.msra.mxu0 %v8165
    %8667 = vmatprep.subr.bf16.mxu0 %v8158
    %8668 = vmatpush2.bf16.msra.mxu0 %v8157
    %8669 = vmatprep.subr.bf16.mxu0 %v8150
    %8670 = vmatpush2.bf16.msra.mxu0 %v8149
    %8671 = vmatprep.subr.bf16.mxu0 %v8142
    %8672 = vmatpush2.bf16.msra.mxu0 %v8141
    %8673 = vmatprep.subr.bf16.mxu0 %v8134
    %8674 = vmatpush2.bf16.msra.mxu0 %v8133
    %8675 = vmatprep.subr.bf16.mxu0 %v8126
    %8676 = vmatpush2.bf16.msra.mxu0 %v8125
    %8677 = vmatprep.subr.bf16.mxu0 %v8118
    %8678 = vmatpush2.bf16.msra.mxu0 %v8117
    %8679 = vmatprep.mubr.bf16.mxu0 %v6260
    %8680 = vmatmul.mubr.bf16.gmra.mxu0 %v6259
    %v8681 = vpop.f32.mrf.mxu0
    %v8682 = vadd.f32 %v8641, %v8681
    %v8683 = vpop.f32.mrf.mxu0
    %v8684 = vadd.f32 %v8643, %v8683
    %v8685 = vpop.f32.mrf.mxu0
    %v8686 = vpop.f32.mrf.mxu0
    %8687 = vdwg.mxu0
    %8688 = vmatprep.subr.bf16.mxu0 %v7856
    %8689 = vmatpush1.bf16.msra.mxu0 %v7855
    %8690 = vmatprep.subr.bf16.mxu0 %v7848
    %8691 = vmatpush1.bf16.msra.mxu0 %v7847
    %8692 = vmatprep.subr.bf16.mxu0 %v7840
    %8693 = vmatpush1.bf16.msra.mxu0 %v7839
    %8694 = vmatprep.subr.bf16.mxu0 %v7832
    %8695 = vmatpush1.bf16.msra.mxu0 %v7831
    %8696 = vmatprep.subr.bf16.mxu0 %v7824
    %8697 = vmatpush1.bf16.msra.mxu0 %v7823
    %8698 = vmatprep.subr.bf16.mxu0 %v7816
    %8699 = vmatpush1.bf16.msra.mxu0 %v7815
    %8700 = vmatprep.subr.bf16.mxu0 %v7808
    %8701 = vmatpush1.bf16.msra.mxu0 %v7807
    %8702 = vmatprep.subr.bf16.mxu0 %v7800
    %8703 = vmatpush1.bf16.msra.mxu0 %v7799
    %8704 = vmatprep.subr.bf16.mxu0 %v7920
    %8705 = vmatpush2.bf16.msra.mxu0 %v7919
    %8706 = vmatprep.subr.bf16.mxu0 %v7912
    %8707 = vmatpush2.bf16.msra.mxu0 %v7911
    %8708 = vmatprep.subr.bf16.mxu0 %v7904
    %8709 = vmatpush2.bf16.msra.mxu0 %v7903
    %8710 = vmatprep.subr.bf16.mxu0 %v7896
    %8711 = vmatpush2.bf16.msra.mxu0 %v7895
    %8712 = vmatprep.subr.bf16.mxu0 %v7888
    %8713 = vmatpush2.bf16.msra.mxu0 %v7887
    %8714 = vmatprep.subr.bf16.mxu0 %v7880
    %8715 = vmatpush2.bf16.msra.mxu0 %v7879
    %8716 = vmatprep.subr.bf16.mxu0 %v7872
    %8717 = vmatpush2.bf16.msra.mxu0 %v7871
    %8718 = vmatprep.subr.bf16.mxu0 %v7864
    %8719 = vmatpush2.bf16.msra.mxu0 %v7863
    %8720 = vmatprep.mubr.bf16.mxu0 %v6256
    %8721 = vmatmul.mubr.bf16.gmra.mxu0 %v6255
    %v8722 = vpop.f32.mrf.mxu0
    %v8723 = vadd.f32 0.0, %v8722
    %v8724 = vpop.f32.mrf.mxu0
    %v8725 = vadd.f32 0.0, %v8724
    %v8726 = vpop.f32.mrf.mxu0
    %v8727 = vpop.f32.mrf.mxu0
    %8728 = vdwg.mxu0
    %8729 = vmatprep.subr.bf16.mxu0 %v7984
    %8730 = vmatpush1.bf16.msra.mxu0 %v7983
    %8731 = vmatprep.subr.bf16.mxu0 %v7976
    %8732 = vmatpush1.bf16.msra.mxu0 %v7975
    %8733 = vmatprep.subr.bf16.mxu0 %v7968
    %8734 = vmatpush1.bf16.msra.mxu0 %v7967
    %8735 = vmatprep.subr.bf16.mxu0 %v7960
    %8736 = vmatpush1.bf16.msra.mxu0 %v7959
    %8737 = vmatprep.subr.bf16.mxu0 %v7952
    %8738 = vmatpush1.bf16.msra.mxu0 %v7951
    %8739 = vmatprep.subr.bf16.mxu0 %v7944
    %8740 = vmatpush1.bf16.msra.mxu0 %v7943
    %8741 = vmatprep.subr.bf16.mxu0 %v7936
    %8742 = vmatpush1.bf16.msra.mxu0 %v7935
    %8743 = vmatprep.subr.bf16.mxu0 %v7928
    %8744 = vmatpush1.bf16.msra.mxu0 %v7927
    %8745 = vmatprep.subr.bf16.mxu0 %v8048
    %8746 = vmatpush2.bf16.msra.mxu0 %v8047
    %8747 = vmatprep.subr.bf16.mxu0 %v8040
    %8748 = vmatpush2.bf16.msra.mxu0 %v8039
    %8749 = vmatprep.subr.bf16.mxu0 %v8032
    %8750 = vmatpush2.bf16.msra.mxu0 %v8031
    %8751 = vmatprep.subr.bf16.mxu0 %v8024
    %8752 = vmatpush2.bf16.msra.mxu0 %v8023
    %8753 = vmatprep.subr.bf16.mxu0 %v8016
    %8754 = vmatpush2.bf16.msra.mxu0 %v8015
    %8755 = vmatprep.subr.bf16.mxu0 %v8008
    %8756 = vmatpush2.bf16.msra.mxu0 %v8007
    %8757 = vmatprep.subr.bf16.mxu0 %v8000
    %8758 = vmatpush2.bf16.msra.mxu0 %v7999
    %8759 = vmatprep.subr.bf16.mxu0 %v7992
    %8760 = vmatpush2.bf16.msra.mxu0 %v7991
    %8761 = vmatprep.mubr.bf16.mxu0 %v6258
    %8762 = vmatmul.mubr.bf16.gmra.mxu0 %v6257
    %v8763 = vpop.f32.mrf.mxu0
    %v8764 = vadd.f32 %v8723, %v8763
    %v8765 = vpop.f32.mrf.mxu0
    %v8766 = vadd.f32 %v8725, %v8765
    %v8767 = vpop.f32.mrf.mxu0
    %v8768 = vpop.f32.mrf.mxu0
    %8769 = vdwg.mxu0
    %8770 = vmatprep.subr.bf16.mxu0 %v8112
    %8771 = vmatpush1.bf16.msra.mxu0 %v8111
    %8772 = vmatprep.subr.bf16.mxu0 %v8104
    %8773 = vmatpush1.bf16.msra.mxu0 %v8103
    %8774 = vmatprep.subr.bf16.mxu0 %v8096
    %8775 = vmatpush1.bf16.msra.mxu0 %v8095
    %8776 = vmatprep.subr.bf16.mxu0 %v8088
    %8777 = vmatpush1.bf16.msra.mxu0 %v8087
    %8778 = vmatprep.subr.bf16.mxu0 %v8080
    %8779 = vmatpush1.bf16.msra.mxu0 %v8079
    %8780 = vmatprep.subr.bf16.mxu0 %v8072
    %8781 = vmatpush1.bf16.msra.mxu0 %v8071
    %8782 = vmatprep.subr.bf16.mxu0 %v8064
    %8783 = vmatpush1.bf16.msra.mxu0 %v8063
    %8784 = vmatprep.subr.bf16.mxu0 %v8056
    %8785 = vmatpush1.bf16.msra.mxu0 %v8055
    %8786 = vmatprep.subr.bf16.mxu0 %v8176
    %8787 = vmatpush2.bf16.msra.mxu0 %v8175
    %8788 = vmatprep.subr.bf16.mxu0 %v8168
    %8789 = vmatpush2.bf16.msra.mxu0 %v8167
    %8790 = vmatprep.subr.bf16.mxu0 %v8160
    %8791 = vmatpush2.bf16.msra.mxu0 %v8159
    %8792 = vmatprep.subr.bf16.mxu0 %v8152
    %8793 = vmatpush2.bf16.msra.mxu0 %v8151
    %8794 = vmatprep.subr.bf16.mxu0 %v8144
    %8795 = vmatpush2.bf16.msra.mxu0 %v8143
    %8796 = vmatprep.subr.bf16.mxu0 %v8136
    %8797 = vmatpush2.bf16.msra.mxu0 %v8135
    %8798 = vmatprep.subr.bf16.mxu0 %v8128
    %8799 = vmatpush2.bf16.msra.mxu0 %v8127
    %8800 = vmatprep.subr.bf16.mxu0 %v8120
    %8801 = vmatpush2.bf16.msra.mxu0 %v8119
    %8802 = vmatprep.mubr.bf16.mxu0 %v6260
    %8803 = vmatmul.mubr.bf16.gmra.mxu0 %v6259
    %v8804 = vpop.f32.mrf.mxu0
    %v8805 = vadd.f32 %v8764, %v8804
    %v8806 = vpop.f32.mrf.mxu0
    %v8807 = vadd.f32 %v8766, %v8806
    %v8808 = vpop.f32.mrf.mxu0
    %v8809 = vpop.f32.mrf.mxu0
    %8810 = vdwg.mxu0
    %8811 = vmatprep.subr.bf16.mxu0 %v7858
    %8812 = vmatpush1.bf16.msra.mxu0 %v7857
    %8813 = vmatprep.subr.bf16.mxu0 %v7850
    %8814 = vmatpush1.bf16.msra.mxu0 %v7849
    %8815 = vmatprep.subr.bf16.mxu0 %v7842
    %8816 = vmatpush1.bf16.msra.mxu0 %v7841
    %8817 = vmatprep.subr.bf16.mxu0 %v7834
    %8818 = vmatpush1.bf16.msra.mxu0 %v7833
    %8819 = vmatprep.subr.bf16.mxu0 %v7826
    %8820 = vmatpush1.bf16.msra.mxu0 %v7825
    %8821 = vmatprep.subr.bf16.mxu0 %v7818
    %8822 = vmatpush1.bf16.msra.mxu0 %v7817
    %8823 = vmatprep.subr.bf16.mxu0 %v7810
    %8824 = vmatpush1.bf16.msra.mxu0 %v7809
    %8825 = vmatprep.subr.bf16.mxu0 %v7802
    %8826 = vmatpush1.bf16.msra.mxu0 %v7801
    %8827 = vmatprep.subr.bf16.mxu0 %v7922
    %8828 = vmatpush2.bf16.msra.mxu0 %v7921
    %8829 = vmatprep.subr.bf16.mxu0 %v7914
    %8830 = vmatpush2.bf16.msra.mxu0 %v7913
    %8831 = vmatprep.subr.bf16.mxu0 %v7906
    %8832 = vmatpush2.bf16.msra.mxu0 %v7905
    %8833 = vmatprep.subr.bf16.mxu0 %v7898
    %8834 = vmatpush2.bf16.msra.mxu0 %v7897
    %8835 = vmatprep.subr.bf16.mxu0 %v7890
    %8836 = vmatpush2.bf16.msra.mxu0 %v7889
    %8837 = vmatprep.subr.bf16.mxu0 %v7882
    %8838 = vmatpush2.bf16.msra.mxu0 %v7881
    %8839 = vmatprep.subr.bf16.mxu0 %v7874
    %8840 = vmatpush2.bf16.msra.mxu0 %v7873
    %8841 = vmatprep.subr.bf16.mxu0 %v7866
    %8842 = vmatpush2.bf16.msra.mxu0 %v7865
    %8843 = vmatprep.mubr.bf16.mxu0 %v6256
    %8844 = vmatmul.mubr.bf16.gmra.mxu0 %v6255
    %v8845 = vpop.f32.mrf.mxu0
    %v8846 = vadd.f32 0.0, %v8845
    %v8847 = vpop.f32.mrf.mxu0
    %v8848 = vadd.f32 0.0, %v8847
    %v8849 = vpop.f32.mrf.mxu0
    %v8850 = vpop.f32.mrf.mxu0
    %8851 = vdwg.mxu0
    %8852 = vmatprep.subr.bf16.mxu0 %v7986
    %8853 = vmatpush1.bf16.msra.mxu0 %v7985
    %8854 = vmatprep.subr.bf16.mxu0 %v7978
    %8855 = vmatpush1.bf16.msra.mxu0 %v7977
    %8856 = vmatprep.subr.bf16.mxu0 %v7970
    %8857 = vmatpush1.bf16.msra.mxu0 %v7969
    %8858 = vmatprep.subr.bf16.mxu0 %v7962
    %8859 = vmatpush1.bf16.msra.mxu0 %v7961
    %8860 = vmatprep.subr.bf16.mxu0 %v7954
    %8861 = vmatpush1.bf16.msra.mxu0 %v7953
    %8862 = vmatprep.subr.bf16.mxu0 %v7946
    %8863 = vmatpush1.bf16.msra.mxu0 %v7945
    %8864 = vmatprep.subr.bf16.mxu0 %v7938
    %8865 = vmatpush1.bf16.msra.mxu0 %v7937
    %8866 = vmatprep.subr.bf16.mxu0 %v7930
    %8867 = vmatpush1.bf16.msra.mxu0 %v7929
    %8868 = vmatprep.subr.bf16.mxu0 %v8050
    %8869 = vmatpush2.bf16.msra.mxu0 %v8049
    %8870 = vmatprep.subr.bf16.mxu0 %v8042
    %8871 = vmatpush2.bf16.msra.mxu0 %v8041
    %8872 = vmatprep.subr.bf16.mxu0 %v8034
    %8873 = vmatpush2.bf16.msra.mxu0 %v8033
    %8874 = vmatprep.subr.bf16.mxu0 %v8026
    %8875 = vmatpush2.bf16.msra.mxu0 %v8025
    %8876 = vmatprep.subr.bf16.mxu0 %v8018
    %8877 = vmatpush2.bf16.msra.mxu0 %v8017
    %8878 = vmatprep.subr.bf16.mxu0 %v8010
    %8879 = vmatpush2.bf16.msra.mxu0 %v8009
    %8880 = vmatprep.subr.bf16.mxu0 %v8002
    %8881 = vmatpush2.bf16.msra.mxu0 %v8001
    %8882 = vmatprep.subr.bf16.mxu0 %v7994
    %8883 = vmatpush2.bf16.msra.mxu0 %v7993
    %8884 = vmatprep.mubr.bf16.mxu0 %v6258
    %8885 = vmatmul.mubr.bf16.gmra.mxu0 %v6257
    %v8886 = vpop.f32.mrf.mxu0
    %v8887 = vadd.f32 %v8846, %v8886
    %v8888 = vpop.f32.mrf.mxu0
    %v8889 = vadd.f32 %v8848, %v8888
    %v8890 = vpop.f32.mrf.mxu0
    %v8891 = vpop.f32.mrf.mxu0
    %8892 = vdwg.mxu0
    %8893 = vmatprep.subr.bf16.mxu0 %v8114
    %8894 = vmatpush1.bf16.msra.mxu0 %v8113
    %8895 = vmatprep.subr.bf16.mxu0 %v8106
    %8896 = vmatpush1.bf16.msra.mxu0 %v8105
    %8897 = vmatprep.subr.bf16.mxu0 %v8098
    %8898 = vmatpush1.bf16.msra.mxu0 %v8097
    %8899 = vmatprep.subr.bf16.mxu0 %v8090
    %8900 = vmatpush1.bf16.msra.mxu0 %v8089
    %8901 = vmatprep.subr.bf16.mxu0 %v8082
    %8902 = vmatpush1.bf16.msra.mxu0 %v8081
    %8903 = vmatprep.subr.bf16.mxu0 %v8074
    %8904 = vmatpush1.bf16.msra.mxu0 %v8073
    %8905 = vmatprep.subr.bf16.mxu0 %v8066
    %8906 = vmatpush1.bf16.msra.mxu0 %v8065
    %8907 = vmatprep.subr.bf16.mxu0 %v8058
    %8908 = vmatpush1.bf16.msra.mxu0 %v8057
    %8909 = vmatprep.subr.bf16.mxu0 %v8178
    %8910 = vmatpush2.bf16.msra.mxu0 %v8177
    %8911 = vmatprep.subr.bf16.mxu0 %v8170
    %8912 = vmatpush2.bf16.msra.mxu0 %v8169
    %8913 = vmatprep.subr.bf16.mxu0 %v8162
    %8914 = vmatpush2.bf16.msra.mxu0 %v8161
    %8915 = vmatprep.subr.bf16.mxu0 %v8154
    %8916 = vmatpush2.bf16.msra.mxu0 %v8153
    %8917 = vmatprep.subr.bf16.mxu0 %v8146
    %8918 = vmatpush2.bf16.msra.mxu0 %v8145
    %8919 = vmatprep.subr.bf16.mxu0 %v8138
    %8920 = vmatpush2.bf16.msra.mxu0 %v8137
    %8921 = vmatprep.subr.bf16.mxu0 %v8130
    %8922 = vmatpush2.bf16.msra.mxu0 %v8129
    %8923 = vmatprep.subr.bf16.mxu0 %v8122
    %8924 = vmatpush2.bf16.msra.mxu0 %v8121
    %8925 = vmatprep.mubr.bf16.mxu0 %v6260
    %8926 = vmatmul.mubr.bf16.gmra.mxu0 %v6259
    %v8927 = vpop.f32.mrf.mxu0
    %v8928 = vadd.f32 %v8887, %v8927
    %v8929 = vpop.f32.mrf.mxu0
    %v8930 = vadd.f32 %v8889, %v8929
    %v8931 = vpop.f32.mrf.mxu0
    %v8932 = vpop.f32.mrf.mxu0
    %8933 = vdwg.mxu0
    %8934 = vmatprep.subr.bf16.mxu0 %v7860
    %8935 = vmatpush1.bf16.msra.mxu0 %v7859
    %8936 = vmatprep.subr.bf16.mxu0 %v7852
    %8937 = vmatpush1.bf16.msra.mxu0 %v7851
    %8938 = vmatprep.subr.bf16.mxu0 %v7844
    %8939 = vmatpush1.bf16.msra.mxu0 %v7843
    %8940 = vmatprep.subr.bf16.mxu0 %v7836
    %8941 = vmatpush1.bf16.msra.mxu0 %v7835
    %8942 = vmatprep.subr.bf16.mxu0 %v7828
    %8943 = vmatpush1.bf16.msra.mxu0 %v7827
    %8944 = vmatprep.subr.bf16.mxu0 %v7820
    %8945 = vmatpush1.bf16.msra.mxu0 %v7819
    %8946 = vmatprep.subr.bf16.mxu0 %v7812
    %8947 = vmatpush1.bf16.msra.mxu0 %v7811
    %8948 = vmatprep.subr.bf16.mxu0 %v7804
    %8949 = vmatpush1.bf16.msra.mxu0 %v7803
    %8950 = vmatprep.subr.bf16.mxu0 %v7924
    %8951 = vmatpush2.bf16.msra.mxu0 %v7923
    %8952 = vmatprep.subr.bf16.mxu0 %v7916
    %8953 = vmatpush2.bf16.msra.mxu0 %v7915
    %8954 = vmatprep.subr.bf16.mxu0 %v7908
    %8955 = vmatpush2.bf16.msra.mxu0 %v7907
    %8956 = vmatprep.subr.bf16.mxu0 %v7900
    %8957 = vmatpush2.bf16.msra.mxu0 %v7899
    %8958 = vmatprep.subr.bf16.mxu0 %v7892
    %8959 = vmatpush2.bf16.msra.mxu0 %v7891
    %8960 = vmatprep.subr.bf16.mxu0 %v7884
    %8961 = vmatpush2.bf16.msra.mxu0 %v7883
    %8962 = vmatprep.subr.bf16.mxu0 %v7876
    %8963 = vmatpush2.bf16.msra.mxu0 %v7875
    %8964 = vmatprep.subr.bf16.mxu0 %v7868
    %8965 = vmatpush2.bf16.msra.mxu0 %v7867
    %8966 = vmatprep.mubr.bf16.mxu0 %v6256
    %8967 = vmatmul.mubr.bf16.gmra.mxu0 %v6255
    %v8968 = vpop.f32.mrf.mxu0
    %v8969 = vadd.f32 0.0, %v8968
    %v8970 = vpop.f32.mrf.mxu0
    %v8971 = vadd.f32 0.0, %v8970
    %v8972 = vpop.f32.mrf.mxu0
    %v8973 = vpop.f32.mrf.mxu0
    %8974 = vdwg.mxu0
    %8975 = vmatprep.subr.bf16.mxu0 %v7988
    %8976 = vmatpush1.bf16.msra.mxu0 %v7987
    %8977 = vmatprep.subr.bf16.mxu0 %v7980
    %8978 = vmatpush1.bf16.msra.mxu0 %v7979
    %8979 = vmatprep.subr.bf16.mxu0 %v7972
    %8980 = vmatpush1.bf16.msra.mxu0 %v7971
    %8981 = vmatprep.subr.bf16.mxu0 %v7964
    %8982 = vmatpush1.bf16.msra.mxu0 %v7963
    %8983 = vmatprep.subr.bf16.mxu0 %v7956
    %8984 = vmatpush1.bf16.msra.mxu0 %v7955
    %8985 = vmatprep.subr.bf16.mxu0 %v7948
    %8986 = vmatpush1.bf16.msra.mxu0 %v7947
    %8987 = vmatprep.subr.bf16.mxu0 %v7940
    %8988 = vmatpush1.bf16.msra.mxu0 %v7939
    %8989 = vmatprep.subr.bf16.mxu0 %v7932
    %8990 = vmatpush1.bf16.msra.mxu0 %v7931
    %8991 = vmatprep.subr.bf16.mxu0 %v8052
    %8992 = vmatpush2.bf16.msra.mxu0 %v8051
    %8993 = vmatprep.subr.bf16.mxu0 %v8044
    %8994 = vmatpush2.bf16.msra.mxu0 %v8043
    %8995 = vmatprep.subr.bf16.mxu0 %v8036
    %8996 = vmatpush2.bf16.msra.mxu0 %v8035
    %8997 = vmatprep.subr.bf16.mxu0 %v8028
    %8998 = vmatpush2.bf16.msra.mxu0 %v8027
    %8999 = vmatprep.subr.bf16.mxu0 %v8020
    %9000 = vmatpush2.bf16.msra.mxu0 %v8019
    %9001 = vmatprep.subr.bf16.mxu0 %v8012
    %9002 = vmatpush2.bf16.msra.mxu0 %v8011
    %9003 = vmatprep.subr.bf16.mxu0 %v8004
    %9004 = vmatpush2.bf16.msra.mxu0 %v8003
    %9005 = vmatprep.subr.bf16.mxu0 %v7996
    %9006 = vmatpush2.bf16.msra.mxu0 %v7995
    %9007 = vmatprep.mubr.bf16.mxu0 %v6258
    %9008 = vmatmul.mubr.bf16.gmra.mxu0 %v6257
    %v9009 = vpop.f32.mrf.mxu0
    %v9010 = vadd.f32 %v8969, %v9009
    %v9011 = vpop.f32.mrf.mxu0
    %v9012 = vadd.f32 %v8971, %v9011
    %v9013 = vpop.f32.mrf.mxu0
    %v9014 = vpop.f32.mrf.mxu0
    %9015 = vdwg.mxu0
    %9016 = vmatprep.subr.bf16.mxu0 %v8116
    %9017 = vmatpush1.bf16.msra.mxu0 %v8115
    %9018 = vmatprep.subr.bf16.mxu0 %v8108
    %9019 = vmatpush1.bf16.msra.mxu0 %v8107
    %9020 = vmatprep.subr.bf16.mxu0 %v8100
    %9021 = vmatpush1.bf16.msra.mxu0 %v8099
    %9022 = vmatprep.subr.bf16.mxu0 %v8092
    %9023 = vmatpush1.bf16.msra.mxu0 %v8091
    %9024 = vmatprep.subr.bf16.mxu0 %v8084
    %9025 = vmatpush1.bf16.msra.mxu0 %v8083
    %9026 = vmatprep.subr.bf16.mxu0 %v8076
    %9027 = vmatpush1.bf16.msra.mxu0 %v8075
    %9028 = vmatprep.subr.bf16.mxu0 %v8068
    %9029 = vmatpush1.bf16.msra.mxu0 %v8067
    %9030 = vmatprep.subr.bf16.mxu0 %v8060
    %9031 = vmatpush1.bf16.msra.mxu0 %v8059
    %9032 = vmatprep.subr.bf16.mxu0 %v8180
    %9033 = vmatpush2.bf16.msra.mxu0 %v8179
    %9034 = vmatprep.subr.bf16.mxu0 %v8172
    %9035 = vmatpush2.bf16.msra.mxu0 %v8171
    %9036 = vmatprep.subr.bf16.mxu0 %v8164
    %9037 = vmatpush2.bf16.msra.mxu0 %v8163
    %9038 = vmatprep.subr.bf16.mxu0 %v8156
    %9039 = vmatpush2.bf16.msra.mxu0 %v8155
    %9040 = vmatprep.subr.bf16.mxu0 %v8148
    %9041 = vmatpush2.bf16.msra.mxu0 %v8147
    %9042 = vmatprep.subr.bf16.mxu0 %v8140
    %9043 = vmatpush2.bf16.msra.mxu0 %v8139
    %9044 = vmatprep.subr.bf16.mxu0 %v8132
    %9045 = vmatpush2.bf16.msra.mxu0 %v8131
    %9046 = vmatprep.subr.bf16.mxu0 %v8124
    %9047 = vmatpush2.bf16.msra.mxu0 %v8123
    %9048 = vmatprep.mubr.bf16.mxu0 %v6260
    %9049 = vmatmul.mubr.bf16.gmra.mxu0 %v6259
    %v9050 = vpop.f32.mrf.mxu0
    %v9051 = vadd.f32 %v9010, %v9050
    %v9052 = vpop.f32.mrf.mxu0
    %v9053 = vadd.f32 %v9012, %v9052
    %v9054 = vpop.f32.mrf.mxu0
    %v9055 = vpop.f32.mrf.mxu0
    %9056 = vdwg.mxu0
    %v9441 = vunpack.c.l.b16 %v5871
    %v9442 = vunpack.c.h.b16 %v5871
    %v9443 = vunpack.c.l.b16 %v5872
    %v9444 = vunpack.c.h.b16 %v5872
    %v9445 = vunpack.c.l.b16 %v5873
    %v9446 = vunpack.c.h.b16 %v5873
    %v9447 = vunpack.c.l.b16 %v5874
    %v9448 = vunpack.c.h.b16 %v5874
    %v9449 = vunpack.c.l.b16 %v5875
    %v9450 = vunpack.c.h.b16 %v5875
    %v9451 = vunpack.c.l.b16 %v5876
    %v9452 = vunpack.c.h.b16 %v5876
    %v9453 = vunpack.c.l.b16 %v5877
    %v9454 = vunpack.c.h.b16 %v5877
    %v9455 = vunpack.c.l.b16 %v5878
    %v9456 = vunpack.c.h.b16 %v5878
    %v9457 = vunpack.c.l.b16 %v5879
    %v9458 = vunpack.c.h.b16 %v5879
    %v9459 = vunpack.c.l.b16 %v5880
    %v9460 = vunpack.c.h.b16 %v5880
    %v9461 = vunpack.c.l.b16 %v5881
    %v9462 = vunpack.c.h.b16 %v5881
    %v9463 = vunpack.c.l.b16 %v5882
    %v9464 = vunpack.c.h.b16 %v5882
    %v9465 = vunpack.c.l.b16 %v5883
    %v9466 = vunpack.c.h.b16 %v5883
    %v9467 = vunpack.c.l.b16 %v5884
    %v9468 = vunpack.c.h.b16 %v5884
    %v9469 = vunpack.c.l.b16 %v5885
    %v9470 = vunpack.c.h.b16 %v5885
    %v9471 = vunpack.c.l.b16 %v5886
    %v9472 = vunpack.c.h.b16 %v5886
    %v9473 = vunpack.c.l.b16 %v5887
    %v9474 = vunpack.c.h.b16 %v5887
    %v9475 = vunpack.c.l.b16 %v5888
    %v9476 = vunpack.c.h.b16 %v5888
    %v9477 = vunpack.c.l.b16 %v5889
    %v9478 = vunpack.c.h.b16 %v5889
    %v9479 = vunpack.c.l.b16 %v5890
    %v9480 = vunpack.c.h.b16 %v5890
    %v9481 = vunpack.c.l.b16 %v5891
    %v9482 = vunpack.c.h.b16 %v5891
    %v9483 = vunpack.c.l.b16 %v5892
    %v9484 = vunpack.c.h.b16 %v5892
    %v9485 = vunpack.c.l.b16 %v5893
    %v9486 = vunpack.c.h.b16 %v5893
    %v9487 = vunpack.c.l.b16 %v5894
    %v9488 = vunpack.c.h.b16 %v5894
    %v9489 = vunpack.c.l.b16 %v5895
    %v9490 = vunpack.c.h.b16 %v5895
    %v9491 = vunpack.c.l.b16 %v5896
    %v9492 = vunpack.c.h.b16 %v5896
    %v9493 = vunpack.c.l.b16 %v5897
    %v9494 = vunpack.c.h.b16 %v5897
    %v9495 = vunpack.c.l.b16 %v5898
    %v9496 = vunpack.c.h.b16 %v5898
    %v9497 = vunpack.c.l.b16 %v5899
    %v9498 = vunpack.c.h.b16 %v5899
    %v9499 = vunpack.c.l.b16 %v5900
    %v9500 = vunpack.c.h.b16 %v5900
    %v9501 = vunpack.c.l.b16 %v5901
    %v9502 = vunpack.c.h.b16 %v5901
    %v9503 = vunpack.c.l.b16 %v5902
    %v9504 = vunpack.c.h.b16 %v5902
    %v9505 = vunpack.c.l.b16 %v5903
    %v9506 = vunpack.c.h.b16 %v5903
    %v9507 = vunpack.c.l.b16 %v5904
    %v9508 = vunpack.c.h.b16 %v5904
    %v9509 = vunpack.c.l.b16 %v5905
    %v9510 = vunpack.c.h.b16 %v5905
    %v9511 = vunpack.c.l.b16 %v5906
    %v9512 = vunpack.c.h.b16 %v5906
    %v9513 = vunpack.c.l.b16 %v5907
    %v9514 = vunpack.c.h.b16 %v5907
    %v9515 = vunpack.c.l.b16 %v5908
    %v9516 = vunpack.c.h.b16 %v5908
    %v9517 = vunpack.c.l.b16 %v5909
    %v9518 = vunpack.c.h.b16 %v5909
    %v9519 = vunpack.c.l.b16 %v5910
    %v9520 = vunpack.c.h.b16 %v5910
    %v9521 = vunpack.c.l.b16 %v5911
    %v9522 = vunpack.c.h.b16 %v5911
    %v9523 = vunpack.c.l.b16 %v5912
    %v9524 = vunpack.c.h.b16 %v5912
    %v9525 = vunpack.c.l.b16 %v5913
    %v9526 = vunpack.c.h.b16 %v5913
    %v9527 = vunpack.c.l.b16 %v5914
    %v9528 = vunpack.c.h.b16 %v5914
    %v9529 = vunpack.c.l.b16 %v5915
    %v9530 = vunpack.c.h.b16 %v5915
    %v9531 = vunpack.c.l.b16 %v5916
    %v9532 = vunpack.c.h.b16 %v5916
    %v9533 = vunpack.c.l.b16 %v5917
    %v9534 = vunpack.c.h.b16 %v5917
    %v9535 = vunpack.c.l.b16 %v5918
    %v9536 = vunpack.c.h.b16 %v5918
    %v9537 = vunpack.c.l.b16 %v5919
    %v9538 = vunpack.c.h.b16 %v5919
    %v9539 = vunpack.c.l.b16 %v5920
    %v9540 = vunpack.c.h.b16 %v5920
    %v9541 = vunpack.c.l.b16 %v5921
    %v9542 = vunpack.c.h.b16 %v5921
    %v9543 = vunpack.c.l.b16 %v5922
    %v9544 = vunpack.c.h.b16 %v5922
    %v9545 = vunpack.c.l.b16 %v5923
    %v9546 = vunpack.c.h.b16 %v5923
    %v9547 = vunpack.c.l.b16 %v5924
    %v9548 = vunpack.c.h.b16 %v5924
    %v9549 = vunpack.c.l.b16 %v5925
    %v9550 = vunpack.c.h.b16 %v5925
    %v9551 = vunpack.c.l.b16 %v5926
    %v9552 = vunpack.c.h.b16 %v5926
    %v9553 = vunpack.c.l.b16 %v5927
    %v9554 = vunpack.c.h.b16 %v5927
    %v9555 = vunpack.c.l.b16 %v5928
    %v9556 = vunpack.c.h.b16 %v5928
    %v9557 = vunpack.c.l.b16 %v5929
    %v9558 = vunpack.c.h.b16 %v5929
    %v9559 = vunpack.c.l.b16 %v5930
    %v9560 = vunpack.c.h.b16 %v5930
    %v9561 = vunpack.c.l.b16 %v5931
    %v9562 = vunpack.c.h.b16 %v5931
    %v9563 = vunpack.c.l.b16 %v5932
    %v9564 = vunpack.c.h.b16 %v5932
    %v9565 = vunpack.c.l.b16 %v5933
    %v9566 = vunpack.c.h.b16 %v5933
    %v9567 = vunpack.c.l.b16 %v5934
    %v9568 = vunpack.c.h.b16 %v5934
    %v9569 = vunpack.c.l.b16 %v5935
    %v9570 = vunpack.c.h.b16 %v5935
    %v9571 = vunpack.c.l.b16 %v5936
    %v9572 = vunpack.c.h.b16 %v5936
    %v9573 = vunpack.c.l.b16 %v5937
    %v9574 = vunpack.c.h.b16 %v5937
    %v9575 = vunpack.c.l.b16 %v5938
    %v9576 = vunpack.c.h.b16 %v5938
    %v9577 = vunpack.c.l.b16 %v5939
    %v9578 = vunpack.c.h.b16 %v5939
    %v9579 = vunpack.c.l.b16 %v5940
    %v9580 = vunpack.c.h.b16 %v5940
    %v9581 = vunpack.c.l.b16 %v5941
    %v9582 = vunpack.c.h.b16 %v5941
    %v9583 = vunpack.c.l.b16 %v5942
    %v9584 = vunpack.c.h.b16 %v5942
    %v9585 = vunpack.c.l.b16 %v5943
    %v9586 = vunpack.c.h.b16 %v5943
    %v9587 = vunpack.c.l.b16 %v5944
    %v9588 = vunpack.c.h.b16 %v5944
    %v9589 = vunpack.c.l.b16 %v5945
    %v9590 = vunpack.c.h.b16 %v5945
    %v9591 = vunpack.c.l.b16 %v5946
    %v9592 = vunpack.c.h.b16 %v5946
    %v9593 = vunpack.c.l.b16 %v5947
    %v9594 = vunpack.c.h.b16 %v5947
    %v9595 = vunpack.c.l.b16 %v5948
    %v9596 = vunpack.c.h.b16 %v5948
    %v9597 = vunpack.c.l.b16 %v5949
    %v9598 = vunpack.c.h.b16 %v5949
    %v9599 = vunpack.c.l.b16 %v5950
    %v9600 = vunpack.c.h.b16 %v5950
    %v9601 = vunpack.c.l.b16 %v5951
    %v9602 = vunpack.c.h.b16 %v5951
    %v9603 = vunpack.c.l.b16 %v5952
    %v9604 = vunpack.c.h.b16 %v5952
    %v9605 = vunpack.c.l.b16 %v5953
    %v9606 = vunpack.c.h.b16 %v5953
    %v9607 = vunpack.c.l.b16 %v5954
    %v9608 = vunpack.c.h.b16 %v5954
    %v9609 = vunpack.c.l.b16 %v5955
    %v9610 = vunpack.c.h.b16 %v5955
    %v9611 = vunpack.c.l.b16 %v5956
    %v9612 = vunpack.c.h.b16 %v5956
    %v9613 = vunpack.c.l.b16 %v5957
    %v9614 = vunpack.c.h.b16 %v5957
    %v9615 = vunpack.c.l.b16 %v5958
    %v9616 = vunpack.c.h.b16 %v5958
    %v9617 = vunpack.c.l.b16 %v5959
    %v9618 = vunpack.c.h.b16 %v5959
    %v9619 = vunpack.c.l.b16 %v5960
    %v9620 = vunpack.c.h.b16 %v5960
    %v9621 = vunpack.c.l.b16 %v5961
    %v9622 = vunpack.c.h.b16 %v5961
    %v9623 = vunpack.c.l.b16 %v5962
    %v9624 = vunpack.c.h.b16 %v5962
    %v9625 = vunpack.c.l.b16 %v5963
    %v9626 = vunpack.c.h.b16 %v5963
    %v9627 = vunpack.c.l.b16 %v5964
    %v9628 = vunpack.c.h.b16 %v5964
    %v9629 = vunpack.c.l.b16 %v5965
    %v9630 = vunpack.c.h.b16 %v5965
    %v9631 = vunpack.c.l.b16 %v5966
    %v9632 = vunpack.c.h.b16 %v5966
    %v9633 = vunpack.c.l.b16 %v5967
    %v9634 = vunpack.c.h.b16 %v5967
    %v9635 = vunpack.c.l.b16 %v5968
    %v9636 = vunpack.c.h.b16 %v5968
    %v9637 = vunpack.c.l.b16 %v5969
    %v9638 = vunpack.c.h.b16 %v5969
    %v9639 = vunpack.c.l.b16 %v5970
    %v9640 = vunpack.c.h.b16 %v5970
    %v9641 = vunpack.c.l.b16 %v5971
    %v9642 = vunpack.c.h.b16 %v5971
    %v9643 = vunpack.c.l.b16 %v5972
    %v9644 = vunpack.c.h.b16 %v5972
    %v9645 = vunpack.c.l.b16 %v5973
    %v9646 = vunpack.c.h.b16 %v5973
    %v9647 = vunpack.c.l.b16 %v5974
    %v9648 = vunpack.c.h.b16 %v5974
    %v9649 = vunpack.c.l.b16 %v5975
    %v9650 = vunpack.c.h.b16 %v5975
    %v9651 = vunpack.c.l.b16 %v5976
    %v9652 = vunpack.c.h.b16 %v5976
    %v9653 = vunpack.c.l.b16 %v5977
    %v9654 = vunpack.c.h.b16 %v5977
    %v9655 = vunpack.c.l.b16 %v5978
    %v9656 = vunpack.c.h.b16 %v5978
    %v9657 = vunpack.c.l.b16 %v5979
    %v9658 = vunpack.c.h.b16 %v5979
    %v9659 = vunpack.c.l.b16 %v5980
    %v9660 = vunpack.c.h.b16 %v5980
    %v9661 = vunpack.c.l.b16 %v5981
    %v9662 = vunpack.c.h.b16 %v5981
    %v9663 = vunpack.c.l.b16 %v5982
    %v9664 = vunpack.c.h.b16 %v5982
    %v9665 = vunpack.c.l.b16 %v5983
    %v9666 = vunpack.c.h.b16 %v5983
    %v9667 = vunpack.c.l.b16 %v5984
    %v9668 = vunpack.c.h.b16 %v5984
    %v9669 = vunpack.c.l.b16 %v5985
    %v9670 = vunpack.c.h.b16 %v5985
    %v9671 = vunpack.c.l.b16 %v5986
    %v9672 = vunpack.c.h.b16 %v5986
    %v9673 = vunpack.c.l.b16 %v5987
    %v9674 = vunpack.c.h.b16 %v5987
    %v9675 = vunpack.c.l.b16 %v5988
    %v9676 = vunpack.c.h.b16 %v5988
    %v9677 = vunpack.c.l.b16 %v5989
    %v9678 = vunpack.c.h.b16 %v5989
    %v9679 = vunpack.c.l.b16 %v5990
    %v9680 = vunpack.c.h.b16 %v5990
    %v9681 = vunpack.c.l.b16 %v5991
    %v9682 = vunpack.c.h.b16 %v5991
    %v9683 = vunpack.c.l.b16 %v5992
    %v9684 = vunpack.c.h.b16 %v5992
    %v9685 = vunpack.c.l.b16 %v5993
    %v9686 = vunpack.c.h.b16 %v5993
    %v9687 = vunpack.c.l.b16 %v5994
    %v9688 = vunpack.c.h.b16 %v5994
    %v9689 = vunpack.c.l.b16 %v5995
    %v9690 = vunpack.c.h.b16 %v5995
    %v9691 = vunpack.c.l.b16 %v5996
    %v9692 = vunpack.c.h.b16 %v5996
    %v9693 = vunpack.c.l.b16 %v5997
    %v9694 = vunpack.c.h.b16 %v5997
    %v9695 = vunpack.c.l.b16 %v5998
    %v9696 = vunpack.c.h.b16 %v5998
    %v9697 = vunpack.c.l.b16 %v5999
    %v9698 = vunpack.c.h.b16 %v5999
    %v9699 = vunpack.c.l.b16 %v6000
    %v9700 = vunpack.c.h.b16 %v6000
    %v9701 = vunpack.c.l.b16 %v6001
    %v9702 = vunpack.c.h.b16 %v6001
    %v9703 = vunpack.c.l.b16 %v6002
    %v9704 = vunpack.c.h.b16 %v6002
    %v9705 = vunpack.c.l.b16 %v6003
    %v9706 = vunpack.c.h.b16 %v6003
    %v9707 = vunpack.c.l.b16 %v6004
    %v9708 = vunpack.c.h.b16 %v6004
    %v9709 = vunpack.c.l.b16 %v6005
    %v9710 = vunpack.c.h.b16 %v6005
    %v9711 = vunpack.c.l.b16 %v6006
    %v9712 = vunpack.c.h.b16 %v6006
    %v9713 = vunpack.c.l.b16 %v6007
    %v9714 = vunpack.c.h.b16 %v6007
    %v9715 = vunpack.c.l.b16 %v6008
    %v9716 = vunpack.c.h.b16 %v6008
    %v9717 = vunpack.c.l.b16 %v6009
    %v9718 = vunpack.c.h.b16 %v6009
    %v9719 = vunpack.c.l.b16 %v6010
    %v9720 = vunpack.c.h.b16 %v6010
    %v9721 = vunpack.c.l.b16 %v6011
    %v9722 = vunpack.c.h.b16 %v6011
    %v9723 = vunpack.c.l.b16 %v6012
    %v9724 = vunpack.c.h.b16 %v6012
    %v9725 = vunpack.c.l.b16 %v6013
    %v9726 = vunpack.c.h.b16 %v6013
    %v9727 = vunpack.c.l.b16 %v6014
    %v9728 = vunpack.c.h.b16 %v6014
    %v9729 = vunpack.c.l.b16 %v6015
    %v9730 = vunpack.c.h.b16 %v6015
    %v9731 = vunpack.c.l.b16 %v6016
    %v9732 = vunpack.c.h.b16 %v6016
    %v9733 = vunpack.c.l.b16 %v6017
    %v9734 = vunpack.c.h.b16 %v6017
    %v9735 = vunpack.c.l.b16 %v6018
    %v9736 = vunpack.c.h.b16 %v6018
    %v9737 = vunpack.c.l.b16 %v6019
    %v9738 = vunpack.c.h.b16 %v6019
    %v9739 = vunpack.c.l.b16 %v6020
    %v9740 = vunpack.c.h.b16 %v6020
    %v9741 = vunpack.c.l.b16 %v6021
    %v9742 = vunpack.c.h.b16 %v6021
    %v9743 = vunpack.c.l.b16 %v6022
    %v9744 = vunpack.c.h.b16 %v6022
    %v9745 = vunpack.c.l.b16 %v6023
    %v9746 = vunpack.c.h.b16 %v6023
    %v9747 = vunpack.c.l.b16 %v6024
    %v9748 = vunpack.c.h.b16 %v6024
    %v9749 = vunpack.c.l.b16 %v6025
    %v9750 = vunpack.c.h.b16 %v6025
    %v9751 = vunpack.c.l.b16 %v6026
    %v9752 = vunpack.c.h.b16 %v6026
    %v9753 = vunpack.c.l.b16 %v6027
    %v9754 = vunpack.c.h.b16 %v6027
    %v9755 = vunpack.c.l.b16 %v6028
    %v9756 = vunpack.c.h.b16 %v6028
    %v9757 = vunpack.c.l.b16 %v6029
    %v9758 = vunpack.c.h.b16 %v6029
    %v9759 = vunpack.c.l.b16 %v6030
    %v9760 = vunpack.c.h.b16 %v6030
    %v9761 = vunpack.c.l.b16 %v6031
    %v9762 = vunpack.c.h.b16 %v6031
    %v9763 = vunpack.c.l.b16 %v6032
    %v9764 = vunpack.c.h.b16 %v6032
    %v9765 = vunpack.c.l.b16 %v6033
    %v9766 = vunpack.c.h.b16 %v6033
    %v9767 = vunpack.c.l.b16 %v6034
    %v9768 = vunpack.c.h.b16 %v6034
    %v9769 = vunpack.c.l.b16 %v6035
    %v9770 = vunpack.c.h.b16 %v6035
    %v9771 = vunpack.c.l.b16 %v6036
    %v9772 = vunpack.c.h.b16 %v6036
    %v9773 = vunpack.c.l.b16 %v6037
    %v9774 = vunpack.c.h.b16 %v6037
    %v9775 = vunpack.c.l.b16 %v6038
    %v9776 = vunpack.c.h.b16 %v6038
    %v9777 = vunpack.c.l.b16 %v6039
    %v9778 = vunpack.c.h.b16 %v6039
    %v9779 = vunpack.c.l.b16 %v6040
    %v9780 = vunpack.c.h.b16 %v6040
    %v9781 = vunpack.c.l.b16 %v6041
    %v9782 = vunpack.c.h.b16 %v6041
    %v9783 = vunpack.c.l.b16 %v6042
    %v9784 = vunpack.c.h.b16 %v6042
    %v9785 = vunpack.c.l.b16 %v6043
    %v9786 = vunpack.c.h.b16 %v6043
    %v9787 = vunpack.c.l.b16 %v6044
    %v9788 = vunpack.c.h.b16 %v6044
    %v9789 = vunpack.c.l.b16 %v6045
    %v9790 = vunpack.c.h.b16 %v6045
    %v9791 = vunpack.c.l.b16 %v6046
    %v9792 = vunpack.c.h.b16 %v6046
    %v9793 = vunpack.c.l.b16 %v6047
    %v9794 = vunpack.c.h.b16 %v6047
    %v9795 = vunpack.c.l.b16 %v6048
    %v9796 = vunpack.c.h.b16 %v6048
    %v9797 = vunpack.c.l.b16 %v6049
    %v9798 = vunpack.c.h.b16 %v6049
    %v9799 = vunpack.c.l.b16 %v6050
    %v9800 = vunpack.c.h.b16 %v6050
    %v9801 = vunpack.c.l.b16 %v6051
    %v9802 = vunpack.c.h.b16 %v6051
    %v9803 = vunpack.c.l.b16 %v6052
    %v9804 = vunpack.c.h.b16 %v6052
    %v9805 = vunpack.c.l.b16 %v6053
    %v9806 = vunpack.c.h.b16 %v6053
    %v9807 = vunpack.c.l.b16 %v6054
    %v9808 = vunpack.c.h.b16 %v6054
    %v9809 = vunpack.c.l.b16 %v6055
    %v9810 = vunpack.c.h.b16 %v6055
    %v9811 = vunpack.c.l.b16 %v6056
    %v9812 = vunpack.c.h.b16 %v6056
    %v9813 = vunpack.c.l.b16 %v6057
    %v9814 = vunpack.c.h.b16 %v6057
    %v9815 = vunpack.c.l.b16 %v6058
    %v9816 = vunpack.c.h.b16 %v6058
    %v9817 = vunpack.c.l.b16 %v6059
    %v9818 = vunpack.c.h.b16 %v6059
    %v9819 = vunpack.c.l.b16 %v6060
    %v9820 = vunpack.c.h.b16 %v6060
    %v9821 = vunpack.c.l.b16 %v6061
    %v9822 = vunpack.c.h.b16 %v6061
    %v9823 = vunpack.c.l.b16 %v6062
    %v9824 = vunpack.c.h.b16 %v6062
    %v9825 = vunpack.c.l.b16 %v6063
    %v9826 = vunpack.c.h.b16 %v6063
    %v9827 = vunpack.c.l.b16 %v6064
    %v9828 = vunpack.c.h.b16 %v6064
    %v9829 = vunpack.c.l.b16 %v6065
    %v9830 = vunpack.c.h.b16 %v6065
    %v9831 = vunpack.c.l.b16 %v6066
    %v9832 = vunpack.c.h.b16 %v6066
    %v9833 = vunpack.c.l.b16 %v6067
    %v9834 = vunpack.c.h.b16 %v6067
    %v9835 = vunpack.c.l.b16 %v6068
    %v9836 = vunpack.c.h.b16 %v6068
    %v9837 = vunpack.c.l.b16 %v6069
    %v9838 = vunpack.c.h.b16 %v6069
    %v9839 = vunpack.c.l.b16 %v6070
    %v9840 = vunpack.c.h.b16 %v6070
    %v9841 = vunpack.c.l.b16 %v6071
    %v9842 = vunpack.c.h.b16 %v6071
    %v9843 = vunpack.c.l.b16 %v6072
    %v9844 = vunpack.c.h.b16 %v6072
    %v9845 = vunpack.c.l.b16 %v6073
    %v9846 = vunpack.c.h.b16 %v6073
    %v9847 = vunpack.c.l.b16 %v6074
    %v9848 = vunpack.c.h.b16 %v6074
    %v9849 = vunpack.c.l.b16 %v6075
    %v9850 = vunpack.c.h.b16 %v6075
    %v9851 = vunpack.c.l.b16 %v6076
    %v9852 = vunpack.c.h.b16 %v6076
    %v9853 = vunpack.c.l.b16 %v6077
    %v9854 = vunpack.c.h.b16 %v6077
    %v9855 = vunpack.c.l.b16 %v6078
    %v9856 = vunpack.c.h.b16 %v6078
    %v9857 = vunpack.c.l.b16 %v6079
    %v9858 = vunpack.c.h.b16 %v6079
    %v9859 = vunpack.c.l.b16 %v6080
    %v9860 = vunpack.c.h.b16 %v6080
    %v9861 = vunpack.c.l.b16 %v6081
    %v9862 = vunpack.c.h.b16 %v6081
    %v9863 = vunpack.c.l.b16 %v6082
    %v9864 = vunpack.c.h.b16 %v6082
    %v9865 = vunpack.c.l.b16 %v6083
    %v9866 = vunpack.c.h.b16 %v6083
    %v9867 = vunpack.c.l.b16 %v6084
    %v9868 = vunpack.c.h.b16 %v6084
    %v9869 = vunpack.c.l.b16 %v6085
    %v9870 = vunpack.c.h.b16 %v6085
    %v9871 = vunpack.c.l.b16 %v6086
    %v9872 = vunpack.c.h.b16 %v6086
    %v9873 = vunpack.c.l.b16 %v6087
    %v9874 = vunpack.c.h.b16 %v6087
    %v9875 = vunpack.c.l.b16 %v6088
    %v9876 = vunpack.c.h.b16 %v6088
    %v9877 = vunpack.c.l.b16 %v6089
    %v9878 = vunpack.c.h.b16 %v6089
    %v9879 = vunpack.c.l.b16 %v6090
    %v9880 = vunpack.c.h.b16 %v6090
    %v9881 = vunpack.c.l.b16 %v6091
    %v9882 = vunpack.c.h.b16 %v6091
    %v9883 = vunpack.c.l.b16 %v6092
    %v9884 = vunpack.c.h.b16 %v6092
    %v9885 = vunpack.c.l.b16 %v6093
    %v9886 = vunpack.c.h.b16 %v6093
    %v9887 = vunpack.c.l.b16 %v6094
    %v9888 = vunpack.c.h.b16 %v6094
    %v9889 = vunpack.c.l.b16 %v6095
    %v9890 = vunpack.c.h.b16 %v6095
    %v9891 = vunpack.c.l.b16 %v6096
    %v9892 = vunpack.c.h.b16 %v6096
    %v9893 = vunpack.c.l.b16 %v6097
    %v9894 = vunpack.c.h.b16 %v6097
    %v9895 = vunpack.c.l.b16 %v6098
    %v9896 = vunpack.c.h.b16 %v6098
    %v9897 = vunpack.c.l.b16 %v6099
    %v9898 = vunpack.c.h.b16 %v6099
    %v9899 = vunpack.c.l.b16 %v6100
    %v9900 = vunpack.c.h.b16 %v6100
    %v9901 = vunpack.c.l.b16 %v6101
    %v9902 = vunpack.c.h.b16 %v6101
    %v9903 = vunpack.c.l.b16 %v6102
    %v9904 = vunpack.c.h.b16 %v6102
    %v9905 = vunpack.c.l.b16 %v6103
    %v9906 = vunpack.c.h.b16 %v6103
    %v9907 = vunpack.c.l.b16 %v6104
    %v9908 = vunpack.c.h.b16 %v6104
    %v9909 = vunpack.c.l.b16 %v6105
    %v9910 = vunpack.c.h.b16 %v6105
    %v9911 = vunpack.c.l.b16 %v6106
    %v9912 = vunpack.c.h.b16 %v6106
    %v9913 = vunpack.c.l.b16 %v6107
    %v9914 = vunpack.c.h.b16 %v6107
    %v9915 = vunpack.c.l.b16 %v6108
    %v9916 = vunpack.c.h.b16 %v6108
    %v9917 = vunpack.c.l.b16 %v6109
    %v9918 = vunpack.c.h.b16 %v6109
    %v9919 = vunpack.c.l.b16 %v6110
    %v9920 = vunpack.c.h.b16 %v6110
    %v9921 = vunpack.c.l.b16 %v6111
    %v9922 = vunpack.c.h.b16 %v6111
    %v9923 = vunpack.c.l.b16 %v6112
    %v9924 = vunpack.c.h.b16 %v6112
    %v9925 = vunpack.c.l.b16 %v6113
    %v9926 = vunpack.c.h.b16 %v6113
    %v9927 = vunpack.c.l.b16 %v6114
    %v9928 = vunpack.c.h.b16 %v6114
    %v9929 = vunpack.c.l.b16 %v6115
    %v9930 = vunpack.c.h.b16 %v6115
    %v9931 = vunpack.c.l.b16 %v6116
    %v9932 = vunpack.c.h.b16 %v6116
    %v9933 = vunpack.c.l.b16 %v6117
    %v9934 = vunpack.c.h.b16 %v6117
    %v9935 = vunpack.c.l.b16 %v6118
    %v9936 = vunpack.c.h.b16 %v6118
    %v9937 = vunpack.c.l.b16 %v6119
    %v9938 = vunpack.c.h.b16 %v6119
    %v9939 = vunpack.c.l.b16 %v6120
    %v9940 = vunpack.c.h.b16 %v6120
    %v9941 = vunpack.c.l.b16 %v6121
    %v9942 = vunpack.c.h.b16 %v6121
    %v9943 = vunpack.c.l.b16 %v6122
    %v9944 = vunpack.c.h.b16 %v6122
    %v9945 = vunpack.c.l.b16 %v6123
    %v9946 = vunpack.c.h.b16 %v6123
    %v9947 = vunpack.c.l.b16 %v6124
    %v9948 = vunpack.c.h.b16 %v6124
    %v9949 = vunpack.c.l.b16 %v6125
    %v9950 = vunpack.c.h.b16 %v6125
    %v9951 = vunpack.c.l.b16 %v6126
    %v9952 = vunpack.c.h.b16 %v6126
    %v9953 = vunpack.c.l.b16 %v6127
    %v9954 = vunpack.c.h.b16 %v6127
    %v9955 = vunpack.c.l.b16 %v6128
    %v9956 = vunpack.c.h.b16 %v6128
    %v9957 = vunpack.c.l.b16 %v6129
    %v9958 = vunpack.c.h.b16 %v6129
    %v9959 = vunpack.c.l.b16 %v6130
    %v9960 = vunpack.c.h.b16 %v6130
    %v9961 = vunpack.c.l.b16 %v6131
    %v9962 = vunpack.c.h.b16 %v6131
    %v9963 = vunpack.c.l.b16 %v6132
    %v9964 = vunpack.c.h.b16 %v6132
    %v9965 = vunpack.c.l.b16 %v6133
    %v9966 = vunpack.c.h.b16 %v6133
    %v9967 = vunpack.c.l.b16 %v6134
    %v9968 = vunpack.c.h.b16 %v6134
    %v9969 = vunpack.c.l.b16 %v6135
    %v9970 = vunpack.c.h.b16 %v6135
    %v9971 = vunpack.c.l.b16 %v6136
    %v9972 = vunpack.c.h.b16 %v6136
    %v9973 = vunpack.c.l.b16 %v6137
    %v9974 = vunpack.c.h.b16 %v6137
    %v9975 = vunpack.c.l.b16 %v6138
    %v9976 = vunpack.c.h.b16 %v6138
    %v9977 = vunpack.c.l.b16 %v6139
    %v9978 = vunpack.c.h.b16 %v6139
    %v9979 = vunpack.c.l.b16 %v6140
    %v9980 = vunpack.c.h.b16 %v6140
    %v9981 = vunpack.c.l.b16 %v6141
    %v9982 = vunpack.c.h.b16 %v6141
    %v9983 = vunpack.c.l.b16 %v6142
    %v9984 = vunpack.c.h.b16 %v6142
    %v9985 = vunpack.c.l.b16 %v6143
    %v9986 = vunpack.c.h.b16 %v6143
    %v9987 = vunpack.c.l.b16 %v6144
    %v9988 = vunpack.c.h.b16 %v6144
    %v9989 = vunpack.c.l.b16 %v6145
    %v9990 = vunpack.c.h.b16 %v6145
    %v9991 = vunpack.c.l.b16 %v6146
    %v9992 = vunpack.c.h.b16 %v6146
    %v9993 = vunpack.c.l.b16 %v6147
    %v9994 = vunpack.c.h.b16 %v6147
    %v9995 = vunpack.c.l.b16 %v6148
    %v9996 = vunpack.c.h.b16 %v6148
    %v9997 = vunpack.c.l.b16 %v6149
    %v9998 = vunpack.c.h.b16 %v6149
    %v9999 = vunpack.c.l.b16 %v6150
    %v10000 = vunpack.c.h.b16 %v6150
    %v10001 = vunpack.c.l.b16 %v6151
    %v10002 = vunpack.c.h.b16 %v6151
    %v10003 = vunpack.c.l.b16 %v6152
    %v10004 = vunpack.c.h.b16 %v6152
    %v10005 = vunpack.c.l.b16 %v6153
    %v10006 = vunpack.c.h.b16 %v6153
    %v10007 = vunpack.c.l.b16 %v6154
    %v10008 = vunpack.c.h.b16 %v6154
    %v10009 = vunpack.c.l.b16 %v6155
    %v10010 = vunpack.c.h.b16 %v6155
    %v10011 = vunpack.c.l.b16 %v6156
    %v10012 = vunpack.c.h.b16 %v6156
    %v10013 = vunpack.c.l.b16 %v6157
    %v10014 = vunpack.c.h.b16 %v6157
    %v10015 = vunpack.c.l.b16 %v6158
    %v10016 = vunpack.c.h.b16 %v6158
    %v10017 = vunpack.c.l.b16 %v6159
    %v10018 = vunpack.c.h.b16 %v6159
    %v10019 = vunpack.c.l.b16 %v6160
    %v10020 = vunpack.c.h.b16 %v6160
    %v10021 = vunpack.c.l.b16 %v6161
    %v10022 = vunpack.c.h.b16 %v6161
    %v10023 = vunpack.c.l.b16 %v6162
    %v10024 = vunpack.c.h.b16 %v6162
    %v10025 = vunpack.c.l.b16 %v6163
    %v10026 = vunpack.c.h.b16 %v6163
    %v10027 = vunpack.c.l.b16 %v6164
    %v10028 = vunpack.c.h.b16 %v6164
    %v10029 = vunpack.c.l.b16 %v6165
    %v10030 = vunpack.c.h.b16 %v6165
    %v10031 = vunpack.c.l.b16 %v6166
    %v10032 = vunpack.c.h.b16 %v6166
    %v10033 = vunpack.c.l.b16 %v6167
    %v10034 = vunpack.c.h.b16 %v6167
    %v10035 = vunpack.c.l.b16 %v6168
    %v10036 = vunpack.c.h.b16 %v6168
    %v10037 = vunpack.c.l.b16 %v6169
    %v10038 = vunpack.c.h.b16 %v6169
    %v10039 = vunpack.c.l.b16 %v6170
    %v10040 = vunpack.c.h.b16 %v6170
    %v10041 = vunpack.c.l.b16 %v6171
    %v10042 = vunpack.c.h.b16 %v6171
    %v10043 = vunpack.c.l.b16 %v6172
    %v10044 = vunpack.c.h.b16 %v6172
    %v10045 = vunpack.c.l.b16 %v6173
    %v10046 = vunpack.c.h.b16 %v6173
    %v10047 = vunpack.c.l.b16 %v6174
    %v10048 = vunpack.c.h.b16 %v6174
    %v10049 = vunpack.c.l.b16 %v6175
    %v10050 = vunpack.c.h.b16 %v6175
    %v10051 = vunpack.c.l.b16 %v6176
    %v10052 = vunpack.c.h.b16 %v6176
    %v10053 = vunpack.c.l.b16 %v6177
    %v10054 = vunpack.c.h.b16 %v6177
    %v10055 = vunpack.c.l.b16 %v6178
    %v10056 = vunpack.c.h.b16 %v6178
    %v10057 = vunpack.c.l.b16 %v6179
    %v10058 = vunpack.c.h.b16 %v6179
    %v10059 = vunpack.c.l.b16 %v6180
    %v10060 = vunpack.c.h.b16 %v6180
    %v10061 = vunpack.c.l.b16 %v6181
    %v10062 = vunpack.c.h.b16 %v6181
    %v10063 = vunpack.c.l.b16 %v6182
    %v10064 = vunpack.c.h.b16 %v6182
    %v10065 = vunpack.c.l.b16 %v6183
    %v10066 = vunpack.c.h.b16 %v6183
    %v10067 = vunpack.c.l.b16 %v6184
    %v10068 = vunpack.c.h.b16 %v6184
    %v10069 = vunpack.c.l.b16 %v6185
    %v10070 = vunpack.c.h.b16 %v6185
    %v10071 = vunpack.c.l.b16 %v6186
    %v10072 = vunpack.c.h.b16 %v6186
    %v10073 = vunpack.c.l.b16 %v6187
    %v10074 = vunpack.c.h.b16 %v6187
    %v10075 = vunpack.c.l.b16 %v6188
    %v10076 = vunpack.c.h.b16 %v6188
    %v10077 = vunpack.c.l.b16 %v6189
    %v10078 = vunpack.c.h.b16 %v6189
    %v10079 = vunpack.c.l.b16 %v6190
    %v10080 = vunpack.c.h.b16 %v6190
    %v10081 = vunpack.c.l.b16 %v6191
    %v10082 = vunpack.c.h.b16 %v6191
    %v10083 = vunpack.c.l.b16 %v6192
    %v10084 = vunpack.c.h.b16 %v6192
    %v10085 = vunpack.c.l.b16 %v6193
    %v10086 = vunpack.c.h.b16 %v6193
    %v10087 = vunpack.c.l.b16 %v6194
    %v10088 = vunpack.c.h.b16 %v6194
    %v10089 = vunpack.c.l.b16 %v6195
    %v10090 = vunpack.c.h.b16 %v6195
    %v10091 = vunpack.c.l.b16 %v6196
    %v10092 = vunpack.c.h.b16 %v6196
    %v10093 = vunpack.c.l.b16 %v6197
    %v10094 = vunpack.c.h.b16 %v6197
    %v10095 = vunpack.c.l.b16 %v6198
    %v10096 = vunpack.c.h.b16 %v6198
    %v10097 = vunpack.c.l.b16 %v6199
    %v10098 = vunpack.c.h.b16 %v6199
    %v10099 = vunpack.c.l.b16 %v6200
    %v10100 = vunpack.c.h.b16 %v6200
    %v10101 = vunpack.c.l.b16 %v6201
    %v10102 = vunpack.c.h.b16 %v6201
    %v10103 = vunpack.c.l.b16 %v6202
    %v10104 = vunpack.c.h.b16 %v6202
    %v10105 = vunpack.c.l.b16 %v6203
    %v10106 = vunpack.c.h.b16 %v6203
    %v10107 = vunpack.c.l.b16 %v6204
    %v10108 = vunpack.c.h.b16 %v6204
    %v10109 = vunpack.c.l.b16 %v6205
    %v10110 = vunpack.c.h.b16 %v6205
    %v10111 = vunpack.c.l.b16 %v6206
    %v10112 = vunpack.c.h.b16 %v6206
    %v10113 = vunpack.c.l.b16 %v6207
    %v10114 = vunpack.c.h.b16 %v6207
    %v10115 = vunpack.c.l.b16 %v6208
    %v10116 = vunpack.c.h.b16 %v6208
    %v10117 = vunpack.c.l.b16 %v6209
    %v10118 = vunpack.c.h.b16 %v6209
    %v10119 = vunpack.c.l.b16 %v6210
    %v10120 = vunpack.c.h.b16 %v6210
    %v10121 = vunpack.c.l.b16 %v6211
    %v10122 = vunpack.c.h.b16 %v6211
    %v10123 = vunpack.c.l.b16 %v6212
    %v10124 = vunpack.c.h.b16 %v6212
    %v10125 = vunpack.c.l.b16 %v6213
    %v10126 = vunpack.c.h.b16 %v6213
    %v10127 = vunpack.c.l.b16 %v6214
    %v10128 = vunpack.c.h.b16 %v6214
    %v10129 = vunpack.c.l.b16 %v6215
    %v10130 = vunpack.c.h.b16 %v6215
    %v10131 = vunpack.c.l.b16 %v6216
    %v10132 = vunpack.c.h.b16 %v6216
    %v10133 = vunpack.c.l.b16 %v6217
    %v10134 = vunpack.c.h.b16 %v6217
    %v10135 = vunpack.c.l.b16 %v6218
    %v10136 = vunpack.c.h.b16 %v6218
    %v10137 = vunpack.c.l.b16 %v6219
    %v10138 = vunpack.c.h.b16 %v6219
    %v10139 = vunpack.c.l.b16 %v6220
    %v10140 = vunpack.c.h.b16 %v6220
    %v10141 = vunpack.c.l.b16 %v6221
    %v10142 = vunpack.c.h.b16 %v6221
    %v10143 = vunpack.c.l.b16 %v6222
    %v10144 = vunpack.c.h.b16 %v6222
    %v10145 = vunpack.c.l.b16 %v6223
    %v10146 = vunpack.c.h.b16 %v6223
    %v10147 = vunpack.c.l.b16 %v6224
    %v10148 = vunpack.c.h.b16 %v6224
    %v10149 = vunpack.c.l.b16 %v6225
    %v10150 = vunpack.c.h.b16 %v6225
    %v10151 = vunpack.c.l.b16 %v6226
    %v10152 = vunpack.c.h.b16 %v6226
    %v10153 = vunpack.c.l.b16 %v6227
    %v10154 = vunpack.c.h.b16 %v6227
    %v10155 = vunpack.c.l.b16 %v6228
    %v10156 = vunpack.c.h.b16 %v6228
    %v10157 = vunpack.c.l.b16 %v6229
    %v10158 = vunpack.c.h.b16 %v6229
    %v10159 = vunpack.c.l.b16 %v6230
    %v10160 = vunpack.c.h.b16 %v6230
    %v10161 = vunpack.c.l.b16 %v6231
    %v10162 = vunpack.c.h.b16 %v6231
    %v10163 = vunpack.c.l.b16 %v6232
    %v10164 = vunpack.c.h.b16 %v6232
    %v10165 = vunpack.c.l.b16 %v6233
    %v10166 = vunpack.c.h.b16 %v6233
    %v10167 = vunpack.c.l.b16 %v6234
    %v10168 = vunpack.c.h.b16 %v6234
    %v10169 = vunpack.c.l.b16 %v6235
    %v10170 = vunpack.c.h.b16 %v6235
    %v10171 = vunpack.c.l.b16 %v6236
    %v10172 = vunpack.c.h.b16 %v6236
    %v10173 = vunpack.c.l.b16 %v6237
    %v10174 = vunpack.c.h.b16 %v6237
    %v10175 = vunpack.c.l.b16 %v6238
    %v10176 = vunpack.c.h.b16 %v6238
    %v10177 = vunpack.c.l.b16 %v6239
    %v10178 = vunpack.c.h.b16 %v6239
    %v10179 = vunpack.c.l.b16 %v6240
    %v10180 = vunpack.c.h.b16 %v6240
    %v10181 = vunpack.c.l.b16 %v6241
    %v10182 = vunpack.c.h.b16 %v6241
    %v10183 = vunpack.c.l.b16 %v6242
    %v10184 = vunpack.c.h.b16 %v6242
    %v10185 = vunpack.c.l.b16 %v6243
    %v10186 = vunpack.c.h.b16 %v6243
    %v10187 = vunpack.c.l.b16 %v6244
    %v10188 = vunpack.c.h.b16 %v6244
    %v10189 = vunpack.c.l.b16 %v6245
    %v10190 = vunpack.c.h.b16 %v6245
    %v10191 = vunpack.c.l.b16 %v6246
    %v10192 = vunpack.c.h.b16 %v6246
    %v10193 = vunpack.c.l.b16 %v6247
    %v10194 = vunpack.c.h.b16 %v6247
    %v10195 = vunpack.c.l.b16 %v6248
    %v10196 = vunpack.c.h.b16 %v6248
    %v10197 = vunpack.c.l.b16 %v6249
    %v10198 = vunpack.c.h.b16 %v6249
    %v10199 = vunpack.c.l.b16 %v6250
    %v10200 = vunpack.c.h.b16 %v6250
    %v10201 = vunpack.c.l.b16 %v6251
    %v10202 = vunpack.c.h.b16 %v6251
    %v10203 = vunpack.c.l.b16 %v6252
    %v10204 = vunpack.c.h.b16 %v6252
    %v10205 = vunpack.c.l.b16 %v6253
    %v10206 = vunpack.c.h.b16 %v6253
    %v10207 = vunpack.c.l.b16 %v6254
    %v10208 = vunpack.c.h.b16 %v6254
    %v10209 = vpack.c.b16 %v9449, %v9441
    %v10210 = vpack.c.b16 %v9450, %v9442
    %v10211 = vpack.c.b16 %v9451, %v9443
    %v10212 = vpack.c.b16 %v9452, %v9444
    %v10213 = vpack.c.b16 %v9453, %v9445
    %v10214 = vpack.c.b16 %v9454, %v9446
    %v10215 = vpack.c.b16 %v9455, %v9447
    %v10216 = vpack.c.b16 %v9456, %v9448
    %v10217 = vpack.c.b16 %v9465, %v9457
    %v10218 = vpack.c.b16 %v9466, %v9458
    %v10219 = vpack.c.b16 %v9467, %v9459
    %v10220 = vpack.c.b16 %v9468, %v9460
    %v10221 = vpack.c.b16 %v9469, %v9461
    %v10222 = vpack.c.b16 %v9470, %v9462
    %v10223 = vpack.c.b16 %v9471, %v9463
    %v10224 = vpack.c.b16 %v9472, %v9464
    %v10225 = vpack.c.b16 %v9481, %v9473
    %v10226 = vpack.c.b16 %v9482, %v9474
    %v10227 = vpack.c.b16 %v9483, %v9475
    %v10228 = vpack.c.b16 %v9484, %v9476
    %v10229 = vpack.c.b16 %v9485, %v9477
    %v10230 = vpack.c.b16 %v9486, %v9478
    %v10231 = vpack.c.b16 %v9487, %v9479
    %v10232 = vpack.c.b16 %v9488, %v9480
    %v10233 = vpack.c.b16 %v9497, %v9489
    %v10234 = vpack.c.b16 %v9498, %v9490
    %v10235 = vpack.c.b16 %v9499, %v9491
    %v10236 = vpack.c.b16 %v9500, %v9492
    %v10237 = vpack.c.b16 %v9501, %v9493
    %v10238 = vpack.c.b16 %v9502, %v9494
    %v10239 = vpack.c.b16 %v9503, %v9495
    %v10240 = vpack.c.b16 %v9504, %v9496
    %v10241 = vpack.c.b16 %v9513, %v9505
    %v10242 = vpack.c.b16 %v9514, %v9506
    %v10243 = vpack.c.b16 %v9515, %v9507
    %v10244 = vpack.c.b16 %v9516, %v9508
    %v10245 = vpack.c.b16 %v9517, %v9509
    %v10246 = vpack.c.b16 %v9518, %v9510
    %v10247 = vpack.c.b16 %v9519, %v9511
    %v10248 = vpack.c.b16 %v9520, %v9512
    %v10249 = vpack.c.b16 %v9529, %v9521
    %v10250 = vpack.c.b16 %v9530, %v9522
    %v10251 = vpack.c.b16 %v9531, %v9523
    %v10252 = vpack.c.b16 %v9532, %v9524
    %v10253 = vpack.c.b16 %v9533, %v9525
    %v10254 = vpack.c.b16 %v9534, %v9526
    %v10255 = vpack.c.b16 %v9535, %v9527
    %v10256 = vpack.c.b16 %v9536, %v9528
    %v10257 = vpack.c.b16 %v9545, %v9537
    %v10258 = vpack.c.b16 %v9546, %v9538
    %v10259 = vpack.c.b16 %v9547, %v9539
    %v10260 = vpack.c.b16 %v9548, %v9540
    %v10261 = vpack.c.b16 %v9549, %v9541
    %v10262 = vpack.c.b16 %v9550, %v9542
    %v10263 = vpack.c.b16 %v9551, %v9543
    %v10264 = vpack.c.b16 %v9552, %v9544
    %v10265 = vpack.c.b16 %v9561, %v9553
    %v10266 = vpack.c.b16 %v9562, %v9554
    %v10267 = vpack.c.b16 %v9563, %v9555
    %v10268 = vpack.c.b16 %v9564, %v9556
    %v10269 = vpack.c.b16 %v9565, %v9557
    %v10270 = vpack.c.b16 %v9566, %v9558
    %v10271 = vpack.c.b16 %v9567, %v9559
    %v10272 = vpack.c.b16 %v9568, %v9560
    %v10273 = vpack.c.b16 %v9577, %v9569
    %v10274 = vpack.c.b16 %v9578, %v9570
    %v10275 = vpack.c.b16 %v9579, %v9571
    %v10276 = vpack.c.b16 %v9580, %v9572
    %v10277 = vpack.c.b16 %v9581, %v9573
    %v10278 = vpack.c.b16 %v9582, %v9574
    %v10279 = vpack.c.b16 %v9583, %v9575
    %v10280 = vpack.c.b16 %v9584, %v9576
    %v10281 = vpack.c.b16 %v9593, %v9585
    %v10282 = vpack.c.b16 %v9594, %v9586
    %v10283 = vpack.c.b16 %v9595, %v9587
    %v10284 = vpack.c.b16 %v9596, %v9588
    %v10285 = vpack.c.b16 %v9597, %v9589
    %v10286 = vpack.c.b16 %v9598, %v9590
    %v10287 = vpack.c.b16 %v9599, %v9591
    %v10288 = vpack.c.b16 %v9600, %v9592
    %v10289 = vpack.c.b16 %v9609, %v9601
    %v10290 = vpack.c.b16 %v9610, %v9602
    %v10291 = vpack.c.b16 %v9611, %v9603
    %v10292 = vpack.c.b16 %v9612, %v9604
    %v10293 = vpack.c.b16 %v9613, %v9605
    %v10294 = vpack.c.b16 %v9614, %v9606
    %v10295 = vpack.c.b16 %v9615, %v9607
    %v10296 = vpack.c.b16 %v9616, %v9608
    %v10297 = vpack.c.b16 %v9625, %v9617
    %v10298 = vpack.c.b16 %v9626, %v9618
    %v10299 = vpack.c.b16 %v9627, %v9619
    %v10300 = vpack.c.b16 %v9628, %v9620
    %v10301 = vpack.c.b16 %v9629, %v9621
    %v10302 = vpack.c.b16 %v9630, %v9622
    %v10303 = vpack.c.b16 %v9631, %v9623
    %v10304 = vpack.c.b16 %v9632, %v9624
    %v10305 = vpack.c.b16 %v9641, %v9633
    %v10306 = vpack.c.b16 %v9642, %v9634
    %v10307 = vpack.c.b16 %v9643, %v9635
    %v10308 = vpack.c.b16 %v9644, %v9636
    %v10309 = vpack.c.b16 %v9645, %v9637
    %v10310 = vpack.c.b16 %v9646, %v9638
    %v10311 = vpack.c.b16 %v9647, %v9639
    %v10312 = vpack.c.b16 %v9648, %v9640
    %v10313 = vpack.c.b16 %v9657, %v9649
    %v10314 = vpack.c.b16 %v9658, %v9650
    %v10315 = vpack.c.b16 %v9659, %v9651
    %v10316 = vpack.c.b16 %v9660, %v9652
    %v10317 = vpack.c.b16 %v9661, %v9653
    %v10318 = vpack.c.b16 %v9662, %v9654
    %v10319 = vpack.c.b16 %v9663, %v9655
    %v10320 = vpack.c.b16 %v9664, %v9656
    %v10321 = vpack.c.b16 %v9673, %v9665
    %v10322 = vpack.c.b16 %v9674, %v9666
    %v10323 = vpack.c.b16 %v9675, %v9667
    %v10324 = vpack.c.b16 %v9676, %v9668
    %v10325 = vpack.c.b16 %v9677, %v9669
    %v10326 = vpack.c.b16 %v9678, %v9670
    %v10327 = vpack.c.b16 %v9679, %v9671
    %v10328 = vpack.c.b16 %v9680, %v9672
    %v10329 = vpack.c.b16 %v9689, %v9681
    %v10330 = vpack.c.b16 %v9690, %v9682
    %v10331 = vpack.c.b16 %v9691, %v9683
    %v10332 = vpack.c.b16 %v9692, %v9684
    %v10333 = vpack.c.b16 %v9693, %v9685
    %v10334 = vpack.c.b16 %v9694, %v9686
    %v10335 = vpack.c.b16 %v9695, %v9687
    %v10336 = vpack.c.b16 %v9696, %v9688
    %v10337 = vpack.c.b16 %v9705, %v9697
    %v10338 = vpack.c.b16 %v9706, %v9698
    %v10339 = vpack.c.b16 %v9707, %v9699
    %v10340 = vpack.c.b16 %v9708, %v9700
    %v10341 = vpack.c.b16 %v9709, %v9701
    %v10342 = vpack.c.b16 %v9710, %v9702
    %v10343 = vpack.c.b16 %v9711, %v9703
    %v10344 = vpack.c.b16 %v9712, %v9704
    %v10345 = vpack.c.b16 %v9721, %v9713
    %v10346 = vpack.c.b16 %v9722, %v9714
    %v10347 = vpack.c.b16 %v9723, %v9715
    %v10348 = vpack.c.b16 %v9724, %v9716
    %v10349 = vpack.c.b16 %v9725, %v9717
    %v10350 = vpack.c.b16 %v9726, %v9718
    %v10351 = vpack.c.b16 %v9727, %v9719
    %v10352 = vpack.c.b16 %v9728, %v9720
    %v10353 = vpack.c.b16 %v9737, %v9729
    %v10354 = vpack.c.b16 %v9738, %v9730
    %v10355 = vpack.c.b16 %v9739, %v9731
    %v10356 = vpack.c.b16 %v9740, %v9732
    %v10357 = vpack.c.b16 %v9741, %v9733
    %v10358 = vpack.c.b16 %v9742, %v9734
    %v10359 = vpack.c.b16 %v9743, %v9735
    %v10360 = vpack.c.b16 %v9744, %v9736
    %v10361 = vpack.c.b16 %v9753, %v9745
    %v10362 = vpack.c.b16 %v9754, %v9746
    %v10363 = vpack.c.b16 %v9755, %v9747
    %v10364 = vpack.c.b16 %v9756, %v9748
    %v10365 = vpack.c.b16 %v9757, %v9749
    %v10366 = vpack.c.b16 %v9758, %v9750
    %v10367 = vpack.c.b16 %v9759, %v9751
    %v10368 = vpack.c.b16 %v9760, %v9752
    %v10369 = vpack.c.b16 %v9769, %v9761
    %v10370 = vpack.c.b16 %v9770, %v9762
    %v10371 = vpack.c.b16 %v9771, %v9763
    %v10372 = vpack.c.b16 %v9772, %v9764
    %v10373 = vpack.c.b16 %v9773, %v9765
    %v10374 = vpack.c.b16 %v9774, %v9766
    %v10375 = vpack.c.b16 %v9775, %v9767
    %v10376 = vpack.c.b16 %v9776, %v9768
    %v10377 = vpack.c.b16 %v9785, %v9777
    %v10378 = vpack.c.b16 %v9786, %v9778
    %v10379 = vpack.c.b16 %v9787, %v9779
    %v10380 = vpack.c.b16 %v9788, %v9780
    %v10381 = vpack.c.b16 %v9789, %v9781
    %v10382 = vpack.c.b16 %v9790, %v9782
    %v10383 = vpack.c.b16 %v9791, %v9783
    %v10384 = vpack.c.b16 %v9792, %v9784
    %v10385 = vpack.c.b16 %v9801, %v9793
    %v10386 = vpack.c.b16 %v9802, %v9794
    %v10387 = vpack.c.b16 %v9803, %v9795
    %v10388 = vpack.c.b16 %v9804, %v9796
    %v10389 = vpack.c.b16 %v9805, %v9797
    %v10390 = vpack.c.b16 %v9806, %v9798
    %v10391 = vpack.c.b16 %v9807, %v9799
    %v10392 = vpack.c.b16 %v9808, %v9800
    %v10393 = vpack.c.b16 %v9817, %v9809
    %v10394 = vpack.c.b16 %v9818, %v9810
    %v10395 = vpack.c.b16 %v9819, %v9811
    %v10396 = vpack.c.b16 %v9820, %v9812
    %v10397 = vpack.c.b16 %v9821, %v9813
    %v10398 = vpack.c.b16 %v9822, %v9814
    %v10399 = vpack.c.b16 %v9823, %v9815
    %v10400 = vpack.c.b16 %v9824, %v9816
    %v10401 = vpack.c.b16 %v9833, %v9825
    %v10402 = vpack.c.b16 %v9834, %v9826
    %v10403 = vpack.c.b16 %v9835, %v9827
    %v10404 = vpack.c.b16 %v9836, %v9828
    %v10405 = vpack.c.b16 %v9837, %v9829
    %v10406 = vpack.c.b16 %v9838, %v9830
    %v10407 = vpack.c.b16 %v9839, %v9831
    %v10408 = vpack.c.b16 %v9840, %v9832
    %v10409 = vpack.c.b16 %v9849, %v9841
    %v10410 = vpack.c.b16 %v9850, %v9842
    %v10411 = vpack.c.b16 %v9851, %v9843
    %v10412 = vpack.c.b16 %v9852, %v9844
    %v10413 = vpack.c.b16 %v9853, %v9845
    %v10414 = vpack.c.b16 %v9854, %v9846
    %v10415 = vpack.c.b16 %v9855, %v9847
    %v10416 = vpack.c.b16 %v9856, %v9848
    %v10417 = vpack.c.b16 %v9865, %v9857
    %v10418 = vpack.c.b16 %v9866, %v9858
    %v10419 = vpack.c.b16 %v9867, %v9859
    %v10420 = vpack.c.b16 %v9868, %v9860
    %v10421 = vpack.c.b16 %v9869, %v9861
    %v10422 = vpack.c.b16 %v9870, %v9862
    %v10423 = vpack.c.b16 %v9871, %v9863
    %v10424 = vpack.c.b16 %v9872, %v9864
    %v10425 = vpack.c.b16 %v9881, %v9873
    %v10426 = vpack.c.b16 %v9882, %v9874
    %v10427 = vpack.c.b16 %v9883, %v9875
    %v10428 = vpack.c.b16 %v9884, %v9876
    %v10429 = vpack.c.b16 %v9885, %v9877
    %v10430 = vpack.c.b16 %v9886, %v9878
    %v10431 = vpack.c.b16 %v9887, %v9879
    %v10432 = vpack.c.b16 %v9888, %v9880
    %v10433 = vpack.c.b16 %v9897, %v9889
    %v10434 = vpack.c.b16 %v9898, %v9890
    %v10435 = vpack.c.b16 %v9899, %v9891
    %v10436 = vpack.c.b16 %v9900, %v9892
    %v10437 = vpack.c.b16 %v9901, %v9893
    %v10438 = vpack.c.b16 %v9902, %v9894
    %v10439 = vpack.c.b16 %v9903, %v9895
    %v10440 = vpack.c.b16 %v9904, %v9896
    %v10441 = vpack.c.b16 %v9913, %v9905
    %v10442 = vpack.c.b16 %v9914, %v9906
    %v10443 = vpack.c.b16 %v9915, %v9907
    %v10444 = vpack.c.b16 %v9916, %v9908
    %v10445 = vpack.c.b16 %v9917, %v9909
    %v10446 = vpack.c.b16 %v9918, %v9910
    %v10447 = vpack.c.b16 %v9919, %v9911
    %v10448 = vpack.c.b16 %v9920, %v9912
    %v10449 = vpack.c.b16 %v9929, %v9921
    %v10450 = vpack.c.b16 %v9930, %v9922
    %v10451 = vpack.c.b16 %v9931, %v9923
    %v10452 = vpack.c.b16 %v9932, %v9924
    %v10453 = vpack.c.b16 %v9933, %v9925
    %v10454 = vpack.c.b16 %v9934, %v9926
    %v10455 = vpack.c.b16 %v9935, %v9927
    %v10456 = vpack.c.b16 %v9936, %v9928
    %v10457 = vpack.c.b16 %v9945, %v9937
    %v10458 = vpack.c.b16 %v9946, %v9938
    %v10459 = vpack.c.b16 %v9947, %v9939
    %v10460 = vpack.c.b16 %v9948, %v9940
    %v10461 = vpack.c.b16 %v9949, %v9941
    %v10462 = vpack.c.b16 %v9950, %v9942
    %v10463 = vpack.c.b16 %v9951, %v9943
    %v10464 = vpack.c.b16 %v9952, %v9944
    %v10465 = vpack.c.b16 %v9961, %v9953
    %v10466 = vpack.c.b16 %v9962, %v9954
    %v10467 = vpack.c.b16 %v9963, %v9955
    %v10468 = vpack.c.b16 %v9964, %v9956
    %v10469 = vpack.c.b16 %v9965, %v9957
    %v10470 = vpack.c.b16 %v9966, %v9958
    %v10471 = vpack.c.b16 %v9967, %v9959
    %v10472 = vpack.c.b16 %v9968, %v9960
    %v10473 = vpack.c.b16 %v9977, %v9969
    %v10474 = vpack.c.b16 %v9978, %v9970
    %v10475 = vpack.c.b16 %v9979, %v9971
    %v10476 = vpack.c.b16 %v9980, %v9972
    %v10477 = vpack.c.b16 %v9981, %v9973
    %v10478 = vpack.c.b16 %v9982, %v9974
    %v10479 = vpack.c.b16 %v9983, %v9975
    %v10480 = vpack.c.b16 %v9984, %v9976
    %v10481 = vpack.c.b16 %v9993, %v9985
    %v10482 = vpack.c.b16 %v9994, %v9986
    %v10483 = vpack.c.b16 %v9995, %v9987
    %v10484 = vpack.c.b16 %v9996, %v9988
    %v10485 = vpack.c.b16 %v9997, %v9989
    %v10486 = vpack.c.b16 %v9998, %v9990
    %v10487 = vpack.c.b16 %v9999, %v9991
    %v10488 = vpack.c.b16 %v10000, %v9992
    %v10489 = vpack.c.b16 %v10009, %v10001
    %v10490 = vpack.c.b16 %v10010, %v10002
    %v10491 = vpack.c.b16 %v10011, %v10003
    %v10492 = vpack.c.b16 %v10012, %v10004
    %v10493 = vpack.c.b16 %v10013, %v10005
    %v10494 = vpack.c.b16 %v10014, %v10006
    %v10495 = vpack.c.b16 %v10015, %v10007
    %v10496 = vpack.c.b16 %v10016, %v10008
    %v10497 = vpack.c.b16 %v10025, %v10017
    %v10498 = vpack.c.b16 %v10026, %v10018
    %v10499 = vpack.c.b16 %v10027, %v10019
    %v10500 = vpack.c.b16 %v10028, %v10020
    %v10501 = vpack.c.b16 %v10029, %v10021
    %v10502 = vpack.c.b16 %v10030, %v10022
    %v10503 = vpack.c.b16 %v10031, %v10023
    %v10504 = vpack.c.b16 %v10032, %v10024
    %v10505 = vpack.c.b16 %v10041, %v10033
    %v10506 = vpack.c.b16 %v10042, %v10034
    %v10507 = vpack.c.b16 %v10043, %v10035
    %v10508 = vpack.c.b16 %v10044, %v10036
    %v10509 = vpack.c.b16 %v10045, %v10037
    %v10510 = vpack.c.b16 %v10046, %v10038
    %v10511 = vpack.c.b16 %v10047, %v10039
    %v10512 = vpack.c.b16 %v10048, %v10040
    %v10513 = vpack.c.b16 %v10057, %v10049
    %v10514 = vpack.c.b16 %v10058, %v10050
    %v10515 = vpack.c.b16 %v10059, %v10051
    %v10516 = vpack.c.b16 %v10060, %v10052
    %v10517 = vpack.c.b16 %v10061, %v10053
    %v10518 = vpack.c.b16 %v10062, %v10054
    %v10519 = vpack.c.b16 %v10063, %v10055
    %v10520 = vpack.c.b16 %v10064, %v10056
    %v10521 = vpack.c.b16 %v10073, %v10065
    %v10522 = vpack.c.b16 %v10074, %v10066
    %v10523 = vpack.c.b16 %v10075, %v10067
    %v10524 = vpack.c.b16 %v10076, %v10068
    %v10525 = vpack.c.b16 %v10077, %v10069
    %v10526 = vpack.c.b16 %v10078, %v10070
    %v10527 = vpack.c.b16 %v10079, %v10071
    %v10528 = vpack.c.b16 %v10080, %v10072
    %v10529 = vpack.c.b16 %v10089, %v10081
    %v10530 = vpack.c.b16 %v10090, %v10082
    %v10531 = vpack.c.b16 %v10091, %v10083
    %v10532 = vpack.c.b16 %v10092, %v10084
    %v10533 = vpack.c.b16 %v10093, %v10085
    %v10534 = vpack.c.b16 %v10094, %v10086
    %v10535 = vpack.c.b16 %v10095, %v10087
    %v10536 = vpack.c.b16 %v10096, %v10088
    %v10537 = vpack.c.b16 %v10105, %v10097
    %v10538 = vpack.c.b16 %v10106, %v10098
    %v10539 = vpack.c.b16 %v10107, %v10099
    %v10540 = vpack.c.b16 %v10108, %v10100
    %v10541 = vpack.c.b16 %v10109, %v10101
    %v10542 = vpack.c.b16 %v10110, %v10102
    %v10543 = vpack.c.b16 %v10111, %v10103
    %v10544 = vpack.c.b16 %v10112, %v10104
    %v10545 = vpack.c.b16 %v10121, %v10113
    %v10546 = vpack.c.b16 %v10122, %v10114
    %v10547 = vpack.c.b16 %v10123, %v10115
    %v10548 = vpack.c.b16 %v10124, %v10116
    %v10549 = vpack.c.b16 %v10125, %v10117
    %v10550 = vpack.c.b16 %v10126, %v10118
    %v10551 = vpack.c.b16 %v10127, %v10119
    %v10552 = vpack.c.b16 %v10128, %v10120
    %v10553 = vpack.c.b16 %v10137, %v10129
    %v10554 = vpack.c.b16 %v10138, %v10130
    %v10555 = vpack.c.b16 %v10139, %v10131
    %v10556 = vpack.c.b16 %v10140, %v10132
    %v10557 = vpack.c.b16 %v10141, %v10133
    %v10558 = vpack.c.b16 %v10142, %v10134
    %v10559 = vpack.c.b16 %v10143, %v10135
    %v10560 = vpack.c.b16 %v10144, %v10136
    %v10561 = vpack.c.b16 %v10153, %v10145
    %v10562 = vpack.c.b16 %v10154, %v10146
    %v10563 = vpack.c.b16 %v10155, %v10147
    %v10564 = vpack.c.b16 %v10156, %v10148
    %v10565 = vpack.c.b16 %v10157, %v10149
    %v10566 = vpack.c.b16 %v10158, %v10150
    %v10567 = vpack.c.b16 %v10159, %v10151
    %v10568 = vpack.c.b16 %v10160, %v10152
    %v10569 = vpack.c.b16 %v10169, %v10161
    %v10570 = vpack.c.b16 %v10170, %v10162
    %v10571 = vpack.c.b16 %v10171, %v10163
    %v10572 = vpack.c.b16 %v10172, %v10164
    %v10573 = vpack.c.b16 %v10173, %v10165
    %v10574 = vpack.c.b16 %v10174, %v10166
    %v10575 = vpack.c.b16 %v10175, %v10167
    %v10576 = vpack.c.b16 %v10176, %v10168
    %v10577 = vpack.c.b16 %v10185, %v10177
    %v10578 = vpack.c.b16 %v10186, %v10178
    %v10579 = vpack.c.b16 %v10187, %v10179
    %v10580 = vpack.c.b16 %v10188, %v10180
    %v10581 = vpack.c.b16 %v10189, %v10181
    %v10582 = vpack.c.b16 %v10190, %v10182
    %v10583 = vpack.c.b16 %v10191, %v10183
    %v10584 = vpack.c.b16 %v10192, %v10184
    %v10585 = vpack.c.b16 %v10201, %v10193
    %v10586 = vpack.c.b16 %v10202, %v10194
    %v10587 = vpack.c.b16 %v10203, %v10195
    %v10588 = vpack.c.b16 %v10204, %v10196
    %v10589 = vpack.c.b16 %v10205, %v10197
    %v10590 = vpack.c.b16 %v10206, %v10198
    %v10591 = vpack.c.b16 %v10207, %v10199
    %v10592 = vpack.c.b16 %v10208, %v10200
    %10977 = vmatprep.subr.bf16.mxu0 %v10266
    %10978 = vmatpush1.bf16.msra.mxu0 %v10265
    %10979 = vmatprep.subr.bf16.mxu0 %v10258
    %10980 = vmatpush1.bf16.msra.mxu0 %v10257
    %10981 = vmatprep.subr.bf16.mxu0 %v10250
    %10982 = vmatpush1.bf16.msra.mxu0 %v10249
    %10983 = vmatprep.subr.bf16.mxu0 %v10242
    %10984 = vmatpush1.bf16.msra.mxu0 %v10241
    %10985 = vmatprep.subr.bf16.mxu0 %v10234
    %10986 = vmatpush1.bf16.msra.mxu0 %v10233
    %10987 = vmatprep.subr.bf16.mxu0 %v10226
    %10988 = vmatpush1.bf16.msra.mxu0 %v10225
    %10989 = vmatprep.subr.bf16.mxu0 %v10218
    %10990 = vmatpush1.bf16.msra.mxu0 %v10217
    %10991 = vmatprep.subr.bf16.mxu0 %v10210
    %10992 = vmatpush1.bf16.msra.mxu0 %v10209
    %10993 = vmatprep.subr.bf16.mxu0 %v10330
    %10994 = vmatpush2.bf16.msra.mxu0 %v10329
    %10995 = vmatprep.subr.bf16.mxu0 %v10322
    %10996 = vmatpush2.bf16.msra.mxu0 %v10321
    %10997 = vmatprep.subr.bf16.mxu0 %v10314
    %10998 = vmatpush2.bf16.msra.mxu0 %v10313
    %10999 = vmatprep.subr.bf16.mxu0 %v10306
    %11000 = vmatpush2.bf16.msra.mxu0 %v10305
    %11001 = vmatprep.subr.bf16.mxu0 %v10298
    %11002 = vmatpush2.bf16.msra.mxu0 %v10297
    %11003 = vmatprep.subr.bf16.mxu0 %v10290
    %11004 = vmatpush2.bf16.msra.mxu0 %v10289
    %11005 = vmatprep.subr.bf16.mxu0 %v10282
    %11006 = vmatpush2.bf16.msra.mxu0 %v10281
    %11007 = vmatprep.subr.bf16.mxu0 %v10274
    %11008 = vmatpush2.bf16.msra.mxu0 %v10273
    %11009 = vmatprep.mubr.bf16.mxu0 %v5866
    %11010 = vmatmul.mubr.bf16.gmra.mxu0 %v5865
    %v11011 = vpop.f32.mrf.mxu0
    %v11012 = vadd.f32 %v8682, %v11011
    %v11013 = vpop.f32.mrf.mxu0
    %v11014 = vadd.f32 %v8684, %v11013
    %v11015 = vpop.f32.mrf.mxu0
    %v11016 = vpop.f32.mrf.mxu0
    %11017 = vdwg.mxu0
    %11018 = vmatprep.subr.bf16.mxu0 %v10394
    %11019 = vmatpush1.bf16.msra.mxu0 %v10393
    %11020 = vmatprep.subr.bf16.mxu0 %v10386
    %11021 = vmatpush1.bf16.msra.mxu0 %v10385
    %11022 = vmatprep.subr.bf16.mxu0 %v10378
    %11023 = vmatpush1.bf16.msra.mxu0 %v10377
    %11024 = vmatprep.subr.bf16.mxu0 %v10370
    %11025 = vmatpush1.bf16.msra.mxu0 %v10369
    %11026 = vmatprep.subr.bf16.mxu0 %v10362
    %11027 = vmatpush1.bf16.msra.mxu0 %v10361
    %11028 = vmatprep.subr.bf16.mxu0 %v10354
    %11029 = vmatpush1.bf16.msra.mxu0 %v10353
    %11030 = vmatprep.subr.bf16.mxu0 %v10346
    %11031 = vmatpush1.bf16.msra.mxu0 %v10345
    %11032 = vmatprep.subr.bf16.mxu0 %v10338
    %11033 = vmatpush1.bf16.msra.mxu0 %v10337
    %11034 = vmatprep.subr.bf16.mxu0 %v10458
    %11035 = vmatpush2.bf16.msra.mxu0 %v10457
    %11036 = vmatprep.subr.bf16.mxu0 %v10450
    %11037 = vmatpush2.bf16.msra.mxu0 %v10449
    %11038 = vmatprep.subr.bf16.mxu0 %v10442
    %11039 = vmatpush2.bf16.msra.mxu0 %v10441
    %11040 = vmatprep.subr.bf16.mxu0 %v10434
    %11041 = vmatpush2.bf16.msra.mxu0 %v10433
    %11042 = vmatprep.subr.bf16.mxu0 %v10426
    %11043 = vmatpush2.bf16.msra.mxu0 %v10425
    %11044 = vmatprep.subr.bf16.mxu0 %v10418
    %11045 = vmatpush2.bf16.msra.mxu0 %v10417
    %11046 = vmatprep.subr.bf16.mxu0 %v10410
    %11047 = vmatpush2.bf16.msra.mxu0 %v10409
    %11048 = vmatprep.subr.bf16.mxu0 %v10402
    %11049 = vmatpush2.bf16.msra.mxu0 %v10401
    %11050 = vmatprep.mubr.bf16.mxu0 %v5868
    %11051 = vmatmul.mubr.bf16.gmra.mxu0 %v5867
    %v11052 = vpop.f32.mrf.mxu0
    %v11053 = vadd.f32 %v11012, %v11052
    %v11054 = vpop.f32.mrf.mxu0
    %v11055 = vadd.f32 %v11014, %v11054
    %v11056 = vpop.f32.mrf.mxu0
    %v11057 = vpop.f32.mrf.mxu0
    %11058 = vdwg.mxu0
    %11059 = vmatprep.subr.bf16.mxu0 %v10522
    %11060 = vmatpush1.bf16.msra.mxu0 %v10521
    %11061 = vmatprep.subr.bf16.mxu0 %v10514
    %11062 = vmatpush1.bf16.msra.mxu0 %v10513
    %11063 = vmatprep.subr.bf16.mxu0 %v10506
    %11064 = vmatpush1.bf16.msra.mxu0 %v10505
    %11065 = vmatprep.subr.bf16.mxu0 %v10498
    %11066 = vmatpush1.bf16.msra.mxu0 %v10497
    %11067 = vmatprep.subr.bf16.mxu0 %v10490
    %11068 = vmatpush1.bf16.msra.mxu0 %v10489
    %11069 = vmatprep.subr.bf16.mxu0 %v10482
    %11070 = vmatpush1.bf16.msra.mxu0 %v10481
    %11071 = vmatprep.subr.bf16.mxu0 %v10474
    %11072 = vmatpush1.bf16.msra.mxu0 %v10473
    %11073 = vmatprep.subr.bf16.mxu0 %v10466
    %11074 = vmatpush1.bf16.msra.mxu0 %v10465
    %11075 = vmatprep.subr.bf16.mxu0 %v10586
    %11076 = vmatpush2.bf16.msra.mxu0 %v10585
    %11077 = vmatprep.subr.bf16.mxu0 %v10578
    %11078 = vmatpush2.bf16.msra.mxu0 %v10577
    %11079 = vmatprep.subr.bf16.mxu0 %v10570
    %11080 = vmatpush2.bf16.msra.mxu0 %v10569
    %11081 = vmatprep.subr.bf16.mxu0 %v10562
    %11082 = vmatpush2.bf16.msra.mxu0 %v10561
    %11083 = vmatprep.subr.bf16.mxu0 %v10554
    %11084 = vmatpush2.bf16.msra.mxu0 %v10553
    %11085 = vmatprep.subr.bf16.mxu0 %v10546
    %11086 = vmatpush2.bf16.msra.mxu0 %v10545
    %11087 = vmatprep.subr.bf16.mxu0 %v10538
    %11088 = vmatpush2.bf16.msra.mxu0 %v10537
    %11089 = vmatprep.subr.bf16.mxu0 %v10530
    %11090 = vmatpush2.bf16.msra.mxu0 %v10529
    %11091 = vmatprep.mubr.bf16.mxu0 %v5870
    %11092 = vmatmul.mubr.bf16.gmra.mxu0 %v5869
    %v11093 = vpop.f32.mrf.mxu0
    %v11094 = vadd.f32 %v11053, %v11093
    %v11095 = vpop.f32.mrf.mxu0
    %v11096 = vadd.f32 %v11055, %v11095
    %v11097 = vpop.f32.mrf.mxu0
    %v11098 = vpop.f32.mrf.mxu0
    %11099 = vdwg.mxu0
    %11100 = vmatprep.subr.bf16.mxu0 %v10268
    %11101 = vmatpush1.bf16.msra.mxu0 %v10267
    %11102 = vmatprep.subr.bf16.mxu0 %v10260
    %11103 = vmatpush1.bf16.msra.mxu0 %v10259
    %11104 = vmatprep.subr.bf16.mxu0 %v10252
    %11105 = vmatpush1.bf16.msra.mxu0 %v10251
    %11106 = vmatprep.subr.bf16.mxu0 %v10244
    %11107 = vmatpush1.bf16.msra.mxu0 %v10243
    %11108 = vmatprep.subr.bf16.mxu0 %v10236
    %11109 = vmatpush1.bf16.msra.mxu0 %v10235
    %11110 = vmatprep.subr.bf16.mxu0 %v10228
    %11111 = vmatpush1.bf16.msra.mxu0 %v10227
    %11112 = vmatprep.subr.bf16.mxu0 %v10220
    %11113 = vmatpush1.bf16.msra.mxu0 %v10219
    %11114 = vmatprep.subr.bf16.mxu0 %v10212
    %11115 = vmatpush1.bf16.msra.mxu0 %v10211
    %11116 = vmatprep.subr.bf16.mxu0 %v10332
    %11117 = vmatpush2.bf16.msra.mxu0 %v10331
    %11118 = vmatprep.subr.bf16.mxu0 %v10324
    %11119 = vmatpush2.bf16.msra.mxu0 %v10323
    %11120 = vmatprep.subr.bf16.mxu0 %v10316
    %11121 = vmatpush2.bf16.msra.mxu0 %v10315
    %11122 = vmatprep.subr.bf16.mxu0 %v10308
    %11123 = vmatpush2.bf16.msra.mxu0 %v10307
    %11124 = vmatprep.subr.bf16.mxu0 %v10300
    %11125 = vmatpush2.bf16.msra.mxu0 %v10299
    %11126 = vmatprep.subr.bf16.mxu0 %v10292
    %11127 = vmatpush2.bf16.msra.mxu0 %v10291
    %11128 = vmatprep.subr.bf16.mxu0 %v10284
    %11129 = vmatpush2.bf16.msra.mxu0 %v10283
    %11130 = vmatprep.subr.bf16.mxu0 %v10276
    %11131 = vmatpush2.bf16.msra.mxu0 %v10275
    %11132 = vmatprep.mubr.bf16.mxu0 %v5866
    %11133 = vmatmul.mubr.bf16.gmra.mxu0 %v5865
    %v11134 = vpop.f32.mrf.mxu0
    %v11135 = vadd.f32 %v8805, %v11134
    %v11136 = vpop.f32.mrf.mxu0
    %v11137 = vadd.f32 %v8807, %v11136
    %v11138 = vpop.f32.mrf.mxu0
    %v11139 = vpop.f32.mrf.mxu0
    %11140 = vdwg.mxu0
    %11141 = vmatprep.subr.bf16.mxu0 %v10396
    %11142 = vmatpush1.bf16.msra.mxu0 %v10395
    %11143 = vmatprep.subr.bf16.mxu0 %v10388
    %11144 = vmatpush1.bf16.msra.mxu0 %v10387
    %11145 = vmatprep.subr.bf16.mxu0 %v10380
    %11146 = vmatpush1.bf16.msra.mxu0 %v10379
    %11147 = vmatprep.subr.bf16.mxu0 %v10372
    %11148 = vmatpush1.bf16.msra.mxu0 %v10371
    %11149 = vmatprep.subr.bf16.mxu0 %v10364
    %11150 = vmatpush1.bf16.msra.mxu0 %v10363
    %11151 = vmatprep.subr.bf16.mxu0 %v10356
    %11152 = vmatpush1.bf16.msra.mxu0 %v10355
    %11153 = vmatprep.subr.bf16.mxu0 %v10348
    %11154 = vmatpush1.bf16.msra.mxu0 %v10347
    %11155 = vmatprep.subr.bf16.mxu0 %v10340
    %11156 = vmatpush1.bf16.msra.mxu0 %v10339
    %11157 = vmatprep.subr.bf16.mxu0 %v10460
    %11158 = vmatpush2.bf16.msra.mxu0 %v10459
    %11159 = vmatprep.subr.bf16.mxu0 %v10452
    %11160 = vmatpush2.bf16.msra.mxu0 %v10451
    %11161 = vmatprep.subr.bf16.mxu0 %v10444
    %11162 = vmatpush2.bf16.msra.mxu0 %v10443
    %11163 = vmatprep.subr.bf16.mxu0 %v10436
    %11164 = vmatpush2.bf16.msra.mxu0 %v10435
    %11165 = vmatprep.subr.bf16.mxu0 %v10428
    %11166 = vmatpush2.bf16.msra.mxu0 %v10427
    %11167 = vmatprep.subr.bf16.mxu0 %v10420
    %11168 = vmatpush2.bf16.msra.mxu0 %v10419
    %11169 = vmatprep.subr.bf16.mxu0 %v10412
    %11170 = vmatpush2.bf16.msra.mxu0 %v10411
    %11171 = vmatprep.subr.bf16.mxu0 %v10404
    %11172 = vmatpush2.bf16.msra.mxu0 %v10403
    %11173 = vmatprep.mubr.bf16.mxu0 %v5868
    %11174 = vmatmul.mubr.bf16.gmra.mxu0 %v5867
    %v11175 = vpop.f32.mrf.mxu0
    %v11176 = vadd.f32 %v11135, %v11175
    %v11177 = vpop.f32.mrf.mxu0
    %v11178 = vadd.f32 %v11137, %v11177
    %v11179 = vpop.f32.mrf.mxu0
    %v11180 = vpop.f32.mrf.mxu0
    %11181 = vdwg.mxu0
    %11182 = vmatprep.subr.bf16.mxu0 %v10524
    %11183 = vmatpush1.bf16.msra.mxu0 %v10523
    %11184 = vmatprep.subr.bf16.mxu0 %v10516
    %11185 = vmatpush1.bf16.msra.mxu0 %v10515
    %11186 = vmatprep.subr.bf16.mxu0 %v10508
    %11187 = vmatpush1.bf16.msra.mxu0 %v10507
    %11188 = vmatprep.subr.bf16.mxu0 %v10500
    %11189 = vmatpush1.bf16.msra.mxu0 %v10499
    %11190 = vmatprep.subr.bf16.mxu0 %v10492
    %11191 = vmatpush1.bf16.msra.mxu0 %v10491
    %11192 = vmatprep.subr.bf16.mxu0 %v10484
    %11193 = vmatpush1.bf16.msra.mxu0 %v10483
    %11194 = vmatprep.subr.bf16.mxu0 %v10476
    %11195 = vmatpush1.bf16.msra.mxu0 %v10475
    %11196 = vmatprep.subr.bf16.mxu0 %v10468
    %11197 = vmatpush1.bf16.msra.mxu0 %v10467
    %11198 = vmatprep.subr.bf16.mxu0 %v10588
    %11199 = vmatpush2.bf16.msra.mxu0 %v10587
    %11200 = vmatprep.subr.bf16.mxu0 %v10580
    %11201 = vmatpush2.bf16.msra.mxu0 %v10579
    %11202 = vmatprep.subr.bf16.mxu0 %v10572
    %11203 = vmatpush2.bf16.msra.mxu0 %v10571
    %11204 = vmatprep.subr.bf16.mxu0 %v10564
    %11205 = vmatpush2.bf16.msra.mxu0 %v10563
    %11206 = vmatprep.subr.bf16.mxu0 %v10556
    %11207 = vmatpush2.bf16.msra.mxu0 %v10555
    %11208 = vmatprep.subr.bf16.mxu0 %v10548
    %11209 = vmatpush2.bf16.msra.mxu0 %v10547
    %11210 = vmatprep.subr.bf16.mxu0 %v10540
    %11211 = vmatpush2.bf16.msra.mxu0 %v10539
    %11212 = vmatprep.subr.bf16.mxu0 %v10532
    %11213 = vmatpush2.bf16.msra.mxu0 %v10531
    %11214 = vmatprep.mubr.bf16.mxu0 %v5870
    %11215 = vmatmul.mubr.bf16.gmra.mxu0 %v5869
    %v11216 = vpop.f32.mrf.mxu0
    %v11217 = vadd.f32 %v11176, %v11216
    %v11218 = vpop.f32.mrf.mxu0
    %v11219 = vadd.f32 %v11178, %v11218
    %v11220 = vpop.f32.mrf.mxu0
    %v11221 = vpop.f32.mrf.mxu0
    %11222 = vdwg.mxu0
    %11223 = vmatprep.subr.bf16.mxu0 %v10270
    %11224 = vmatpush1.bf16.msra.mxu0 %v10269
    %11225 = vmatprep.subr.bf16.mxu0 %v10262
    %11226 = vmatpush1.bf16.msra.mxu0 %v10261
    %11227 = vmatprep.subr.bf16.mxu0 %v10254
    %11228 = vmatpush1.bf16.msra.mxu0 %v10253
    %11229 = vmatprep.subr.bf16.mxu0 %v10246
    %11230 = vmatpush1.bf16.msra.mxu0 %v10245
    %11231 = vmatprep.subr.bf16.mxu0 %v10238
    %11232 = vmatpush1.bf16.msra.mxu0 %v10237
    %11233 = vmatprep.subr.bf16.mxu0 %v10230
    %11234 = vmatpush1.bf16.msra.mxu0 %v10229
    %11235 = vmatprep.subr.bf16.mxu0 %v10222
    %11236 = vmatpush1.bf16.msra.mxu0 %v10221
    %11237 = vmatprep.subr.bf16.mxu0 %v10214
    %11238 = vmatpush1.bf16.msra.mxu0 %v10213
    %11239 = vmatprep.subr.bf16.mxu0 %v10334
    %11240 = vmatpush2.bf16.msra.mxu0 %v10333
    %11241 = vmatprep.subr.bf16.mxu0 %v10326
    %11242 = vmatpush2.bf16.msra.mxu0 %v10325
    %11243 = vmatprep.subr.bf16.mxu0 %v10318
    %11244 = vmatpush2.bf16.msra.mxu0 %v10317
    %11245 = vmatprep.subr.bf16.mxu0 %v10310
    %11246 = vmatpush2.bf16.msra.mxu0 %v10309
    %11247 = vmatprep.subr.bf16.mxu0 %v10302
    %11248 = vmatpush2.bf16.msra.mxu0 %v10301
    %11249 = vmatprep.subr.bf16.mxu0 %v10294
    %11250 = vmatpush2.bf16.msra.mxu0 %v10293
    %11251 = vmatprep.subr.bf16.mxu0 %v10286
    %11252 = vmatpush2.bf16.msra.mxu0 %v10285
    %11253 = vmatprep.subr.bf16.mxu0 %v10278
    %11254 = vmatpush2.bf16.msra.mxu0 %v10277
    %11255 = vmatprep.mubr.bf16.mxu0 %v5866
    %11256 = vmatmul.mubr.bf16.gmra.mxu0 %v5865
    %v11257 = vpop.f32.mrf.mxu0
    %v11258 = vadd.f32 %v8928, %v11257
    %v11259 = vpop.f32.mrf.mxu0
    %v11260 = vadd.f32 %v8930, %v11259
    %v11261 = vpop.f32.mrf.mxu0
    %v11262 = vpop.f32.mrf.mxu0
    %11263 = vdwg.mxu0
    %11264 = vmatprep.subr.bf16.mxu0 %v10398
    %11265 = vmatpush1.bf16.msra.mxu0 %v10397
    %11266 = vmatprep.subr.bf16.mxu0 %v10390
    %11267 = vmatpush1.bf16.msra.mxu0 %v10389
    %11268 = vmatprep.subr.bf16.mxu0 %v10382
    %11269 = vmatpush1.bf16.msra.mxu0 %v10381
    %11270 = vmatprep.subr.bf16.mxu0 %v10374
    %11271 = vmatpush1.bf16.msra.mxu0 %v10373
    %11272 = vmatprep.subr.bf16.mxu0 %v10366
    %11273 = vmatpush1.bf16.msra.mxu0 %v10365
    %11274 = vmatprep.subr.bf16.mxu0 %v10358
    %11275 = vmatpush1.bf16.msra.mxu0 %v10357
    %11276 = vmatprep.subr.bf16.mxu0 %v10350
    %11277 = vmatpush1.bf16.msra.mxu0 %v10349
    %11278 = vmatprep.subr.bf16.mxu0 %v10342
    %11279 = vmatpush1.bf16.msra.mxu0 %v10341
    %11280 = vmatprep.subr.bf16.mxu0 %v10462
    %11281 = vmatpush2.bf16.msra.mxu0 %v10461
    %11282 = vmatprep.subr.bf16.mxu0 %v10454
    %11283 = vmatpush2.bf16.msra.mxu0 %v10453
    %11284 = vmatprep.subr.bf16.mxu0 %v10446
    %11285 = vmatpush2.bf16.msra.mxu0 %v10445
    %11286 = vmatprep.subr.bf16.mxu0 %v10438
    %11287 = vmatpush2.bf16.msra.mxu0 %v10437
    %11288 = vmatprep.subr.bf16.mxu0 %v10430
    %11289 = vmatpush2.bf16.msra.mxu0 %v10429
    %11290 = vmatprep.subr.bf16.mxu0 %v10422
    %11291 = vmatpush2.bf16.msra.mxu0 %v10421
    %11292 = vmatprep.subr.bf16.mxu0 %v10414
    %11293 = vmatpush2.bf16.msra.mxu0 %v10413
    %11294 = vmatprep.subr.bf16.mxu0 %v10406
    %11295 = vmatpush2.bf16.msra.mxu0 %v10405
    %11296 = vmatprep.mubr.bf16.mxu0 %v5868
    %11297 = vmatmul.mubr.bf16.gmra.mxu0 %v5867
    %v11298 = vpop.f32.mrf.mxu0
    %v11299 = vadd.f32 %v11258, %v11298
    %v11300 = vpop.f32.mrf.mxu0
    %v11301 = vadd.f32 %v11260, %v11300
    %v11302 = vpop.f32.mrf.mxu0
    %v11303 = vpop.f32.mrf.mxu0
    %11304 = vdwg.mxu0
    %11305 = vmatprep.subr.bf16.mxu0 %v10526
    %11306 = vmatpush1.bf16.msra.mxu0 %v10525
    %11307 = vmatprep.subr.bf16.mxu0 %v10518
    %11308 = vmatpush1.bf16.msra.mxu0 %v10517
    %11309 = vmatprep.subr.bf16.mxu0 %v10510
    %11310 = vmatpush1.bf16.msra.mxu0 %v10509
    %11311 = vmatprep.subr.bf16.mxu0 %v10502
    %11312 = vmatpush1.bf16.msra.mxu0 %v10501
    %11313 = vmatprep.subr.bf16.mxu0 %v10494
    %11314 = vmatpush1.bf16.msra.mxu0 %v10493
    %11315 = vmatprep.subr.bf16.mxu0 %v10486
    %11316 = vmatpush1.bf16.msra.mxu0 %v10485
    %11317 = vmatprep.subr.bf16.mxu0 %v10478
    %11318 = vmatpush1.bf16.msra.mxu0 %v10477
    %11319 = vmatprep.subr.bf16.mxu0 %v10470
    %11320 = vmatpush1.bf16.msra.mxu0 %v10469
    %11321 = vmatprep.subr.bf16.mxu0 %v10590
    %11322 = vmatpush2.bf16.msra.mxu0 %v10589
    %11323 = vmatprep.subr.bf16.mxu0 %v10582
    %11324 = vmatpush2.bf16.msra.mxu0 %v10581
    %11325 = vmatprep.subr.bf16.mxu0 %v10574
    %11326 = vmatpush2.bf16.msra.mxu0 %v10573
    %11327 = vmatprep.subr.bf16.mxu0 %v10566
    %11328 = vmatpush2.bf16.msra.mxu0 %v10565
    %11329 = vmatprep.subr.bf16.mxu0 %v10558
    %11330 = vmatpush2.bf16.msra.mxu0 %v10557
    %11331 = vmatprep.subr.bf16.mxu0 %v10550
    %11332 = vmatpush2.bf16.msra.mxu0 %v10549
    %11333 = vmatprep.subr.bf16.mxu0 %v10542
    %11334 = vmatpush2.bf16.msra.mxu0 %v10541
    %11335 = vmatprep.subr.bf16.mxu0 %v10534
    %11336 = vmatpush2.bf16.msra.mxu0 %v10533
    %11337 = vmatprep.mubr.bf16.mxu0 %v5870
    %11338 = vmatmul.mubr.bf16.gmra.mxu0 %v5869
    %v11339 = vpop.f32.mrf.mxu0
    %v11340 = vadd.f32 %v11299, %v11339
    %v11341 = vpop.f32.mrf.mxu0
    %v11342 = vadd.f32 %v11301, %v11341
    %v11343 = vpop.f32.mrf.mxu0
    %v11344 = vpop.f32.mrf.mxu0
    %11345 = vdwg.mxu0
    %11346 = vmatprep.subr.bf16.mxu0 %v10272
    %11347 = vmatpush1.bf16.msra.mxu0 %v10271
    %11348 = vmatprep.subr.bf16.mxu0 %v10264
    %11349 = vmatpush1.bf16.msra.mxu0 %v10263
    %11350 = vmatprep.subr.bf16.mxu0 %v10256
    %11351 = vmatpush1.bf16.msra.mxu0 %v10255
    %11352 = vmatprep.subr.bf16.mxu0 %v10248
    %11353 = vmatpush1.bf16.msra.mxu0 %v10247
    %11354 = vmatprep.subr.bf16.mxu0 %v10240
    %11355 = vmatpush1.bf16.msra.mxu0 %v10239
    %11356 = vmatprep.subr.bf16.mxu0 %v10232
    %11357 = vmatpush1.bf16.msra.mxu0 %v10231
    %11358 = vmatprep.subr.bf16.mxu0 %v10224
    %11359 = vmatpush1.bf16.msra.mxu0 %v10223
    %11360 = vmatprep.subr.bf16.mxu0 %v10216
    %11361 = vmatpush1.bf16.msra.mxu0 %v10215
    %11362 = vmatprep.subr.bf16.mxu0 %v10336
    %11363 = vmatpush2.bf16.msra.mxu0 %v10335
    %11364 = vmatprep.subr.bf16.mxu0 %v10328
    %11365 = vmatpush2.bf16.msra.mxu0 %v10327
    %11366 = vmatprep.subr.bf16.mxu0 %v10320
    %11367 = vmatpush2.bf16.msra.mxu0 %v10319
    %11368 = vmatprep.subr.bf16.mxu0 %v10312
    %11369 = vmatpush2.bf16.msra.mxu0 %v10311
    %11370 = vmatprep.subr.bf16.mxu0 %v10304
    %11371 = vmatpush2.bf16.msra.mxu0 %v10303
    %11372 = vmatprep.subr.bf16.mxu0 %v10296
    %11373 = vmatpush2.bf16.msra.mxu0 %v10295
    %11374 = vmatprep.subr.bf16.mxu0 %v10288
    %11375 = vmatpush2.bf16.msra.mxu0 %v10287
    %11376 = vmatprep.subr.bf16.mxu0 %v10280
    %11377 = vmatpush2.bf16.msra.mxu0 %v10279
    %11378 = vmatprep.mubr.bf16.mxu0 %v5866
    %11379 = vmatmul.mubr.bf16.gmra.mxu0 %v5865
    %v11380 = vpop.f32.mrf.mxu0
    %v11381 = vadd.f32 %v9051, %v11380
    %v11382 = vpop.f32.mrf.mxu0
    %v11383 = vadd.f32 %v9053, %v11382
    %v11384 = vpop.f32.mrf.mxu0
    %v11385 = vpop.f32.mrf.mxu0
    %11386 = vdwg.mxu0
    %11387 = vmatprep.subr.bf16.mxu0 %v10400
    %11388 = vmatpush1.bf16.msra.mxu0 %v10399
    %11389 = vmatprep.subr.bf16.mxu0 %v10392
    %11390 = vmatpush1.bf16.msra.mxu0 %v10391
    %11391 = vmatprep.subr.bf16.mxu0 %v10384
    %11392 = vmatpush1.bf16.msra.mxu0 %v10383
    %11393 = vmatprep.subr.bf16.mxu0 %v10376
    %11394 = vmatpush1.bf16.msra.mxu0 %v10375
    %11395 = vmatprep.subr.bf16.mxu0 %v10368
    %11396 = vmatpush1.bf16.msra.mxu0 %v10367
    %11397 = vmatprep.subr.bf16.mxu0 %v10360
    %11398 = vmatpush1.bf16.msra.mxu0 %v10359
    %11399 = vmatprep.subr.bf16.mxu0 %v10352
    %11400 = vmatpush1.bf16.msra.mxu0 %v10351
    %11401 = vmatprep.subr.bf16.mxu0 %v10344
    %11402 = vmatpush1.bf16.msra.mxu0 %v10343
    %11403 = vmatprep.subr.bf16.mxu0 %v10464
    %11404 = vmatpush2.bf16.msra.mxu0 %v10463
    %11405 = vmatprep.subr.bf16.mxu0 %v10456
    %11406 = vmatpush2.bf16.msra.mxu0 %v10455
    %11407 = vmatprep.subr.bf16.mxu0 %v10448
    %11408 = vmatpush2.bf16.msra.mxu0 %v10447
    %11409 = vmatprep.subr.bf16.mxu0 %v10440
    %11410 = vmatpush2.bf16.msra.mxu0 %v10439
    %11411 = vmatprep.subr.bf16.mxu0 %v10432
    %11412 = vmatpush2.bf16.msra.mxu0 %v10431
    %11413 = vmatprep.subr.bf16.mxu0 %v10424
    %11414 = vmatpush2.bf16.msra.mxu0 %v10423
    %11415 = vmatprep.subr.bf16.mxu0 %v10416
    %11416 = vmatpush2.bf16.msra.mxu0 %v10415
    %11417 = vmatprep.subr.bf16.mxu0 %v10408
    %11418 = vmatpush2.bf16.msra.mxu0 %v10407
    %11419 = vmatprep.mubr.bf16.mxu0 %v5868
    %11420 = vmatmul.mubr.bf16.gmra.mxu0 %v5867
    %v11421 = vpop.f32.mrf.mxu0
    %v11422 = vadd.f32 %v11381, %v11421
    %v11423 = vpop.f32.mrf.mxu0
    %v11424 = vadd.f32 %v11383, %v11423
    %v11425 = vpop.f32.mrf.mxu0
    %v11426 = vpop.f32.mrf.mxu0
    %11427 = vdwg.mxu0
    %11428 = vmatprep.subr.bf16.mxu0 %v10528
    %11429 = vmatpush1.bf16.msra.mxu0 %v10527
    %11430 = vmatprep.subr.bf16.mxu0 %v10520
    %11431 = vmatpush1.bf16.msra.mxu0 %v10519
    %11432 = vmatprep.subr.bf16.mxu0 %v10512
    %11433 = vmatpush1.bf16.msra.mxu0 %v10511
    %11434 = vmatprep.subr.bf16.mxu0 %v10504
    %11435 = vmatpush1.bf16.msra.mxu0 %v10503
    %11436 = vmatprep.subr.bf16.mxu0 %v10496
    %11437 = vmatpush1.bf16.msra.mxu0 %v10495
    %11438 = vmatprep.subr.bf16.mxu0 %v10488
    %11439 = vmatpush1.bf16.msra.mxu0 %v10487
    %11440 = vmatprep.subr.bf16.mxu0 %v10480
    %11441 = vmatpush1.bf16.msra.mxu0 %v10479
    %11442 = vmatprep.subr.bf16.mxu0 %v10472
    %11443 = vmatpush1.bf16.msra.mxu0 %v10471
    %11444 = vmatprep.subr.bf16.mxu0 %v10592
    %11445 = vmatpush2.bf16.msra.mxu0 %v10591
    %11446 = vmatprep.subr.bf16.mxu0 %v10584
    %11447 = vmatpush2.bf16.msra.mxu0 %v10583
    %11448 = vmatprep.subr.bf16.mxu0 %v10576
    %11449 = vmatpush2.bf16.msra.mxu0 %v10575
    %11450 = vmatprep.subr.bf16.mxu0 %v10568
    %11451 = vmatpush2.bf16.msra.mxu0 %v10567
    %11452 = vmatprep.subr.bf16.mxu0 %v10560
    %11453 = vmatpush2.bf16.msra.mxu0 %v10559
    %11454 = vmatprep.subr.bf16.mxu0 %v10552
    %11455 = vmatpush2.bf16.msra.mxu0 %v10551
    %11456 = vmatprep.subr.bf16.mxu0 %v10544
    %11457 = vmatpush2.bf16.msra.mxu0 %v10543
    %11458 = vmatprep.subr.bf16.mxu0 %v10536
    %11459 = vmatpush2.bf16.msra.mxu0 %v10535
    %11460 = vmatprep.mubr.bf16.mxu0 %v5870
    %11461 = vmatmul.mubr.bf16.gmra.mxu0 %v5869
    %v11462 = vpop.f32.mrf.mxu0
    %v11463 = vadd.f32 %v11422, %v11462
    %v11464 = vpop.f32.mrf.mxu0
    %v11465 = vadd.f32 %v11424, %v11464
    %v11466 = vpop.f32.mrf.mxu0
    %v11467 = vpop.f32.mrf.mxu0
    %11468 = vdwg.mxu0
    %v11469 = vld [vmem:[#allocation16] sm:$0xff]
    %v11471 = vlaneseq
    %v11472 = vshrl.u32 %v11471, 7
    %v11473 = vsub.s32 0, %v11472
    %v11474 = vrot.slane %v11469, %v11473
    %v11475 = vlaneseq
    %v11476 = vshrl.u32 %v11475, 7
    %v11477 = vsub.s32 1, %v11476
    %v11478 = vrot.slane %v11469, %v11477
    %v11479 = vlaneseq
    %v11480 = vshrl.u32 %v11479, 7
    %v11481 = vsub.s32 2, %v11480
    %v11482 = vrot.slane %v11469, %v11481
    %v11483 = vlaneseq
    %v11484 = vshrl.u32 %v11483, 7
    %v11485 = vsub.s32 3, %v11484
    %v11486 = vrot.slane %v11469, %v11485
    %v11487 = vlaneseq
    %v11488 = vshrl.u32 %v11487, 7
    %v11489 = vsub.s32 4, %v11488
    %v11490 = vrot.slane %v11469, %v11489
    %v11491 = vlaneseq
    %v11492 = vshrl.u32 %v11491, 7
    %v11493 = vsub.s32 5, %v11492
    %v11494 = vrot.slane %v11469, %v11493
    %v11495 = vlaneseq
    %v11496 = vshrl.u32 %v11495, 7
    %v11497 = vsub.s32 6, %v11496
    %v11498 = vrot.slane %v11469, %v11497
    %v11499 = vlaneseq
    %v11500 = vshrl.u32 %v11499, 7
    %v11501 = vsub.s32 7, %v11500
    %v11502 = vrot.slane %v11469, %v11501
    %v11511 = vadd.f32 %v11094, %v11474
    %v11512 = vadd.f32 %v11096, %v11478
    %v11513 = vadd.f32 %v11217, %v11482
    %v11514 = vadd.f32 %v11219, %v11486
    %v11515 = vadd.f32 %v11340, %v11490
    %v11516 = vadd.f32 %v11342, %v11494
    %v11517 = vadd.f32 %v11463, %v11498
    %v11518 = vadd.f32 %v11465, %v11502
    %v11519 = vmax.f32 %v11511, 0.0
    %v11520 = vmax.f32 %v11512, 0.0
    %v11521 = vmax.f32 %v11513, 0.0
    %v11522 = vmax.f32 %v11514, 0.0
    %v11523 = vmax.f32 %v11515, 0.0
    %v11524 = vmax.f32 %v11516, 0.0
    %v11525 = vmax.f32 %v11517, 0.0
    %v11526 = vmax.f32 %v11518, 0.0
    %v11527 = vpack.c.bf16 %v11519, %v11519
    %v11528 = vpack.c.bf16 %v11520, %v11520
    %v11529 = vpack.c.bf16 %v11521, %v11521
    %v11530 = vpack.c.bf16 %v11522, %v11522
    %v11531 = vpack.c.bf16 %v11523, %v11523
    %v11532 = vpack.c.bf16 %v11524, %v11524
    %v11533 = vpack.c.bf16 %v11525, %v11525
    %v11534 = vpack.c.bf16 %v11526, %v11526
    %v11535 = vld [vmem:[#allocation17] sm:$0xf]
    %v11536 = vld [vmem:[#allocation17 + $0x4] sm:$0xf]
    %v11537 = vld [vmem:[#allocation17 + $0x8] sm:$0xf]
    %v11538 = vld [vmem:[#allocation17 + $0xc] sm:$0xf]
    %v11539 = vld [vmem:[#allocation17 + $0x10] sm:$0xf]
    %v11540 = vld [vmem:[#allocation17 + $0x14] sm:$0xf]
    %v11541 = vld [vmem:[#allocation17 + $0x18] sm:$0xf]
    %v11542 = vld [vmem:[#allocation17 + $0x1c] sm:$0xf]
    %v11543 = vld [vmem:[#allocation17 + $0x20] sm:$0xf]
    %v11544 = vld [vmem:[#allocation17 + $0x24] sm:$0xf]
    %v11545 = vld [vmem:[#allocation17 + $0x28] sm:$0xf]
    %v11546 = vld [vmem:[#allocation17 + $0x2c] sm:$0xf]
    %v11547 = vld [vmem:[#allocation17 + $0x30] sm:$0xf]
    %v11548 = vld [vmem:[#allocation17 + $0x34] sm:$0xf]
    %v11549 = vld [vmem:[#allocation17 + $0x38] sm:$0xf]
    %v11550 = vld [vmem:[#allocation17 + $0x3c] sm:$0xf]
    %v11551 = vld [vmem:[#allocation17 + $0x40] sm:$0xf]
    %v11552 = vld [vmem:[#allocation17 + $0x44] sm:$0xf]
    %v11553 = vld [vmem:[#allocation17 + $0x48] sm:$0xf]
    %v11554 = vld [vmem:[#allocation17 + $0x4c] sm:$0xf]
    %v11555 = vld [vmem:[#allocation17 + $0x50] sm:$0xf]
    %v11556 = vld [vmem:[#allocation17 + $0x54] sm:$0xf]
    %v11557 = vld [vmem:[#allocation17 + $0x58] sm:$0xf]
    %v11558 = vld [vmem:[#allocation17 + $0x5c] sm:$0xf]
    %v11559 = vld [vmem:[#allocation17 + $0x60] sm:$0xf]
    %v11560 = vld [vmem:[#allocation17 + $0x64] sm:$0xf]
    %v11561 = vld [vmem:[#allocation17 + $0x68] sm:$0xf]
    %v11562 = vld [vmem:[#allocation17 + $0x6c] sm:$0xf]
    %v11563 = vld [vmem:[#allocation17 + $0x70] sm:$0xf]
    %v11564 = vld [vmem:[#allocation17 + $0x74] sm:$0xf]
    %v11565 = vld [vmem:[#allocation17 + $0x78] sm:$0xf]
    %v11566 = vld [vmem:[#allocation17 + $0x7c] sm:$0xf]
    %v11567 = vld [vmem:[#allocation17 + $0x80] sm:$0xf]
    %v11568 = vld [vmem:[#allocation17 + $0x84] sm:$0xf]
    %v11569 = vld [vmem:[#allocation17 + $0x88] sm:$0xf]
    %v11570 = vld [vmem:[#allocation17 + $0x8c] sm:$0xf]
    %v11571 = vld [vmem:[#allocation17 + $0x90] sm:$0xf]
    %v11572 = vld [vmem:[#allocation17 + $0x94] sm:$0xf]
    %v11573 = vld [vmem:[#allocation17 + $0x98] sm:$0xf]
    %v11574 = vld [vmem:[#allocation17 + $0x9c] sm:$0xf]
    %v11575 = vld [vmem:[#allocation17 + $0xa0] sm:$0xf]
    %v11576 = vld [vmem:[#allocation17 + $0xa4] sm:$0xf]
    %v11577 = vld [vmem:[#allocation17 + $0xa8] sm:$0xf]
    %v11578 = vld [vmem:[#allocation17 + $0xac] sm:$0xf]
    %v11579 = vld [vmem:[#allocation17 + $0xb0] sm:$0xf]
    %v11580 = vld [vmem:[#allocation17 + $0xb4] sm:$0xf]
    %v11581 = vld [vmem:[#allocation17 + $0xb8] sm:$0xf]
    %v11582 = vld [vmem:[#allocation17 + $0xbc] sm:$0xf]
    %v11583 = vld [vmem:[#allocation17 + $0xc0] sm:$0xf]
    %v11584 = vld [vmem:[#allocation17 + $0xc4] sm:$0xf]
    %v11585 = vld [vmem:[#allocation17 + $0xc8] sm:$0xf]
    %v11586 = vld [vmem:[#allocation17 + $0xcc] sm:$0xf]
    %v11587 = vld [vmem:[#allocation17 + $0xd0] sm:$0xf]
    %v11588 = vld [vmem:[#allocation17 + $0xd4] sm:$0xf]
    %v11589 = vld [vmem:[#allocation17 + $0xd8] sm:$0xf]
    %v11590 = vld [vmem:[#allocation17 + $0xdc] sm:$0xf]
    %v11591 = vld [vmem:[#allocation17 + $0xe0] sm:$0xf]
    %v11592 = vld [vmem:[#allocation17 + $0xe4] sm:$0xf]
    %v11593 = vld [vmem:[#allocation17 + $0xe8] sm:$0xf]
    %v11594 = vld [vmem:[#allocation17 + $0xec] sm:$0xf]
    %v11595 = vld [vmem:[#allocation17 + $0xf0] sm:$0xf]
    %v11596 = vld [vmem:[#allocation17 + $0xf4] sm:$0xf]
    %v11597 = vld [vmem:[#allocation17 + $0xf8] sm:$0xf]
    %v11598 = vld [vmem:[#allocation17 + $0xfc] sm:$0xf]
    %v11599 = vld [vmem:[#allocation17 + $0x100] sm:$0xf]
    %v11600 = vld [vmem:[#allocation17 + $0x104] sm:$0xf]
    %v11601 = vld [vmem:[#allocation17 + $0x108] sm:$0xf]
    %v11602 = vld [vmem:[#allocation17 + $0x10c] sm:$0xf]
    %v11603 = vld [vmem:[#allocation17 + $0x110] sm:$0xf]
    %v11604 = vld [vmem:[#allocation17 + $0x114] sm:$0xf]
    %v11605 = vld [vmem:[#allocation17 + $0x118] sm:$0xf]
    %v11606 = vld [vmem:[#allocation17 + $0x11c] sm:$0xf]
    %v11607 = vld [vmem:[#allocation17 + $0x120] sm:$0xf]
    %v11608 = vld [vmem:[#allocation17 + $0x124] sm:$0xf]
    %v11609 = vld [vmem:[#allocation17 + $0x128] sm:$0xf]
    %v11610 = vld [vmem:[#allocation17 + $0x12c] sm:$0xf]
    %v11611 = vld [vmem:[#allocation17 + $0x130] sm:$0xf]
    %v11612 = vld [vmem:[#allocation17 + $0x134] sm:$0xf]
    %v11613 = vld [vmem:[#allocation17 + $0x138] sm:$0xf]
    %v11614 = vld [vmem:[#allocation17 + $0x13c] sm:$0xf]
    %v11615 = vld [vmem:[#allocation17 + $0x140] sm:$0xf]
    %v11616 = vld [vmem:[#allocation17 + $0x144] sm:$0xf]
    %v11617 = vld [vmem:[#allocation17 + $0x148] sm:$0xf]
    %v11618 = vld [vmem:[#allocation17 + $0x14c] sm:$0xf]
    %v11619 = vld [vmem:[#allocation17 + $0x150] sm:$0xf]
    %v11620 = vld [vmem:[#allocation17 + $0x154] sm:$0xf]
    %v11621 = vld [vmem:[#allocation17 + $0x158] sm:$0xf]
    %v11622 = vld [vmem:[#allocation17 + $0x15c] sm:$0xf]
    %v11623 = vld [vmem:[#allocation17 + $0x160] sm:$0xf]
    %v11624 = vld [vmem:[#allocation17 + $0x164] sm:$0xf]
    %v11625 = vld [vmem:[#allocation17 + $0x168] sm:$0xf]
    %v11626 = vld [vmem:[#allocation17 + $0x16c] sm:$0xf]
    %v11627 = vld [vmem:[#allocation17 + $0x170] sm:$0xf]
    %v11628 = vld [vmem:[#allocation17 + $0x174] sm:$0xf]
    %v11629 = vld [vmem:[#allocation17 + $0x178] sm:$0xf]
    %v11630 = vld [vmem:[#allocation17 + $0x17c] sm:$0xf]
    %v11631 = vld [vmem:[#allocation17 + $0x180] sm:$0xf]
    %v11632 = vld [vmem:[#allocation17 + $0x184] sm:$0xf]
    %v11633 = vld [vmem:[#allocation17 + $0x188] sm:$0xf]
    %v11634 = vld [vmem:[#allocation17 + $0x18c] sm:$0xf]
    %v11635 = vld [vmem:[#allocation17 + $0x190] sm:$0xf]
    %v11636 = vld [vmem:[#allocation17 + $0x194] sm:$0xf]
    %v11637 = vld [vmem:[#allocation17 + $0x198] sm:$0xf]
    %v11638 = vld [vmem:[#allocation17 + $0x19c] sm:$0xf]
    %v11639 = vld [vmem:[#allocation17 + $0x1a0] sm:$0xf]
    %v11640 = vld [vmem:[#allocation17 + $0x1a4] sm:$0xf]
    %v11641 = vld [vmem:[#allocation17 + $0x1a8] sm:$0xf]
    %v11642 = vld [vmem:[#allocation17 + $0x1ac] sm:$0xf]
    %v11643 = vld [vmem:[#allocation17 + $0x1b0] sm:$0xf]
    %v11644 = vld [vmem:[#allocation17 + $0x1b4] sm:$0xf]
    %v11645 = vld [vmem:[#allocation17 + $0x1b8] sm:$0xf]
    %v11646 = vld [vmem:[#allocation17 + $0x1bc] sm:$0xf]
    %v11647 = vld [vmem:[#allocation17 + $0x1c0] sm:$0xf]
    %v11648 = vld [vmem:[#allocation17 + $0x1c4] sm:$0xf]
    %v11649 = vld [vmem:[#allocation17 + $0x1c8] sm:$0xf]
    %v11650 = vld [vmem:[#allocation17 + $0x1cc] sm:$0xf]
    %v11651 = vld [vmem:[#allocation17 + $0x1d0] sm:$0xf]
    %v11652 = vld [vmem:[#allocation17 + $0x1d4] sm:$0xf]
    %v11653 = vld [vmem:[#allocation17 + $0x1d8] sm:$0xf]
    %v11654 = vld [vmem:[#allocation17 + $0x1dc] sm:$0xf]
    %v11655 = vld [vmem:[#allocation17 + $0x1e0] sm:$0xf]
    %v11656 = vld [vmem:[#allocation17 + $0x1e4] sm:$0xf]
    %v11657 = vld [vmem:[#allocation17 + $0x1e8] sm:$0xf]
    %v11658 = vld [vmem:[#allocation17 + $0x1ec] sm:$0xf]
    %v11659 = vld [vmem:[#allocation17 + $0x1f0] sm:$0xf]
    %v11660 = vld [vmem:[#allocation17 + $0x1f4] sm:$0xf]
    %v11661 = vld [vmem:[#allocation17 + $0x1f8] sm:$0xf]
    %v11662 = vld [vmem:[#allocation17 + $0x1fc] sm:$0xf]
    %v11663 = vld [vmem:[#allocation19] sm:$0x1]
    %v11665 = vlaneseq
    %v11666 = vshrl.u32 %v11665, 7
    %v11667 = vsub.s32 0, %v11666
    %v11668 = vrot.slane %v11663, %v11667
    %v11798 = vunpack.c.l.b16 %v11535
    %v11799 = vunpack.c.l.b16 %v11536
    %v11800 = vunpack.c.l.b16 %v11537
    %v11801 = vunpack.c.l.b16 %v11538
    %v11802 = vunpack.c.l.b16 %v11539
    %v11803 = vunpack.c.l.b16 %v11540
    %v11804 = vunpack.c.l.b16 %v11541
    %v11805 = vunpack.c.l.b16 %v11542
    %v11806 = vunpack.c.l.b16 %v11543
    %v11807 = vunpack.c.l.b16 %v11544
    %v11808 = vunpack.c.l.b16 %v11545
    %v11809 = vunpack.c.l.b16 %v11546
    %v11810 = vunpack.c.l.b16 %v11547
    %v11811 = vunpack.c.l.b16 %v11548
    %v11812 = vunpack.c.l.b16 %v11549
    %v11813 = vunpack.c.l.b16 %v11550
    %v11814 = vunpack.c.l.b16 %v11551
    %v11815 = vunpack.c.l.b16 %v11552
    %v11816 = vunpack.c.l.b16 %v11553
    %v11817 = vunpack.c.l.b16 %v11554
    %v11818 = vunpack.c.l.b16 %v11555
    %v11819 = vunpack.c.l.b16 %v11556
    %v11820 = vunpack.c.l.b16 %v11557
    %v11821 = vunpack.c.l.b16 %v11558
    %v11822 = vunpack.c.l.b16 %v11559
    %v11823 = vunpack.c.l.b16 %v11560
    %v11824 = vunpack.c.l.b16 %v11561
    %v11825 = vunpack.c.l.b16 %v11562
    %v11826 = vunpack.c.l.b16 %v11563
    %v11827 = vunpack.c.l.b16 %v11564
    %v11828 = vunpack.c.l.b16 %v11565
    %v11829 = vunpack.c.l.b16 %v11566
    %v11830 = vunpack.c.l.b16 %v11567
    %v11831 = vunpack.c.l.b16 %v11568
    %v11832 = vunpack.c.l.b16 %v11569
    %v11833 = vunpack.c.l.b16 %v11570
    %v11834 = vunpack.c.l.b16 %v11571
    %v11835 = vunpack.c.l.b16 %v11572
    %v11836 = vunpack.c.l.b16 %v11573
    %v11837 = vunpack.c.l.b16 %v11574
    %v11838 = vunpack.c.l.b16 %v11575
    %v11839 = vunpack.c.l.b16 %v11576
    %v11840 = vunpack.c.l.b16 %v11577
    %v11841 = vunpack.c.l.b16 %v11578
    %v11842 = vunpack.c.l.b16 %v11579
    %v11843 = vunpack.c.l.b16 %v11580
    %v11844 = vunpack.c.l.b16 %v11581
    %v11845 = vunpack.c.l.b16 %v11582
    %v11846 = vunpack.c.l.b16 %v11583
    %v11847 = vunpack.c.l.b16 %v11584
    %v11848 = vunpack.c.l.b16 %v11585
    %v11849 = vunpack.c.l.b16 %v11586
    %v11850 = vunpack.c.l.b16 %v11587
    %v11851 = vunpack.c.l.b16 %v11588
    %v11852 = vunpack.c.l.b16 %v11589
    %v11853 = vunpack.c.l.b16 %v11590
    %v11854 = vunpack.c.l.b16 %v11591
    %v11855 = vunpack.c.l.b16 %v11592
    %v11856 = vunpack.c.l.b16 %v11593
    %v11857 = vunpack.c.l.b16 %v11594
    %v11858 = vunpack.c.l.b16 %v11595
    %v11859 = vunpack.c.l.b16 %v11596
    %v11860 = vunpack.c.l.b16 %v11597
    %v11861 = vunpack.c.l.b16 %v11598
    %v11862 = vunpack.c.l.b16 %v11599
    %v11863 = vunpack.c.l.b16 %v11600
    %v11864 = vunpack.c.l.b16 %v11601
    %v11865 = vunpack.c.l.b16 %v11602
    %v11866 = vunpack.c.l.b16 %v11603
    %v11867 = vunpack.c.l.b16 %v11604
    %v11868 = vunpack.c.l.b16 %v11605
    %v11869 = vunpack.c.l.b16 %v11606
    %v11870 = vunpack.c.l.b16 %v11607
    %v11871 = vunpack.c.l.b16 %v11608
    %v11872 = vunpack.c.l.b16 %v11609
    %v11873 = vunpack.c.l.b16 %v11610
    %v11874 = vunpack.c.l.b16 %v11611
    %v11875 = vunpack.c.l.b16 %v11612
    %v11876 = vunpack.c.l.b16 %v11613
    %v11877 = vunpack.c.l.b16 %v11614
    %v11878 = vunpack.c.l.b16 %v11615
    %v11879 = vunpack.c.l.b16 %v11616
    %v11880 = vunpack.c.l.b16 %v11617
    %v11881 = vunpack.c.l.b16 %v11618
    %v11882 = vunpack.c.l.b16 %v11619
    %v11883 = vunpack.c.l.b16 %v11620
    %v11884 = vunpack.c.l.b16 %v11621
    %v11885 = vunpack.c.l.b16 %v11622
    %v11886 = vunpack.c.l.b16 %v11623
    %v11887 = vunpack.c.l.b16 %v11624
    %v11888 = vunpack.c.l.b16 %v11625
    %v11889 = vunpack.c.l.b16 %v11626
    %v11890 = vunpack.c.l.b16 %v11627
    %v11891 = vunpack.c.l.b16 %v11628
    %v11892 = vunpack.c.l.b16 %v11629
    %v11893 = vunpack.c.l.b16 %v11630
    %v11894 = vunpack.c.l.b16 %v11631
    %v11895 = vunpack.c.l.b16 %v11632
    %v11896 = vunpack.c.l.b16 %v11633
    %v11897 = vunpack.c.l.b16 %v11634
    %v11898 = vunpack.c.l.b16 %v11635
    %v11899 = vunpack.c.l.b16 %v11636
    %v11900 = vunpack.c.l.b16 %v11637
    %v11901 = vunpack.c.l.b16 %v11638
    %v11902 = vunpack.c.l.b16 %v11639
    %v11903 = vunpack.c.l.b16 %v11640
    %v11904 = vunpack.c.l.b16 %v11641
    %v11905 = vunpack.c.l.b16 %v11642
    %v11906 = vunpack.c.l.b16 %v11643
    %v11907 = vunpack.c.l.b16 %v11644
    %v11908 = vunpack.c.l.b16 %v11645
    %v11909 = vunpack.c.l.b16 %v11646
    %v11910 = vunpack.c.l.b16 %v11647
    %v11911 = vunpack.c.l.b16 %v11648
    %v11912 = vunpack.c.l.b16 %v11649
    %v11913 = vunpack.c.l.b16 %v11650
    %v11914 = vunpack.c.l.b16 %v11651
    %v11915 = vunpack.c.l.b16 %v11652
    %v11916 = vunpack.c.l.b16 %v11653
    %v11917 = vunpack.c.l.b16 %v11654
    %v11918 = vunpack.c.l.b16 %v11655
    %v11919 = vunpack.c.l.b16 %v11656
    %v11920 = vunpack.c.l.b16 %v11657
    %v11921 = vunpack.c.l.b16 %v11658
    %v11922 = vunpack.c.l.b16 %v11659
    %v11923 = vunpack.c.l.b16 %v11660
    %v11924 = vunpack.c.l.b16 %v11661
    %v11925 = vunpack.c.l.b16 %v11662
    %v11926 = vpack.c.b16 %v11799, %v11798
    %v11927 = vpack.c.b16 %v11801, %v11800
    %v11928 = vpack.c.b16 %v11803, %v11802
    %v11929 = vpack.c.b16 %v11805, %v11804
    %v11930 = vpack.c.b16 %v11807, %v11806
    %v11931 = vpack.c.b16 %v11809, %v11808
    %v11932 = vpack.c.b16 %v11811, %v11810
    %v11933 = vpack.c.b16 %v11813, %v11812
    %v11934 = vpack.c.b16 %v11815, %v11814
    %v11935 = vpack.c.b16 %v11817, %v11816
    %v11936 = vpack.c.b16 %v11819, %v11818
    %v11937 = vpack.c.b16 %v11821, %v11820
    %v11938 = vpack.c.b16 %v11823, %v11822
    %v11939 = vpack.c.b16 %v11825, %v11824
    %v11940 = vpack.c.b16 %v11827, %v11826
    %v11941 = vpack.c.b16 %v11829, %v11828
    %v11942 = vpack.c.b16 %v11831, %v11830
    %v11943 = vpack.c.b16 %v11833, %v11832
    %v11944 = vpack.c.b16 %v11835, %v11834
    %v11945 = vpack.c.b16 %v11837, %v11836
    %v11946 = vpack.c.b16 %v11839, %v11838
    %v11947 = vpack.c.b16 %v11841, %v11840
    %v11948 = vpack.c.b16 %v11843, %v11842
    %v11949 = vpack.c.b16 %v11845, %v11844
    %v11950 = vpack.c.b16 %v11847, %v11846
    %v11951 = vpack.c.b16 %v11849, %v11848
    %v11952 = vpack.c.b16 %v11851, %v11850
    %v11953 = vpack.c.b16 %v11853, %v11852
    %v11954 = vpack.c.b16 %v11855, %v11854
    %v11955 = vpack.c.b16 %v11857, %v11856
    %v11956 = vpack.c.b16 %v11859, %v11858
    %v11957 = vpack.c.b16 %v11861, %v11860
    %v11958 = vpack.c.b16 %v11863, %v11862
    %v11959 = vpack.c.b16 %v11865, %v11864
    %v11960 = vpack.c.b16 %v11867, %v11866
    %v11961 = vpack.c.b16 %v11869, %v11868
    %v11962 = vpack.c.b16 %v11871, %v11870
    %v11963 = vpack.c.b16 %v11873, %v11872
    %v11964 = vpack.c.b16 %v11875, %v11874
    %v11965 = vpack.c.b16 %v11877, %v11876
    %v11966 = vpack.c.b16 %v11879, %v11878
    %v11967 = vpack.c.b16 %v11881, %v11880
    %v11968 = vpack.c.b16 %v11883, %v11882
    %v11969 = vpack.c.b16 %v11885, %v11884
    %v11970 = vpack.c.b16 %v11887, %v11886
    %v11971 = vpack.c.b16 %v11889, %v11888
    %v11972 = vpack.c.b16 %v11891, %v11890
    %v11973 = vpack.c.b16 %v11893, %v11892
    %v11974 = vpack.c.b16 %v11895, %v11894
    %v11975 = vpack.c.b16 %v11897, %v11896
    %v11976 = vpack.c.b16 %v11899, %v11898
    %v11977 = vpack.c.b16 %v11901, %v11900
    %v11978 = vpack.c.b16 %v11903, %v11902
    %v11979 = vpack.c.b16 %v11905, %v11904
    %v11980 = vpack.c.b16 %v11907, %v11906
    %v11981 = vpack.c.b16 %v11909, %v11908
    %v11982 = vpack.c.b16 %v11911, %v11910
    %v11983 = vpack.c.b16 %v11913, %v11912
    %v11984 = vpack.c.b16 %v11915, %v11914
    %v11985 = vpack.c.b16 %v11917, %v11916
    %v11986 = vpack.c.b16 %v11919, %v11918
    %v11987 = vpack.c.b16 %v11921, %v11920
    %v11988 = vpack.c.b16 %v11923, %v11922
    %v11989 = vpack.c.b16 %v11925, %v11924
    %12054 = vmatprep.subr.bf16.mxu0 0
    %12055 = vmatpush1.bf16.msra.mxu0 %v11933
    %12056 = vmatprep.subr.bf16.mxu0 0
    %12057 = vmatpush1.bf16.msra.mxu0 %v11932
    %12058 = vmatprep.subr.bf16.mxu0 0
    %12059 = vmatpush1.bf16.msra.mxu0 %v11931
    %12060 = vmatprep.subr.bf16.mxu0 0
    %12061 = vmatpush1.bf16.msra.mxu0 %v11930
    %12062 = vmatprep.subr.bf16.mxu0 0
    %12063 = vmatpush1.bf16.msra.mxu0 %v11929
    %12064 = vmatprep.subr.bf16.mxu0 0
    %12065 = vmatpush1.bf16.msra.mxu0 %v11928
    %12066 = vmatprep.subr.bf16.mxu0 0
    %12067 = vmatpush1.bf16.msra.mxu0 %v11927
    %12068 = vmatprep.subr.bf16.mxu0 0
    %12069 = vmatpush1.bf16.msra.mxu0 %v11926
    %12070 = vmatprep.subr.bf16.mxu0 0
    %12071 = vmatpush2.bf16.msra.mxu0 %v11941
    %12072 = vmatprep.subr.bf16.mxu0 0
    %12073 = vmatpush2.bf16.msra.mxu0 %v11940
    %12074 = vmatprep.subr.bf16.mxu0 0
    %12075 = vmatpush2.bf16.msra.mxu0 %v11939
    %12076 = vmatprep.subr.bf16.mxu0 0
    %12077 = vmatpush2.bf16.msra.mxu0 %v11938
    %12078 = vmatprep.subr.bf16.mxu0 0
    %12079 = vmatpush2.bf16.msra.mxu0 %v11937
    %12080 = vmatprep.subr.bf16.mxu0 0
    %12081 = vmatpush2.bf16.msra.mxu0 %v11936
    %12082 = vmatprep.subr.bf16.mxu0 0
    %12083 = vmatpush2.bf16.msra.mxu0 %v11935
    %12084 = vmatprep.subr.bf16.mxu0 0
    %12085 = vmatpush2.bf16.msra.mxu0 %v11934
    %12086 = vmatprep.mubr.bf16.mxu0 %v11528
    %12087 = vmatmul.mubr.bf16.gmra.mxu0 %v11527
    %v12088 = vpop.f32.mrf.mxu0
    %v12089 = vadd.f32 %v11668, %v12088
    %v12090 = vpop.f32.mrf.mxu0
    %v12091 = vpop.f32.mrf.mxu0
    %v12092 = vpop.f32.mrf.mxu0
    %12093 = vdwg.mxu0
    %12094 = vmatprep.subr.bf16.mxu0 0
    %12095 = vmatpush1.bf16.msra.mxu0 %v11949
    %12096 = vmatprep.subr.bf16.mxu0 0
    %12097 = vmatpush1.bf16.msra.mxu0 %v11948
    %12098 = vmatprep.subr.bf16.mxu0 0
    %12099 = vmatpush1.bf16.msra.mxu0 %v11947
    %12100 = vmatprep.subr.bf16.mxu0 0
    %12101 = vmatpush1.bf16.msra.mxu0 %v11946
    %12102 = vmatprep.subr.bf16.mxu0 0
    %12103 = vmatpush1.bf16.msra.mxu0 %v11945
    %12104 = vmatprep.subr.bf16.mxu0 0
    %12105 = vmatpush1.bf16.msra.mxu0 %v11944
    %12106 = vmatprep.subr.bf16.mxu0 0
    %12107 = vmatpush1.bf16.msra.mxu0 %v11943
    %12108 = vmatprep.subr.bf16.mxu0 0
    %12109 = vmatpush1.bf16.msra.mxu0 %v11942
    %12110 = vmatprep.subr.bf16.mxu0 0
    %12111 = vmatpush2.bf16.msra.mxu0 %v11957
    %12112 = vmatprep.subr.bf16.mxu0 0
    %12113 = vmatpush2.bf16.msra.mxu0 %v11956
    %12114 = vmatprep.subr.bf16.mxu0 0
    %12115 = vmatpush2.bf16.msra.mxu0 %v11955
    %12116 = vmatprep.subr.bf16.mxu0 0
    %12117 = vmatpush2.bf16.msra.mxu0 %v11954
    %12118 = vmatprep.subr.bf16.mxu0 0
    %12119 = vmatpush2.bf16.msra.mxu0 %v11953
    %12120 = vmatprep.subr.bf16.mxu0 0
    %12121 = vmatpush2.bf16.msra.mxu0 %v11952
    %12122 = vmatprep.subr.bf16.mxu0 0
    %12123 = vmatpush2.bf16.msra.mxu0 %v11951
    %12124 = vmatprep.subr.bf16.mxu0 0
    %12125 = vmatpush2.bf16.msra.mxu0 %v11950
    %12126 = vmatprep.mubr.bf16.mxu0 %v11530
    %12127 = vmatmul.mubr.bf16.gmra.mxu0 %v11529
    %v12128 = vpop.f32.mrf.mxu0
    %v12129 = vadd.f32 %v12089, %v12128
    %v12130 = vpop.f32.mrf.mxu0
    %v12131 = vpop.f32.mrf.mxu0
    %v12132 = vpop.f32.mrf.mxu0
    %12133 = vdwg.mxu0
    %12134 = vmatprep.subr.bf16.mxu0 0
    %12135 = vmatpush1.bf16.msra.mxu0 %v11965
    %12136 = vmatprep.subr.bf16.mxu0 0
    %12137 = vmatpush1.bf16.msra.mxu0 %v11964
    %12138 = vmatprep.subr.bf16.mxu0 0
    %12139 = vmatpush1.bf16.msra.mxu0 %v11963
    %12140 = vmatprep.subr.bf16.mxu0 0
    %12141 = vmatpush1.bf16.msra.mxu0 %v11962
    %12142 = vmatprep.subr.bf16.mxu0 0
    %12143 = vmatpush1.bf16.msra.mxu0 %v11961
    %12144 = vmatprep.subr.bf16.mxu0 0
    %12145 = vmatpush1.bf16.msra.mxu0 %v11960
    %12146 = vmatprep.subr.bf16.mxu0 0
    %12147 = vmatpush1.bf16.msra.mxu0 %v11959
    %12148 = vmatprep.subr.bf16.mxu0 0
    %12149 = vmatpush1.bf16.msra.mxu0 %v11958
    %12150 = vmatprep.subr.bf16.mxu0 0
    %12151 = vmatpush2.bf16.msra.mxu0 %v11973
    %12152 = vmatprep.subr.bf16.mxu0 0
    %12153 = vmatpush2.bf16.msra.mxu0 %v11972
    %12154 = vmatprep.subr.bf16.mxu0 0
    %12155 = vmatpush2.bf16.msra.mxu0 %v11971
    %12156 = vmatprep.subr.bf16.mxu0 0
    %12157 = vmatpush2.bf16.msra.mxu0 %v11970
    %12158 = vmatprep.subr.bf16.mxu0 0
    %12159 = vmatpush2.bf16.msra.mxu0 %v11969
    %12160 = vmatprep.subr.bf16.mxu0 0
    %12161 = vmatpush2.bf16.msra.mxu0 %v11968
    %12162 = vmatprep.subr.bf16.mxu0 0
    %12163 = vmatpush2.bf16.msra.mxu0 %v11967
    %12164 = vmatprep.subr.bf16.mxu0 0
    %12165 = vmatpush2.bf16.msra.mxu0 %v11966
    %12166 = vmatprep.mubr.bf16.mxu0 %v11532
    %12167 = vmatmul.mubr.bf16.gmra.mxu0 %v11531
    %v12168 = vpop.f32.mrf.mxu0
    %v12169 = vadd.f32 %v12129, %v12168
    %v12170 = vpop.f32.mrf.mxu0
    %v12171 = vpop.f32.mrf.mxu0
    %v12172 = vpop.f32.mrf.mxu0
    %12173 = vdwg.mxu0
    %12174 = vmatprep.subr.bf16.mxu0 0
    %12175 = vmatpush1.bf16.msra.mxu0 %v11981
    %12176 = vmatprep.subr.bf16.mxu0 0
    %12177 = vmatpush1.bf16.msra.mxu0 %v11980
    %12178 = vmatprep.subr.bf16.mxu0 0
    %12179 = vmatpush1.bf16.msra.mxu0 %v11979
    %12180 = vmatprep.subr.bf16.mxu0 0
    %12181 = vmatpush1.bf16.msra.mxu0 %v11978
    %12182 = vmatprep.subr.bf16.mxu0 0
    %12183 = vmatpush1.bf16.msra.mxu0 %v11977
    %12184 = vmatprep.subr.bf16.mxu0 0
    %12185 = vmatpush1.bf16.msra.mxu0 %v11976
    %12186 = vmatprep.subr.bf16.mxu0 0
    %12187 = vmatpush1.bf16.msra.mxu0 %v11975
    %12188 = vmatprep.subr.bf16.mxu0 0
    %12189 = vmatpush1.bf16.msra.mxu0 %v11974
    %12190 = vmatprep.subr.bf16.mxu0 0
    %12191 = vmatpush2.bf16.msra.mxu0 %v11989
    %12192 = vmatprep.subr.bf16.mxu0 0
    %12193 = vmatpush2.bf16.msra.mxu0 %v11988
    %12194 = vmatprep.subr.bf16.mxu0 0
    %12195 = vmatpush2.bf16.msra.mxu0 %v11987
    %12196 = vmatprep.subr.bf16.mxu0 0
    %12197 = vmatpush2.bf16.msra.mxu0 %v11986
    %12198 = vmatprep.subr.bf16.mxu0 0
    %12199 = vmatpush2.bf16.msra.mxu0 %v11985
    %12200 = vmatprep.subr.bf16.mxu0 0
    %12201 = vmatpush2.bf16.msra.mxu0 %v11984
    %12202 = vmatprep.subr.bf16.mxu0 0
    %12203 = vmatpush2.bf16.msra.mxu0 %v11983
    %12204 = vmatprep.subr.bf16.mxu0 0
    %12205 = vmatpush2.bf16.msra.mxu0 %v11982
    %12206 = vmatprep.mubr.bf16.mxu0 %v11534
    %12207 = vmatmul.mubr.bf16.gmra.mxu0 %v11533
    %v12208 = vpop.f32.mrf.mxu0
    %v12209 = vadd.f32 %v12169, %v12208
    %v12210 = vpop.f32.mrf.mxu0
    %v12211 = vpop.f32.mrf.mxu0
    %v12212 = vpop.f32.mrf.mxu0
    %12213 = vdwg.mxu0
    %12214 = vst [vmem:[#allocation20] sm:$0xff] %v12209
    // Predicated region
    $region90: #{tpu_custom_call.1} parent=1 // pred_check
      _
    $region91: #{tpu_custom_call.1} parent=1 // pred_check_branch
      %12216 = sbr.rel (0) target = $region93
    $region92: #{tpu_custom_call.1} parent=1 // pred_region
      %s12218 = ssub.s32 128, 128
      %12219 = vsyncadd [#allocation4], %s12218
      %s12221 = sshll.u32 [#allocation20], 4
      %s12222 = int_to_ptr.vmem [resolvable:$true] %s12221
      %12224 = dma.vmem_to_hbm [thread:$0]  %s12222, 128, %s11, [#allocation4]
    $region93: #{tpu_custom_call.1} parent=1 // pred_fallthru
      _
    // Predicated region
    $region94: #{tpu_custom_call.1} parent=1 // pred_check
      _
    $region95: #{tpu_custom_call.1} parent=1 // pred_check_branch
      %12226 = sbr.rel (0) target = $region97
    $region96: #{tpu_custom_call.1} parent=1 // pred_region
      %12227 = dma.done [#allocation4], 128
    $region97: #{tpu_custom_call.1} parent=1 // pred_fallthru
      _
    %12228 = vsyncpa [#allocation3], 1
    %12229 = vsyncpa [#allocation6], 1
    %12230 = vsyncpa [#allocation9], 1
    %12231 = vsyncpa [#allocation12], 1
    %12232 = vsyncpa [#allocation15], 1
    %12233 = vsyncpa [#allocation18], 1
    %12234 = vsyncpa [#allocation4], 1

</llo_original>
